<compile_context>
chip_gen: v7x
topology: tpu7x:2x2x1
jax: 0.10.0
libtpu: 0.0.40
codegen_flags: <defaults>
</compile_context>

<pallas_src>
import math

import jax
import jax.numpy as jnp
from jax.experimental import pallas as pl
from jax.experimental.pallas import tpu as pltpu

# ----------------------------- model hyper-parameters -----------------------------
B = 2        # batch
L = 8        # target sequence length
LS = 10      # source (encoder) sequence length
E = 16       # embedding size
H = 32       # hidden size
NH = 4       # num heads
KD = 32      # total key depth
VD = 32      # total value depth
FF = 64      # filter size
NL = 2       # num layers
EPS = 1e-6
NEG = -1e18

QKV = KD + KD + VD          # fused q|k|v width (self-attention)
KVC = KD + VD               # fused k|v width per layer (cross-attention)
OUT_W = 128                 # lane-dense packed output width (y | attn | zero pad)
DK = KD // NH
DV = VD // NH
BH = B * NH                 # combined batch*heads attention batch


# --------------------------------- helpers (traced) --------------------------------
def _layer_norm(z, g, b):
    # matches the custom LayerNorm: (z - mean) / (std_unbiased + eps) * gamma + beta
    mu = jnp.mean(z, axis=-1, keepdims=True)
    var = jnp.sum((z - mu) ** 2, axis=-1, keepdims=True) / (z.shape[-1] - 1)
    return g * ((z - mu) / (jnp.sqrt(var) + EPS)) + b


def _softmax_lastdim(logits):
    m = jnp.max(logits, axis=-1, keepdims=True)
    e = jnp.exp(logits - m)
    s = jnp.sum(e, axis=-1, keepdims=True)
    return e * pl.reciprocal(s, approx=True)


def _split_heads_bh(t2, rows, d):
    # (B*rows, NH*d) -> (B*NH, rows, d); batch-major / head-minor on the leading axis.
    return jnp.stack(
        [t2[b * rows:(b + 1) * rows, h * d:(h + 1) * d]
         for b in range(B) for h in range(NH)], axis=0)


def _merge_heads_bh(t3):
    # (B*NH, rows, d) -> (B*rows, NH*d)
    return jnp.concatenate(
        [jnp.concatenate([t3[b * NH + h] for h in range(NH)], axis=-1)
         for b in range(B)], axis=0)


def _bh_attention(q3, k3, v3, mask3, want_attn=False):
    """(B*NH)-batched attention in two MXU ops.
    q3:(BH,Lq,dk) bf16, k3:(BH,Lk,dk) bf16, v3:(BH,Lk,dv) bf16,
    mask3 broadcastable to (BH,Lq,Lk) (1.0 = masked).
    Returns ctx:(B*Lq, NH*dv) f32, and (if want_attn) mean-over-head masked
    logits (B*Lq, Lk) f32."""
    dn_qk = (((2,), (2,)), ((0,), (0,)))
    logits = jax.lax.dot_general(q3, k3, dn_qk,
                                 preferred_element_type=jnp.float32)      # (BH, Lq, Lk)
    logits = jnp.where(mask3 > 0.5, jnp.float32(NEG), logits)

    attn_mean = None
    if want_attn:
        per_b = []
        for b in range(B):
            acc = logits[b * NH]
            for h in range(1, NH):
                acc = acc + logits[b * NH + h]
            per_b.append(acc * jnp.float32(1.0 / NH))
        attn_mean = jnp.concatenate(per_b, axis=0)                        # (B*Lq, Lk)

    w = _softmax_lastdim(logits)
    dn_pv = (((2,), (1,)), ((0,), (0,)))
    ctx3 = jax.lax.dot_general(w.astype(jnp.bfloat16), v3, dn_pv,
                               preferred_element_type=jnp.float32)        # (BH, Lq, dv)
    return _merge_heads_bh(ctx3), attn_mean


def _mm(a_f32, w_bf16):
    # bf16 operands, f32 accumulation on the MXU
    return jnp.dot(a_f32.astype(jnp.bfloat16), w_bf16, preferred_element_type=jnp.float32)


# ------------------------------------ kernel --------------------------------------
def decoder_kernel(
    x_ref, enc_ref, dec_mask_ref, src_mask_ref, timing_ref, w_emb_ref,
    wkv_c_ref,
    ln1_g_ref, ln1_b_ref, wqkv_s_ref, wo_s_ref,
    ln2_g_ref, ln2_b_ref, wq_c_ref, wo_c_ref,
    ln3_g_ref, ln3_b_ref, w1_ref, b1_ref, w2_ref, b2_ref,
    lnf_g_ref, lnf_b_ref,
    out_ref,
):
    f32 = jnp.float32

    dec_mask = dec_mask_ref[...]          # (B*NH, L, L)   float 0/1
    src_mask = src_mask_ref[...]          # (B*NH, 1, LS)  float 0/1

    # input dropout (p=0) -> identity; embedding projection (no bias) + timing signal
    x = _mm(x_ref[...], w_emb_ref[...]) + timing_ref[...]                  # (B*L, H) f32

    # cross-attention K/V for *all* layers at once: (B*LS, H) x (H, NL*(KD+VD)) -> 128 lanes
    kv_c = _mm(enc_ref[...], wkv_c_ref[...])                               # (B*LS, NL*KVC) f32
    k_c, v_c = [], []
    for l in range(NL):                    # head-split hoisted out of the layer loop
        kvl = kv_c[:, l * KVC:(l + 1) * KVC]
        k_c.append(_split_heads_bh(kvl[:, :KD], LS, DK).astype(jnp.bfloat16))
        v_c.append(_split_heads_bh(kvl[:, KD:], LS, DV).astype(jnp.bfloat16))

    attn_rows = None
    for l in range(NL):                    # static unroll over layers
        # --------------------- masked self-attention (pre-LN, residual) ---------------
        xn = _layer_norm(x, ln1_g_ref[l], ln1_b_ref[l])
        qkv = _mm(xn, wqkv_s_ref[l])                                       # (B*L, 96), scale folded in wq
        q3 = _split_heads_bh(qkv[:, :KD], L, DK).astype(jnp.bfloat16)
        k3 = _split_heads_bh(qkv[:, KD:2 * KD], L, DK).astype(jnp.bfloat16)
        v3 = _split_heads_bh(qkv[:, 2 * KD:], L, DV).astype(jnp.bfloat16)
        ctx, _ = _bh_attention(q3, k3, v3, dec_mask)
        x = x + _mm(ctx, wo_s_ref[l])

        # --------------------- encoder-decoder attention -------------------------------
        xn = _layer_norm(x, ln2_g_ref[l], ln2_b_ref[l])
        qc = _mm(xn, wq_c_ref[l])                                          # (B*L, KD), scale folded in
        q3 = _split_heads_bh(qc, L, DK).astype(jnp.bfloat16)
        ctx, amean = _bh_attention(q3, k_c[l], v_c[l], src_mask,
                                   want_attn=(l == NL - 1))
        if amean is not None:
            attn_rows = amean                                              # (B*L, LS)
        x = x + _mm(ctx, wo_c_ref[l])

        # --------------------- position-wise FFN ---------------------------------------
        xn = _layer_norm(x, ln3_g_ref[l], ln3_b_ref[l])
        h1 = jnp.maximum(_mm(xn, w1_ref[l]) + b1_ref[l], 0.0)
        x = x + _mm(h1, w2_ref[l]) + b2_ref[l]

    y = _layer_norm(x, lnf_g_ref[...], lnf_b_ref[...])                     # (B*L, H)

    # lane-dense packed output: [ y | attn_dist | zero pad ] -> (B*L, 128), single full store
    pad = jnp.zeros((B * L, OUT_W - H - LS), f32)
    out_ref[...] = jnp.concatenate([y, attn_rows, pad], axis=-1)


# ------------------------------------ wrapper --------------------------------------
def gen_timing_signal(length, channels, min_timescale=1.0, max_timescale=1e4):
    position = jnp.arange(length, dtype=jnp.float32)
    num_timescales = channels // 2
    log_inc = math.log(float(max_timescale) / float(min_timescale)) / max(num_timescales - 1, 1)
    inv_timescales = min_timescale * jnp.exp(
        jnp.arange(num_timescales, dtype=jnp.float32) * -log_inc)
    scaled_time = position[:, None] * inv_timescales[None, :]
    return jnp.concatenate([jnp.sin(scaled_time), jnp.cos(scaled_time)], axis=1)  # (length, channels)


# hoisted static constants (fed into the jit as compile-time constants)
_TIMING_TILED = jnp.tile(gen_timing_signal(L, H), (B, 1))                 # (B*L, H)
_SUBSEQUENT = jnp.triu(jnp.ones((L, L), jnp.float32), k=1)                # (L, L)


def _full_spec(shape):
    zeros = (0,) * len(shape)
    return pl.BlockSpec(tuple(shape), lambda i, _z=zeros: _z)


@jax.jit
def decoder_forward(params, inputs, encoder_output, mask_src, mask_trg):
    # dec_mask = (mask_trg + subsequent_mask) > 0, pre-expanded over heads (b-major, h-minor)
    dec_mask = ((mask_trg + _SUBSEQUENT[None, :, :]) > 0).astype(jnp.float32)   # (B, L, L)
    dec_mask_bh = jnp.repeat(dec_mask, NH, axis=0)                              # (B*NH, L, L)
    src_mask_bh = jnp.repeat(mask_src, NH, axis=0)                              # (B*NH, 1, LS)

    x2d = inputs.reshape(B * L, E)
    enc2d = encoder_output.reshape(B * LS, H)

    in_specs = [
        _full_spec((B * L, E)),            # x
        _full_spec((B * LS, H)),           # encoder_output
        _full_spec((B * NH, L, L)),        # dec_mask (per batch*head)
        _full_spec((B * NH, 1, LS)),       # mask_src (per batch*head)
        _full_spec((B * L, H)),            # timing
        _full_spec((E, H)),                # w_emb
        _full_spec((H, NL * KVC)),         # wkv_c (all layers)
        _full_spec((NL, 1, H)), _full_spec((NL, 1, H)),       # ln1 g/b
        _full_spec((NL, H, QKV)),          # fused q|k|v (self)
        _full_spec((NL, VD, H)),           # wo_s
        _full_spec((NL, 1, H)), _full_spec((NL, 1, H)),       # ln2 g/b
        _full_spec((NL, H, KD)),           # wq_c
        _full_spec((NL, VD, H)),           # wo_c
        _full_spec((NL, 1, H)), _full_spec((NL, 1, H)),       # ln3 g/b
        _full_spec((NL, H, FF)), _full_spec((NL, 1, FF)),
        _full_spec((NL, FF, H)), _full_spec((NL, 1, H)),      # FFN
        _full_spec((1, H)), _full_spec((1, H)),               # final LN
    ]

    packed = pl.pallas_call(
        decoder_kernel,
        grid=(1,),
        in_specs=in_specs,
        out_specs=_full_spec((B * L, OUT_W)),
        out_shape=jax.ShapeDtypeStruct((B * L, OUT_W), jnp.float32),
        compiler_params=pltpu.CompilerParams(dimension_semantics=("arbitrary",)),
    )(
        x2d, enc2d, dec_mask_bh, src_mask_bh, _TIMING_TILED,
        params["w_emb"], params["wkv_c"],
        params["ln1_g"], params["ln1_b"], params["wqkv_s"], params["wo_s"],
        params["ln2_g"], params["ln2_b"], params["wq_c"], params["wo_c"],
        params["ln3_g"], params["ln3_b"],
        params["w1"], params["b1"], params["w2"], params["b2"],
        params["lnf_g"], params["lnf_b"],
    )

    y = packed[:, :H].reshape(B, L, H)
    attn_dist = packed[:, H:H + LS].reshape(B, L, LS)
    return y, attn_dist


def init_params(key):
    ks = jax.random.split(key, 16)

    def nrm(k, shape):
        return jax.random.normal(k, shape, jnp.float32) * 0.05

    bf = lambda a: a.astype(jnp.bfloat16)
    scale = DK ** -0.5

    # self-attention: fuse q|k|v and fold the 1/sqrt(dk) scale into the q columns
    wq_s = nrm(ks[1], (NL, H, KD)) * scale
    wk_s = nrm(ks[2], (NL, H, KD))
    wv_s = nrm(ks[3], (NL, H, VD))
    wqkv_s = jnp.concatenate([wq_s, wk_s, wv_s], axis=-1)                 # (NL, H, 96)

    # cross-attention: fold scale into wq; stack k|v of all layers into one (H, 128) matrix
    wq_c = nrm(ks[5], (NL, H, KD)) * scale
    wk_c = nrm(ks[6], (NL, H, KD))
    wv_c = nrm(ks[7], (NL, H, VD))
    wkv_c = jnp.concatenate(
        [jnp.concatenate([wk_c[l], wv_c[l]], axis=-1) for l in range(NL)], axis=-1)  # (H, NL*(KD+VD))

    p = {
        "w_emb": bf(nrm(ks[0], (E, H))),
        "wqkv_s": bf(wqkv_s),
        "wo_s": bf(nrm(ks[4], (NL, VD, H))),
        "wq_c": bf(wq_c),
        "wkv_c": bf(wkv_c),
        "wo_c": bf(nrm(ks[8], (NL, VD, H))),
        "ln1_g": jnp.ones((NL, 1, H), jnp.float32), "ln1_b": jnp.zeros((NL, 1, H), jnp.float32),
        "ln2_g": jnp.ones((NL, 1, H), jnp.float32), "ln2_b": jnp.zeros((NL, 1, H), jnp.float32),
        "ln3_g": jnp.ones((NL, 1, H), jnp.float32), "ln3_b": jnp.zeros((NL, 1, H), jnp.float32),
        "w1": bf(nrm(ks[9], (NL, H, FF))), "b1": jnp.zeros((NL, 1, FF), jnp.float32),
        "w2": bf(nrm(ks[10], (NL, FF, H))), "b2": jnp.zeros((NL, 1, H), jnp.float32),
        "lnf_g": jnp.ones((1, H), jnp.float32), "lnf_b": jnp.zeros((1, H), jnp.float32),
    }
    return p


if __name__ == "__main__":
    key = jax.random.PRNGKey(0)
    k_par, k_in, k_enc = jax.random.split(key, 3)

    params = init_params(k_par)
    inputs = jax.random.normal(k_in, (B, L, E), jnp.float32)
    encoder_output = jax.random.normal(k_enc, (B, LS, H), jnp.float32)

    # padding masks (1.0 = masked).  Example: last 2 source tokens of batch 1 are padding.
    mask_src = jnp.zeros((B, 1, LS), jnp.float32).at[1, 0, -2:].set(1.0)
    mask_trg = jnp.zeros((B, 1, L), jnp.float32)

    y, attn_dist = decoder_forward(params, inputs, encoder_output, mask_src, mask_trg)
    jax.block_until_ready((y, attn_dist))
    assert y.shape == (B, L, H) and attn_dist.shape == (B, L, LS)
    assert bool(jnp.all(jnp.isfinite(y))) and bool(jnp.all(jnp.isfinite(attn_dist)))
    print("KERNEL_OK")
</pallas_src>

<mosaic_0001>
module attributes {stable_mosaic.version = 11 : i64} {
  func.func @decoder_kernel(%arg0: i32, %arg1: memref<16x16xf32, #tpu.memory_space<vmem>>, %arg2: memref<20x32xf32, #tpu.memory_space<vmem>>, %arg3: memref<8x8x8xf32, #tpu.memory_space<vmem>>, %arg4: memref<8x1x10xf32, #tpu.memory_space<vmem>>, %arg5: memref<16x32xf32, #tpu.memory_space<vmem>>, %arg6: memref<16x32xbf16, #tpu.memory_space<vmem>>, %arg7: memref<32x128xbf16, #tpu.memory_space<vmem>>, %arg8: memref<2x1x32xf32, #tpu.memory_space<vmem>>, %arg9: memref<2x1x32xf32, #tpu.memory_space<vmem>>, %arg10: memref<2x32x96xbf16, #tpu.memory_space<vmem>>, %arg11: memref<2x32x32xbf16, #tpu.memory_space<vmem>>, %arg12: memref<2x1x32xf32, #tpu.memory_space<vmem>>, %arg13: memref<2x1x32xf32, #tpu.memory_space<vmem>>, %arg14: memref<2x32x32xbf16, #tpu.memory_space<vmem>>, %arg15: memref<2x32x32xbf16, #tpu.memory_space<vmem>>, %arg16: memref<2x1x32xf32, #tpu.memory_space<vmem>>, %arg17: memref<2x1x32xf32, #tpu.memory_space<vmem>>, %arg18: memref<2x32x64xbf16, #tpu.memory_space<vmem>>, %arg19: memref<2x1x64xf32, #tpu.memory_space<vmem>>, %arg20: memref<2x64x32xbf16, #tpu.memory_space<vmem>>, %arg21: memref<2x1x32xf32, #tpu.memory_space<vmem>>, %arg22: memref<1x32xf32, #tpu.memory_space<vmem>>, %arg23: memref<1x32xf32, #tpu.memory_space<vmem>>, %arg24: memref<16x128xf32, #tpu.memory_space<vmem>>) attributes {dimension_semantics = [#tpu.dimension_semantics<arbitrary>], iteration_bounds = array<i64: 1>, scalar_prefetch = 0 : i64, scratch_operands = 0 : i64, tpu.core_type = #tpu.core_type<tc>, window_params = [{pipeline_mode = #tpu.pipeline_mode<synchronous>, transform_indices = @transform_0, window_bounds = array<i64: 16, 16>}, {pipeline_mode = #tpu.pipeline_mode<synchronous>, transform_indices = @transform_1, window_bounds = array<i64: 20, 32>}, {pipeline_mode = #tpu.pipeline_mode<synchronous>, transform_indices = @transform_2, window_bounds = array<i64: 8, 8, 8>}, {pipeline_mode = #tpu.pipeline_mode<synchronous>, transform_indices = @transform_3, window_bounds = array<i64: 8, 1, 10>}, {pipeline_mode = #tpu.pipeline_mode<synchronous>, transform_indices = @transform_4, window_bounds = array<i64: 16, 32>}, {pipeline_mode = #tpu.pipeline_mode<synchronous>, transform_indices = @transform_5, window_bounds = array<i64: 16, 32>}, {pipeline_mode = #tpu.pipeline_mode<synchronous>, transform_indices = @transform_6, window_bounds = array<i64: 32, 128>}, {pipeline_mode = #tpu.pipeline_mode<synchronous>, transform_indices = @transform_7, window_bounds = array<i64: 2, 1, 32>}, {pipeline_mode = #tpu.pipeline_mode<synchronous>, transform_indices = @transform_8, window_bounds = array<i64: 2, 1, 32>}, {pipeline_mode = #tpu.pipeline_mode<synchronous>, transform_indices = @transform_9, window_bounds = array<i64: 2, 32, 96>}, {pipeline_mode = #tpu.pipeline_mode<synchronous>, transform_indices = @transform_10, window_bounds = array<i64: 2, 32, 32>}, {pipeline_mode = #tpu.pipeline_mode<synchronous>, transform_indices = @transform_11, window_bounds = array<i64: 2, 1, 32>}, {pipeline_mode = #tpu.pipeline_mode<synchronous>, transform_indices = @transform_12, window_bounds = array<i64: 2, 1, 32>}, {pipeline_mode = #tpu.pipeline_mode<synchronous>, transform_indices = @transform_13, window_bounds = array<i64: 2, 32, 32>}, {pipeline_mode = #tpu.pipeline_mode<synchronous>, transform_indices = @transform_14, window_bounds = array<i64: 2, 32, 32>}, {pipeline_mode = #tpu.pipeline_mode<synchronous>, transform_indices = @transform_15, window_bounds = array<i64: 2, 1, 32>}, {pipeline_mode = #tpu.pipeline_mode<synchronous>, transform_indices = @transform_16, window_bounds = array<i64: 2, 1, 32>}, {pipeline_mode = #tpu.pipeline_mode<synchronous>, transform_indices = @transform_17, window_bounds = array<i64: 2, 32, 64>}, {pipeline_mode = #tpu.pipeline_mode<synchronous>, transform_indices = @transform_18, window_bounds = array<i64: 2, 1, 64>}, {pipeline_mode = #tpu.pipeline_mode<synchronous>, transform_indices = @transform_19, window_bounds = array<i64: 2, 64, 32>}, {pipeline_mode = #tpu.pipeline_mode<synchronous>, transform_indices = @transform_20, window_bounds = array<i64: 2, 1, 32>}, {pipeline_mode = #tpu.pipeline_mode<synchronous>, transform_indices = @transform_21, window_bounds = array<i64: 1, 32>}, {pipeline_mode = #tpu.pipeline_mode<synchronous>, transform_indices = @transform_22, window_bounds = array<i64: 1, 32>}, {pipeline_mode = #tpu.pipeline_mode<synchronous>, transform_indices = @transform_23, window_bounds = array<i64: 16, 128>}]} {
    %c0 = arith.constant 0 : index
    %c0_0 = arith.constant 0 : index
    %c0_1 = arith.constant 0 : index
    %0 = vector.load %arg3[%c0, %c0_0, %c0_1] : memref<8x8x8xf32, #tpu.memory_space<vmem>>, vector<8x8x8xf32>
    %c0_2 = arith.constant 0 : index
    %c0_3 = arith.constant 0 : index
    %c0_4 = arith.constant 0 : index
    %1 = vector.load %arg4[%c0_2, %c0_3, %c0_4] : memref<8x1x10xf32, #tpu.memory_space<vmem>>, vector<8x1x10xf32>
    %c0_5 = arith.constant 0 : index
    %c0_6 = arith.constant 0 : index
    %2 = vector.load %arg1[%c0_5, %c0_6] : memref<16x16xf32, #tpu.memory_space<vmem>>, vector<16x16xf32>
    %c0_7 = arith.constant 0 : index
    %c0_8 = arith.constant 0 : index
    %3 = vector.load %arg6[%c0_7, %c0_8] : memref<16x32xbf16, #tpu.memory_space<vmem>>, vector<16x32xbf16>
    %4 = arith.truncf %2 : vector<16x16xf32> to vector<16x16xbf16>
    %cst = arith.constant dense<0.000000e+00> : vector<16x32xf32>
    %5 = tpu.matmul %4, %3, %cst {dimension_numbers = #tpu.dot_dimension_numbers<[1], [0], [0], [1], [0, 0, 1, 1], [], []>} : vector<16x16xbf16>, vector<16x32xbf16>, vector<16x32xf32> -> vector<16x32xf32>
    %c0_9 = arith.constant 0 : index
    %c0_10 = arith.constant 0 : index
    %6 = vector.load %arg5[%c0_9, %c0_10] : memref<16x32xf32, #tpu.memory_space<vmem>>, vector<16x32xf32>
    %7 = arith.addf %5, %6 : vector<16x32xf32>
    %c0_11 = arith.constant 0 : index
    %c0_12 = arith.constant 0 : index
    %8 = vector.load %arg2[%c0_11, %c0_12] : memref<20x32xf32, #tpu.memory_space<vmem>>, vector<20x32xf32>
    %c0_13 = arith.constant 0 : index
    %c0_14 = arith.constant 0 : index
    %9 = vector.load %arg7[%c0_13, %c0_14] : memref<32x128xbf16, #tpu.memory_space<vmem>>, vector<32x128xbf16>
    %10 = arith.truncf %8 : vector<20x32xf32> to vector<20x32xbf16>
    %cst_15 = arith.constant dense<0.000000e+00> : vector<20x128xf32>
    %11 = tpu.matmul %10, %9, %cst_15 {dimension_numbers = #tpu.dot_dimension_numbers<[1], [0], [0], [1], [0, 0, 1, 1], [], []>} : vector<20x32xbf16>, vector<32x128xbf16>, vector<20x128xf32> -> vector<20x128xf32>
    %12 = vector.extract_strided_slice %11 {offsets = [0, 0], sizes = [20, 64], strides = [1, 1]} : vector<20x128xf32> to vector<20x64xf32>
    %13 = vector.extract_strided_slice %12 {offsets = [0, 0], sizes = [20, 32], strides = [1, 1]} : vector<20x64xf32> to vector<20x32xf32>
    %14 = vector.extract_strided_slice %13 {offsets = [0, 0], sizes = [10, 8], strides = [1, 1]} : vector<20x32xf32> to vector<10x8xf32>
    %15 = vector.extract_strided_slice %13 {offsets = [0, 8], sizes = [10, 8], strides = [1, 1]} : vector<20x32xf32> to vector<10x8xf32>
    %16 = vector.extract_strided_slice %13 {offsets = [0, 16], sizes = [10, 8], strides = [1, 1]} : vector<20x32xf32> to vector<10x8xf32>
    %17 = vector.extract_strided_slice %13 {offsets = [0, 24], sizes = [10, 8], strides = [1, 1]} : vector<20x32xf32> to vector<10x8xf32>
    %18 = vector.extract_strided_slice %13 {offsets = [10, 0], sizes = [10, 8], strides = [1, 1]} : vector<20x32xf32> to vector<10x8xf32>
    %19 = vector.extract_strided_slice %13 {offsets = [10, 8], sizes = [10, 8], strides = [1, 1]} : vector<20x32xf32> to vector<10x8xf32>
    %20 = vector.extract_strided_slice %13 {offsets = [10, 16], sizes = [10, 8], strides = [1, 1]} : vector<20x32xf32> to vector<10x8xf32>
    %21 = vector.extract_strided_slice %13 {offsets = [10, 24], sizes = [10, 8], strides = [1, 1]} : vector<20x32xf32> to vector<10x8xf32>
    %22 = vector.shape_cast %14 : vector<10x8xf32> to vector<1x10x8xf32>
    %23 = vector.shape_cast %15 : vector<10x8xf32> to vector<1x10x8xf32>
    %24 = vector.shape_cast %16 : vector<10x8xf32> to vector<1x10x8xf32>
    %25 = vector.shape_cast %17 : vector<10x8xf32> to vector<1x10x8xf32>
    %26 = vector.shape_cast %18 : vector<10x8xf32> to vector<1x10x8xf32>
    %27 = vector.shape_cast %19 : vector<10x8xf32> to vector<1x10x8xf32>
    %28 = vector.shape_cast %20 : vector<10x8xf32> to vector<1x10x8xf32>
    %29 = vector.shape_cast %21 : vector<10x8xf32> to vector<1x10x8xf32>
    %30 = tpu.concatenate %22, %23, %24, %25, %26, %27, %28, %29 in 0 : vector<1x10x8xf32>, vector<1x10x8xf32>, vector<1x10x8xf32>, vector<1x10x8xf32>, vector<1x10x8xf32>, vector<1x10x8xf32>, vector<1x10x8xf32>, vector<1x10x8xf32> -> vector<8x10x8xf32>
    %31 = arith.truncf %30 : vector<8x10x8xf32> to vector<8x10x8xbf16>
    %32 = vector.extract_strided_slice %12 {offsets = [0, 32], sizes = [20, 32], strides = [1, 1]} : vector<20x64xf32> to vector<20x32xf32>
    %33 = vector.extract_strided_slice %32 {offsets = [0, 0], sizes = [10, 8], strides = [1, 1]} : vector<20x32xf32> to vector<10x8xf32>
    %34 = vector.extract_strided_slice %32 {offsets = [0, 8], sizes = [10, 8], strides = [1, 1]} : vector<20x32xf32> to vector<10x8xf32>
    %35 = vector.extract_strided_slice %32 {offsets = [0, 16], sizes = [10, 8], strides = [1, 1]} : vector<20x32xf32> to vector<10x8xf32>
    %36 = vector.extract_strided_slice %32 {offsets = [0, 24], sizes = [10, 8], strides = [1, 1]} : vector<20x32xf32> to vector<10x8xf32>
    %37 = vector.extract_strided_slice %32 {offsets = [10, 0], sizes = [10, 8], strides = [1, 1]} : vector<20x32xf32> to vector<10x8xf32>
    %38 = vector.extract_strided_slice %32 {offsets = [10, 8], sizes = [10, 8], strides = [1, 1]} : vector<20x32xf32> to vector<10x8xf32>
    %39 = vector.extract_strided_slice %32 {offsets = [10, 16], sizes = [10, 8], strides = [1, 1]} : vector<20x32xf32> to vector<10x8xf32>
    %40 = vector.extract_strided_slice %32 {offsets = [10, 24], sizes = [10, 8], strides = [1, 1]} : vector<20x32xf32> to vector<10x8xf32>
    %41 = vector.shape_cast %33 : vector<10x8xf32> to vector<1x10x8xf32>
    %42 = vector.shape_cast %34 : vector<10x8xf32> to vector<1x10x8xf32>
    %43 = vector.shape_cast %35 : vector<10x8xf32> to vector<1x10x8xf32>
    %44 = vector.shape_cast %36 : vector<10x8xf32> to vector<1x10x8xf32>
    %45 = vector.shape_cast %37 : vector<10x8xf32> to vector<1x10x8xf32>
    %46 = vector.shape_cast %38 : vector<10x8xf32> to vector<1x10x8xf32>
    %47 = vector.shape_cast %39 : vector<10x8xf32> to vector<1x10x8xf32>
    %48 = vector.shape_cast %40 : vector<10x8xf32> to vector<1x10x8xf32>
    %49 = tpu.concatenate %41, %42, %43, %44, %45, %46, %47, %48 in 0 : vector<1x10x8xf32>, vector<1x10x8xf32>, vector<1x10x8xf32>, vector<1x10x8xf32>, vector<1x10x8xf32>, vector<1x10x8xf32>, vector<1x10x8xf32>, vector<1x10x8xf32> -> vector<8x10x8xf32>
    %50 = arith.truncf %49 : vector<8x10x8xf32> to vector<8x10x8xbf16>
    %51 = vector.extract_strided_slice %11 {offsets = [0, 64], sizes = [20, 64], strides = [1, 1]} : vector<20x128xf32> to vector<20x64xf32>
    %52 = vector.extract_strided_slice %51 {offsets = [0, 0], sizes = [20, 32], strides = [1, 1]} : vector<20x64xf32> to vector<20x32xf32>
    %53 = vector.extract_strided_slice %52 {offsets = [0, 0], sizes = [10, 8], strides = [1, 1]} : vector<20x32xf32> to vector<10x8xf32>
    %54 = vector.extract_strided_slice %52 {offsets = [0, 8], sizes = [10, 8], strides = [1, 1]} : vector<20x32xf32> to vector<10x8xf32>
    %55 = vector.extract_strided_slice %52 {offsets = [0, 16], sizes = [10, 8], strides = [1, 1]} : vector<20x32xf32> to vector<10x8xf32>
    %56 = vector.extract_strided_slice %52 {offsets = [0, 24], sizes = [10, 8], strides = [1, 1]} : vector<20x32xf32> to vector<10x8xf32>
    %57 = vector.extract_strided_slice %52 {offsets = [10, 0], sizes = [10, 8], strides = [1, 1]} : vector<20x32xf32> to vector<10x8xf32>
    %58 = vector.extract_strided_slice %52 {offsets = [10, 8], sizes = [10, 8], strides = [1, 1]} : vector<20x32xf32> to vector<10x8xf32>
    %59 = vector.extract_strided_slice %52 {offsets = [10, 16], sizes = [10, 8], strides = [1, 1]} : vector<20x32xf32> to vector<10x8xf32>
    %60 = vector.extract_strided_slice %52 {offsets = [10, 24], sizes = [10, 8], strides = [1, 1]} : vector<20x32xf32> to vector<10x8xf32>
    %61 = vector.shape_cast %53 : vector<10x8xf32> to vector<1x10x8xf32>
    %62 = vector.shape_cast %54 : vector<10x8xf32> to vector<1x10x8xf32>
    %63 = vector.shape_cast %55 : vector<10x8xf32> to vector<1x10x8xf32>
    %64 = vector.shape_cast %56 : vector<10x8xf32> to vector<1x10x8xf32>
    %65 = vector.shape_cast %57 : vector<10x8xf32> to vector<1x10x8xf32>
    %66 = vector.shape_cast %58 : vector<10x8xf32> to vector<1x10x8xf32>
    %67 = vector.shape_cast %59 : vector<10x8xf32> to vector<1x10x8xf32>
    %68 = vector.shape_cast %60 : vector<10x8xf32> to vector<1x10x8xf32>
    %69 = tpu.concatenate %61, %62, %63, %64, %65, %66, %67, %68 in 0 : vector<1x10x8xf32>, vector<1x10x8xf32>, vector<1x10x8xf32>, vector<1x10x8xf32>, vector<1x10x8xf32>, vector<1x10x8xf32>, vector<1x10x8xf32>, vector<1x10x8xf32> -> vector<8x10x8xf32>
    %70 = arith.truncf %69 : vector<8x10x8xf32> to vector<8x10x8xbf16>
    %71 = vector.extract_strided_slice %51 {offsets = [0, 32], sizes = [20, 32], strides = [1, 1]} : vector<20x64xf32> to vector<20x32xf32>
    %72 = vector.extract_strided_slice %71 {offsets = [0, 0], sizes = [10, 8], strides = [1, 1]} : vector<20x32xf32> to vector<10x8xf32>
    %73 = vector.extract_strided_slice %71 {offsets = [0, 8], sizes = [10, 8], strides = [1, 1]} : vector<20x32xf32> to vector<10x8xf32>
    %74 = vector.extract_strided_slice %71 {offsets = [0, 16], sizes = [10, 8], strides = [1, 1]} : vector<20x32xf32> to vector<10x8xf32>
    %75 = vector.extract_strided_slice %71 {offsets = [0, 24], sizes = [10, 8], strides = [1, 1]} : vector<20x32xf32> to vector<10x8xf32>
    %76 = vector.extract_strided_slice %71 {offsets = [10, 0], sizes = [10, 8], strides = [1, 1]} : vector<20x32xf32> to vector<10x8xf32>
    %77 = vector.extract_strided_slice %71 {offsets = [10, 8], sizes = [10, 8], strides = [1, 1]} : vector<20x32xf32> to vector<10x8xf32>
    %78 = vector.extract_strided_slice %71 {offsets = [10, 16], sizes = [10, 8], strides = [1, 1]} : vector<20x32xf32> to vector<10x8xf32>
    %79 = vector.extract_strided_slice %71 {offsets = [10, 24], sizes = [10, 8], strides = [1, 1]} : vector<20x32xf32> to vector<10x8xf32>
    %80 = vector.shape_cast %72 : vector<10x8xf32> to vector<1x10x8xf32>
    %81 = vector.shape_cast %73 : vector<10x8xf32> to vector<1x10x8xf32>
    %82 = vector.shape_cast %74 : vector<10x8xf32> to vector<1x10x8xf32>
    %83 = vector.shape_cast %75 : vector<10x8xf32> to vector<1x10x8xf32>
    %84 = vector.shape_cast %76 : vector<10x8xf32> to vector<1x10x8xf32>
    %85 = vector.shape_cast %77 : vector<10x8xf32> to vector<1x10x8xf32>
    %86 = vector.shape_cast %78 : vector<10x8xf32> to vector<1x10x8xf32>
    %87 = vector.shape_cast %79 : vector<10x8xf32> to vector<1x10x8xf32>
    %88 = tpu.concatenate %80, %81, %82, %83, %84, %85, %86, %87 in 0 : vector<1x10x8xf32>, vector<1x10x8xf32>, vector<1x10x8xf32>, vector<1x10x8xf32>, vector<1x10x8xf32>, vector<1x10x8xf32>, vector<1x10x8xf32>, vector<1x10x8xf32> -> vector<8x10x8xf32>
    %89 = arith.truncf %88 : vector<8x10x8xf32> to vector<8x10x8xbf16>
    %c0_16 = arith.constant 0 : index
    %c0_17 = arith.constant 0 : index
    %c0_18 = arith.constant 0 : index
    %90 = vector.load %arg8[%c0_16, %c0_17, %c0_18] : memref<2x1x32xf32, #tpu.memory_space<vmem>>, vector<1x1x32xf32>
    %91 = vector.shape_cast %90 : vector<1x1x32xf32> to vector<1x32xf32>
    %c0_19 = arith.constant 0 : index
    %c0_20 = arith.constant 0 : index
    %c0_21 = arith.constant 0 : index
    %92 = vector.load %arg9[%c0_19, %c0_20, %c0_21] : memref<2x1x32xf32, #tpu.memory_space<vmem>>, vector<1x1x32xf32>
    %93 = vector.shape_cast %92 : vector<1x1x32xf32> to vector<1x32xf32>
    %cst_22 = arith.constant dense<0.000000e+00> : vector<16xf32>
    %94 = vector.multi_reduction <add>, %7, %cst_22 [1] : vector<16x32xf32> to vector<16xf32>
    %95 = vector.shape_cast %94 : vector<16xf32> to vector<16x1xf32>
    %cst_23 = arith.constant 3.200000e+01 : f32
    %96 = vector.broadcast %cst_23 : f32 to vector<16x1xf32>
    %97 = arith.divf %95, %96 : vector<16x1xf32>
    %98 = vector.broadcast %97 : vector<16x1xf32> to vector<16x32xf32>
    %99 = arith.subf %7, %98 : vector<16x32xf32>
    %100 = arith.mulf %99, %99 : vector<16x32xf32>
    %cst_24 = arith.constant dense<0.000000e+00> : vector<16xf32>
    %101 = vector.multi_reduction <add>, %100, %cst_24 [1] : vector<16x32xf32> to vector<16xf32>
    %102 = vector.shape_cast %101 : vector<16xf32> to vector<16x1xf32>
    %cst_25 = arith.constant 3.100000e+01 : f32
    %103 = vector.broadcast %cst_25 : f32 to vector<16x1xf32>
    %104 = arith.divf %102, %103 : vector<16x1xf32>
    %105 = vector.broadcast %97 : vector<16x1xf32> to vector<16x32xf32>
    %106 = arith.subf %7, %105 : vector<16x32xf32>
    %107 = math.sqrt %104 : vector<16x1xf32>
    %cst_26 = arith.constant 9.99999997E-7 : f32
    %108 = vector.broadcast %cst_26 : f32 to vector<16x1xf32>
    %109 = arith.addf %107, %108 : vector<16x1xf32>
    %110 = vector.broadcast %109 : vector<16x1xf32> to vector<16x32xf32>
    %111 = arith.divf %106, %110 : vector<16x32xf32>
    %112 = vector.broadcast %91 : vector<1x32xf32> to vector<16x32xf32>
    %113 = arith.mulf %112, %111 : vector<16x32xf32>
    %114 = vector.broadcast %93 : vector<1x32xf32> to vector<16x32xf32>
    %115 = arith.addf %113, %114 : vector<16x32xf32>
    %c0_27 = arith.constant 0 : index
    %c0_28 = arith.constant 0 : index
    %c0_29 = arith.constant 0 : index
    %116 = vector.load %arg10[%c0_27, %c0_28, %c0_29] : memref<2x32x96xbf16, #tpu.memory_space<vmem>>, vector<1x32x96xbf16>
    %117 = vector.shape_cast %116 : vector<1x32x96xbf16> to vector<32x96xbf16>
    %118 = arith.truncf %115 : vector<16x32xf32> to vector<16x32xbf16>
    %cst_30 = arith.constant dense<0.000000e+00> : vector<16x96xf32>
    %119 = tpu.matmul %118, %117, %cst_30 {dimension_numbers = #tpu.dot_dimension_numbers<[1], [0], [0], [1], [0, 0, 1, 1], [], []>} : vector<16x32xbf16>, vector<32x96xbf16>, vector<16x96xf32> -> vector<16x96xf32>
    %120 = vector.extract_strided_slice %119 {offsets = [0, 0], sizes = [16, 32], strides = [1, 1]} : vector<16x96xf32> to vector<16x32xf32>
    %121 = vector.extract_strided_slice %120 {offsets = [0, 0], sizes = [8, 8], strides = [1, 1]} : vector<16x32xf32> to vector<8x8xf32>
    %122 = vector.extract_strided_slice %120 {offsets = [0, 8], sizes = [8, 8], strides = [1, 1]} : vector<16x32xf32> to vector<8x8xf32>
    %123 = vector.extract_strided_slice %120 {offsets = [0, 16], sizes = [8, 8], strides = [1, 1]} : vector<16x32xf32> to vector<8x8xf32>
    %124 = vector.extract_strided_slice %120 {offsets = [0, 24], sizes = [8, 8], strides = [1, 1]} : vector<16x32xf32> to vector<8x8xf32>
    %125 = vector.extract_strided_slice %120 {offsets = [8, 0], sizes = [8, 8], strides = [1, 1]} : vector<16x32xf32> to vector<8x8xf32>
    %126 = vector.extract_strided_slice %120 {offsets = [8, 8], sizes = [8, 8], strides = [1, 1]} : vector<16x32xf32> to vector<8x8xf32>
    %127 = vector.extract_strided_slice %120 {offsets = [8, 16], sizes = [8, 8], strides = [1, 1]} : vector<16x32xf32> to vector<8x8xf32>
    %128 = vector.extract_strided_slice %120 {offsets = [8, 24], sizes = [8, 8], strides = [1, 1]} : vector<16x32xf32> to vector<8x8xf32>
    %129 = vector.shape_cast %121 : vector<8x8xf32> to vector<1x8x8xf32>
    %130 = vector.shape_cast %122 : vector<8x8xf32> to vector<1x8x8xf32>
    %131 = vector.shape_cast %123 : vector<8x8xf32> to vector<1x8x8xf32>
    %132 = vector.shape_cast %124 : vector<8x8xf32> to vector<1x8x8xf32>
    %133 = vector.shape_cast %125 : vector<8x8xf32> to vector<1x8x8xf32>
    %134 = vector.shape_cast %126 : vector<8x8xf32> to vector<1x8x8xf32>
    %135 = vector.shape_cast %127 : vector<8x8xf32> to vector<1x8x8xf32>
    %136 = vector.shape_cast %128 : vector<8x8xf32> to vector<1x8x8xf32>
    %137 = tpu.concatenate %129, %130, %131, %132, %133, %134, %135, %136 in 0 : vector<1x8x8xf32>, vector<1x8x8xf32>, vector<1x8x8xf32>, vector<1x8x8xf32>, vector<1x8x8xf32>, vector<1x8x8xf32>, vector<1x8x8xf32>, vector<1x8x8xf32> -> vector<8x8x8xf32>
    %138 = arith.truncf %137 : vector<8x8x8xf32> to vector<8x8x8xbf16>
    %139 = vector.extract_strided_slice %119 {offsets = [0, 32], sizes = [16, 32], strides = [1, 1]} : vector<16x96xf32> to vector<16x32xf32>
    %140 = vector.extract_strided_slice %139 {offsets = [0, 0], sizes = [8, 8], strides = [1, 1]} : vector<16x32xf32> to vector<8x8xf32>
    %141 = vector.extract_strided_slice %139 {offsets = [0, 8], sizes = [8, 8], strides = [1, 1]} : vector<16x32xf32> to vector<8x8xf32>
    %142 = vector.extract_strided_slice %139 {offsets = [0, 16], sizes = [8, 8], strides = [1, 1]} : vector<16x32xf32> to vector<8x8xf32>
    %143 = vector.extract_strided_slice %139 {offsets = [0, 24], sizes = [8, 8], strides = [1, 1]} : vector<16x32xf32> to vector<8x8xf32>
    %144 = vector.extract_strided_slice %139 {offsets = [8, 0], sizes = [8, 8], strides = [1, 1]} : vector<16x32xf32> to vector<8x8xf32>
    %145 = vector.extract_strided_slice %139 {offsets = [8, 8], sizes = [8, 8], strides = [1, 1]} : vector<16x32xf32> to vector<8x8xf32>
    %146 = vector.extract_strided_slice %139 {offsets = [8, 16], sizes = [8, 8], strides = [1, 1]} : vector<16x32xf32> to vector<8x8xf32>
    %147 = vector.extract_strided_slice %139 {offsets = [8, 24], sizes = [8, 8], strides = [1, 1]} : vector<16x32xf32> to vector<8x8xf32>
    %148 = vector.shape_cast %140 : vector<8x8xf32> to vector<1x8x8xf32>
    %149 = vector.shape_cast %141 : vector<8x8xf32> to vector<1x8x8xf32>
    %150 = vector.shape_cast %142 : vector<8x8xf32> to vector<1x8x8xf32>
    %151 = vector.shape_cast %143 : vector<8x8xf32> to vector<1x8x8xf32>
    %152 = vector.shape_cast %144 : vector<8x8xf32> to vector<1x8x8xf32>
    %153 = vector.shape_cast %145 : vector<8x8xf32> to vector<1x8x8xf32>
    %154 = vector.shape_cast %146 : vector<8x8xf32> to vector<1x8x8xf32>
    %155 = vector.shape_cast %147 : vector<8x8xf32> to vector<1x8x8xf32>
    %156 = tpu.concatenate %148, %149, %150, %151, %152, %153, %154, %155 in 0 : vector<1x8x8xf32>, vector<1x8x8xf32>, vector<1x8x8xf32>, vector<1x8x8xf32>, vector<1x8x8xf32>, vector<1x8x8xf32>, vector<1x8x8xf32>, vector<1x8x8xf32> -> vector<8x8x8xf32>
    %157 = arith.truncf %156 : vector<8x8x8xf32> to vector<8x8x8xbf16>
    %158 = vector.extract_strided_slice %119 {offsets = [0, 64], sizes = [16, 32], strides = [1, 1]} : vector<16x96xf32> to vector<16x32xf32>
    %159 = vector.extract_strided_slice %158 {offsets = [0, 0], sizes = [8, 8], strides = [1, 1]} : vector<16x32xf32> to vector<8x8xf32>
    %160 = vector.extract_strided_slice %158 {offsets = [0, 8], sizes = [8, 8], strides = [1, 1]} : vector<16x32xf32> to vector<8x8xf32>
    %161 = vector.extract_strided_slice %158 {offsets = [0, 16], sizes = [8, 8], strides = [1, 1]} : vector<16x32xf32> to vector<8x8xf32>
    %162 = vector.extract_strided_slice %158 {offsets = [0, 24], sizes = [8, 8], strides = [1, 1]} : vector<16x32xf32> to vector<8x8xf32>
    %163 = vector.extract_strided_slice %158 {offsets = [8, 0], sizes = [8, 8], strides = [1, 1]} : vector<16x32xf32> to vector<8x8xf32>
    %164 = vector.extract_strided_slice %158 {offsets = [8, 8], sizes = [8, 8], strides = [1, 1]} : vector<16x32xf32> to vector<8x8xf32>
    %165 = vector.extract_strided_slice %158 {offsets = [8, 16], sizes = [8, 8], strides = [1, 1]} : vector<16x32xf32> to vector<8x8xf32>
    %166 = vector.extract_strided_slice %158 {offsets = [8, 24], sizes = [8, 8], strides = [1, 1]} : vector<16x32xf32> to vector<8x8xf32>
    %167 = vector.shape_cast %159 : vector<8x8xf32> to vector<1x8x8xf32>
    %168 = vector.shape_cast %160 : vector<8x8xf32> to vector<1x8x8xf32>
    %169 = vector.shape_cast %161 : vector<8x8xf32> to vector<1x8x8xf32>
    %170 = vector.shape_cast %162 : vector<8x8xf32> to vector<1x8x8xf32>
    %171 = vector.shape_cast %163 : vector<8x8xf32> to vector<1x8x8xf32>
    %172 = vector.shape_cast %164 : vector<8x8xf32> to vector<1x8x8xf32>
    %173 = vector.shape_cast %165 : vector<8x8xf32> to vector<1x8x8xf32>
    %174 = vector.shape_cast %166 : vector<8x8xf32> to vector<1x8x8xf32>
    %175 = tpu.concatenate %167, %168, %169, %170, %171, %172, %173, %174 in 0 : vector<1x8x8xf32>, vector<1x8x8xf32>, vector<1x8x8xf32>, vector<1x8x8xf32>, vector<1x8x8xf32>, vector<1x8x8xf32>, vector<1x8x8xf32>, vector<1x8x8xf32> -> vector<8x8x8xf32>
    %176 = arith.truncf %175 : vector<8x8x8xf32> to vector<8x8x8xbf16>
    %cst_31 = arith.constant dense<0.000000e+00> : vector<8x8x8xf32>
    %177 = tpu.matmul %138, %157, %cst_31 {dimension_numbers = #tpu.dot_dimension_numbers<[2], [2], [1], [1], [0, 0, 0, 1, 1, 1], [0], [0]>} : vector<8x8x8xbf16>, vector<8x8x8xbf16>, vector<8x8x8xf32> -> vector<8x8x8xf32>
    %cst_32 = arith.constant 5.000000e-01 : f32
    %178 = vector.broadcast %cst_32 : f32 to vector<8x8x8xf32>
    %179 = arith.cmpf ogt, %0, %178 : vector<8x8x8xf32>
    %cst_33 = arith.constant -9.99999984E+17 : f32
    %180 = vector.broadcast %cst_33 : f32 to vector<8x8x8xf32>
    %181 = arith.select %179, %180, %177 : vector<8x8x8xi1>, vector<8x8x8xf32>
    %cst_34 = arith.constant dense<0xFF800000> : vector<8x8xf32>
    %182 = vector.multi_reduction <maximumf>, %181, %cst_34 [2] : vector<8x8x8xf32> to vector<8x8xf32>
    %183 = vector.shape_cast %182 : vector<8x8xf32> to vector<8x8x1xf32>
    %184 = vector.broadcast %183 : vector<8x8x1xf32> to vector<8x8x8xf32>
    %185 = arith.subf %181, %184 : vector<8x8x8xf32>
    %186 = math.exp %185 : vector<8x8x8xf32>
    %cst_35 = arith.constant dense<0.000000e+00> : vector<8x8xf32>
    %187 = vector.multi_reduction <add>, %186, %cst_35 [2] : vector<8x8x8xf32> to vector<8x8xf32>
    %188 = vector.shape_cast %187 : vector<8x8xf32> to vector<8x8x1xf32>
    %189 = tpu.reciprocal %188 {approx = true} : vector<8x8x1xf32> -> vector<8x8x1xf32>
    %190 = vector.broadcast %189 : vector<8x8x1xf32> to vector<8x8x8xf32>
    %191 = arith.mulf %186, %190 : vector<8x8x8xf32>
    %192 = arith.truncf %191 : vector<8x8x8xf32> to vector<8x8x8xbf16>
    %cst_36 = arith.constant dense<0.000000e+00> : vector<8x8x8xf32>
    %193 = tpu.matmul %192, %176, %cst_36 {dimension_numbers = #tpu.dot_dimension_numbers<[2], [1], [1], [2], [0, 0, 0, 1, 1, 2], [0], [0]>} : vector<8x8x8xbf16>, vector<8x8x8xbf16>, vector<8x8x8xf32> -> vector<8x8x8xf32>
    %194 = vector.extract_strided_slice %193 {offsets = [0, 0, 0], sizes = [1, 8, 8], strides = [1, 1, 1]} : vector<8x8x8xf32> to vector<1x8x8xf32>
    %195 = vector.shape_cast %194 : vector<1x8x8xf32> to vector<8x8xf32>
    %196 = vector.extract_strided_slice %193 {offsets = [1, 0, 0], sizes = [1, 8, 8], strides = [1, 1, 1]} : vector<8x8x8xf32> to vector<1x8x8xf32>
    %197 = vector.shape_cast %196 : vector<1x8x8xf32> to vector<8x8xf32>
    %198 = vector.extract_strided_slice %193 {offsets = [2, 0, 0], sizes = [1, 8, 8], strides = [1, 1, 1]} : vector<8x8x8xf32> to vector<1x8x8xf32>
    %199 = vector.shape_cast %198 : vector<1x8x8xf32> to vector<8x8xf32>
    %200 = vector.extract_strided_slice %193 {offsets = [3, 0, 0], sizes = [1, 8, 8], strides = [1, 1, 1]} : vector<8x8x8xf32> to vector<1x8x8xf32>
    %201 = vector.shape_cast %200 : vector<1x8x8xf32> to vector<8x8xf32>
    %202 = tpu.concatenate %195, %197, %199, %201 in 1 : vector<8x8xf32>, vector<8x8xf32>, vector<8x8xf32>, vector<8x8xf32> -> vector<8x32xf32>
    %203 = vector.extract_strided_slice %193 {offsets = [4, 0, 0], sizes = [1, 8, 8], strides = [1, 1, 1]} : vector<8x8x8xf32> to vector<1x8x8xf32>
    %204 = vector.shape_cast %203 : vector<1x8x8xf32> to vector<8x8xf32>
    %205 = vector.extract_strided_slice %193 {offsets = [5, 0, 0], sizes = [1, 8, 8], strides = [1, 1, 1]} : vector<8x8x8xf32> to vector<1x8x8xf32>
    %206 = vector.shape_cast %205 : vector<1x8x8xf32> to vector<8x8xf32>
    %207 = vector.extract_strided_slice %193 {offsets = [6, 0, 0], sizes = [1, 8, 8], strides = [1, 1, 1]} : vector<8x8x8xf32> to vector<1x8x8xf32>
    %208 = vector.shape_cast %207 : vector<1x8x8xf32> to vector<8x8xf32>
    %209 = vector.extract_strided_slice %193 {offsets = [7, 0, 0], sizes = [1, 8, 8], strides = [1, 1, 1]} : vector<8x8x8xf32> to vector<1x8x8xf32>
    %210 = vector.shape_cast %209 : vector<1x8x8xf32> to vector<8x8xf32>
    %211 = tpu.concatenate %204, %206, %208, %210 in 1 : vector<8x8xf32>, vector<8x8xf32>, vector<8x8xf32>, vector<8x8xf32> -> vector<8x32xf32>
    %212 = tpu.concatenate %202, %211 in 0 : vector<8x32xf32>, vector<8x32xf32> -> vector<16x32xf32>
    %c0_37 = arith.constant 0 : index
    %c0_38 = arith.constant 0 : index
    %c0_39 = arith.constant 0 : index
    %213 = vector.load %arg11[%c0_37, %c0_38, %c0_39] : memref<2x32x32xbf16, #tpu.memory_space<vmem>>, vector<1x32x32xbf16>
    %214 = vector.shape_cast %213 : vector<1x32x32xbf16> to vector<32x32xbf16>
    %215 = arith.truncf %212 : vector<16x32xf32> to vector<16x32xbf16>
    %cst_40 = arith.constant dense<0.000000e+00> : vector<16x32xf32>
    %216 = tpu.matmul %215, %214, %cst_40 {dimension_numbers = #tpu.dot_dimension_numbers<[1], [0], [0], [1], [0, 0, 1, 1], [], []>} : vector<16x32xbf16>, vector<32x32xbf16>, vector<16x32xf32> -> vector<16x32xf32>
    %217 = arith.addf %7, %216 : vector<16x32xf32>
    %c0_41 = arith.constant 0 : index
    %c0_42 = arith.constant 0 : index
    %c0_43 = arith.constant 0 : index
    %218 = vector.load %arg12[%c0_41, %c0_42, %c0_43] : memref<2x1x32xf32, #tpu.memory_space<vmem>>, vector<1x1x32xf32>
    %219 = vector.shape_cast %218 : vector<1x1x32xf32> to vector<1x32xf32>
    %c0_44 = arith.constant 0 : index
    %c0_45 = arith.constant 0 : index
    %c0_46 = arith.constant 0 : index
    %220 = vector.load %arg13[%c0_44, %c0_45, %c0_46] : memref<2x1x32xf32, #tpu.memory_space<vmem>>, vector<1x1x32xf32>
    %221 = vector.shape_cast %220 : vector<1x1x32xf32> to vector<1x32xf32>
    %cst_47 = arith.constant dense<0.000000e+00> : vector<16xf32>
    %222 = vector.multi_reduction <add>, %217, %cst_47 [1] : vector<16x32xf32> to vector<16xf32>
    %223 = vector.shape_cast %222 : vector<16xf32> to vector<16x1xf32>
    %cst_48 = arith.constant 3.200000e+01 : f32
    %224 = vector.broadcast %cst_48 : f32 to vector<16x1xf32>
    %225 = arith.divf %223, %224 : vector<16x1xf32>
    %226 = vector.broadcast %225 : vector<16x1xf32> to vector<16x32xf32>
    %227 = arith.subf %217, %226 : vector<16x32xf32>
    %228 = arith.mulf %227, %227 : vector<16x32xf32>
    %cst_49 = arith.constant dense<0.000000e+00> : vector<16xf32>
    %229 = vector.multi_reduction <add>, %228, %cst_49 [1] : vector<16x32xf32> to vector<16xf32>
    %230 = vector.shape_cast %229 : vector<16xf32> to vector<16x1xf32>
    %cst_50 = arith.constant 3.100000e+01 : f32
    %231 = vector.broadcast %cst_50 : f32 to vector<16x1xf32>
    %232 = arith.divf %230, %231 : vector<16x1xf32>
    %233 = vector.broadcast %225 : vector<16x1xf32> to vector<16x32xf32>
    %234 = arith.subf %217, %233 : vector<16x32xf32>
    %235 = math.sqrt %232 : vector<16x1xf32>
    %cst_51 = arith.constant 9.99999997E-7 : f32
    %236 = vector.broadcast %cst_51 : f32 to vector<16x1xf32>
    %237 = arith.addf %235, %236 : vector<16x1xf32>
    %238 = vector.broadcast %237 : vector<16x1xf32> to vector<16x32xf32>
    %239 = arith.divf %234, %238 : vector<16x32xf32>
    %240 = vector.broadcast %219 : vector<1x32xf32> to vector<16x32xf32>
    %241 = arith.mulf %240, %239 : vector<16x32xf32>
    %242 = vector.broadcast %221 : vector<1x32xf32> to vector<16x32xf32>
    %243 = arith.addf %241, %242 : vector<16x32xf32>
    %c0_52 = arith.constant 0 : index
    %c0_53 = arith.constant 0 : index
    %c0_54 = arith.constant 0 : index
    %244 = vector.load %arg14[%c0_52, %c0_53, %c0_54] : memref<2x32x32xbf16, #tpu.memory_space<vmem>>, vector<1x32x32xbf16>
    %245 = vector.shape_cast %244 : vector<1x32x32xbf16> to vector<32x32xbf16>
    %246 = arith.truncf %243 : vector<16x32xf32> to vector<16x32xbf16>
    %cst_55 = arith.constant dense<0.000000e+00> : vector<16x32xf32>
    %247 = tpu.matmul %246, %245, %cst_55 {dimension_numbers = #tpu.dot_dimension_numbers<[1], [0], [0], [1], [0, 0, 1, 1], [], []>} : vector<16x32xbf16>, vector<32x32xbf16>, vector<16x32xf32> -> vector<16x32xf32>
    %248 = vector.extract_strided_slice %247 {offsets = [0, 0], sizes = [8, 8], strides = [1, 1]} : vector<16x32xf32> to vector<8x8xf32>
    %249 = vector.extract_strided_slice %247 {offsets = [0, 8], sizes = [8, 8], strides = [1, 1]} : vector<16x32xf32> to vector<8x8xf32>
    %250 = vector.extract_strided_slice %247 {offsets = [0, 16], sizes = [8, 8], strides = [1, 1]} : vector<16x32xf32> to vector<8x8xf32>
    %251 = vector.extract_strided_slice %247 {offsets = [0, 24], sizes = [8, 8], strides = [1, 1]} : vector<16x32xf32> to vector<8x8xf32>
    %252 = vector.extract_strided_slice %247 {offsets = [8, 0], sizes = [8, 8], strides = [1, 1]} : vector<16x32xf32> to vector<8x8xf32>
    %253 = vector.extract_strided_slice %247 {offsets = [8, 8], sizes = [8, 8], strides = [1, 1]} : vector<16x32xf32> to vector<8x8xf32>
    %254 = vector.extract_strided_slice %247 {offsets = [8, 16], sizes = [8, 8], strides = [1, 1]} : vector<16x32xf32> to vector<8x8xf32>
    %255 = vector.extract_strided_slice %247 {offsets = [8, 24], sizes = [8, 8], strides = [1, 1]} : vector<16x32xf32> to vector<8x8xf32>
    %256 = vector.shape_cast %248 : vector<8x8xf32> to vector<1x8x8xf32>
    %257 = vector.shape_cast %249 : vector<8x8xf32> to vector<1x8x8xf32>
    %258 = vector.shape_cast %250 : vector<8x8xf32> to vector<1x8x8xf32>
    %259 = vector.shape_cast %251 : vector<8x8xf32> to vector<1x8x8xf32>
    %260 = vector.shape_cast %252 : vector<8x8xf32> to vector<1x8x8xf32>
    %261 = vector.shape_cast %253 : vector<8x8xf32> to vector<1x8x8xf32>
    %262 = vector.shape_cast %254 : vector<8x8xf32> to vector<1x8x8xf32>
    %263 = vector.shape_cast %255 : vector<8x8xf32> to vector<1x8x8xf32>
    %264 = tpu.concatenate %256, %257, %258, %259, %260, %261, %262, %263 in 0 : vector<1x8x8xf32>, vector<1x8x8xf32>, vector<1x8x8xf32>, vector<1x8x8xf32>, vector<1x8x8xf32>, vector<1x8x8xf32>, vector<1x8x8xf32>, vector<1x8x8xf32> -> vector<8x8x8xf32>
    %265 = arith.truncf %264 : vector<8x8x8xf32> to vector<8x8x8xbf16>
    %cst_56 = arith.constant dense<0.000000e+00> : vector<8x8x10xf32>
    %266 = tpu.matmul %265, %31, %cst_56 {dimension_numbers = #tpu.dot_dimension_numbers<[2], [2], [1], [1], [0, 0, 0, 1, 1, 1], [0], [0]>} : vector<8x8x8xbf16>, vector<8x10x8xbf16>, vector<8x8x10xf32> -> vector<8x8x10xf32>
    %cst_57 = arith.constant 5.000000e-01 : f32
    %267 = vector.broadcast %cst_57 : f32 to vector<8x1x10xf32>
    %268 = arith.cmpf ogt, %1, %267 : vector<8x1x10xf32>
    %cst_58 = arith.constant -9.99999984E+17 : f32
    %269 = vector.shape_cast %268 : vector<8x1x10xi1> to vector<8x1x10xi1>
    %270 = vector.broadcast %269 : vector<8x1x10xi1> to vector<8x8x10xi1>
    %271 = vector.broadcast %cst_58 : f32 to vector<8x8x10xf32>
    %272 = arith.select %270, %271, %266 : vector<8x8x10xi1>, vector<8x8x10xf32>
    %cst_59 = arith.constant dense<0xFF800000> : vector<8x8xf32>
    %273 = vector.multi_reduction <maximumf>, %272, %cst_59 [2] : vector<8x8x10xf32> to vector<8x8xf32>
    %274 = vector.shape_cast %273 : vector<8x8xf32> to vector<8x8x1xf32>
    %275 = vector.broadcast %274 : vector<8x8x1xf32> to vector<8x8x10xf32>
    %276 = arith.subf %272, %275 : vector<8x8x10xf32>
    %277 = math.exp %276 : vector<8x8x10xf32>
    %cst_60 = arith.constant dense<0.000000e+00> : vector<8x8xf32>
    %278 = vector.multi_reduction <add>, %277, %cst_60 [2] : vector<8x8x10xf32> to vector<8x8xf32>
    %279 = vector.shape_cast %278 : vector<8x8xf32> to vector<8x8x1xf32>
    %280 = tpu.reciprocal %279 {approx = true} : vector<8x8x1xf32> -> vector<8x8x1xf32>
    %281 = vector.broadcast %280 : vector<8x8x1xf32> to vector<8x8x10xf32>
    %282 = arith.mulf %277, %281 : vector<8x8x10xf32>
    %283 = arith.truncf %282 : vector<8x8x10xf32> to vector<8x8x10xbf16>
    %cst_61 = arith.constant dense<0.000000e+00> : vector<8x8x8xf32>
    %284 = tpu.matmul %283, %50, %cst_61 {dimension_numbers = #tpu.dot_dimension_numbers<[2], [1], [1], [2], [0, 0, 0, 1, 1, 2], [0], [0]>} : vector<8x8x10xbf16>, vector<8x10x8xbf16>, vector<8x8x8xf32> -> vector<8x8x8xf32>
    %285 = vector.extract_strided_slice %284 {offsets = [0, 0, 0], sizes = [1, 8, 8], strides = [1, 1, 1]} : vector<8x8x8xf32> to vector<1x8x8xf32>
    %286 = vector.shape_cast %285 : vector<1x8x8xf32> to vector<8x8xf32>
    %287 = vector.extract_strided_slice %284 {offsets = [1, 0, 0], sizes = [1, 8, 8], strides = [1, 1, 1]} : vector<8x8x8xf32> to vector<1x8x8xf32>
    %288 = vector.shape_cast %287 : vector<1x8x8xf32> to vector<8x8xf32>
    %289 = vector.extract_strided_slice %284 {offsets = [2, 0, 0], sizes = [1, 8, 8], strides = [1, 1, 1]} : vector<8x8x8xf32> to vector<1x8x8xf32>
    %290 = vector.shape_cast %289 : vector<1x8x8xf32> to vector<8x8xf32>
    %291 = vector.extract_strided_slice %284 {offsets = [3, 0, 0], sizes = [1, 8, 8], strides = [1, 1, 1]} : vector<8x8x8xf32> to vector<1x8x8xf32>
    %292 = vector.shape_cast %291 : vector<1x8x8xf32> to vector<8x8xf32>
    %293 = tpu.concatenate %286, %288, %290, %292 in 1 : vector<8x8xf32>, vector<8x8xf32>, vector<8x8xf32>, vector<8x8xf32> -> vector<8x32xf32>
    %294 = vector.extract_strided_slice %284 {offsets = [4, 0, 0], sizes = [1, 8, 8], strides = [1, 1, 1]} : vector<8x8x8xf32> to vector<1x8x8xf32>
    %295 = vector.shape_cast %294 : vector<1x8x8xf32> to vector<8x8xf32>
    %296 = vector.extract_strided_slice %284 {offsets = [5, 0, 0], sizes = [1, 8, 8], strides = [1, 1, 1]} : vector<8x8x8xf32> to vector<1x8x8xf32>
    %297 = vector.shape_cast %296 : vector<1x8x8xf32> to vector<8x8xf32>
    %298 = vector.extract_strided_slice %284 {offsets = [6, 0, 0], sizes = [1, 8, 8], strides = [1, 1, 1]} : vector<8x8x8xf32> to vector<1x8x8xf32>
    %299 = vector.shape_cast %298 : vector<1x8x8xf32> to vector<8x8xf32>
    %300 = vector.extract_strided_slice %284 {offsets = [7, 0, 0], sizes = [1, 8, 8], strides = [1, 1, 1]} : vector<8x8x8xf32> to vector<1x8x8xf32>
    %301 = vector.shape_cast %300 : vector<1x8x8xf32> to vector<8x8xf32>
    %302 = tpu.concatenate %295, %297, %299, %301 in 1 : vector<8x8xf32>, vector<8x8xf32>, vector<8x8xf32>, vector<8x8xf32> -> vector<8x32xf32>
    %303 = tpu.concatenate %293, %302 in 0 : vector<8x32xf32>, vector<8x32xf32> -> vector<16x32xf32>
    %c0_62 = arith.constant 0 : index
    %c0_63 = arith.constant 0 : index
    %c0_64 = arith.constant 0 : index
    %304 = vector.load %arg15[%c0_62, %c0_63, %c0_64] : memref<2x32x32xbf16, #tpu.memory_space<vmem>>, vector<1x32x32xbf16>
    %305 = vector.shape_cast %304 : vector<1x32x32xbf16> to vector<32x32xbf16>
    %306 = arith.truncf %303 : vector<16x32xf32> to vector<16x32xbf16>
    %cst_65 = arith.constant dense<0.000000e+00> : vector<16x32xf32>
    %307 = tpu.matmul %306, %305, %cst_65 {dimension_numbers = #tpu.dot_dimension_numbers<[1], [0], [0], [1], [0, 0, 1, 1], [], []>} : vector<16x32xbf16>, vector<32x32xbf16>, vector<16x32xf32> -> vector<16x32xf32>
    %308 = arith.addf %217, %307 : vector<16x32xf32>
    %c0_66 = arith.constant 0 : index
    %c0_67 = arith.constant 0 : index
    %c0_68 = arith.constant 0 : index
    %309 = vector.load %arg16[%c0_66, %c0_67, %c0_68] : memref<2x1x32xf32, #tpu.memory_space<vmem>>, vector<1x1x32xf32>
    %310 = vector.shape_cast %309 : vector<1x1x32xf32> to vector<1x32xf32>
    %c0_69 = arith.constant 0 : index
    %c0_70 = arith.constant 0 : index
    %c0_71 = arith.constant 0 : index
    %311 = vector.load %arg17[%c0_69, %c0_70, %c0_71] : memref<2x1x32xf32, #tpu.memory_space<vmem>>, vector<1x1x32xf32>
    %312 = vector.shape_cast %311 : vector<1x1x32xf32> to vector<1x32xf32>
    %cst_72 = arith.constant dense<0.000000e+00> : vector<16xf32>
    %313 = vector.multi_reduction <add>, %308, %cst_72 [1] : vector<16x32xf32> to vector<16xf32>
    %314 = vector.shape_cast %313 : vector<16xf32> to vector<16x1xf32>
    %cst_73 = arith.constant 3.200000e+01 : f32
    %315 = vector.broadcast %cst_73 : f32 to vector<16x1xf32>
    %316 = arith.divf %314, %315 : vector<16x1xf32>
    %317 = vector.broadcast %316 : vector<16x1xf32> to vector<16x32xf32>
    %318 = arith.subf %308, %317 : vector<16x32xf32>
    %319 = arith.mulf %318, %318 : vector<16x32xf32>
    %cst_74 = arith.constant dense<0.000000e+00> : vector<16xf32>
    %320 = vector.multi_reduction <add>, %319, %cst_74 [1] : vector<16x32xf32> to vector<16xf32>
    %321 = vector.shape_cast %320 : vector<16xf32> to vector<16x1xf32>
    %cst_75 = arith.constant 3.100000e+01 : f32
    %322 = vector.broadcast %cst_75 : f32 to vector<16x1xf32>
    %323 = arith.divf %321, %322 : vector<16x1xf32>
    %324 = vector.broadcast %316 : vector<16x1xf32> to vector<16x32xf32>
    %325 = arith.subf %308, %324 : vector<16x32xf32>
    %326 = math.sqrt %323 : vector<16x1xf32>
    %cst_76 = arith.constant 9.99999997E-7 : f32
    %327 = vector.broadcast %cst_76 : f32 to vector<16x1xf32>
    %328 = arith.addf %326, %327 : vector<16x1xf32>
    %329 = vector.broadcast %328 : vector<16x1xf32> to vector<16x32xf32>
    %330 = arith.divf %325, %329 : vector<16x32xf32>
    %331 = vector.broadcast %310 : vector<1x32xf32> to vector<16x32xf32>
    %332 = arith.mulf %331, %330 : vector<16x32xf32>
    %333 = vector.broadcast %312 : vector<1x32xf32> to vector<16x32xf32>
    %334 = arith.addf %332, %333 : vector<16x32xf32>
    %c0_77 = arith.constant 0 : index
    %c0_78 = arith.constant 0 : index
    %c0_79 = arith.constant 0 : index
    %335 = vector.load %arg18[%c0_77, %c0_78, %c0_79] : memref<2x32x64xbf16, #tpu.memory_space<vmem>>, vector<1x32x64xbf16>
    %336 = vector.shape_cast %335 : vector<1x32x64xbf16> to vector<32x64xbf16>
    %337 = arith.truncf %334 : vector<16x32xf32> to vector<16x32xbf16>
    %cst_80 = arith.constant dense<0.000000e+00> : vector<16x64xf32>
    %338 = tpu.matmul %337, %336, %cst_80 {dimension_numbers = #tpu.dot_dimension_numbers<[1], [0], [0], [1], [0, 0, 1, 1], [], []>} : vector<16x32xbf16>, vector<32x64xbf16>, vector<16x64xf32> -> vector<16x64xf32>
    %c0_81 = arith.constant 0 : index
    %c0_82 = arith.constant 0 : index
    %c0_83 = arith.constant 0 : index
    %339 = vector.load %arg19[%c0_81, %c0_82, %c0_83] : memref<2x1x64xf32, #tpu.memory_space<vmem>>, vector<1x1x64xf32>
    %340 = vector.shape_cast %339 : vector<1x1x64xf32> to vector<1x64xf32>
    %341 = vector.broadcast %340 : vector<1x64xf32> to vector<16x64xf32>
    %342 = arith.addf %338, %341 : vector<16x64xf32>
    %cst_84 = arith.constant 0.000000e+00 : f32
    %343 = vector.broadcast %cst_84 : f32 to vector<16x64xf32>
    %344 = arith.maximumf %342, %343 : vector<16x64xf32>
    %c0_85 = arith.constant 0 : index
    %c0_86 = arith.constant 0 : index
    %c0_87 = arith.constant 0 : index
    %345 = vector.load %arg20[%c0_85, %c0_86, %c0_87] : memref<2x64x32xbf16, #tpu.memory_space<vmem>>, vector<1x64x32xbf16>
    %346 = vector.shape_cast %345 : vector<1x64x32xbf16> to vector<64x32xbf16>
    %347 = arith.truncf %344 : vector<16x64xf32> to vector<16x64xbf16>
    %cst_88 = arith.constant dense<0.000000e+00> : vector<16x32xf32>
    %348 = tpu.matmul %347, %346, %cst_88 {dimension_numbers = #tpu.dot_dimension_numbers<[1], [0], [0], [1], [0, 0, 1, 1], [], []>} : vector<16x64xbf16>, vector<64x32xbf16>, vector<16x32xf32> -> vector<16x32xf32>
    %349 = arith.addf %308, %348 : vector<16x32xf32>
    %c0_89 = arith.constant 0 : index
    %c0_90 = arith.constant 0 : index
    %c0_91 = arith.constant 0 : index
    %350 = vector.load %arg21[%c0_89, %c0_90, %c0_91] : memref<2x1x32xf32, #tpu.memory_space<vmem>>, vector<1x1x32xf32>
    %351 = vector.shape_cast %350 : vector<1x1x32xf32> to vector<1x32xf32>
    %352 = vector.broadcast %351 : vector<1x32xf32> to vector<16x32xf32>
    %353 = arith.addf %349, %352 : vector<16x32xf32>
    %c1 = arith.constant 1 : index
    %c0_92 = arith.constant 0 : index
    %c0_93 = arith.constant 0 : index
    %354 = vector.load %arg8[%c1, %c0_92, %c0_93] : memref<2x1x32xf32, #tpu.memory_space<vmem>>, vector<1x1x32xf32>
    %355 = vector.shape_cast %354 : vector<1x1x32xf32> to vector<1x32xf32>
    %c1_94 = arith.constant 1 : index
    %c0_95 = arith.constant 0 : index
    %c0_96 = arith.constant 0 : index
    %356 = vector.load %arg9[%c1_94, %c0_95, %c0_96] : memref<2x1x32xf32, #tpu.memory_space<vmem>>, vector<1x1x32xf32>
    %357 = vector.shape_cast %356 : vector<1x1x32xf32> to vector<1x32xf32>
    %cst_97 = arith.constant dense<0.000000e+00> : vector<16xf32>
    %358 = vector.multi_reduction <add>, %353, %cst_97 [1] : vector<16x32xf32> to vector<16xf32>
    %359 = vector.shape_cast %358 : vector<16xf32> to vector<16x1xf32>
    %cst_98 = arith.constant 3.200000e+01 : f32
    %360 = vector.broadcast %cst_98 : f32 to vector<16x1xf32>
    %361 = arith.divf %359, %360 : vector<16x1xf32>
    %362 = vector.broadcast %361 : vector<16x1xf32> to vector<16x32xf32>
    %363 = arith.subf %353, %362 : vector<16x32xf32>
    %364 = arith.mulf %363, %363 : vector<16x32xf32>
    %cst_99 = arith.constant dense<0.000000e+00> : vector<16xf32>
    %365 = vector.multi_reduction <add>, %364, %cst_99 [1] : vector<16x32xf32> to vector<16xf32>
    %366 = vector.shape_cast %365 : vector<16xf32> to vector<16x1xf32>
    %cst_100 = arith.constant 3.100000e+01 : f32
    %367 = vector.broadcast %cst_100 : f32 to vector<16x1xf32>
    %368 = arith.divf %366, %367 : vector<16x1xf32>
    %369 = vector.broadcast %361 : vector<16x1xf32> to vector<16x32xf32>
    %370 = arith.subf %353, %369 : vector<16x32xf32>
    %371 = math.sqrt %368 : vector<16x1xf32>
    %cst_101 = arith.constant 9.99999997E-7 : f32
    %372 = vector.broadcast %cst_101 : f32 to vector<16x1xf32>
    %373 = arith.addf %371, %372 : vector<16x1xf32>
    %374 = vector.broadcast %373 : vector<16x1xf32> to vector<16x32xf32>
    %375 = arith.divf %370, %374 : vector<16x32xf32>
    %376 = vector.broadcast %355 : vector<1x32xf32> to vector<16x32xf32>
    %377 = arith.mulf %376, %375 : vector<16x32xf32>
    %378 = vector.broadcast %357 : vector<1x32xf32> to vector<16x32xf32>
    %379 = arith.addf %377, %378 : vector<16x32xf32>
    %c1_102 = arith.constant 1 : index
    %c0_103 = arith.constant 0 : index
    %c0_104 = arith.constant 0 : index
    %380 = vector.load %arg10[%c1_102, %c0_103, %c0_104] : memref<2x32x96xbf16, #tpu.memory_space<vmem>>, vector<1x32x96xbf16>
    %381 = vector.shape_cast %380 : vector<1x32x96xbf16> to vector<32x96xbf16>
    %382 = arith.truncf %379 : vector<16x32xf32> to vector<16x32xbf16>
    %cst_105 = arith.constant dense<0.000000e+00> : vector<16x96xf32>
    %383 = tpu.matmul %382, %381, %cst_105 {dimension_numbers = #tpu.dot_dimension_numbers<[1], [0], [0], [1], [0, 0, 1, 1], [], []>} : vector<16x32xbf16>, vector<32x96xbf16>, vector<16x96xf32> -> vector<16x96xf32>
    %384 = vector.extract_strided_slice %383 {offsets = [0, 0], sizes = [16, 32], strides = [1, 1]} : vector<16x96xf32> to vector<16x32xf32>
    %385 = vector.extract_strided_slice %384 {offsets = [0, 0], sizes = [8, 8], strides = [1, 1]} : vector<16x32xf32> to vector<8x8xf32>
    %386 = vector.extract_strided_slice %384 {offsets = [0, 8], sizes = [8, 8], strides = [1, 1]} : vector<16x32xf32> to vector<8x8xf32>
    %387 = vector.extract_strided_slice %384 {offsets = [0, 16], sizes = [8, 8], strides = [1, 1]} : vector<16x32xf32> to vector<8x8xf32>
    %388 = vector.extract_strided_slice %384 {offsets = [0, 24], sizes = [8, 8], strides = [1, 1]} : vector<16x32xf32> to vector<8x8xf32>
    %389 = vector.extract_strided_slice %384 {offsets = [8, 0], sizes = [8, 8], strides = [1, 1]} : vector<16x32xf32> to vector<8x8xf32>
    %390 = vector.extract_strided_slice %384 {offsets = [8, 8], sizes = [8, 8], strides = [1, 1]} : vector<16x32xf32> to vector<8x8xf32>
    %391 = vector.extract_strided_slice %384 {offsets = [8, 16], sizes = [8, 8], strides = [1, 1]} : vector<16x32xf32> to vector<8x8xf32>
    %392 = vector.extract_strided_slice %384 {offsets = [8, 24], sizes = [8, 8], strides = [1, 1]} : vector<16x32xf32> to vector<8x8xf32>
    %393 = vector.shape_cast %385 : vector<8x8xf32> to vector<1x8x8xf32>
    %394 = vector.shape_cast %386 : vector<8x8xf32> to vector<1x8x8xf32>
    %395 = vector.shape_cast %387 : vector<8x8xf32> to vector<1x8x8xf32>
    %396 = vector.shape_cast %388 : vector<8x8xf32> to vector<1x8x8xf32>
    %397 = vector.shape_cast %389 : vector<8x8xf32> to vector<1x8x8xf32>
    %398 = vector.shape_cast %390 : vector<8x8xf32> to vector<1x8x8xf32>
    %399 = vector.shape_cast %391 : vector<8x8xf32> to vector<1x8x8xf32>
    %400 = vector.shape_cast %392 : vector<8x8xf32> to vector<1x8x8xf32>
    %401 = tpu.concatenate %393, %394, %395, %396, %397, %398, %399, %400 in 0 : vector<1x8x8xf32>, vector<1x8x8xf32>, vector<1x8x8xf32>, vector<1x8x8xf32>, vector<1x8x8xf32>, vector<1x8x8xf32>, vector<1x8x8xf32>, vector<1x8x8xf32> -> vector<8x8x8xf32>
    %402 = arith.truncf %401 : vector<8x8x8xf32> to vector<8x8x8xbf16>
    %403 = vector.extract_strided_slice %383 {offsets = [0, 32], sizes = [16, 32], strides = [1, 1]} : vector<16x96xf32> to vector<16x32xf32>
    %404 = vector.extract_strided_slice %403 {offsets = [0, 0], sizes = [8, 8], strides = [1, 1]} : vector<16x32xf32> to vector<8x8xf32>
    %405 = vector.extract_strided_slice %403 {offsets = [0, 8], sizes = [8, 8], strides = [1, 1]} : vector<16x32xf32> to vector<8x8xf32>
    %406 = vector.extract_strided_slice %403 {offsets = [0, 16], sizes = [8, 8], strides = [1, 1]} : vector<16x32xf32> to vector<8x8xf32>
    %407 = vector.extract_strided_slice %403 {offsets = [0, 24], sizes = [8, 8], strides = [1, 1]} : vector<16x32xf32> to vector<8x8xf32>
    %408 = vector.extract_strided_slice %403 {offsets = [8, 0], sizes = [8, 8], strides = [1, 1]} : vector<16x32xf32> to vector<8x8xf32>
    %409 = vector.extract_strided_slice %403 {offsets = [8, 8], sizes = [8, 8], strides = [1, 1]} : vector<16x32xf32> to vector<8x8xf32>
    %410 = vector.extract_strided_slice %403 {offsets = [8, 16], sizes = [8, 8], strides = [1, 1]} : vector<16x32xf32> to vector<8x8xf32>
    %411 = vector.extract_strided_slice %403 {offsets = [8, 24], sizes = [8, 8], strides = [1, 1]} : vector<16x32xf32> to vector<8x8xf32>
    %412 = vector.shape_cast %404 : vector<8x8xf32> to vector<1x8x8xf32>
    %413 = vector.shape_cast %405 : vector<8x8xf32> to vector<1x8x8xf32>
    %414 = vector.shape_cast %406 : vector<8x8xf32> to vector<1x8x8xf32>
    %415 = vector.shape_cast %407 : vector<8x8xf32> to vector<1x8x8xf32>
    %416 = vector.shape_cast %408 : vector<8x8xf32> to vector<1x8x8xf32>
    %417 = vector.shape_cast %409 : vector<8x8xf32> to vector<1x8x8xf32>
    %418 = vector.shape_cast %410 : vector<8x8xf32> to vector<1x8x8xf32>
    %419 = vector.shape_cast %411 : vector<8x8xf32> to vector<1x8x8xf32>
    %420 = tpu.concatenate %412, %413, %414, %415, %416, %417, %418, %419 in 0 : vector<1x8x8xf32>, vector<1x8x8xf32>, vector<1x8x8xf32>, vector<1x8x8xf32>, vector<1x8x8xf32>, vector<1x8x8xf32>, vector<1x8x8xf32>, vector<1x8x8xf32> -> vector<8x8x8xf32>
    %421 = arith.truncf %420 : vector<8x8x8xf32> to vector<8x8x8xbf16>
    %422 = vector.extract_strided_slice %383 {offsets = [0, 64], sizes = [16, 32], strides = [1, 1]} : vector<16x96xf32> to vector<16x32xf32>
    %423 = vector.extract_strided_slice %422 {offsets = [0, 0], sizes = [8, 8], strides = [1, 1]} : vector<16x32xf32> to vector<8x8xf32>
    %424 = vector.extract_strided_slice %422 {offsets = [0, 8], sizes = [8, 8], strides = [1, 1]} : vector<16x32xf32> to vector<8x8xf32>
    %425 = vector.extract_strided_slice %422 {offsets = [0, 16], sizes = [8, 8], strides = [1, 1]} : vector<16x32xf32> to vector<8x8xf32>
    %426 = vector.extract_strided_slice %422 {offsets = [0, 24], sizes = [8, 8], strides = [1, 1]} : vector<16x32xf32> to vector<8x8xf32>
    %427 = vector.extract_strided_slice %422 {offsets = [8, 0], sizes = [8, 8], strides = [1, 1]} : vector<16x32xf32> to vector<8x8xf32>
    %428 = vector.extract_strided_slice %422 {offsets = [8, 8], sizes = [8, 8], strides = [1, 1]} : vector<16x32xf32> to vector<8x8xf32>
    %429 = vector.extract_strided_slice %422 {offsets = [8, 16], sizes = [8, 8], strides = [1, 1]} : vector<16x32xf32> to vector<8x8xf32>
    %430 = vector.extract_strided_slice %422 {offsets = [8, 24], sizes = [8, 8], strides = [1, 1]} : vector<16x32xf32> to vector<8x8xf32>
    %431 = vector.shape_cast %423 : vector<8x8xf32> to vector<1x8x8xf32>
    %432 = vector.shape_cast %424 : vector<8x8xf32> to vector<1x8x8xf32>
    %433 = vector.shape_cast %425 : vector<8x8xf32> to vector<1x8x8xf32>
    %434 = vector.shape_cast %426 : vector<8x8xf32> to vector<1x8x8xf32>
    %435 = vector.shape_cast %427 : vector<8x8xf32> to vector<1x8x8xf32>
    %436 = vector.shape_cast %428 : vector<8x8xf32> to vector<1x8x8xf32>
    %437 = vector.shape_cast %429 : vector<8x8xf32> to vector<1x8x8xf32>
    %438 = vector.shape_cast %430 : vector<8x8xf32> to vector<1x8x8xf32>
    %439 = tpu.concatenate %431, %432, %433, %434, %435, %436, %437, %438 in 0 : vector<1x8x8xf32>, vector<1x8x8xf32>, vector<1x8x8xf32>, vector<1x8x8xf32>, vector<1x8x8xf32>, vector<1x8x8xf32>, vector<1x8x8xf32>, vector<1x8x8xf32> -> vector<8x8x8xf32>
    %440 = arith.truncf %439 : vector<8x8x8xf32> to vector<8x8x8xbf16>
    %cst_106 = arith.constant dense<0.000000e+00> : vector<8x8x8xf32>
    %441 = tpu.matmul %402, %421, %cst_106 {dimension_numbers = #tpu.dot_dimension_numbers<[2], [2], [1], [1], [0, 0, 0, 1, 1, 1], [0], [0]>} : vector<8x8x8xbf16>, vector<8x8x8xbf16>, vector<8x8x8xf32> -> vector<8x8x8xf32>
    %cst_107 = arith.constant 5.000000e-01 : f32
    %442 = vector.broadcast %cst_107 : f32 to vector<8x8x8xf32>
    %443 = arith.cmpf ogt, %0, %442 : vector<8x8x8xf32>
    %cst_108 = arith.constant -9.99999984E+17 : f32
    %444 = vector.broadcast %cst_108 : f32 to vector<8x8x8xf32>
    %445 = arith.select %443, %444, %441 : vector<8x8x8xi1>, vector<8x8x8xf32>
    %cst_109 = arith.constant dense<0xFF800000> : vector<8x8xf32>
    %446 = vector.multi_reduction <maximumf>, %445, %cst_109 [2] : vector<8x8x8xf32> to vector<8x8xf32>
    %447 = vector.shape_cast %446 : vector<8x8xf32> to vector<8x8x1xf32>
    %448 = vector.broadcast %447 : vector<8x8x1xf32> to vector<8x8x8xf32>
    %449 = arith.subf %445, %448 : vector<8x8x8xf32>
    %450 = math.exp %449 : vector<8x8x8xf32>
    %cst_110 = arith.constant dense<0.000000e+00> : vector<8x8xf32>
    %451 = vector.multi_reduction <add>, %450, %cst_110 [2] : vector<8x8x8xf32> to vector<8x8xf32>
    %452 = vector.shape_cast %451 : vector<8x8xf32> to vector<8x8x1xf32>
    %453 = tpu.reciprocal %452 {approx = true} : vector<8x8x1xf32> -> vector<8x8x1xf32>
    %454 = vector.broadcast %453 : vector<8x8x1xf32> to vector<8x8x8xf32>
    %455 = arith.mulf %450, %454 : vector<8x8x8xf32>
    %456 = arith.truncf %455 : vector<8x8x8xf32> to vector<8x8x8xbf16>
    %cst_111 = arith.constant dense<0.000000e+00> : vector<8x8x8xf32>
    %457 = tpu.matmul %456, %440, %cst_111 {dimension_numbers = #tpu.dot_dimension_numbers<[2], [1], [1], [2], [0, 0, 0, 1, 1, 2], [0], [0]>} : vector<8x8x8xbf16>, vector<8x8x8xbf16>, vector<8x8x8xf32> -> vector<8x8x8xf32>
    %458 = vector.extract_strided_slice %457 {offsets = [0, 0, 0], sizes = [1, 8, 8], strides = [1, 1, 1]} : vector<8x8x8xf32> to vector<1x8x8xf32>
    %459 = vector.shape_cast %458 : vector<1x8x8xf32> to vector<8x8xf32>
    %460 = vector.extract_strided_slice %457 {offsets = [1, 0, 0], sizes = [1, 8, 8], strides = [1, 1, 1]} : vector<8x8x8xf32> to vector<1x8x8xf32>
    %461 = vector.shape_cast %460 : vector<1x8x8xf32> to vector<8x8xf32>
    %462 = vector.extract_strided_slice %457 {offsets = [2, 0, 0], sizes = [1, 8, 8], strides = [1, 1, 1]} : vector<8x8x8xf32> to vector<1x8x8xf32>
    %463 = vector.shape_cast %462 : vector<1x8x8xf32> to vector<8x8xf32>
    %464 = vector.extract_strided_slice %457 {offsets = [3, 0, 0], sizes = [1, 8, 8], strides = [1, 1, 1]} : vector<8x8x8xf32> to vector<1x8x8xf32>
    %465 = vector.shape_cast %464 : vector<1x8x8xf32> to vector<8x8xf32>
    %466 = tpu.concatenate %459, %461, %463, %465 in 1 : vector<8x8xf32>, vector<8x8xf32>, vector<8x8xf32>, vector<8x8xf32> -> vector<8x32xf32>
    %467 = vector.extract_strided_slice %457 {offsets = [4, 0, 0], sizes = [1, 8, 8], strides = [1, 1, 1]} : vector<8x8x8xf32> to vector<1x8x8xf32>
    %468 = vector.shape_cast %467 : vector<1x8x8xf32> to vector<8x8xf32>
    %469 = vector.extract_strided_slice %457 {offsets = [5, 0, 0], sizes = [1, 8, 8], strides = [1, 1, 1]} : vector<8x8x8xf32> to vector<1x8x8xf32>
    %470 = vector.shape_cast %469 : vector<1x8x8xf32> to vector<8x8xf32>
    %471 = vector.extract_strided_slice %457 {offsets = [6, 0, 0], sizes = [1, 8, 8], strides = [1, 1, 1]} : vector<8x8x8xf32> to vector<1x8x8xf32>
    %472 = vector.shape_cast %471 : vector<1x8x8xf32> to vector<8x8xf32>
    %473 = vector.extract_strided_slice %457 {offsets = [7, 0, 0], sizes = [1, 8, 8], strides = [1, 1, 1]} : vector<8x8x8xf32> to vector<1x8x8xf32>
    %474 = vector.shape_cast %473 : vector<1x8x8xf32> to vector<8x8xf32>
    %475 = tpu.concatenate %468, %470, %472, %474 in 1 : vector<8x8xf32>, vector<8x8xf32>, vector<8x8xf32>, vector<8x8xf32> -> vector<8x32xf32>
    %476 = tpu.concatenate %466, %475 in 0 : vector<8x32xf32>, vector<8x32xf32> -> vector<16x32xf32>
    %c1_112 = arith.constant 1 : index
    %c0_113 = arith.constant 0 : index
    %c0_114 = arith.constant 0 : index
    %477 = vector.load %arg11[%c1_112, %c0_113, %c0_114] : memref<2x32x32xbf16, #tpu.memory_space<vmem>>, vector<1x32x32xbf16>
    %478 = vector.shape_cast %477 : vector<1x32x32xbf16> to vector<32x32xbf16>
    %479 = arith.truncf %476 : vector<16x32xf32> to vector<16x32xbf16>
    %cst_115 = arith.constant dense<0.000000e+00> : vector<16x32xf32>
    %480 = tpu.matmul %479, %478, %cst_115 {dimension_numbers = #tpu.dot_dimension_numbers<[1], [0], [0], [1], [0, 0, 1, 1], [], []>} : vector<16x32xbf16>, vector<32x32xbf16>, vector<16x32xf32> -> vector<16x32xf32>
    %481 = arith.addf %353, %480 : vector<16x32xf32>
    %c1_116 = arith.constant 1 : index
    %c0_117 = arith.constant 0 : index
    %c0_118 = arith.constant 0 : index
    %482 = vector.load %arg12[%c1_116, %c0_117, %c0_118] : memref<2x1x32xf32, #tpu.memory_space<vmem>>, vector<1x1x32xf32>
    %483 = vector.shape_cast %482 : vector<1x1x32xf32> to vector<1x32xf32>
    %c1_119 = arith.constant 1 : index
    %c0_120 = arith.constant 0 : index
    %c0_121 = arith.constant 0 : index
    %484 = vector.load %arg13[%c1_119, %c0_120, %c0_121] : memref<2x1x32xf32, #tpu.memory_space<vmem>>, vector<1x1x32xf32>
    %485 = vector.shape_cast %484 : vector<1x1x32xf32> to vector<1x32xf32>
    %cst_122 = arith.constant dense<0.000000e+00> : vector<16xf32>
    %486 = vector.multi_reduction <add>, %481, %cst_122 [1] : vector<16x32xf32> to vector<16xf32>
    %487 = vector.shape_cast %486 : vector<16xf32> to vector<16x1xf32>
    %cst_123 = arith.constant 3.200000e+01 : f32
    %488 = vector.broadcast %cst_123 : f32 to vector<16x1xf32>
    %489 = arith.divf %487, %488 : vector<16x1xf32>
    %490 = vector.broadcast %489 : vector<16x1xf32> to vector<16x32xf32>
    %491 = arith.subf %481, %490 : vector<16x32xf32>
    %492 = arith.mulf %491, %491 : vector<16x32xf32>
    %cst_124 = arith.constant dense<0.000000e+00> : vector<16xf32>
    %493 = vector.multi_reduction <add>, %492, %cst_124 [1] : vector<16x32xf32> to vector<16xf32>
    %494 = vector.shape_cast %493 : vector<16xf32> to vector<16x1xf32>
    %cst_125 = arith.constant 3.100000e+01 : f32
    %495 = vector.broadcast %cst_125 : f32 to vector<16x1xf32>
    %496 = arith.divf %494, %495 : vector<16x1xf32>
    %497 = vector.broadcast %489 : vector<16x1xf32> to vector<16x32xf32>
    %498 = arith.subf %481, %497 : vector<16x32xf32>
    %499 = math.sqrt %496 : vector<16x1xf32>
    %cst_126 = arith.constant 9.99999997E-7 : f32
    %500 = vector.broadcast %cst_126 : f32 to vector<16x1xf32>
    %501 = arith.addf %499, %500 : vector<16x1xf32>
    %502 = vector.broadcast %501 : vector<16x1xf32> to vector<16x32xf32>
    %503 = arith.divf %498, %502 : vector<16x32xf32>
    %504 = vector.broadcast %483 : vector<1x32xf32> to vector<16x32xf32>
    %505 = arith.mulf %504, %503 : vector<16x32xf32>
    %506 = vector.broadcast %485 : vector<1x32xf32> to vector<16x32xf32>
    %507 = arith.addf %505, %506 : vector<16x32xf32>
    %c1_127 = arith.constant 1 : index
    %c0_128 = arith.constant 0 : index
    %c0_129 = arith.constant 0 : index
    %508 = vector.load %arg14[%c1_127, %c0_128, %c0_129] : memref<2x32x32xbf16, #tpu.memory_space<vmem>>, vector<1x32x32xbf16>
    %509 = vector.shape_cast %508 : vector<1x32x32xbf16> to vector<32x32xbf16>
    %510 = arith.truncf %507 : vector<16x32xf32> to vector<16x32xbf16>
    %cst_130 = arith.constant dense<0.000000e+00> : vector<16x32xf32>
    %511 = tpu.matmul %510, %509, %cst_130 {dimension_numbers = #tpu.dot_dimension_numbers<[1], [0], [0], [1], [0, 0, 1, 1], [], []>} : vector<16x32xbf16>, vector<32x32xbf16>, vector<16x32xf32> -> vector<16x32xf32>
    %512 = vector.extract_strided_slice %511 {offsets = [0, 0], sizes = [8, 8], strides = [1, 1]} : vector<16x32xf32> to vector<8x8xf32>
    %513 = vector.extract_strided_slice %511 {offsets = [0, 8], sizes = [8, 8], strides = [1, 1]} : vector<16x32xf32> to vector<8x8xf32>
    %514 = vector.extract_strided_slice %511 {offsets = [0, 16], sizes = [8, 8], strides = [1, 1]} : vector<16x32xf32> to vector<8x8xf32>
    %515 = vector.extract_strided_slice %511 {offsets = [0, 24], sizes = [8, 8], strides = [1, 1]} : vector<16x32xf32> to vector<8x8xf32>
    %516 = vector.extract_strided_slice %511 {offsets = [8, 0], sizes = [8, 8], strides = [1, 1]} : vector<16x32xf32> to vector<8x8xf32>
    %517 = vector.extract_strided_slice %511 {offsets = [8, 8], sizes = [8, 8], strides = [1, 1]} : vector<16x32xf32> to vector<8x8xf32>
    %518 = vector.extract_strided_slice %511 {offsets = [8, 16], sizes = [8, 8], strides = [1, 1]} : vector<16x32xf32> to vector<8x8xf32>
    %519 = vector.extract_strided_slice %511 {offsets = [8, 24], sizes = [8, 8], strides = [1, 1]} : vector<16x32xf32> to vector<8x8xf32>
    %520 = vector.shape_cast %512 : vector<8x8xf32> to vector<1x8x8xf32>
    %521 = vector.shape_cast %513 : vector<8x8xf32> to vector<1x8x8xf32>
    %522 = vector.shape_cast %514 : vector<8x8xf32> to vector<1x8x8xf32>
    %523 = vector.shape_cast %515 : vector<8x8xf32> to vector<1x8x8xf32>
    %524 = vector.shape_cast %516 : vector<8x8xf32> to vector<1x8x8xf32>
    %525 = vector.shape_cast %517 : vector<8x8xf32> to vector<1x8x8xf32>
    %526 = vector.shape_cast %518 : vector<8x8xf32> to vector<1x8x8xf32>
    %527 = vector.shape_cast %519 : vector<8x8xf32> to vector<1x8x8xf32>
    %528 = tpu.concatenate %520, %521, %522, %523, %524, %525, %526, %527 in 0 : vector<1x8x8xf32>, vector<1x8x8xf32>, vector<1x8x8xf32>, vector<1x8x8xf32>, vector<1x8x8xf32>, vector<1x8x8xf32>, vector<1x8x8xf32>, vector<1x8x8xf32> -> vector<8x8x8xf32>
    %529 = arith.truncf %528 : vector<8x8x8xf32> to vector<8x8x8xbf16>
    %cst_131 = arith.constant dense<0.000000e+00> : vector<8x8x10xf32>
    %530 = tpu.matmul %529, %70, %cst_131 {dimension_numbers = #tpu.dot_dimension_numbers<[2], [2], [1], [1], [0, 0, 0, 1, 1, 1], [0], [0]>} : vector<8x8x8xbf16>, vector<8x10x8xbf16>, vector<8x8x10xf32> -> vector<8x8x10xf32>
    %cst_132 = arith.constant 5.000000e-01 : f32
    %531 = vector.broadcast %cst_132 : f32 to vector<8x1x10xf32>
    %532 = arith.cmpf ogt, %1, %531 : vector<8x1x10xf32>
    %cst_133 = arith.constant -9.99999984E+17 : f32
    %533 = vector.shape_cast %532 : vector<8x1x10xi1> to vector<8x1x10xi1>
    %534 = vector.broadcast %533 : vector<8x1x10xi1> to vector<8x8x10xi1>
    %535 = vector.broadcast %cst_133 : f32 to vector<8x8x10xf32>
    %536 = arith.select %534, %535, %530 : vector<8x8x10xi1>, vector<8x8x10xf32>
    %537 = vector.extract_strided_slice %536 {offsets = [0, 0, 0], sizes = [1, 8, 10], strides = [1, 1, 1]} : vector<8x8x10xf32> to vector<1x8x10xf32>
    %538 = vector.shape_cast %537 : vector<1x8x10xf32> to vector<8x10xf32>
    %539 = vector.extract_strided_slice %536 {offsets = [1, 0, 0], sizes = [1, 8, 10], strides = [1, 1, 1]} : vector<8x8x10xf32> to vector<1x8x10xf32>
    %540 = vector.shape_cast %539 : vector<1x8x10xf32> to vector<8x10xf32>
    %541 = arith.addf %538, %540 : vector<8x10xf32>
    %542 = vector.extract_strided_slice %536 {offsets = [2, 0, 0], sizes = [1, 8, 10], strides = [1, 1, 1]} : vector<8x8x10xf32> to vector<1x8x10xf32>
    %543 = vector.shape_cast %542 : vector<1x8x10xf32> to vector<8x10xf32>
    %544 = arith.addf %541, %543 : vector<8x10xf32>
    %545 = vector.extract_strided_slice %536 {offsets = [3, 0, 0], sizes = [1, 8, 10], strides = [1, 1, 1]} : vector<8x8x10xf32> to vector<1x8x10xf32>
    %546 = vector.shape_cast %545 : vector<1x8x10xf32> to vector<8x10xf32>
    %547 = arith.addf %544, %546 : vector<8x10xf32>
    %cst_134 = arith.constant 2.500000e-01 : f32
    %548 = vector.broadcast %cst_134 : f32 to vector<8x10xf32>
    %549 = arith.mulf %547, %548 : vector<8x10xf32>
    %550 = vector.extract_strided_slice %536 {offsets = [4, 0, 0], sizes = [1, 8, 10], strides = [1, 1, 1]} : vector<8x8x10xf32> to vector<1x8x10xf32>
    %551 = vector.shape_cast %550 : vector<1x8x10xf32> to vector<8x10xf32>
    %552 = vector.extract_strided_slice %536 {offsets = [5, 0, 0], sizes = [1, 8, 10], strides = [1, 1, 1]} : vector<8x8x10xf32> to vector<1x8x10xf32>
    %553 = vector.shape_cast %552 : vector<1x8x10xf32> to vector<8x10xf32>
    %554 = arith.addf %551, %553 : vector<8x10xf32>
    %555 = vector.extract_strided_slice %536 {offsets = [6, 0, 0], sizes = [1, 8, 10], strides = [1, 1, 1]} : vector<8x8x10xf32> to vector<1x8x10xf32>
    %556 = vector.shape_cast %555 : vector<1x8x10xf32> to vector<8x10xf32>
    %557 = arith.addf %554, %556 : vector<8x10xf32>
    %558 = vector.extract_strided_slice %536 {offsets = [7, 0, 0], sizes = [1, 8, 10], strides = [1, 1, 1]} : vector<8x8x10xf32> to vector<1x8x10xf32>
    %559 = vector.shape_cast %558 : vector<1x8x10xf32> to vector<8x10xf32>
    %560 = arith.addf %557, %559 : vector<8x10xf32>
    %cst_135 = arith.constant 2.500000e-01 : f32
    %561 = vector.broadcast %cst_135 : f32 to vector<8x10xf32>
    %562 = arith.mulf %560, %561 : vector<8x10xf32>
    %563 = tpu.concatenate %549, %562 in 0 : vector<8x10xf32>, vector<8x10xf32> -> vector<16x10xf32>
    %cst_136 = arith.constant dense<0xFF800000> : vector<8x8xf32>
    %564 = vector.multi_reduction <maximumf>, %536, %cst_136 [2] : vector<8x8x10xf32> to vector<8x8xf32>
    %565 = vector.shape_cast %564 : vector<8x8xf32> to vector<8x8x1xf32>
    %566 = vector.broadcast %565 : vector<8x8x1xf32> to vector<8x8x10xf32>
    %567 = arith.subf %536, %566 : vector<8x8x10xf32>
    %568 = math.exp %567 : vector<8x8x10xf32>
    %cst_137 = arith.constant dense<0.000000e+00> : vector<8x8xf32>
    %569 = vector.multi_reduction <add>, %568, %cst_137 [2] : vector<8x8x10xf32> to vector<8x8xf32>
    %570 = vector.shape_cast %569 : vector<8x8xf32> to vector<8x8x1xf32>
    %571 = tpu.reciprocal %570 {approx = true} : vector<8x8x1xf32> -> vector<8x8x1xf32>
    %572 = vector.broadcast %571 : vector<8x8x1xf32> to vector<8x8x10xf32>
    %573 = arith.mulf %568, %572 : vector<8x8x10xf32>
    %574 = arith.truncf %573 : vector<8x8x10xf32> to vector<8x8x10xbf16>
    %cst_138 = arith.constant dense<0.000000e+00> : vector<8x8x8xf32>
    %575 = tpu.matmul %574, %89, %cst_138 {dimension_numbers = #tpu.dot_dimension_numbers<[2], [1], [1], [2], [0, 0, 0, 1, 1, 2], [0], [0]>} : vector<8x8x10xbf16>, vector<8x10x8xbf16>, vector<8x8x8xf32> -> vector<8x8x8xf32>
    %576 = vector.extract_strided_slice %575 {offsets = [0, 0, 0], sizes = [1, 8, 8], strides = [1, 1, 1]} : vector<8x8x8xf32> to vector<1x8x8xf32>
    %577 = vector.shape_cast %576 : vector<1x8x8xf32> to vector<8x8xf32>
    %578 = vector.extract_strided_slice %575 {offsets = [1, 0, 0], sizes = [1, 8, 8], strides = [1, 1, 1]} : vector<8x8x8xf32> to vector<1x8x8xf32>
    %579 = vector.shape_cast %578 : vector<1x8x8xf32> to vector<8x8xf32>
    %580 = vector.extract_strided_slice %575 {offsets = [2, 0, 0], sizes = [1, 8, 8], strides = [1, 1, 1]} : vector<8x8x8xf32> to vector<1x8x8xf32>
    %581 = vector.shape_cast %580 : vector<1x8x8xf32> to vector<8x8xf32>
    %582 = vector.extract_strided_slice %575 {offsets = [3, 0, 0], sizes = [1, 8, 8], strides = [1, 1, 1]} : vector<8x8x8xf32> to vector<1x8x8xf32>
    %583 = vector.shape_cast %582 : vector<1x8x8xf32> to vector<8x8xf32>
    %584 = tpu.concatenate %577, %579, %581, %583 in 1 : vector<8x8xf32>, vector<8x8xf32>, vector<8x8xf32>, vector<8x8xf32> -> vector<8x32xf32>
    %585 = vector.extract_strided_slice %575 {offsets = [4, 0, 0], sizes = [1, 8, 8], strides = [1, 1, 1]} : vector<8x8x8xf32> to vector<1x8x8xf32>
    %586 = vector.shape_cast %585 : vector<1x8x8xf32> to vector<8x8xf32>
    %587 = vector.extract_strided_slice %575 {offsets = [5, 0, 0], sizes = [1, 8, 8], strides = [1, 1, 1]} : vector<8x8x8xf32> to vector<1x8x8xf32>
    %588 = vector.shape_cast %587 : vector<1x8x8xf32> to vector<8x8xf32>
    %589 = vector.extract_strided_slice %575 {offsets = [6, 0, 0], sizes = [1, 8, 8], strides = [1, 1, 1]} : vector<8x8x8xf32> to vector<1x8x8xf32>
    %590 = vector.shape_cast %589 : vector<1x8x8xf32> to vector<8x8xf32>
    %591 = vector.extract_strided_slice %575 {offsets = [7, 0, 0], sizes = [1, 8, 8], strides = [1, 1, 1]} : vector<8x8x8xf32> to vector<1x8x8xf32>
    %592 = vector.shape_cast %591 : vector<1x8x8xf32> to vector<8x8xf32>
    %593 = tpu.concatenate %586, %588, %590, %592 in 1 : vector<8x8xf32>, vector<8x8xf32>, vector<8x8xf32>, vector<8x8xf32> -> vector<8x32xf32>
    %594 = tpu.concatenate %584, %593 in 0 : vector<8x32xf32>, vector<8x32xf32> -> vector<16x32xf32>
    %c1_139 = arith.constant 1 : index
    %c0_140 = arith.constant 0 : index
    %c0_141 = arith.constant 0 : index
    %595 = vector.load %arg15[%c1_139, %c0_140, %c0_141] : memref<2x32x32xbf16, #tpu.memory_space<vmem>>, vector<1x32x32xbf16>
    %596 = vector.shape_cast %595 : vector<1x32x32xbf16> to vector<32x32xbf16>
    %597 = arith.truncf %594 : vector<16x32xf32> to vector<16x32xbf16>
    %cst_142 = arith.constant dense<0.000000e+00> : vector<16x32xf32>
    %598 = tpu.matmul %597, %596, %cst_142 {dimension_numbers = #tpu.dot_dimension_numbers<[1], [0], [0], [1], [0, 0, 1, 1], [], []>} : vector<16x32xbf16>, vector<32x32xbf16>, vector<16x32xf32> -> vector<16x32xf32>
    %599 = arith.addf %481, %598 : vector<16x32xf32>
    %c1_143 = arith.constant 1 : index
    %c0_144 = arith.constant 0 : index
    %c0_145 = arith.constant 0 : index
    %600 = vector.load %arg16[%c1_143, %c0_144, %c0_145] : memref<2x1x32xf32, #tpu.memory_space<vmem>>, vector<1x1x32xf32>
    %601 = vector.shape_cast %600 : vector<1x1x32xf32> to vector<1x32xf32>
    %c1_146 = arith.constant 1 : index
    %c0_147 = arith.constant 0 : index
    %c0_148 = arith.constant 0 : index
    %602 = vector.load %arg17[%c1_146, %c0_147, %c0_148] : memref<2x1x32xf32, #tpu.memory_space<vmem>>, vector<1x1x32xf32>
    %603 = vector.shape_cast %602 : vector<1x1x32xf32> to vector<1x32xf32>
    %cst_149 = arith.constant dense<0.000000e+00> : vector<16xf32>
    %604 = vector.multi_reduction <add>, %599, %cst_149 [1] : vector<16x32xf32> to vector<16xf32>
    %605 = vector.shape_cast %604 : vector<16xf32> to vector<16x1xf32>
    %cst_150 = arith.constant 3.200000e+01 : f32
    %606 = vector.broadcast %cst_150 : f32 to vector<16x1xf32>
    %607 = arith.divf %605, %606 : vector<16x1xf32>
    %608 = vector.broadcast %607 : vector<16x1xf32> to vector<16x32xf32>
    %609 = arith.subf %599, %608 : vector<16x32xf32>
    %610 = arith.mulf %609, %609 : vector<16x32xf32>
    %cst_151 = arith.constant dense<0.000000e+00> : vector<16xf32>
    %611 = vector.multi_reduction <add>, %610, %cst_151 [1] : vector<16x32xf32> to vector<16xf32>
    %612 = vector.shape_cast %611 : vector<16xf32> to vector<16x1xf32>
    %cst_152 = arith.constant 3.100000e+01 : f32
    %613 = vector.broadcast %cst_152 : f32 to vector<16x1xf32>
    %614 = arith.divf %612, %613 : vector<16x1xf32>
    %615 = vector.broadcast %607 : vector<16x1xf32> to vector<16x32xf32>
    %616 = arith.subf %599, %615 : vector<16x32xf32>
    %617 = math.sqrt %614 : vector<16x1xf32>
    %cst_153 = arith.constant 9.99999997E-7 : f32
    %618 = vector.broadcast %cst_153 : f32 to vector<16x1xf32>
    %619 = arith.addf %617, %618 : vector<16x1xf32>
    %620 = vector.broadcast %619 : vector<16x1xf32> to vector<16x32xf32>
    %621 = arith.divf %616, %620 : vector<16x32xf32>
    %622 = vector.broadcast %601 : vector<1x32xf32> to vector<16x32xf32>
    %623 = arith.mulf %622, %621 : vector<16x32xf32>
    %624 = vector.broadcast %603 : vector<1x32xf32> to vector<16x32xf32>
    %625 = arith.addf %623, %624 : vector<16x32xf32>
    %c1_154 = arith.constant 1 : index
    %c0_155 = arith.constant 0 : index
    %c0_156 = arith.constant 0 : index
    %626 = vector.load %arg18[%c1_154, %c0_155, %c0_156] : memref<2x32x64xbf16, #tpu.memory_space<vmem>>, vector<1x32x64xbf16>
    %627 = vector.shape_cast %626 : vector<1x32x64xbf16> to vector<32x64xbf16>
    %628 = arith.truncf %625 : vector<16x32xf32> to vector<16x32xbf16>
    %cst_157 = arith.constant dense<0.000000e+00> : vector<16x64xf32>
    %629 = tpu.matmul %628, %627, %cst_157 {dimension_numbers = #tpu.dot_dimension_numbers<[1], [0], [0], [1], [0, 0, 1, 1], [], []>} : vector<16x32xbf16>, vector<32x64xbf16>, vector<16x64xf32> -> vector<16x64xf32>
    %c1_158 = arith.constant 1 : index
    %c0_159 = arith.constant 0 : index
    %c0_160 = arith.constant 0 : index
    %630 = vector.load %arg19[%c1_158, %c0_159, %c0_160] : memref<2x1x64xf32, #tpu.memory_space<vmem>>, vector<1x1x64xf32>
    %631 = vector.shape_cast %630 : vector<1x1x64xf32> to vector<1x64xf32>
    %632 = vector.broadcast %631 : vector<1x64xf32> to vector<16x64xf32>
    %633 = arith.addf %629, %632 : vector<16x64xf32>
    %cst_161 = arith.constant 0.000000e+00 : f32
    %634 = vector.broadcast %cst_161 : f32 to vector<16x64xf32>
    %635 = arith.maximumf %633, %634 : vector<16x64xf32>
    %c1_162 = arith.constant 1 : index
    %c0_163 = arith.constant 0 : index
    %c0_164 = arith.constant 0 : index
    %636 = vector.load %arg20[%c1_162, %c0_163, %c0_164] : memref<2x64x32xbf16, #tpu.memory_space<vmem>>, vector<1x64x32xbf16>
    %637 = vector.shape_cast %636 : vector<1x64x32xbf16> to vector<64x32xbf16>
    %638 = arith.truncf %635 : vector<16x64xf32> to vector<16x64xbf16>
    %cst_165 = arith.constant dense<0.000000e+00> : vector<16x32xf32>
    %639 = tpu.matmul %638, %637, %cst_165 {dimension_numbers = #tpu.dot_dimension_numbers<[1], [0], [0], [1], [0, 0, 1, 1], [], []>} : vector<16x64xbf16>, vector<64x32xbf16>, vector<16x32xf32> -> vector<16x32xf32>
    %640 = arith.addf %599, %639 : vector<16x32xf32>
    %c1_166 = arith.constant 1 : index
    %c0_167 = arith.constant 0 : index
    %c0_168 = arith.constant 0 : index
    %641 = vector.load %arg21[%c1_166, %c0_167, %c0_168] : memref<2x1x32xf32, #tpu.memory_space<vmem>>, vector<1x1x32xf32>
    %642 = vector.shape_cast %641 : vector<1x1x32xf32> to vector<1x32xf32>
    %643 = vector.broadcast %642 : vector<1x32xf32> to vector<16x32xf32>
    %644 = arith.addf %640, %643 : vector<16x32xf32>
    %c0_169 = arith.constant 0 : index
    %c0_170 = arith.constant 0 : index
    %645 = vector.load %arg22[%c0_169, %c0_170] : memref<1x32xf32, #tpu.memory_space<vmem>>, vector<1x32xf32>
    %c0_171 = arith.constant 0 : index
    %c0_172 = arith.constant 0 : index
    %646 = vector.load %arg23[%c0_171, %c0_172] : memref<1x32xf32, #tpu.memory_space<vmem>>, vector<1x32xf32>
    %cst_173 = arith.constant dense<0.000000e+00> : vector<16xf32>
    %647 = vector.multi_reduction <add>, %644, %cst_173 [1] : vector<16x32xf32> to vector<16xf32>
    %648 = vector.shape_cast %647 : vector<16xf32> to vector<16x1xf32>
    %cst_174 = arith.constant 3.200000e+01 : f32
    %649 = vector.broadcast %cst_174 : f32 to vector<16x1xf32>
    %650 = arith.divf %648, %649 : vector<16x1xf32>
    %651 = vector.broadcast %650 : vector<16x1xf32> to vector<16x32xf32>
    %652 = arith.subf %644, %651 : vector<16x32xf32>
    %653 = arith.mulf %652, %652 : vector<16x32xf32>
    %cst_175 = arith.constant dense<0.000000e+00> : vector<16xf32>
    %654 = vector.multi_reduction <add>, %653, %cst_175 [1] : vector<16x32xf32> to vector<16xf32>
    %655 = vector.shape_cast %654 : vector<16xf32> to vector<16x1xf32>
    %cst_176 = arith.constant 3.100000e+01 : f32
    %656 = vector.broadcast %cst_176 : f32 to vector<16x1xf32>
    %657 = arith.divf %655, %656 : vector<16x1xf32>
    %658 = vector.broadcast %650 : vector<16x1xf32> to vector<16x32xf32>
    %659 = arith.subf %644, %658 : vector<16x32xf32>
    %660 = math.sqrt %657 : vector<16x1xf32>
    %cst_177 = arith.constant 9.99999997E-7 : f32
    %661 = vector.broadcast %cst_177 : f32 to vector<16x1xf32>
    %662 = arith.addf %660, %661 : vector<16x1xf32>
    %663 = vector.broadcast %662 : vector<16x1xf32> to vector<16x32xf32>
    %664 = arith.divf %659, %663 : vector<16x32xf32>
    %665 = vector.broadcast %645 : vector<1x32xf32> to vector<16x32xf32>
    %666 = arith.mulf %665, %664 : vector<16x32xf32>
    %667 = vector.broadcast %646 : vector<1x32xf32> to vector<16x32xf32>
    %668 = arith.addf %666, %667 : vector<16x32xf32>
    %cst_178 = arith.constant 0.000000e+00 : f32
    %669 = vector.broadcast %cst_178 : f32 to vector<16x86xf32>
    %670 = tpu.concatenate %668, %563, %669 in 1 : vector<16x32xf32>, vector<16x10xf32>, vector<16x86xf32> -> vector<16x128xf32>
    %c0_179 = arith.constant 0 : index
    %c0_180 = arith.constant 0 : index
    %671 = vector.load %arg24[%c0_179, %c0_180] : memref<16x128xf32, #tpu.memory_space<vmem>>, vector<16x128xf32>
    tpu.vector_store %arg24[%c0_179, %c0_180], %670 {strides = array<i32>} : memref<16x128xf32, #tpu.memory_space<vmem>>, vector<16x128xf32>,
    return
  }
  func.func @transform_0(%arg0: i32) -> (i32, i32) {
    %c0_i32 = arith.constant 0 : i32
    %c0_i32_0 = arith.constant 0 : i32
    %c0_i32_1 = arith.constant 0 : i32
    return %c0_i32, %c0_i32_0 : i32, i32
  }
  func.func @transform_1(%arg0: i32) -> (i32, i32) {
    %c0_i32 = arith.constant 0 : i32
    %c0_i32_0 = arith.constant 0 : i32
    %c0_i32_1 = arith.constant 0 : i32
    return %c0_i32, %c0_i32_0 : i32, i32
  }
  func.func @transform_2(%arg0: i32) -> (i32, i32, i32) {
    %c0_i32 = arith.constant 0 : i32
    %c0_i32_0 = arith.constant 0 : i32
    %c0_i32_1 = arith.constant 0 : i32
    %c0_i32_2 = arith.constant 0 : i32
    return %c0_i32, %c0_i32_0, %c0_i32_1 : i32, i32, i32
  }
  func.func @transform_3(%arg0: i32) -> (i32, i32, i32) {
    %c0_i32 = arith.constant 0 : i32
    %c0_i32_0 = arith.constant 0 : i32
    %c0_i32_1 = arith.constant 0 : i32
    %c0_i32_2 = arith.constant 0 : i32
    return %c0_i32, %c0_i32_0, %c0_i32_1 : i32, i32, i32
  }
  func.func @transform_4(%arg0: i32) -> (i32, i32) {
    %c0_i32 = arith.constant 0 : i32
    %c0_i32_0 = arith.constant 0 : i32
    %c0_i32_1 = arith.constant 0 : i32
    return %c0_i32, %c0_i32_0 : i32, i32
  }
  func.func @transform_5(%arg0: i32) -> (i32, i32) {
    %c0_i32 = arith.constant 0 : i32
    %c0_i32_0 = arith.constant 0 : i32
    %c0_i32_1 = arith.constant 0 : i32
    return %c0_i32, %c0_i32_0 : i32, i32
  }
  func.func @transform_6(%arg0: i32) -> (i32, i32) {
    %c0_i32 = arith.constant 0 : i32
    %c0_i32_0 = arith.constant 0 : i32
    %c0_i32_1 = arith.constant 0 : i32
    return %c0_i32, %c0_i32_0 : i32, i32
  }
  func.func @transform_7(%arg0: i32) -> (i32, i32, i32) {
    %c0_i32 = arith.constant 0 : i32
    %c0_i32_0 = arith.constant 0 : i32
    %c0_i32_1 = arith.constant 0 : i32
    %c0_i32_2 = arith.constant 0 : i32
    return %c0_i32, %c0_i32_0, %c0_i32_1 : i32, i32, i32
  }
  func.func @transform_8(%arg0: i32) -> (i32, i32, i32) {
    %c0_i32 = arith.constant 0 : i32
    %c0_i32_0 = arith.constant 0 : i32
    %c0_i32_1 = arith.constant 0 : i32
    %c0_i32_2 = arith.constant 0 : i32
    return %c0_i32, %c0_i32_0, %c0_i32_1 : i32, i32, i32
  }
  func.func @transform_9(%arg0: i32) -> (i32, i32, i32) {
    %c0_i32 = arith.constant 0 : i32
    %c0_i32_0 = arith.constant 0 : i32
    %c0_i32_1 = arith.constant 0 : i32
    %c0_i32_2 = arith.constant 0 : i32
    return %c0_i32, %c0_i32_0, %c0_i32_1 : i32, i32, i32
  }
  func.func @transform_10(%arg0: i32) -> (i32, i32, i32) {
    %c0_i32 = arith.constant 0 : i32
    %c0_i32_0 = arith.constant 0 : i32
    %c0_i32_1 = arith.constant 0 : i32
    %c0_i32_2 = arith.constant 0 : i32
    return %c0_i32, %c0_i32_0, %c0_i32_1 : i32, i32, i32
  }
  func.func @transform_11(%arg0: i32) -> (i32, i32, i32) {
    %c0_i32 = arith.constant 0 : i32
    %c0_i32_0 = arith.constant 0 : i32
    %c0_i32_1 = arith.constant 0 : i32
    %c0_i32_2 = arith.constant 0 : i32
    return %c0_i32, %c0_i32_0, %c0_i32_1 : i32, i32, i32
  }
  func.func @transform_12(%arg0: i32) -> (i32, i32, i32) {
    %c0_i32 = arith.constant 0 : i32
    %c0_i32_0 = arith.constant 0 : i32
    %c0_i32_1 = arith.constant 0 : i32
    %c0_i32_2 = arith.constant 0 : i32
    return %c0_i32, %c0_i32_0, %c0_i32_1 : i32, i32, i32
  }
  func.func @transform_13(%arg0: i32) -> (i32, i32, i32) {
    %c0_i32 = arith.constant 0 : i32
    %c0_i32_0 = arith.constant 0 : i32
    %c0_i32_1 = arith.constant 0 : i32
    %c0_i32_2 = arith.constant 0 : i32
    return %c0_i32, %c0_i32_0, %c0_i32_1 : i32, i32, i32
  }
  func.func @transform_14(%arg0: i32) -> (i32, i32, i32) {
    %c0_i32 = arith.constant 0 : i32
    %c0_i32_0 = arith.constant 0 : i32
    %c0_i32_1 = arith.constant 0 : i32
    %c0_i32_2 = arith.constant 0 : i32
    return %c0_i32, %c0_i32_0, %c0_i32_1 : i32, i32, i32
  }
  func.func @transform_15(%arg0: i32) -> (i32, i32, i32) {
    %c0_i32 = arith.constant 0 : i32
    %c0_i32_0 = arith.constant 0 : i32
    %c0_i32_1 = arith.constant 0 : i32
    %c0_i32_2 = arith.constant 0 : i32
    return %c0_i32, %c0_i32_0, %c0_i32_1 : i32, i32, i32
  }
  func.func @transform_16(%arg0: i32) -> (i32, i32, i32) {
    %c0_i32 = arith.constant 0 : i32
    %c0_i32_0 = arith.constant 0 : i32
    %c0_i32_1 = arith.constant 0 : i32
    %c0_i32_2 = arith.constant 0 : i32
    return %c0_i32, %c0_i32_0, %c0_i32_1 : i32, i32, i32
  }
  func.func @transform_17(%arg0: i32) -> (i32, i32, i32) {
    %c0_i32 = arith.constant 0 : i32
    %c0_i32_0 = arith.constant 0 : i32
    %c0_i32_1 = arith.constant 0 : i32
    %c0_i32_2 = arith.constant 0 : i32
    return %c0_i32, %c0_i32_0, %c0_i32_1 : i32, i32, i32
  }
  func.func @transform_18(%arg0: i32) -> (i32, i32, i32) {
    %c0_i32 = arith.constant 0 : i32
    %c0_i32_0 = arith.constant 0 : i32
    %c0_i32_1 = arith.constant 0 : i32
    %c0_i32_2 = arith.constant 0 : i32
    return %c0_i32, %c0_i32_0, %c0_i32_1 : i32, i32, i32
  }
  func.func @transform_19(%arg0: i32) -> (i32, i32, i32) {
    %c0_i32 = arith.constant 0 : i32
    %c0_i32_0 = arith.constant 0 : i32
    %c0_i32_1 = arith.constant 0 : i32
    %c0_i32_2 = arith.constant 0 : i32
    return %c0_i32, %c0_i32_0, %c0_i32_1 : i32, i32, i32
  }
  func.func @transform_20(%arg0: i32) -> (i32, i32, i32) {
    %c0_i32 = arith.constant 0 : i32
    %c0_i32_0 = arith.constant 0 : i32
    %c0_i32_1 = arith.constant 0 : i32
    %c0_i32_2 = arith.constant 0 : i32
    return %c0_i32, %c0_i32_0, %c0_i32_1 : i32, i32, i32
  }
  func.func @transform_21(%arg0: i32) -> (i32, i32) {
    %c0_i32 = arith.constant 0 : i32
    %c0_i32_0 = arith.constant 0 : i32
    %c0_i32_1 = arith.constant 0 : i32
    return %c0_i32, %c0_i32_0 : i32, i32
  }
  func.func @transform_22(%arg0: i32) -> (i32, i32) {
    %c0_i32 = arith.constant 0 : i32
    %c0_i32_0 = arith.constant 0 : i32
    %c0_i32_1 = arith.constant 0 : i32
    return %c0_i32, %c0_i32_0 : i32, i32
  }
  func.func @transform_23(%arg0: i32) -> (i32, i32) {
    %c0_i32 = arith.constant 0 : i32
    %c0_i32_0 = arith.constant 0 : i32
    %c0_i32_1 = arith.constant 0 : i32
    return %c0_i32, %c0_i32_0 : i32, i32
  }
}

</mosaic_0001>

<llo_original>
// kernel: decoder_forward.1
$region0: #{decoder_forward.1}
  #allocation0 [shape = 'u32[]', space=smem, size = 0x4, offset = 0x4, fixed_abs, tag = 'smem constant byte address 0x4 - core index']
  #allocation1 [shape = 'u32[144,128]{1,0:T(1,128)}', space=vmem, size = 0x12000, scoped, tag = 'internal scratch']
  %s0 = inlined_call_operand.vmem [shape: f32[16,16], index: 0, kind: input, shape index: {}]
  %s1 = inlined_call_operand.vmem [shape: f32[20,32], index: 1, kind: input, shape index: {}]
  %s2 = inlined_call_operand.vmem [shape: f32[8,8,8], index: 2, kind: input, shape index: {}]
  %s3 = inlined_call_operand.vmem [shape: f32[8,1,10], index: 3, kind: input, shape index: {}]
  %s4 = inlined_call_operand.vmem [shape: f32[16,32], index: 4, kind: input, shape index: {}]
  %s5 = inlined_call_operand.vmem [shape: bf16[16,32], index: 5, kind: input, shape index: {}]
  %s6 = inlined_call_operand.vmem [shape: bf16[32,128], index: 6, kind: input, shape index: {}]
  %s7 = inlined_call_operand.vmem [shape: f32[2,1,32], index: 7, kind: input, shape index: {}]
  %s8 = inlined_call_operand.vmem [shape: f32[2,1,32], index: 8, kind: input, shape index: {}]
  %s9 = inlined_call_operand.vmem [shape: bf16[2,32,96], index: 9, kind: input, shape index: {}]
  %s10 = inlined_call_operand.vmem [shape: bf16[2,32,32], index: 10, kind: input, shape index: {}]
  %s11 = inlined_call_operand.vmem [shape: f32[2,1,32], index: 11, kind: input, shape index: {}]
  %s12 = inlined_call_operand.vmem [shape: f32[2,1,32], index: 12, kind: input, shape index: {}]
  %s13 = inlined_call_operand.vmem [shape: bf16[2,32,32], index: 13, kind: input, shape index: {}]
  %s14 = inlined_call_operand.vmem [shape: bf16[2,32,32], index: 14, kind: input, shape index: {}]
  %s15 = inlined_call_operand.vmem [shape: f32[2,1,32], index: 15, kind: input, shape index: {}]
  %s16 = inlined_call_operand.vmem [shape: f32[2,1,32], index: 16, kind: input, shape index: {}]
  %s17 = inlined_call_operand.vmem [shape: bf16[2,32,64], index: 17, kind: input, shape index: {}]
  %s18 = inlined_call_operand.vmem [shape: f32[2,1,64], index: 18, kind: input, shape index: {}]
  %s19 = inlined_call_operand.vmem [shape: bf16[2,64,32], index: 19, kind: input, shape index: {}]
  %s20 = inlined_call_operand.vmem [shape: f32[2,1,32], index: 20, kind: input, shape index: {}]
  %s21 = inlined_call_operand.vmem [shape: f32[1,32], index: 21, kind: input, shape index: {}]
  %s22 = inlined_call_operand.vmem [shape: f32[1,32], index: 22, kind: input, shape index: {}]
  %s23 = inlined_call_operand.vmem [shape: f32[16,128], index: 23, kind: output, shape index: {}]
  %s24 = sld [smem:[#allocation0]]
  $region102: #{decoder_forward.1} parent=0
    _
  %s26 = ssub.s32 1, %s24
  %s27 = scalar_select 0, %s26, %s24
  // Predicated region
  $region2: #{decoder_forward.1} parent=0 // pred_check
    _
  $region3: #{decoder_forward.1} parent=0 // pred_check_branch
    %29 = sbr.rel (0) target = $region5
  $region4: #{decoder_forward.1} parent=0 // pred_region
    _
  $region5: #{decoder_forward.1} parent=0 // pred_fallthru
    _
  // Predicated region
  $region6: #{decoder_forward.1} parent=0 // pred_check
    _
  $region7: #{decoder_forward.1} parent=0 // pred_check_branch
    %31 = sbr.rel (0) target = $region9
  $region8: #{decoder_forward.1} parent=0 // pred_region
    _
  $region9: #{decoder_forward.1} parent=0 // pred_fallthru
    _
  // Predicated region
  $region10: #{decoder_forward.1} parent=0 // pred_check
    _
  $region11: #{decoder_forward.1} parent=0 // pred_check_branch
    %33 = sbr.rel (0) target = $region13
  $region12: #{decoder_forward.1} parent=0 // pred_region
    _
  $region13: #{decoder_forward.1} parent=0 // pred_fallthru
    _
  // Predicated region
  $region14: #{decoder_forward.1} parent=0 // pred_check
    _
  $region15: #{decoder_forward.1} parent=0 // pred_check_branch
    %35 = sbr.rel (0) target = $region17
  $region16: #{decoder_forward.1} parent=0 // pred_region
    _
  $region17: #{decoder_forward.1} parent=0 // pred_fallthru
    _
  // Predicated region
  $region18: #{decoder_forward.1} parent=0 // pred_check
    _
  $region19: #{decoder_forward.1} parent=0 // pred_check_branch
    %37 = sbr.rel (0) target = $region21
  $region20: #{decoder_forward.1} parent=0 // pred_region
    _
  $region21: #{decoder_forward.1} parent=0 // pred_fallthru
    _
  // Predicated region
  $region22: #{decoder_forward.1} parent=0 // pred_check
    _
  $region23: #{decoder_forward.1} parent=0 // pred_check_branch
    %39 = sbr.rel (0) target = $region25
  $region24: #{decoder_forward.1} parent=0 // pred_region
    _
  $region25: #{decoder_forward.1} parent=0 // pred_fallthru
    _
  // Predicated region
  $region26: #{decoder_forward.1} parent=0 // pred_check
    _
  $region27: #{decoder_forward.1} parent=0 // pred_check_branch
    %41 = sbr.rel (0) target = $region29
  $region28: #{decoder_forward.1} parent=0 // pred_region
    _
  $region29: #{decoder_forward.1} parent=0 // pred_fallthru
    _
  // Predicated region
  $region30: #{decoder_forward.1} parent=0 // pred_check
    _
  $region31: #{decoder_forward.1} parent=0 // pred_check_branch
    %43 = sbr.rel (0) target = $region33
  $region32: #{decoder_forward.1} parent=0 // pred_region
    _
  $region33: #{decoder_forward.1} parent=0 // pred_fallthru
    _
  // Predicated region
  $region34: #{decoder_forward.1} parent=0 // pred_check
    _
  $region35: #{decoder_forward.1} parent=0 // pred_check_branch
    %45 = sbr.rel (0) target = $region37
  $region36: #{decoder_forward.1} parent=0 // pred_region
    _
  $region37: #{decoder_forward.1} parent=0 // pred_fallthru
    _
  // Predicated region
  $region38: #{decoder_forward.1} parent=0 // pred_check
    _
  $region39: #{decoder_forward.1} parent=0 // pred_check_branch
    %47 = sbr.rel (0) target = $region41
  $region40: #{decoder_forward.1} parent=0 // pred_region
    _
  $region41: #{decoder_forward.1} parent=0 // pred_fallthru
    _
  // Predicated region
  $region42: #{decoder_forward.1} parent=0 // pred_check
    _
  $region43: #{decoder_forward.1} parent=0 // pred_check_branch
    %49 = sbr.rel (0) target = $region45
  $region44: #{decoder_forward.1} parent=0 // pred_region
    _
  $region45: #{decoder_forward.1} parent=0 // pred_fallthru
    _
  // Predicated region
  $region46: #{decoder_forward.1} parent=0 // pred_check
    _
  $region47: #{decoder_forward.1} parent=0 // pred_check_branch
    %51 = sbr.rel (0) target = $region49
  $region48: #{decoder_forward.1} parent=0 // pred_region
    _
  $region49: #{decoder_forward.1} parent=0 // pred_fallthru
    _
  // Predicated region
  $region50: #{decoder_forward.1} parent=0 // pred_check
    _
  $region51: #{decoder_forward.1} parent=0 // pred_check_branch
    %53 = sbr.rel (0) target = $region53
  $region52: #{decoder_forward.1} parent=0 // pred_region
    _
  $region53: #{decoder_forward.1} parent=0 // pred_fallthru
    _
  // Predicated region
  $region54: #{decoder_forward.1} parent=0 // pred_check
    _
  $region55: #{decoder_forward.1} parent=0 // pred_check_branch
    %55 = sbr.rel (0) target = $region57
  $region56: #{decoder_forward.1} parent=0 // pred_region
    _
  $region57: #{decoder_forward.1} parent=0 // pred_fallthru
    _
  // Predicated region
  $region58: #{decoder_forward.1} parent=0 // pred_check
    _
  $region59: #{decoder_forward.1} parent=0 // pred_check_branch
    %57 = sbr.rel (0) target = $region61
  $region60: #{decoder_forward.1} parent=0 // pred_region
    _
  $region61: #{decoder_forward.1} parent=0 // pred_fallthru
    _
  // Predicated region
  $region62: #{decoder_forward.1} parent=0 // pred_check
    _
  $region63: #{decoder_forward.1} parent=0 // pred_check_branch
    %59 = sbr.rel (0) target = $region65
  $region64: #{decoder_forward.1} parent=0 // pred_region
    _
  $region65: #{decoder_forward.1} parent=0 // pred_fallthru
    _
  // Predicated region
  $region66: #{decoder_forward.1} parent=0 // pred_check
    _
  $region67: #{decoder_forward.1} parent=0 // pred_check_branch
    %61 = sbr.rel (0) target = $region69
  $region68: #{decoder_forward.1} parent=0 // pred_region
    _
  $region69: #{decoder_forward.1} parent=0 // pred_fallthru
    _
  // Predicated region
  $region70: #{decoder_forward.1} parent=0 // pred_check
    _
  $region71: #{decoder_forward.1} parent=0 // pred_check_branch
    %63 = sbr.rel (0) target = $region73
  $region72: #{decoder_forward.1} parent=0 // pred_region
    _
  $region73: #{decoder_forward.1} parent=0 // pred_fallthru
    _
  // Predicated region
  $region74: #{decoder_forward.1} parent=0 // pred_check
    _
  $region75: #{decoder_forward.1} parent=0 // pred_check_branch
    %65 = sbr.rel (0) target = $region77
  $region76: #{decoder_forward.1} parent=0 // pred_region
    _
  $region77: #{decoder_forward.1} parent=0 // pred_fallthru
    _
  // Predicated region
  $region78: #{decoder_forward.1} parent=0 // pred_check
    _
  $region79: #{decoder_forward.1} parent=0 // pred_check_branch
    %67 = sbr.rel (0) target = $region81
  $region80: #{decoder_forward.1} parent=0 // pred_region
    _
  $region81: #{decoder_forward.1} parent=0 // pred_fallthru
    _
  // Predicated region
  $region82: #{decoder_forward.1} parent=0 // pred_check
    _
  $region83: #{decoder_forward.1} parent=0 // pred_check_branch
    %69 = sbr.rel (0) target = $region85
  $region84: #{decoder_forward.1} parent=0 // pred_region
    _
  $region85: #{decoder_forward.1} parent=0 // pred_fallthru
    _
  // Predicated region
  $region86: #{decoder_forward.1} parent=0 // pred_check
    _
  $region87: #{decoder_forward.1} parent=0 // pred_check_branch
    %71 = sbr.rel (0) target = $region89
  $region88: #{decoder_forward.1} parent=0 // pred_region
    _
  $region89: #{decoder_forward.1} parent=0 // pred_fallthru
    _
  // Predicated region
  $region90: #{decoder_forward.1} parent=0 // pred_check
    _
  $region91: #{decoder_forward.1} parent=0 // pred_check_branch
    %73 = sbr.rel (0) target = $region93
  $region92: #{decoder_forward.1} parent=0 // pred_region
    _
  $region93: #{decoder_forward.1} parent=0 // pred_fallthru
    _
  %v75 = vld [vmem:[%s2] sm:$0xff]
  %v76 = vld [vmem:[%s2 + $0x8] sm:$0xff]
  %v77 = vld [vmem:[%s2 + $0x10] sm:$0xff]
  %v78 = vld [vmem:[%s2 + $0x18] sm:$0xff]
  %v79 = vld [vmem:[%s2 + $0x20] sm:$0xff]
  %v80 = vld [vmem:[%s2 + $0x28] sm:$0xff]
  %v81 = vld [vmem:[%s2 + $0x30] sm:$0xff]
  %v82 = vld [vmem:[%s2 + $0x38] sm:$0xff]
  %v83 = vld [vmem:[%s3] sm:$0x1]
  %v84 = vld [vmem:[%s3 + $0x1] sm:$0x1]
  %v85 = vld [vmem:[%s3 + $0x2] sm:$0x1]
  %v86 = vld [vmem:[%s3 + $0x3] sm:$0x1]
  %v87 = vld [vmem:[%s3 + $0x4] sm:$0x1]
  %v88 = vld [vmem:[%s3 + $0x5] sm:$0x1]
  %v89 = vld [vmem:[%s3 + $0x6] sm:$0x1]
  %v90 = vld [vmem:[%s3 + $0x7] sm:$0x1]
  %v91 = vld [vmem:[%s0] sm:$0xff]
  %v92 = vld [vmem:[%s0 + $0x8] sm:$0xff]
  %v93 = vld [vmem:[%s5] sm:$0xf]
  %v94 = vld [vmem:[%s5 + $0x4] sm:$0xf]
  %v95 = vpack.c.bf16 %v92, %v91
  %v96 = vld [vmem:[%s4] sm:$0xff]
  %v97 = vld [vmem:[%s4 + $0x8] sm:$0xff]
  %v100 = vunpack.c.l.b16 %v93
  %v101 = vunpack.c.l.b16 %v94
  %v102 = vpack.c.b16 %v101, %v100
  %vm104 = vcmask 130048
  %v106 = vsel %vm104, %v95, 0
  %108 = vmatprep.subr.bf16.mxu0 0
  %109 = vmatpush1.bf16.msra.mxu0 %v102
  %110 = vmatprep.subr.bf16.mxu0 0
  %111 = vmatpush1.bf16.msra.mxu0 0
  %112 = vmatprep.subr.bf16.mxu0 0
  %113 = vmatpush1.bf16.msra.mxu0 0
  %114 = vmatprep.subr.bf16.mxu0 0
  %115 = vmatpush1.bf16.msra.mxu0 0
  %116 = vmatprep.subr.bf16.mxu0 0
  %117 = vmatpush1.bf16.msra.mxu0 0
  %118 = vmatprep.subr.bf16.mxu0 0
  %119 = vmatpush1.bf16.msra.mxu0 0
  %120 = vmatprep.subr.bf16.mxu0 0
  %121 = vmatpush1.bf16.msra.mxu0 0
  %122 = vmatprep.subr.bf16.mxu0 0
  %123 = vmatpush1.bf16.msra.mxu0 0
  %124 = vmatprep.subr.bf16.mxu0 0
  %125 = vmatpush1.bf16.msra.mxu0 0
  %126 = vmatprep.subr.bf16.mxu0 0
  %127 = vmatpush1.bf16.msra.mxu0 0
  %128 = vmatprep.subr.bf16.mxu0 0
  %129 = vmatpush1.bf16.msra.mxu0 0
  %130 = vmatprep.subr.bf16.mxu0 0
  %131 = vmatpush1.bf16.msra.mxu0 0
  %132 = vmatprep.subr.bf16.mxu0 0
  %133 = vmatpush1.bf16.msra.mxu0 0
  %134 = vmatprep.subr.bf16.mxu0 0
  %135 = vmatpush1.bf16.msra.mxu0 0
  %136 = vmatprep.subr.bf16.mxu0 0
  %137 = vmatpush1.bf16.msra.mxu0 0
  %138 = vmatprep.subr.bf16.mxu0 0
  %139 = vmatpush1.bf16.msra.mxu0 0
  %140 = vmatprep.mubr.bf16.mxu0 0
  %141 = vmatmul.mubr.bf16.gmra.mrb[0].mxu0 %v106
  %v142 = vpop.f32.mrb[0].mxu0
  %v143 = vadd.f32 %v96, %v142
  %v144 = vpop.f32.mrb[0].mxu0
  %v145 = vpop.f32.mrb[0].mxu0
  %v146 = vadd.f32 %v97, %v145
  %v147 = vpop.f32.mrb[0].mxu0
  %148 = vdwg.mxu0
  %v149 = vld [vmem:[%s1] sm:$0xff]
  %v150 = vld [vmem:[%s1 + $0x8] sm:$0xff]
  %v151 = vld [vmem:[%s1 + $0x10] sm:$0xf]
  %v152 = vld [vmem:[%s6] sm:$0xf]
  %v153 = vld [vmem:[%s6 + $0x4] sm:$0xf]
  %v154 = vld [vmem:[%s6 + $0x8] sm:$0xf]
  %v155 = vld [vmem:[%s6 + $0xc] sm:$0xf]
  %v156 = vpack.c.bf16 %v150, %v149
  %v157 = vpack.c.bf16 %v151, %v151
  %v162 = vunpack.c.l.b16 %v152
  %v163 = vunpack.c.l.b16 %v153
  %v164 = vunpack.c.l.b16 %v154
  %v165 = vunpack.c.l.b16 %v155
  %v166 = vpack.c.b16 %v163, %v162
  %v167 = vpack.c.b16 %v165, %v164
  %vm170 = vcmask 261120
  %v172 = vsel %vm170, %v156, 0
  %v175 = vsel %vm170, %v157, 0
  %177 = vmatprep.subr.bf16.mxu0 0
  %178 = vmatpush1.bf16.msra.mxu0 %v166
  %179 = vmatprep.subr.bf16.mxu0 0
  %180 = vmatpush1.bf16.msra.mxu0 %v167
  %181 = vmatprep.subr.bf16.mxu0 0
  %182 = vmatpush1.bf16.msra.mxu0 0
  %183 = vmatprep.subr.bf16.mxu0 0
  %184 = vmatpush1.bf16.msra.mxu0 0
  %185 = vmatprep.subr.bf16.mxu0 0
  %186 = vmatpush1.bf16.msra.mxu0 0
  %187 = vmatprep.subr.bf16.mxu0 0
  %188 = vmatpush1.bf16.msra.mxu0 0
  %189 = vmatprep.subr.bf16.mxu0 0
  %190 = vmatpush1.bf16.msra.mxu0 0
  %191 = vmatprep.subr.bf16.mxu0 0
  %192 = vmatpush1.bf16.msra.mxu0 0
  %193 = vmatprep.subr.bf16.mxu0 0
  %194 = vmatpush1.bf16.msra.mxu0 0
  %195 = vmatprep.subr.bf16.mxu0 0
  %196 = vmatpush1.bf16.msra.mxu0 0
  %197 = vmatprep.subr.bf16.mxu0 0
  %198 = vmatpush1.bf16.msra.mxu0 0
  %199 = vmatprep.subr.bf16.mxu0 0
  %200 = vmatpush1.bf16.msra.mxu0 0
  %201 = vmatprep.subr.bf16.mxu0 0
  %202 = vmatpush1.bf16.msra.mxu0 0
  %203 = vmatprep.subr.bf16.mxu0 0
  %204 = vmatpush1.bf16.msra.mxu0 0
  %205 = vmatprep.subr.bf16.mxu0 0
  %206 = vmatpush1.bf16.msra.mxu0 0
  %207 = vmatprep.subr.bf16.mxu0 0
  %208 = vmatpush1.bf16.msra.mxu0 0
  %209 = vmatprep.mubr.bf16.mxu0 0
  %210 = vmatmul.mubr.bf16.gmra.mrb[0].mxu0 %v172
  %v211 = vpop.f32.mrb[0].mxu0
  %v212 = vadd.f32 0.0, %v211
  %v213 = vpop.f32.mrb[0].mxu0
  %v214 = vpop.f32.mrb[0].mxu0
  %v215 = vadd.f32 0.0, %v214
  %v216 = vpop.f32.mrb[0].mxu0
  %217 = vmatprep.mubr.bf16.mxu0 0
  %218 = vmatmul.mubr.bf16.gmra.mrb[0].mxu0 %v175
  %v219 = vpop.f32.mrb[0].mxu0
  %v220 = vadd.f32 0.0, %v219
  %v221 = vpop.f32.mrb[0].mxu0
  %v222 = vpop.f32.mrb[0].mxu0
  %v223 = vpop.f32.mrb[0].mxu0
  %224 = vdwg.mxu0
  %227 = vrot.lane.b32.xlu0 %v212, 120
  %v228 = vpop.permute.xlu0 %227
  %229 = vrot.lane.b32.xlu0 %v215, 120
  %v230 = vpop.permute.xlu0 %229
  %233 = vrot.lane.b32.xlu0 %v212, 112
  %v234 = vpop.permute.xlu0 %233
  %235 = vrot.lane.b32.xlu0 %v215, 112
  %v236 = vpop.permute.xlu0 %235
  %239 = vrot.lane.b32.xlu0 %v212, 104
  %v240 = vpop.permute.xlu0 %239
  %241 = vrot.lane.b32.xlu0 %v215, 104
  %v242 = vpop.permute.xlu0 %241
  %vm246 = vcmask 1045504
  %v247 = vrot.slane %v215, 2
  %v248 = vrot.slane %v220, 2
  %v249 = vsel %vm246, %v247, %v248
  %252 = vrot.lane.b32.xlu0 %v249, 120
  %v253 = vpop.permute.xlu0 %252
  %254 = vrot.lane.b32.xlu0 %v248, 120
  %v255 = vpop.permute.xlu0 %254
  %258 = vrot.lane.b32.xlu0 %v249, 112
  %v259 = vpop.permute.xlu0 %258
  %260 = vrot.lane.b32.xlu0 %v248, 112
  %v261 = vpop.permute.xlu0 %260
  %264 = vrot.lane.b32.xlu0 %v249, 104
  %v265 = vpop.permute.xlu0 %264
  %266 = vrot.lane.b32.xlu0 %v248, 104
  %v267 = vpop.permute.xlu0 %266
  %v270 = vpack.c.bf16 %v215, %v212
  %v271 = vpack.c.bf16 %v230, %v228
  %v272 = vpack.c.bf16 %v236, %v234
  %v273 = vpack.c.bf16 %v242, %v240
  %v274 = vpack.c.bf16 %v248, %v249
  %v275 = vpack.c.bf16 %v255, %v253
  %v276 = vpack.c.bf16 %v261, %v259
  %v277 = vpack.c.bf16 %v267, %v265
  %v278 = vld [vmem:[%s7] sm:$0x1]
  %v279 = vld [vmem:[%s8] sm:$0x1]
  %v280 = vsel %vm170, %v143, 0.0
  %281 = vadd.xlane.f32.xlu0 %v280
  %v282 = vpop.xlane.xlu0 %281
  %v283 = vsel %vm170, %v146, 0.0
  %284 = vadd.xlane.f32.xlu0 %v283
  %v285 = vpop.xlane.xlu0 %284
  %v286 = vrcp.pop 32.0
  %v287 = vmul.f32 %v282, %v286
  %v288 = vmul.f32 %v285, %v286
  %v289 = vsub.f32 %v143, %v287
  %v290 = vsub.f32 %v146, %v288
  %v291 = vmul.f32 %v289, %v289
  %v292 = vmul.f32 %v290, %v290
  %v293 = vsel %vm170, %v291, 0.0
  %294 = vadd.xlane.f32.xlu0 %v293
  %v295 = vpop.xlane.xlu0 %294
  %v296 = vsel %vm170, %v292, 0.0
  %297 = vadd.xlane.f32.xlu0 %v296
  %v298 = vpop.xlane.xlu0 %297
  %v299 = vrcp.pop 31.0
  %v300 = vmul.f32 %v295, %v299
  %v301 = vmul.f32 %v298, %v299
  %v302 = vrsqrt.pop %v300
  %v303 = vmul.f32 %v300, %v302
  %vm304 = vcmp.eq.f32.partialorder %v300, inf
  %v305 = vsel %vm304, %v300, %v303
  %vm306 = vcmp.eq.f32.partialorder %v300, 0.0
  %v307 = vand.u32 %v300, 2147483648
  %v308 = vsel %vm306, %v307, %v305
  %v309 = vrsqrt.pop %v301
  %v310 = vmul.f32 %v301, %v309
  %vm311 = vcmp.eq.f32.partialorder %v301, inf
  %v312 = vsel %vm311, %v301, %v310
  %vm313 = vcmp.eq.f32.partialorder %v301, 0.0
  %v314 = vand.u32 %v301, 2147483648
  %v315 = vsel %vm313, %v314, %v312
  %v316 = vadd.f32 %v308, 1e-06
  %v317 = vadd.f32 %v315, 1e-06
  %v318 = vrcp.pop %v316
  %v319 = vmul.f32 %v289, %v318
  %v320 = vrcp.pop %v317
  %v321 = vmul.f32 %v290, %v320
  %v323 = vlaneseq
  %v324 = vshrl.u32 %v323, 7
  %v325 = vsub.s32 0, %v324
  %v326 = vrot.slane %v278, %v325
  %v328 = vmul.f32 %v326, %v319
  %v329 = vmul.f32 %v326, %v321
  %v331 = vlaneseq
  %v332 = vshrl.u32 %v331, 7
  %v333 = vsub.s32 0, %v332
  %v334 = vrot.slane %v279, %v333
  %v336 = vadd.f32 %v328, %v334
  %v337 = vadd.f32 %v329, %v334
  %v338 = vld [vmem:[%s9] sm:$0xf]
  %v339 = vld [vmem:[%s9 + $0x4] sm:$0xf]
  %v340 = vld [vmem:[%s9 + $0x8] sm:$0xf]
  %v341 = vld [vmem:[%s9 + $0xc] sm:$0xf]
  %v342 = vpack.c.bf16 %v337, %v336
  %v347 = vunpack.c.l.b16 %v338
  %v348 = vunpack.c.l.b16 %v339
  %v349 = vunpack.c.l.b16 %v340
  %v350 = vunpack.c.l.b16 %v341
  %v351 = vpack.c.b16 %v348, %v347
  %v352 = vpack.c.b16 %v350, %v349
  %v356 = vsel %vm170, %v342, 0
  %358 = vmatprep.subr.bf16.mxu0 0
  %359 = vmatpush1.bf16.msra.mxu0 %v351
  %360 = vmatprep.subr.bf16.mxu0 0
  %361 = vmatpush1.bf16.msra.mxu0 %v352
  %362 = vmatprep.subr.bf16.mxu0 0
  %363 = vmatpush1.bf16.msra.mxu0 0
  %364 = vmatprep.subr.bf16.mxu0 0
  %365 = vmatpush1.bf16.msra.mxu0 0
  %366 = vmatprep.subr.bf16.mxu0 0
  %367 = vmatpush1.bf16.msra.mxu0 0
  %368 = vmatprep.subr.bf16.mxu0 0
  %369 = vmatpush1.bf16.msra.mxu0 0
  %370 = vmatprep.subr.bf16.mxu0 0
  %371 = vmatpush1.bf16.msra.mxu0 0
  %372 = vmatprep.subr.bf16.mxu0 0
  %373 = vmatpush1.bf16.msra.mxu0 0
  %374 = vmatprep.subr.bf16.mxu0 0
  %375 = vmatpush1.bf16.msra.mxu0 0
  %376 = vmatprep.subr.bf16.mxu0 0
  %377 = vmatpush1.bf16.msra.mxu0 0
  %378 = vmatprep.subr.bf16.mxu0 0
  %379 = vmatpush1.bf16.msra.mxu0 0
  %380 = vmatprep.subr.bf16.mxu0 0
  %381 = vmatpush1.bf16.msra.mxu0 0
  %382 = vmatprep.subr.bf16.mxu0 0
  %383 = vmatpush1.bf16.msra.mxu0 0
  %384 = vmatprep.subr.bf16.mxu0 0
  %385 = vmatpush1.bf16.msra.mxu0 0
  %386 = vmatprep.subr.bf16.mxu0 0
  %387 = vmatpush1.bf16.msra.mxu0 0
  %388 = vmatprep.subr.bf16.mxu0 0
  %389 = vmatpush1.bf16.msra.mxu0 0
  %390 = vmatprep.mubr.bf16.mxu0 0
  %391 = vmatmul.mubr.bf16.gmra.mrb[0].mxu0 %v356
  %v392 = vpop.f32.mrb[0].mxu0
  %v393 = vadd.f32 0.0, %v392
  %v394 = vpop.f32.mrb[0].mxu0
  %v395 = vpop.f32.mrb[0].mxu0
  %v396 = vadd.f32 0.0, %v395
  %v397 = vpop.f32.mrb[0].mxu0
  %398 = vdwg.mxu0
  %400 = vrot.lane.b32.xlu0 %v393, 120
  %v401 = vpop.permute.xlu0 %400
  %403 = vrot.lane.b32.xlu0 %v393, 112
  %v404 = vpop.permute.xlu0 %403
  %406 = vrot.lane.b32.xlu0 %v393, 104
  %v407 = vpop.permute.xlu0 %406
  %410 = vrot.lane.b32.xlu0 %v396, 120
  %v411 = vpop.permute.xlu0 %410
  %413 = vrot.lane.b32.xlu0 %v396, 112
  %v414 = vpop.permute.xlu0 %413
  %416 = vrot.lane.b32.xlu0 %v396, 104
  %v417 = vpop.permute.xlu0 %416
  %v419 = vpack.c.bf16 %v393, %v393
  %v420 = vpack.c.bf16 %v401, %v401
  %v421 = vpack.c.bf16 %v404, %v404
  %v422 = vpack.c.bf16 %v407, %v407
  %v423 = vpack.c.bf16 %v396, %v396
  %v424 = vpack.c.bf16 %v411, %v411
  %v425 = vpack.c.bf16 %v414, %v414
  %v426 = vpack.c.bf16 %v417, %v417
  %428 = vrot.lane.b32.xlu0 %v419, 96
  %v429 = vpop.permute.xlu0 %428
  %vm430 = vcmask 64512
  %v432 = vsel %vm430, %v419, 0
  %v435 = vsel %vm430, %v429, 0
  %437 = vmatprep.subr.bf16.mxu0 0
  %438 = vmatpush1.bf16.xpose.msra.mxu0 %v435
  %439 = vmatprep.subr.bf16.mxu0 0
  %440 = vmatpush1.bf16.xpose.msra.mxu0 0
  %441 = vmatprep.subr.bf16.mxu0 0
  %442 = vmatpush1.bf16.xpose.msra.mxu0 0
  %443 = vmatprep.subr.bf16.mxu0 0
  %444 = vmatpush1.bf16.xpose.msra.mxu0 0
  %445 = vmatprep.subr.bf16.mxu0 0
  %446 = vmatpush1.bf16.xpose.msra.mxu0 0
  %447 = vmatprep.subr.bf16.mxu0 0
  %448 = vmatpush1.bf16.xpose.msra.mxu0 0
  %449 = vmatprep.subr.bf16.mxu0 0
  %450 = vmatpush1.bf16.xpose.msra.mxu0 0
  %451 = vmatprep.subr.bf16.mxu0 0
  %452 = vmatpush1.bf16.xpose.msra.mxu0 0
  %453 = vmatprep.subr.bf16.mxu0 0
  %454 = vmatpush1.bf16.xpose.msra.mxu0 0
  %455 = vmatprep.subr.bf16.mxu0 0
  %456 = vmatpush1.bf16.xpose.msra.mxu0 0
  %457 = vmatprep.subr.bf16.mxu0 0
  %458 = vmatpush1.bf16.xpose.msra.mxu0 0
  %459 = vmatprep.subr.bf16.mxu0 0
  %460 = vmatpush1.bf16.xpose.msra.mxu0 0
  %461 = vmatprep.subr.bf16.mxu0 0
  %462 = vmatpush1.bf16.xpose.msra.mxu0 0
  %463 = vmatprep.subr.bf16.mxu0 0
  %464 = vmatpush1.bf16.xpose.msra.mxu0 0
  %465 = vmatprep.subr.bf16.mxu0 0
  %466 = vmatpush1.bf16.xpose.msra.mxu0 0
  %467 = vmatprep.subr.bf16.mxu0 0
  %468 = vmatpush1.bf16.xpose.msra.mxu0 0
  %469 = vmatprep.mubr.bf16.mxu0 0
  %470 = vmatmul.mubr.bf16.gmra.mrb[0].mxu0 %v432
  %v471 = vpop.f32.mrb[0].mxu0
  %v472 = vadd.f32 0.0, %v471
  %v473 = vpop.f32.mrb[0].mxu0
  %v474 = vpop.f32.mrb[0].mxu0
  %v475 = vpop.f32.mrb[0].mxu0
  %476 = vdwg.mxu0
  %478 = vrot.lane.b32.xlu0 %v420, 96
  %v479 = vpop.permute.xlu0 %478
  %v481 = vsel %vm430, %v420, 0
  %v484 = vsel %vm430, %v479, 0
  %486 = vmatprep.subr.bf16.mxu0 0
  %487 = vmatpush1.bf16.xpose.msra.mxu0 %v484
  %488 = vmatprep.subr.bf16.mxu0 0
  %489 = vmatpush1.bf16.xpose.msra.mxu0 0
  %490 = vmatprep.subr.bf16.mxu0 0
  %491 = vmatpush1.bf16.xpose.msra.mxu0 0
  %492 = vmatprep.subr.bf16.mxu0 0
  %493 = vmatpush1.bf16.xpose.msra.mxu0 0
  %494 = vmatprep.subr.bf16.mxu0 0
  %495 = vmatpush1.bf16.xpose.msra.mxu0 0
  %496 = vmatprep.subr.bf16.mxu0 0
  %497 = vmatpush1.bf16.xpose.msra.mxu0 0
  %498 = vmatprep.subr.bf16.mxu0 0
  %499 = vmatpush1.bf16.xpose.msra.mxu0 0
  %500 = vmatprep.subr.bf16.mxu0 0
  %501 = vmatpush1.bf16.xpose.msra.mxu0 0
  %502 = vmatprep.subr.bf16.mxu0 0
  %503 = vmatpush1.bf16.xpose.msra.mxu0 0
  %504 = vmatprep.subr.bf16.mxu0 0
  %505 = vmatpush1.bf16.xpose.msra.mxu0 0
  %506 = vmatprep.subr.bf16.mxu0 0
  %507 = vmatpush1.bf16.xpose.msra.mxu0 0
  %508 = vmatprep.subr.bf16.mxu0 0
  %509 = vmatpush1.bf16.xpose.msra.mxu0 0
  %510 = vmatprep.subr.bf16.mxu0 0
  %511 = vmatpush1.bf16.xpose.msra.mxu0 0
  %512 = vmatprep.subr.bf16.mxu0 0
  %513 = vmatpush1.bf16.xpose.msra.mxu0 0
  %514 = vmatprep.subr.bf16.mxu0 0
  %515 = vmatpush1.bf16.xpose.msra.mxu0 0
  %516 = vmatprep.subr.bf16.mxu0 0
  %517 = vmatpush1.bf16.xpose.msra.mxu0 0
  %518 = vmatprep.mubr.bf16.mxu0 0
  %519 = vmatmul.mubr.bf16.gmra.mrb[0].mxu0 %v481
  %v520 = vpop.f32.mrb[0].mxu0
  %v521 = vadd.f32 0.0, %v520
  %v522 = vpop.f32.mrb[0].mxu0
  %v523 = vpop.f32.mrb[0].mxu0
  %v524 = vpop.f32.mrb[0].mxu0
  %525 = vdwg.mxu0
  %527 = vrot.lane.b32.xlu0 %v421, 96
  %v528 = vpop.permute.xlu0 %527
  %v530 = vsel %vm430, %v421, 0
  %v533 = vsel %vm430, %v528, 0
  %535 = vmatprep.subr.bf16.mxu0 0
  %536 = vmatpush1.bf16.xpose.msra.mxu0 %v533
  %537 = vmatprep.subr.bf16.mxu0 0
  %538 = vmatpush1.bf16.xpose.msra.mxu0 0
  %539 = vmatprep.subr.bf16.mxu0 0
  %540 = vmatpush1.bf16.xpose.msra.mxu0 0
  %541 = vmatprep.subr.bf16.mxu0 0
  %542 = vmatpush1.bf16.xpose.msra.mxu0 0
  %543 = vmatprep.subr.bf16.mxu0 0
  %544 = vmatpush1.bf16.xpose.msra.mxu0 0
  %545 = vmatprep.subr.bf16.mxu0 0
  %546 = vmatpush1.bf16.xpose.msra.mxu0 0
  %547 = vmatprep.subr.bf16.mxu0 0
  %548 = vmatpush1.bf16.xpose.msra.mxu0 0
  %549 = vmatprep.subr.bf16.mxu0 0
  %550 = vmatpush1.bf16.xpose.msra.mxu0 0
  %551 = vmatprep.subr.bf16.mxu0 0
  %552 = vmatpush1.bf16.xpose.msra.mxu0 0
  %553 = vmatprep.subr.bf16.mxu0 0
  %554 = vmatpush1.bf16.xpose.msra.mxu0 0
  %555 = vmatprep.subr.bf16.mxu0 0
  %556 = vmatpush1.bf16.xpose.msra.mxu0 0
  %557 = vmatprep.subr.bf16.mxu0 0
  %558 = vmatpush1.bf16.xpose.msra.mxu0 0
  %559 = vmatprep.subr.bf16.mxu0 0
  %560 = vmatpush1.bf16.xpose.msra.mxu0 0
  %561 = vmatprep.subr.bf16.mxu0 0
  %562 = vmatpush1.bf16.xpose.msra.mxu0 0
  %563 = vmatprep.subr.bf16.mxu0 0
  %564 = vmatpush1.bf16.xpose.msra.mxu0 0
  %565 = vmatprep.subr.bf16.mxu0 0
  %566 = vmatpush1.bf16.xpose.msra.mxu0 0
  %567 = vmatprep.mubr.bf16.mxu0 0
  %568 = vmatmul.mubr.bf16.gmra.mrb[0].mxu0 %v530
  %v569 = vpop.f32.mrb[0].mxu0
  %v570 = vadd.f32 0.0, %v569
  %v571 = vpop.f32.mrb[0].mxu0
  %v572 = vpop.f32.mrb[0].mxu0
  %v573 = vpop.f32.mrb[0].mxu0
  %574 = vdwg.mxu0
  %576 = vrot.lane.b32.xlu0 %v422, 96
  %v577 = vpop.permute.xlu0 %576
  %v579 = vsel %vm430, %v422, 0
  %v582 = vsel %vm430, %v577, 0
  %584 = vmatprep.subr.bf16.mxu0 0
  %585 = vmatpush1.bf16.xpose.msra.mxu0 %v582
  %586 = vmatprep.subr.bf16.mxu0 0
  %587 = vmatpush1.bf16.xpose.msra.mxu0 0
  %588 = vmatprep.subr.bf16.mxu0 0
  %589 = vmatpush1.bf16.xpose.msra.mxu0 0
  %590 = vmatprep.subr.bf16.mxu0 0
  %591 = vmatpush1.bf16.xpose.msra.mxu0 0
  %592 = vmatprep.subr.bf16.mxu0 0
  %593 = vmatpush1.bf16.xpose.msra.mxu0 0
  %594 = vmatprep.subr.bf16.mxu0 0
  %595 = vmatpush1.bf16.xpose.msra.mxu0 0
  %596 = vmatprep.subr.bf16.mxu0 0
  %597 = vmatpush1.bf16.xpose.msra.mxu0 0
  %598 = vmatprep.subr.bf16.mxu0 0
  %599 = vmatpush1.bf16.xpose.msra.mxu0 0
  %600 = vmatprep.subr.bf16.mxu0 0
  %601 = vmatpush1.bf16.xpose.msra.mxu0 0
  %602 = vmatprep.subr.bf16.mxu0 0
  %603 = vmatpush1.bf16.xpose.msra.mxu0 0
  %604 = vmatprep.subr.bf16.mxu0 0
  %605 = vmatpush1.bf16.xpose.msra.mxu0 0
  %606 = vmatprep.subr.bf16.mxu0 0
  %607 = vmatpush1.bf16.xpose.msra.mxu0 0
  %608 = vmatprep.subr.bf16.mxu0 0
  %609 = vmatpush1.bf16.xpose.msra.mxu0 0
  %610 = vmatprep.subr.bf16.mxu0 0
  %611 = vmatpush1.bf16.xpose.msra.mxu0 0
  %612 = vmatprep.subr.bf16.mxu0 0
  %613 = vmatpush1.bf16.xpose.msra.mxu0 0
  %614 = vmatprep.subr.bf16.mxu0 0
  %615 = vmatpush1.bf16.xpose.msra.mxu0 0
  %616 = vmatprep.mubr.bf16.mxu0 0
  %617 = vmatmul.mubr.bf16.gmra.mrb[0].mxu0 %v579
  %v618 = vpop.f32.mrb[0].mxu0
  %v619 = vadd.f32 0.0, %v618
  %v620 = vpop.f32.mrb[0].mxu0
  %v621 = vpop.f32.mrb[0].mxu0
  %v622 = vpop.f32.mrb[0].mxu0
  %623 = vdwg.mxu0
  %625 = vrot.lane.b32.xlu0 %v423, 96
  %v626 = vpop.permute.xlu0 %625
  %v628 = vsel %vm430, %v423, 0
  %v631 = vsel %vm430, %v626, 0
  %633 = vmatprep.subr.bf16.mxu0 0
  %634 = vmatpush1.bf16.xpose.msra.mxu0 %v631
  %635 = vmatprep.subr.bf16.mxu0 0
  %636 = vmatpush1.bf16.xpose.msra.mxu0 0
  %637 = vmatprep.subr.bf16.mxu0 0
  %638 = vmatpush1.bf16.xpose.msra.mxu0 0
  %639 = vmatprep.subr.bf16.mxu0 0
  %640 = vmatpush1.bf16.xpose.msra.mxu0 0
  %641 = vmatprep.subr.bf16.mxu0 0
  %642 = vmatpush1.bf16.xpose.msra.mxu0 0
  %643 = vmatprep.subr.bf16.mxu0 0
  %644 = vmatpush1.bf16.xpose.msra.mxu0 0
  %645 = vmatprep.subr.bf16.mxu0 0
  %646 = vmatpush1.bf16.xpose.msra.mxu0 0
  %647 = vmatprep.subr.bf16.mxu0 0
  %648 = vmatpush1.bf16.xpose.msra.mxu0 0
  %649 = vmatprep.subr.bf16.mxu0 0
  %650 = vmatpush1.bf16.xpose.msra.mxu0 0
  %651 = vmatprep.subr.bf16.mxu0 0
  %652 = vmatpush1.bf16.xpose.msra.mxu0 0
  %653 = vmatprep.subr.bf16.mxu0 0
  %654 = vmatpush1.bf16.xpose.msra.mxu0 0
  %655 = vmatprep.subr.bf16.mxu0 0
  %656 = vmatpush1.bf16.xpose.msra.mxu0 0
  %657 = vmatprep.subr.bf16.mxu0 0
  %658 = vmatpush1.bf16.xpose.msra.mxu0 0
  %659 = vmatprep.subr.bf16.mxu0 0
  %660 = vmatpush1.bf16.xpose.msra.mxu0 0
  %661 = vmatprep.subr.bf16.mxu0 0
  %662 = vmatpush1.bf16.xpose.msra.mxu0 0
  %663 = vmatprep.subr.bf16.mxu0 0
  %664 = vmatpush1.bf16.xpose.msra.mxu0 0
  %665 = vmatprep.mubr.bf16.mxu0 0
  %666 = vmatmul.mubr.bf16.gmra.mrb[0].mxu0 %v628
  %v667 = vpop.f32.mrb[0].mxu0
  %v668 = vadd.f32 0.0, %v667
  %v669 = vpop.f32.mrb[0].mxu0
  %v670 = vpop.f32.mrb[0].mxu0
  %v671 = vpop.f32.mrb[0].mxu0
  %672 = vdwg.mxu0
  %674 = vrot.lane.b32.xlu0 %v424, 96
  %v675 = vpop.permute.xlu0 %674
  %v677 = vsel %vm430, %v424, 0
  %v680 = vsel %vm430, %v675, 0
  %682 = vmatprep.subr.bf16.mxu0 0
  %683 = vmatpush1.bf16.xpose.msra.mxu0 %v680
  %684 = vmatprep.subr.bf16.mxu0 0
  %685 = vmatpush1.bf16.xpose.msra.mxu0 0
  %686 = vmatprep.subr.bf16.mxu0 0
  %687 = vmatpush1.bf16.xpose.msra.mxu0 0
  %688 = vmatprep.subr.bf16.mxu0 0
  %689 = vmatpush1.bf16.xpose.msra.mxu0 0
  %690 = vmatprep.subr.bf16.mxu0 0
  %691 = vmatpush1.bf16.xpose.msra.mxu0 0
  %692 = vmatprep.subr.bf16.mxu0 0
  %693 = vmatpush1.bf16.xpose.msra.mxu0 0
  %694 = vmatprep.subr.bf16.mxu0 0
  %695 = vmatpush1.bf16.xpose.msra.mxu0 0
  %696 = vmatprep.subr.bf16.mxu0 0
  %697 = vmatpush1.bf16.xpose.msra.mxu0 0
  %698 = vmatprep.subr.bf16.mxu0 0
  %699 = vmatpush1.bf16.xpose.msra.mxu0 0
  %700 = vmatprep.subr.bf16.mxu0 0
  %701 = vmatpush1.bf16.xpose.msra.mxu0 0
  %702 = vmatprep.subr.bf16.mxu0 0
  %703 = vmatpush1.bf16.xpose.msra.mxu0 0
  %704 = vmatprep.subr.bf16.mxu0 0
  %705 = vmatpush1.bf16.xpose.msra.mxu0 0
  %706 = vmatprep.subr.bf16.mxu0 0
  %707 = vmatpush1.bf16.xpose.msra.mxu0 0
  %708 = vmatprep.subr.bf16.mxu0 0
  %709 = vmatpush1.bf16.xpose.msra.mxu0 0
  %710 = vmatprep.subr.bf16.mxu0 0
  %711 = vmatpush1.bf16.xpose.msra.mxu0 0
  %712 = vmatprep.subr.bf16.mxu0 0
  %713 = vmatpush1.bf16.xpose.msra.mxu0 0
  %714 = vmatprep.mubr.bf16.mxu0 0
  %715 = vmatmul.mubr.bf16.gmra.mrb[0].mxu0 %v677
  %v716 = vpop.f32.mrb[0].mxu0
  %v717 = vadd.f32 0.0, %v716
  %v718 = vpop.f32.mrb[0].mxu0
  %v719 = vpop.f32.mrb[0].mxu0
  %v720 = vpop.f32.mrb[0].mxu0
  %721 = vdwg.mxu0
  %723 = vrot.lane.b32.xlu0 %v425, 96
  %v724 = vpop.permute.xlu0 %723
  %v726 = vsel %vm430, %v425, 0
  %v729 = vsel %vm430, %v724, 0
  %731 = vmatprep.subr.bf16.mxu0 0
  %732 = vmatpush1.bf16.xpose.msra.mxu0 %v729
  %733 = vmatprep.subr.bf16.mxu0 0
  %734 = vmatpush1.bf16.xpose.msra.mxu0 0
  %735 = vmatprep.subr.bf16.mxu0 0
  %736 = vmatpush1.bf16.xpose.msra.mxu0 0
  %737 = vmatprep.subr.bf16.mxu0 0
  %738 = vmatpush1.bf16.xpose.msra.mxu0 0
  %739 = vmatprep.subr.bf16.mxu0 0
  %740 = vmatpush1.bf16.xpose.msra.mxu0 0
  %741 = vmatprep.subr.bf16.mxu0 0
  %742 = vmatpush1.bf16.xpose.msra.mxu0 0
  %743 = vmatprep.subr.bf16.mxu0 0
  %744 = vmatpush1.bf16.xpose.msra.mxu0 0
  %745 = vmatprep.subr.bf16.mxu0 0
  %746 = vmatpush1.bf16.xpose.msra.mxu0 0
  %747 = vmatprep.subr.bf16.mxu0 0
  %748 = vmatpush1.bf16.xpose.msra.mxu0 0
  %749 = vmatprep.subr.bf16.mxu0 0
  %750 = vmatpush1.bf16.xpose.msra.mxu0 0
  %751 = vmatprep.subr.bf16.mxu0 0
  %752 = vmatpush1.bf16.xpose.msra.mxu0 0
  %753 = vmatprep.subr.bf16.mxu0 0
  %754 = vmatpush1.bf16.xpose.msra.mxu0 0
  %755 = vmatprep.subr.bf16.mxu0 0
  %756 = vmatpush1.bf16.xpose.msra.mxu0 0
  %757 = vmatprep.subr.bf16.mxu0 0
  %758 = vmatpush1.bf16.xpose.msra.mxu0 0
  %759 = vmatprep.subr.bf16.mxu0 0
  %760 = vmatpush1.bf16.xpose.msra.mxu0 0
  %761 = vmatprep.subr.bf16.mxu0 0
  %762 = vmatpush1.bf16.xpose.msra.mxu0 0
  %763 = vmatprep.mubr.bf16.mxu0 0
  %764 = vmatmul.mubr.bf16.gmra.mrb[0].mxu0 %v726
  %v765 = vpop.f32.mrb[0].mxu0
  %v766 = vadd.f32 0.0, %v765
  %v767 = vpop.f32.mrb[0].mxu0
  %v768 = vpop.f32.mrb[0].mxu0
  %v769 = vpop.f32.mrb[0].mxu0
  %770 = vdwg.mxu0
  %772 = vrot.lane.b32.xlu0 %v426, 96
  %v773 = vpop.permute.xlu0 %772
  %v775 = vsel %vm430, %v426, 0
  %v778 = vsel %vm430, %v773, 0
  %780 = vmatprep.subr.bf16.mxu0 0
  %781 = vmatpush1.bf16.xpose.msra.mxu0 %v778
  %782 = vmatprep.subr.bf16.mxu0 0
  %783 = vmatpush1.bf16.xpose.msra.mxu0 0
  %784 = vmatprep.subr.bf16.mxu0 0
  %785 = vmatpush1.bf16.xpose.msra.mxu0 0
  %786 = vmatprep.subr.bf16.mxu0 0
  %787 = vmatpush1.bf16.xpose.msra.mxu0 0
  %788 = vmatprep.subr.bf16.mxu0 0
  %789 = vmatpush1.bf16.xpose.msra.mxu0 0
  %790 = vmatprep.subr.bf16.mxu0 0
  %791 = vmatpush1.bf16.xpose.msra.mxu0 0
  %792 = vmatprep.subr.bf16.mxu0 0
  %793 = vmatpush1.bf16.xpose.msra.mxu0 0
  %794 = vmatprep.subr.bf16.mxu0 0
  %795 = vmatpush1.bf16.xpose.msra.mxu0 0
  %796 = vmatprep.subr.bf16.mxu0 0
  %797 = vmatpush1.bf16.xpose.msra.mxu0 0
  %798 = vmatprep.subr.bf16.mxu0 0
  %799 = vmatpush1.bf16.xpose.msra.mxu0 0
  %800 = vmatprep.subr.bf16.mxu0 0
  %801 = vmatpush1.bf16.xpose.msra.mxu0 0
  %802 = vmatprep.subr.bf16.mxu0 0
  %803 = vmatpush1.bf16.xpose.msra.mxu0 0
  %804 = vmatprep.subr.bf16.mxu0 0
  %805 = vmatpush1.bf16.xpose.msra.mxu0 0
  %806 = vmatprep.subr.bf16.mxu0 0
  %807 = vmatpush1.bf16.xpose.msra.mxu0 0
  %808 = vmatprep.subr.bf16.mxu0 0
  %809 = vmatpush1.bf16.xpose.msra.mxu0 0
  %810 = vmatprep.subr.bf16.mxu0 0
  %811 = vmatpush1.bf16.xpose.msra.mxu0 0
  %812 = vmatprep.mubr.bf16.mxu0 0
  %813 = vmatmul.mubr.bf16.gmra.mrb[0].mxu0 %v775
  %v814 = vpop.f32.mrb[0].mxu0
  %v815 = vadd.f32 0.0, %v814
  %v816 = vpop.f32.mrb[0].mxu0
  %v817 = vpop.f32.mrb[0].mxu0
  %v818 = vpop.f32.mrb[0].mxu0
  %819 = vdwg.mxu0
  %vm820 = vcmp.gt.f32.partialorder %v75, 0.5
  %vm821 = vcmp.gt.f32.partialorder %v76, 0.5
  %vm822 = vcmp.gt.f32.partialorder %v77, 0.5
  %vm823 = vcmp.gt.f32.partialorder %v78, 0.5
  %vm824 = vcmp.gt.f32.partialorder %v79, 0.5
  %vm825 = vcmp.gt.f32.partialorder %v80, 0.5
  %vm826 = vcmp.gt.f32.partialorder %v81, 0.5
  %vm827 = vcmp.gt.f32.partialorder %v82, 0.5
  %v828 = vsel %vm820, -1e+18, %v472
  %v829 = vsel %vm821, -1e+18, %v521
  %v830 = vsel %vm822, -1e+18, %v570
  %v831 = vsel %vm823, -1e+18, %v619
  %v832 = vsel %vm824, -1e+18, %v668
  %v833 = vsel %vm825, -1e+18, %v717
  %v834 = vsel %vm826, -1e+18, %v766
  %v835 = vsel %vm827, -1e+18, %v815
  %v836 = vsel %vm430, %v828, -inf
  %837 = vmax.xlane.f32.xlu0 %v836
  %v838 = vpop.xlane.xlu0 %837
  %v839 = vsel %vm430, %v829, -inf
  %840 = vmax.xlane.f32.xlu0 %v839
  %v841 = vpop.xlane.xlu0 %840
  %v842 = vsel %vm430, %v830, -inf
  %843 = vmax.xlane.f32.xlu0 %v842
  %v844 = vpop.xlane.xlu0 %843
  %v845 = vsel %vm430, %v831, -inf
  %846 = vmax.xlane.f32.xlu0 %v845
  %v847 = vpop.xlane.xlu0 %846
  %v848 = vsel %vm430, %v832, -inf
  %849 = vmax.xlane.f32.xlu0 %v848
  %v850 = vpop.xlane.xlu0 %849
  %v851 = vsel %vm430, %v833, -inf
  %852 = vmax.xlane.f32.xlu0 %v851
  %v853 = vpop.xlane.xlu0 %852
  %v854 = vsel %vm430, %v834, -inf
  %855 = vmax.xlane.f32.xlu0 %v854
  %v856 = vpop.xlane.xlu0 %855
  %v857 = vsel %vm430, %v835, -inf
  %858 = vmax.xlane.f32.xlu0 %v857
  %v859 = vpop.xlane.xlu0 %858
  %v860 = vsub.f32 %v828, %v838
  %v861 = vsub.f32 %v829, %v841
  %v862 = vsub.f32 %v830, %v844
  %v863 = vsub.f32 %v831, %v847
  %v864 = vsub.f32 %v832, %v850
  %v865 = vsub.f32 %v833, %v853
  %v866 = vsub.f32 %v834, %v856
  %v867 = vsub.f32 %v835, %v859
  %v868 = vmul.f32 %v860, 1.442695
  %v869 = vpow.pop %v868
  %v870 = vmul.f32 %v861, 1.442695
  %v871 = vpow.pop %v870
  %v872 = vmul.f32 %v862, 1.442695
  %v873 = vpow.pop %v872
  %v874 = vmul.f32 %v863, 1.442695
  %v875 = vpow.pop %v874
  %v876 = vmul.f32 %v864, 1.442695
  %v877 = vpow.pop %v876
  %v878 = vmul.f32 %v865, 1.442695
  %v879 = vpow.pop %v878
  %v880 = vmul.f32 %v866, 1.442695
  %v881 = vpow.pop %v880
  %v882 = vmul.f32 %v867, 1.442695
  %v883 = vpow.pop %v882
  %v884 = vsel %vm430, %v869, 0.0
  %885 = vadd.xlane.f32.xlu0 %v884
  %v886 = vpop.xlane.xlu0 %885
  %v887 = vsel %vm430, %v871, 0.0
  %888 = vadd.xlane.f32.xlu0 %v887
  %v889 = vpop.xlane.xlu0 %888
  %v890 = vsel %vm430, %v873, 0.0
  %891 = vadd.xlane.f32.xlu0 %v890
  %v892 = vpop.xlane.xlu0 %891
  %v893 = vsel %vm430, %v875, 0.0
  %894 = vadd.xlane.f32.xlu0 %v893
  %v895 = vpop.xlane.xlu0 %894
  %v896 = vsel %vm430, %v877, 0.0
  %897 = vadd.xlane.f32.xlu0 %v896
  %v898 = vpop.xlane.xlu0 %897
  %v899 = vsel %vm430, %v879, 0.0
  %900 = vadd.xlane.f32.xlu0 %v899
  %v901 = vpop.xlane.xlu0 %900
  %v902 = vsel %vm430, %v881, 0.0
  %903 = vadd.xlane.f32.xlu0 %v902
  %v904 = vpop.xlane.xlu0 %903
  %v905 = vsel %vm430, %v883, 0.0
  %906 = vadd.xlane.f32.xlu0 %v905
  %v907 = vpop.xlane.xlu0 %906
  %v908 = vrcp.pop %v886
  %v909 = vrcp.pop %v889
  %v910 = vrcp.pop %v892
  %v911 = vrcp.pop %v895
  %v912 = vrcp.pop %v898
  %v913 = vrcp.pop %v901
  %v914 = vrcp.pop %v904
  %v915 = vrcp.pop %v907
  %v916 = vmul.f32 %v869, %v908
  %v917 = vmul.f32 %v871, %v909
  %v918 = vmul.f32 %v873, %v910
  %v919 = vmul.f32 %v875, %v911
  %v920 = vmul.f32 %v877, %v912
  %v921 = vmul.f32 %v879, %v913
  %v922 = vmul.f32 %v881, %v914
  %v923 = vmul.f32 %v883, %v915
  %v924 = vpack.c.bf16 %v916, %v916
  %v925 = vpack.c.bf16 %v917, %v917
  %v926 = vpack.c.bf16 %v918, %v918
  %v927 = vpack.c.bf16 %v919, %v919
  %v928 = vpack.c.bf16 %v920, %v920
  %v929 = vpack.c.bf16 %v921, %v921
  %v930 = vpack.c.bf16 %v922, %v922
  %v931 = vpack.c.bf16 %v923, %v923
  %932 = vrot.lane.b32.xlu0 %v419, 64
  %v933 = vpop.permute.xlu0 %932
  %v935 = vsel %vm430, %v924, 0
  %vm937 = vcmask 1043456
  %v939 = vsel %vm937, %v933, 0
  %941 = vmatprep.subr.bf16.mxu0 0
  %942 = vmatpush1.bf16.msra.mxu0 %v939
  %943 = vmatprep.subr.bf16.mxu0 0
  %944 = vmatpush1.bf16.msra.mxu0 0
  %945 = vmatprep.subr.bf16.mxu0 0
  %946 = vmatpush1.bf16.msra.mxu0 0
  %947 = vmatprep.subr.bf16.mxu0 0
  %948 = vmatpush1.bf16.msra.mxu0 0
  %949 = vmatprep.subr.bf16.mxu0 0
  %950 = vmatpush1.bf16.msra.mxu0 0
  %951 = vmatprep.subr.bf16.mxu0 0
  %952 = vmatpush1.bf16.msra.mxu0 0
  %953 = vmatprep.subr.bf16.mxu0 0
  %954 = vmatpush1.bf16.msra.mxu0 0
  %955 = vmatprep.subr.bf16.mxu0 0
  %956 = vmatpush1.bf16.msra.mxu0 0
  %957 = vmatprep.subr.bf16.mxu0 0
  %958 = vmatpush1.bf16.msra.mxu0 0
  %959 = vmatprep.subr.bf16.mxu0 0
  %960 = vmatpush1.bf16.msra.mxu0 0
  %961 = vmatprep.subr.bf16.mxu0 0
  %962 = vmatpush1.bf16.msra.mxu0 0
  %963 = vmatprep.subr.bf16.mxu0 0
  %964 = vmatpush1.bf16.msra.mxu0 0
  %965 = vmatprep.subr.bf16.mxu0 0
  %966 = vmatpush1.bf16.msra.mxu0 0
  %967 = vmatprep.subr.bf16.mxu0 0
  %968 = vmatpush1.bf16.msra.mxu0 0
  %969 = vmatprep.subr.bf16.mxu0 0
  %970 = vmatpush1.bf16.msra.mxu0 0
  %971 = vmatprep.subr.bf16.mxu0 0
  %972 = vmatpush1.bf16.msra.mxu0 0
  %973 = vmatprep.mubr.bf16.mxu0 0
  %974 = vmatmul.mubr.bf16.gmra.mrb[0].mxu0 %v935
  %v975 = vpop.f32.mrb[0].mxu0
  %v976 = vadd.f32 0.0, %v975
  %v977 = vpop.f32.mrb[0].mxu0
  %v978 = vpop.f32.mrb[0].mxu0
  %v979 = vpop.f32.mrb[0].mxu0
  %980 = vdwg.mxu0
  %981 = vrot.lane.b32.xlu0 %v420, 64
  %v982 = vpop.permute.xlu0 %981
  %v984 = vsel %vm430, %v925, 0
  %v987 = vsel %vm937, %v982, 0
  %989 = vmatprep.subr.bf16.mxu0 0
  %990 = vmatpush1.bf16.msra.mxu0 %v987
  %991 = vmatprep.subr.bf16.mxu0 0
  %992 = vmatpush1.bf16.msra.mxu0 0
  %993 = vmatprep.subr.bf16.mxu0 0
  %994 = vmatpush1.bf16.msra.mxu0 0
  %995 = vmatprep.subr.bf16.mxu0 0
  %996 = vmatpush1.bf16.msra.mxu0 0
  %997 = vmatprep.subr.bf16.mxu0 0
  %998 = vmatpush1.bf16.msra.mxu0 0
  %999 = vmatprep.subr.bf16.mxu0 0
  %1000 = vmatpush1.bf16.msra.mxu0 0
  %1001 = vmatprep.subr.bf16.mxu0 0
  %1002 = vmatpush1.bf16.msra.mxu0 0
  %1003 = vmatprep.subr.bf16.mxu0 0
  %1004 = vmatpush1.bf16.msra.mxu0 0
  %1005 = vmatprep.subr.bf16.mxu0 0
  %1006 = vmatpush1.bf16.msra.mxu0 0
  %1007 = vmatprep.subr.bf16.mxu0 0
  %1008 = vmatpush1.bf16.msra.mxu0 0
  %1009 = vmatprep.subr.bf16.mxu0 0
  %1010 = vmatpush1.bf16.msra.mxu0 0
  %1011 = vmatprep.subr.bf16.mxu0 0
  %1012 = vmatpush1.bf16.msra.mxu0 0
  %1013 = vmatprep.subr.bf16.mxu0 0
  %1014 = vmatpush1.bf16.msra.mxu0 0
  %1015 = vmatprep.subr.bf16.mxu0 0
  %1016 = vmatpush1.bf16.msra.mxu0 0
  %1017 = vmatprep.subr.bf16.mxu0 0
  %1018 = vmatpush1.bf16.msra.mxu0 0
  %1019 = vmatprep.subr.bf16.mxu0 0
  %1020 = vmatpush1.bf16.msra.mxu0 0
  %1021 = vmatprep.mubr.bf16.mxu0 0
  %1022 = vmatmul.mubr.bf16.gmra.mrb[0].mxu0 %v984
  %v1023 = vpop.f32.mrb[0].mxu0
  %v1024 = vadd.f32 0.0, %v1023
  %v1025 = vpop.f32.mrb[0].mxu0
  %v1026 = vpop.f32.mrb[0].mxu0
  %v1027 = vpop.f32.mrb[0].mxu0
  %1028 = vdwg.mxu0
  %1029 = vrot.lane.b32.xlu0 %v421, 64
  %v1030 = vpop.permute.xlu0 %1029
  %v1032 = vsel %vm430, %v926, 0
  %v1035 = vsel %vm937, %v1030, 0
  %1037 = vmatprep.subr.bf16.mxu0 0
  %1038 = vmatpush1.bf16.msra.mxu0 %v1035
  %1039 = vmatprep.subr.bf16.mxu0 0
  %1040 = vmatpush1.bf16.msra.mxu0 0
  %1041 = vmatprep.subr.bf16.mxu0 0
  %1042 = vmatpush1.bf16.msra.mxu0 0
  %1043 = vmatprep.subr.bf16.mxu0 0
  %1044 = vmatpush1.bf16.msra.mxu0 0
  %1045 = vmatprep.subr.bf16.mxu0 0
  %1046 = vmatpush1.bf16.msra.mxu0 0
  %1047 = vmatprep.subr.bf16.mxu0 0
  %1048 = vmatpush1.bf16.msra.mxu0 0
  %1049 = vmatprep.subr.bf16.mxu0 0
  %1050 = vmatpush1.bf16.msra.mxu0 0
  %1051 = vmatprep.subr.bf16.mxu0 0
  %1052 = vmatpush1.bf16.msra.mxu0 0
  %1053 = vmatprep.subr.bf16.mxu0 0
  %1054 = vmatpush1.bf16.msra.mxu0 0
  %1055 = vmatprep.subr.bf16.mxu0 0
  %1056 = vmatpush1.bf16.msra.mxu0 0
  %1057 = vmatprep.subr.bf16.mxu0 0
  %1058 = vmatpush1.bf16.msra.mxu0 0
  %1059 = vmatprep.subr.bf16.mxu0 0
  %1060 = vmatpush1.bf16.msra.mxu0 0
  %1061 = vmatprep.subr.bf16.mxu0 0
  %1062 = vmatpush1.bf16.msra.mxu0 0
  %1063 = vmatprep.subr.bf16.mxu0 0
  %1064 = vmatpush1.bf16.msra.mxu0 0
  %1065 = vmatprep.subr.bf16.mxu0 0
  %1066 = vmatpush1.bf16.msra.mxu0 0
  %1067 = vmatprep.subr.bf16.mxu0 0
  %1068 = vmatpush1.bf16.msra.mxu0 0
  %1069 = vmatprep.mubr.bf16.mxu0 0
  %1070 = vmatmul.mubr.bf16.gmra.mrb[0].mxu0 %v1032
  %v1071 = vpop.f32.mrb[0].mxu0
  %v1072 = vadd.f32 0.0, %v1071
  %v1073 = vpop.f32.mrb[0].mxu0
  %v1074 = vpop.f32.mrb[0].mxu0
  %v1075 = vpop.f32.mrb[0].mxu0
  %1076 = vdwg.mxu0
  %1077 = vrot.lane.b32.xlu0 %v422, 64
  %v1078 = vpop.permute.xlu0 %1077
  %v1080 = vsel %vm430, %v927, 0
  %v1083 = vsel %vm937, %v1078, 0
  %1085 = vmatprep.subr.bf16.mxu0 0
  %1086 = vmatpush1.bf16.msra.mxu0 %v1083
  %1087 = vmatprep.subr.bf16.mxu0 0
  %1088 = vmatpush1.bf16.msra.mxu0 0
  %1089 = vmatprep.subr.bf16.mxu0 0
  %1090 = vmatpush1.bf16.msra.mxu0 0
  %1091 = vmatprep.subr.bf16.mxu0 0
  %1092 = vmatpush1.bf16.msra.mxu0 0
  %1093 = vmatprep.subr.bf16.mxu0 0
  %1094 = vmatpush1.bf16.msra.mxu0 0
  %1095 = vmatprep.subr.bf16.mxu0 0
  %1096 = vmatpush1.bf16.msra.mxu0 0
  %1097 = vmatprep.subr.bf16.mxu0 0
  %1098 = vmatpush1.bf16.msra.mxu0 0
  %1099 = vmatprep.subr.bf16.mxu0 0
  %1100 = vmatpush1.bf16.msra.mxu0 0
  %1101 = vmatprep.subr.bf16.mxu0 0
  %1102 = vmatpush1.bf16.msra.mxu0 0
  %1103 = vmatprep.subr.bf16.mxu0 0
  %1104 = vmatpush1.bf16.msra.mxu0 0
  %1105 = vmatprep.subr.bf16.mxu0 0
  %1106 = vmatpush1.bf16.msra.mxu0 0
  %1107 = vmatprep.subr.bf16.mxu0 0
  %1108 = vmatpush1.bf16.msra.mxu0 0
  %1109 = vmatprep.subr.bf16.mxu0 0
  %1110 = vmatpush1.bf16.msra.mxu0 0
  %1111 = vmatprep.subr.bf16.mxu0 0
  %1112 = vmatpush1.bf16.msra.mxu0 0
  %1113 = vmatprep.subr.bf16.mxu0 0
  %1114 = vmatpush1.bf16.msra.mxu0 0
  %1115 = vmatprep.subr.bf16.mxu0 0
  %1116 = vmatpush1.bf16.msra.mxu0 0
  %1117 = vmatprep.mubr.bf16.mxu0 0
  %1118 = vmatmul.mubr.bf16.gmra.mrb[0].mxu0 %v1080
  %v1119 = vpop.f32.mrb[0].mxu0
  %v1120 = vadd.f32 0.0, %v1119
  %v1121 = vpop.f32.mrb[0].mxu0
  %v1122 = vpop.f32.mrb[0].mxu0
  %v1123 = vpop.f32.mrb[0].mxu0
  %1124 = vdwg.mxu0
  %1125 = vrot.lane.b32.xlu0 %v423, 64
  %v1126 = vpop.permute.xlu0 %1125
  %v1128 = vsel %vm430, %v928, 0
  %v1131 = vsel %vm937, %v1126, 0
  %1133 = vmatprep.subr.bf16.mxu0 0
  %1134 = vmatpush1.bf16.msra.mxu0 %v1131
  %1135 = vmatprep.subr.bf16.mxu0 0
  %1136 = vmatpush1.bf16.msra.mxu0 0
  %1137 = vmatprep.subr.bf16.mxu0 0
  %1138 = vmatpush1.bf16.msra.mxu0 0
  %1139 = vmatprep.subr.bf16.mxu0 0
  %1140 = vmatpush1.bf16.msra.mxu0 0
  %1141 = vmatprep.subr.bf16.mxu0 0
  %1142 = vmatpush1.bf16.msra.mxu0 0
  %1143 = vmatprep.subr.bf16.mxu0 0
  %1144 = vmatpush1.bf16.msra.mxu0 0
  %1145 = vmatprep.subr.bf16.mxu0 0
  %1146 = vmatpush1.bf16.msra.mxu0 0
  %1147 = vmatprep.subr.bf16.mxu0 0
  %1148 = vmatpush1.bf16.msra.mxu0 0
  %1149 = vmatprep.subr.bf16.mxu0 0
  %1150 = vmatpush1.bf16.msra.mxu0 0
  %1151 = vmatprep.subr.bf16.mxu0 0
  %1152 = vmatpush1.bf16.msra.mxu0 0
  %1153 = vmatprep.subr.bf16.mxu0 0
  %1154 = vmatpush1.bf16.msra.mxu0 0
  %1155 = vmatprep.subr.bf16.mxu0 0
  %1156 = vmatpush1.bf16.msra.mxu0 0
  %1157 = vmatprep.subr.bf16.mxu0 0
  %1158 = vmatpush1.bf16.msra.mxu0 0
  %1159 = vmatprep.subr.bf16.mxu0 0
  %1160 = vmatpush1.bf16.msra.mxu0 0
  %1161 = vmatprep.subr.bf16.mxu0 0
  %1162 = vmatpush1.bf16.msra.mxu0 0
  %1163 = vmatprep.subr.bf16.mxu0 0
  %1164 = vmatpush1.bf16.msra.mxu0 0
  %1165 = vmatprep.mubr.bf16.mxu0 0
  %1166 = vmatmul.mubr.bf16.gmra.mrb[0].mxu0 %v1128
  %v1167 = vpop.f32.mrb[0].mxu0
  %v1168 = vadd.f32 0.0, %v1167
  %v1169 = vpop.f32.mrb[0].mxu0
  %v1170 = vpop.f32.mrb[0].mxu0
  %v1171 = vpop.f32.mrb[0].mxu0
  %1172 = vdwg.mxu0
  %1173 = vrot.lane.b32.xlu0 %v424, 64
  %v1174 = vpop.permute.xlu0 %1173
  %v1176 = vsel %vm430, %v929, 0
  %v1179 = vsel %vm937, %v1174, 0
  %1181 = vmatprep.subr.bf16.mxu0 0
  %1182 = vmatpush1.bf16.msra.mxu0 %v1179
  %1183 = vmatprep.subr.bf16.mxu0 0
  %1184 = vmatpush1.bf16.msra.mxu0 0
  %1185 = vmatprep.subr.bf16.mxu0 0
  %1186 = vmatpush1.bf16.msra.mxu0 0
  %1187 = vmatprep.subr.bf16.mxu0 0
  %1188 = vmatpush1.bf16.msra.mxu0 0
  %1189 = vmatprep.subr.bf16.mxu0 0
  %1190 = vmatpush1.bf16.msra.mxu0 0
  %1191 = vmatprep.subr.bf16.mxu0 0
  %1192 = vmatpush1.bf16.msra.mxu0 0
  %1193 = vmatprep.subr.bf16.mxu0 0
  %1194 = vmatpush1.bf16.msra.mxu0 0
  %1195 = vmatprep.subr.bf16.mxu0 0
  %1196 = vmatpush1.bf16.msra.mxu0 0
  %1197 = vmatprep.subr.bf16.mxu0 0
  %1198 = vmatpush1.bf16.msra.mxu0 0
  %1199 = vmatprep.subr.bf16.mxu0 0
  %1200 = vmatpush1.bf16.msra.mxu0 0
  %1201 = vmatprep.subr.bf16.mxu0 0
  %1202 = vmatpush1.bf16.msra.mxu0 0
  %1203 = vmatprep.subr.bf16.mxu0 0
  %1204 = vmatpush1.bf16.msra.mxu0 0
  %1205 = vmatprep.subr.bf16.mxu0 0
  %1206 = vmatpush1.bf16.msra.mxu0 0
  %1207 = vmatprep.subr.bf16.mxu0 0
  %1208 = vmatpush1.bf16.msra.mxu0 0
  %1209 = vmatprep.subr.bf16.mxu0 0
  %1210 = vmatpush1.bf16.msra.mxu0 0
  %1211 = vmatprep.subr.bf16.mxu0 0
  %1212 = vmatpush1.bf16.msra.mxu0 0
  %1213 = vmatprep.mubr.bf16.mxu0 0
  %1214 = vmatmul.mubr.bf16.gmra.mrb[0].mxu0 %v1176
  %v1215 = vpop.f32.mrb[0].mxu0
  %v1216 = vadd.f32 0.0, %v1215
  %v1217 = vpop.f32.mrb[0].mxu0
  %v1218 = vpop.f32.mrb[0].mxu0
  %v1219 = vpop.f32.mrb[0].mxu0
  %1220 = vdwg.mxu0
  %1221 = vrot.lane.b32.xlu0 %v425, 64
  %v1222 = vpop.permute.xlu0 %1221
  %v1224 = vsel %vm430, %v930, 0
  %v1227 = vsel %vm937, %v1222, 0
  %1229 = vmatprep.subr.bf16.mxu0 0
  %1230 = vmatpush1.bf16.msra.mxu0 %v1227
  %1231 = vmatprep.subr.bf16.mxu0 0
  %1232 = vmatpush1.bf16.msra.mxu0 0
  %1233 = vmatprep.subr.bf16.mxu0 0
  %1234 = vmatpush1.bf16.msra.mxu0 0
  %1235 = vmatprep.subr.bf16.mxu0 0
  %1236 = vmatpush1.bf16.msra.mxu0 0
  %1237 = vmatprep.subr.bf16.mxu0 0
  %1238 = vmatpush1.bf16.msra.mxu0 0
  %1239 = vmatprep.subr.bf16.mxu0 0
  %1240 = vmatpush1.bf16.msra.mxu0 0
  %1241 = vmatprep.subr.bf16.mxu0 0
  %1242 = vmatpush1.bf16.msra.mxu0 0
  %1243 = vmatprep.subr.bf16.mxu0 0
  %1244 = vmatpush1.bf16.msra.mxu0 0
  %1245 = vmatprep.subr.bf16.mxu0 0
  %1246 = vmatpush1.bf16.msra.mxu0 0
  %1247 = vmatprep.subr.bf16.mxu0 0
  %1248 = vmatpush1.bf16.msra.mxu0 0
  %1249 = vmatprep.subr.bf16.mxu0 0
  %1250 = vmatpush1.bf16.msra.mxu0 0
  %1251 = vmatprep.subr.bf16.mxu0 0
  %1252 = vmatpush1.bf16.msra.mxu0 0
  %1253 = vmatprep.subr.bf16.mxu0 0
  %1254 = vmatpush1.bf16.msra.mxu0 0
  %1255 = vmatprep.subr.bf16.mxu0 0
  %1256 = vmatpush1.bf16.msra.mxu0 0
  %1257 = vmatprep.subr.bf16.mxu0 0
  %1258 = vmatpush1.bf16.msra.mxu0 0
  %1259 = vmatprep.subr.bf16.mxu0 0
  %1260 = vmatpush1.bf16.msra.mxu0 0
  %1261 = vmatprep.mubr.bf16.mxu0 0
  %1262 = vmatmul.mubr.bf16.gmra.mrb[0].mxu0 %v1224
  %v1263 = vpop.f32.mrb[0].mxu0
  %v1264 = vadd.f32 0.0, %v1263
  %v1265 = vpop.f32.mrb[0].mxu0
  %v1266 = vpop.f32.mrb[0].mxu0
  %v1267 = vpop.f32.mrb[0].mxu0
  %1268 = vdwg.mxu0
  %1269 = vrot.lane.b32.xlu0 %v426, 64
  %v1270 = vpop.permute.xlu0 %1269
  %v1272 = vsel %vm430, %v931, 0
  %v1275 = vsel %vm937, %v1270, 0
  %1277 = vmatprep.subr.bf16.mxu0 0
  %1278 = vmatpush1.bf16.msra.mxu0 %v1275
  %1279 = vmatprep.subr.bf16.mxu0 0
  %1280 = vmatpush1.bf16.msra.mxu0 0
  %1281 = vmatprep.subr.bf16.mxu0 0
  %1282 = vmatpush1.bf16.msra.mxu0 0
  %1283 = vmatprep.subr.bf16.mxu0 0
  %1284 = vmatpush1.bf16.msra.mxu0 0
  %1285 = vmatprep.subr.bf16.mxu0 0
  %1286 = vmatpush1.bf16.msra.mxu0 0
  %1287 = vmatprep.subr.bf16.mxu0 0
  %1288 = vmatpush1.bf16.msra.mxu0 0
  %1289 = vmatprep.subr.bf16.mxu0 0
  %1290 = vmatpush1.bf16.msra.mxu0 0
  %1291 = vmatprep.subr.bf16.mxu0 0
  %1292 = vmatpush1.bf16.msra.mxu0 0
  %1293 = vmatprep.subr.bf16.mxu0 0
  %1294 = vmatpush1.bf16.msra.mxu0 0
  %1295 = vmatprep.subr.bf16.mxu0 0
  %1296 = vmatpush1.bf16.msra.mxu0 0
  %1297 = vmatprep.subr.bf16.mxu0 0
  %1298 = vmatpush1.bf16.msra.mxu0 0
  %1299 = vmatprep.subr.bf16.mxu0 0
  %1300 = vmatpush1.bf16.msra.mxu0 0
  %1301 = vmatprep.subr.bf16.mxu0 0
  %1302 = vmatpush1.bf16.msra.mxu0 0
  %1303 = vmatprep.subr.bf16.mxu0 0
  %1304 = vmatpush1.bf16.msra.mxu0 0
  %1305 = vmatprep.subr.bf16.mxu0 0
  %1306 = vmatpush1.bf16.msra.mxu0 0
  %1307 = vmatprep.subr.bf16.mxu0 0
  %1308 = vmatpush1.bf16.msra.mxu0 0
  %1309 = vmatprep.mubr.bf16.mxu0 0
  %1310 = vmatmul.mubr.bf16.gmra.mrb[0].mxu0 %v1272
  %v1311 = vpop.f32.mrb[0].mxu0
  %v1312 = vadd.f32 0.0, %v1311
  %v1313 = vpop.f32.mrb[0].mxu0
  %v1314 = vpop.f32.mrb[0].mxu0
  %v1315 = vpop.f32.mrb[0].mxu0
  %1316 = vdwg.mxu0
  %1318 = vrot.lane.b32.xlu0 %v1024, 8
  %v1319 = vpop.permute.xlu0 %1318
  %1322 = vrot.lane.b32.xlu0 %v1072, 16
  %v1323 = vpop.permute.xlu0 %1322
  %1326 = vrot.lane.b32.xlu0 %v1120, 24
  %v1327 = vpop.permute.xlu0 %1326
  %v1329 = vsel %vm430, %v976, %v1319
  %v1330 = vsel %vm104, %v1329, %v1323
  %vm1331 = vcmask 195584
  %v1332 = vsel %vm1331, %v1330, %v1327
  %1334 = vrot.lane.b32.xlu0 %v1216, 8
  %v1335 = vpop.permute.xlu0 %1334
  %1338 = vrot.lane.b32.xlu0 %v1264, 16
  %v1339 = vpop.permute.xlu0 %1338
  %1342 = vrot.lane.b32.xlu0 %v1312, 24
  %v1343 = vpop.permute.xlu0 %1342
  %v1345 = vsel %vm430, %v1168, %v1335
  %v1346 = vsel %vm104, %v1345, %v1339
  %v1347 = vsel %vm1331, %v1346, %v1343
  %v1348 = vld [vmem:[%s10] sm:$0xf]
  %v1349 = vld [vmem:[%s10 + $0x4] sm:$0xf]
  %v1350 = vld [vmem:[%s10 + $0x8] sm:$0xf]
  %v1351 = vld [vmem:[%s10 + $0xc] sm:$0xf]
  %v1352 = vpack.c.bf16 %v1347, %v1332
  %v1357 = vunpack.c.l.b16 %v1348
  %v1358 = vunpack.c.l.b16 %v1349
  %v1359 = vunpack.c.l.b16 %v1350
  %v1360 = vunpack.c.l.b16 %v1351
  %v1361 = vpack.c.b16 %v1358, %v1357
  %v1362 = vpack.c.b16 %v1360, %v1359
  %v1366 = vsel %vm170, %v1352, 0
  %1368 = vmatprep.subr.bf16.mxu0 0
  %1369 = vmatpush1.bf16.msra.mxu0 %v1361
  %1370 = vmatprep.subr.bf16.mxu0 0
  %1371 = vmatpush1.bf16.msra.mxu0 %v1362
  %1372 = vmatprep.subr.bf16.mxu0 0
  %1373 = vmatpush1.bf16.msra.mxu0 0
  %1374 = vmatprep.subr.bf16.mxu0 0
  %1375 = vmatpush1.bf16.msra.mxu0 0
  %1376 = vmatprep.subr.bf16.mxu0 0
  %1377 = vmatpush1.bf16.msra.mxu0 0
  %1378 = vmatprep.subr.bf16.mxu0 0
  %1379 = vmatpush1.bf16.msra.mxu0 0
  %1380 = vmatprep.subr.bf16.mxu0 0
  %1381 = vmatpush1.bf16.msra.mxu0 0
  %1382 = vmatprep.subr.bf16.mxu0 0
  %1383 = vmatpush1.bf16.msra.mxu0 0
  %1384 = vmatprep.subr.bf16.mxu0 0
  %1385 = vmatpush1.bf16.msra.mxu0 0
  %1386 = vmatprep.subr.bf16.mxu0 0
  %1387 = vmatpush1.bf16.msra.mxu0 0
  %1388 = vmatprep.subr.bf16.mxu0 0
  %1389 = vmatpush1.bf16.msra.mxu0 0
  %1390 = vmatprep.subr.bf16.mxu0 0
  %1391 = vmatpush1.bf16.msra.mxu0 0
  %1392 = vmatprep.subr.bf16.mxu0 0
  %1393 = vmatpush1.bf16.msra.mxu0 0
  %1394 = vmatprep.subr.bf16.mxu0 0
  %1395 = vmatpush1.bf16.msra.mxu0 0
  %1396 = vmatprep.subr.bf16.mxu0 0
  %1397 = vmatpush1.bf16.msra.mxu0 0
  %1398 = vmatprep.subr.bf16.mxu0 0
  %1399 = vmatpush1.bf16.msra.mxu0 0
  %1400 = vmatprep.mubr.bf16.mxu0 0
  %1401 = vmatmul.mubr.bf16.gmra.mrb[0].mxu0 %v1366
  %v1402 = vpop.f32.mrb[0].mxu0
  %v1403 = vadd.f32 0.0, %v1402
  %v1404 = vpop.f32.mrb[0].mxu0
  %v1405 = vpop.f32.mrb[0].mxu0
  %v1406 = vadd.f32 0.0, %v1405
  %v1407 = vpop.f32.mrb[0].mxu0
  %1408 = vdwg.mxu0
  %v1409 = vadd.f32 %v143, %v1403
  %v1410 = vadd.f32 %v146, %v1406
  %v1411 = vld [vmem:[%s11] sm:$0x1]
  %v1412 = vld [vmem:[%s12] sm:$0x1]
  %v1413 = vsel %vm170, %v1409, 0.0
  %1414 = vadd.xlane.f32.xlu0 %v1413
  %v1415 = vpop.xlane.xlu0 %1414
  %v1416 = vsel %vm170, %v1410, 0.0
  %1417 = vadd.xlane.f32.xlu0 %v1416
  %v1418 = vpop.xlane.xlu0 %1417
  %v1419 = vmul.f32 %v1415, %v286
  %v1420 = vmul.f32 %v1418, %v286
  %v1421 = vsub.f32 %v1409, %v1419
  %v1422 = vsub.f32 %v1410, %v1420
  %v1423 = vmul.f32 %v1421, %v1421
  %v1424 = vmul.f32 %v1422, %v1422
  %v1425 = vsel %vm170, %v1423, 0.0
  %1426 = vadd.xlane.f32.xlu0 %v1425
  %v1427 = vpop.xlane.xlu0 %1426
  %v1428 = vsel %vm170, %v1424, 0.0
  %1429 = vadd.xlane.f32.xlu0 %v1428
  %v1430 = vpop.xlane.xlu0 %1429
  %v1431 = vmul.f32 %v1427, %v299
  %v1432 = vmul.f32 %v1430, %v299
  %v1433 = vrsqrt.pop %v1431
  %v1434 = vmul.f32 %v1431, %v1433
  %vm1435 = vcmp.eq.f32.partialorder %v1431, inf
  %v1436 = vsel %vm1435, %v1431, %v1434
  %vm1437 = vcmp.eq.f32.partialorder %v1431, 0.0
  %v1438 = vand.u32 %v1431, 2147483648
  %v1439 = vsel %vm1437, %v1438, %v1436
  %v1440 = vrsqrt.pop %v1432
  %v1441 = vmul.f32 %v1432, %v1440
  %vm1442 = vcmp.eq.f32.partialorder %v1432, inf
  %v1443 = vsel %vm1442, %v1432, %v1441
  %vm1444 = vcmp.eq.f32.partialorder %v1432, 0.0
  %v1445 = vand.u32 %v1432, 2147483648
  %v1446 = vsel %vm1444, %v1445, %v1443
  %v1447 = vadd.f32 %v1439, 1e-06
  %v1448 = vadd.f32 %v1446, 1e-06
  %v1449 = vrcp.pop %v1447
  %v1450 = vmul.f32 %v1421, %v1449
  %v1451 = vrcp.pop %v1448
  %v1452 = vmul.f32 %v1422, %v1451
  %v1454 = vlaneseq
  %v1455 = vshrl.u32 %v1454, 7
  %v1456 = vsub.s32 0, %v1455
  %v1457 = vrot.slane %v1411, %v1456
  %v1459 = vmul.f32 %v1457, %v1450
  %v1460 = vmul.f32 %v1457, %v1452
  %v1462 = vlaneseq
  %v1463 = vshrl.u32 %v1462, 7
  %v1464 = vsub.s32 0, %v1463
  %v1465 = vrot.slane %v1412, %v1464
  %v1467 = vadd.f32 %v1459, %v1465
  %v1468 = vadd.f32 %v1460, %v1465
  %v1469 = vld [vmem:[%s13] sm:$0xf]
  %v1470 = vld [vmem:[%s13 + $0x4] sm:$0xf]
  %v1471 = vld [vmem:[%s13 + $0x8] sm:$0xf]
  %v1472 = vld [vmem:[%s13 + $0xc] sm:$0xf]
  %v1473 = vpack.c.bf16 %v1468, %v1467
  %v1478 = vunpack.c.l.b16 %v1469
  %v1479 = vunpack.c.l.b16 %v1470
  %v1480 = vunpack.c.l.b16 %v1471
  %v1481 = vunpack.c.l.b16 %v1472
  %v1482 = vpack.c.b16 %v1479, %v1478
  %v1483 = vpack.c.b16 %v1481, %v1480
  %v1487 = vsel %vm170, %v1473, 0
  %1489 = vmatprep.subr.bf16.mxu0 0
  %1490 = vmatpush1.bf16.msra.mxu0 %v1482
  %1491 = vmatprep.subr.bf16.mxu0 0
  %1492 = vmatpush1.bf16.msra.mxu0 %v1483
  %1493 = vmatprep.subr.bf16.mxu0 0
  %1494 = vmatpush1.bf16.msra.mxu0 0
  %1495 = vmatprep.subr.bf16.mxu0 0
  %1496 = vmatpush1.bf16.msra.mxu0 0
  %1497 = vmatprep.subr.bf16.mxu0 0
  %1498 = vmatpush1.bf16.msra.mxu0 0
  %1499 = vmatprep.subr.bf16.mxu0 0
  %1500 = vmatpush1.bf16.msra.mxu0 0
  %1501 = vmatprep.subr.bf16.mxu0 0
  %1502 = vmatpush1.bf16.msra.mxu0 0
  %1503 = vmatprep.subr.bf16.mxu0 0
  %1504 = vmatpush1.bf16.msra.mxu0 0
  %1505 = vmatprep.subr.bf16.mxu0 0
  %1506 = vmatpush1.bf16.msra.mxu0 0
  %1507 = vmatprep.subr.bf16.mxu0 0
  %1508 = vmatpush1.bf16.msra.mxu0 0
  %1509 = vmatprep.subr.bf16.mxu0 0
  %1510 = vmatpush1.bf16.msra.mxu0 0
  %1511 = vmatprep.subr.bf16.mxu0 0
  %1512 = vmatpush1.bf16.msra.mxu0 0
  %1513 = vmatprep.subr.bf16.mxu0 0
  %1514 = vmatpush1.bf16.msra.mxu0 0
  %1515 = vmatprep.subr.bf16.mxu0 0
  %1516 = vmatpush1.bf16.msra.mxu0 0
  %1517 = vmatprep.subr.bf16.mxu0 0
  %1518 = vmatpush1.bf16.msra.mxu0 0
  %1519 = vmatprep.subr.bf16.mxu0 0
  %1520 = vmatpush1.bf16.msra.mxu0 0
  %1521 = vmatprep.mubr.bf16.mxu0 0
  %1522 = vmatmul.mubr.bf16.gmra.mrb[0].mxu0 %v1487
  %v1523 = vpop.f32.mrb[0].mxu0
  %v1524 = vadd.f32 0.0, %v1523
  %v1525 = vpop.f32.mrb[0].mxu0
  %v1526 = vpop.f32.mrb[0].mxu0
  %v1527 = vadd.f32 0.0, %v1526
  %v1528 = vpop.f32.mrb[0].mxu0
  %1529 = vdwg.mxu0
  %1531 = vrot.lane.b32.xlu0 %v1524, 120
  %v1532 = vpop.permute.xlu0 %1531
  %1534 = vrot.lane.b32.xlu0 %v1524, 112
  %v1535 = vpop.permute.xlu0 %1534
  %1537 = vrot.lane.b32.xlu0 %v1524, 104
  %v1538 = vpop.permute.xlu0 %1537
  %1541 = vrot.lane.b32.xlu0 %v1527, 120
  %v1542 = vpop.permute.xlu0 %1541
  %1544 = vrot.lane.b32.xlu0 %v1527, 112
  %v1545 = vpop.permute.xlu0 %1544
  %1547 = vrot.lane.b32.xlu0 %v1527, 104
  %v1548 = vpop.permute.xlu0 %1547
  %v1550 = vpack.c.bf16 %v1524, %v1524
  %v1551 = vpack.c.bf16 %v1532, %v1532
  %v1552 = vpack.c.bf16 %v1535, %v1535
  %v1553 = vpack.c.bf16 %v1538, %v1538
  %v1554 = vpack.c.bf16 %v1527, %v1527
  %v1555 = vpack.c.bf16 %v1542, %v1542
  %v1556 = vpack.c.bf16 %v1545, %v1545
  %v1557 = vpack.c.bf16 %v1548, %v1548
  %v1559 = vsel %vm430, %v1550, 0
  %v1562 = vsel %vm430, %v270, 0
  %1564 = vmatprep.subr.bf16.mxu0 0
  %1565 = vmatpush1.bf16.xpose.msra.mxu0 %v1562
  %1566 = vmatprep.subr.bf16.mxu0 0
  %1567 = vmatpush1.bf16.xpose.msra.mxu0 0
  %1568 = vmatprep.subr.bf16.mxu0 0
  %1569 = vmatpush1.bf16.xpose.msra.mxu0 0
  %1570 = vmatprep.subr.bf16.mxu0 0
  %1571 = vmatpush1.bf16.xpose.msra.mxu0 0
  %1572 = vmatprep.subr.bf16.mxu0 0
  %1573 = vmatpush1.bf16.xpose.msra.mxu0 0
  %1574 = vmatprep.subr.bf16.mxu0 0
  %1575 = vmatpush1.bf16.xpose.msra.mxu0 0
  %1576 = vmatprep.subr.bf16.mxu0 0
  %1577 = vmatpush1.bf16.xpose.msra.mxu0 0
  %1578 = vmatprep.subr.bf16.mxu0 0
  %1579 = vmatpush1.bf16.xpose.msra.mxu0 0
  %1580 = vmatprep.subr.bf16.mxu0 0
  %1581 = vmatpush1.bf16.xpose.msra.mxu0 0
  %1582 = vmatprep.subr.bf16.mxu0 0
  %1583 = vmatpush1.bf16.xpose.msra.mxu0 0
  %1584 = vmatprep.subr.bf16.mxu0 0
  %1585 = vmatpush1.bf16.xpose.msra.mxu0 0
  %1586 = vmatprep.subr.bf16.mxu0 0
  %1587 = vmatpush1.bf16.xpose.msra.mxu0 0
  %1588 = vmatprep.subr.bf16.mxu0 0
  %1589 = vmatpush1.bf16.xpose.msra.mxu0 0
  %1590 = vmatprep.subr.bf16.mxu0 0
  %1591 = vmatpush1.bf16.xpose.msra.mxu0 0
  %1592 = vmatprep.subr.bf16.mxu0 0
  %1593 = vmatpush1.bf16.xpose.msra.mxu0 0
  %1594 = vmatprep.subr.bf16.mxu0 0
  %1595 = vmatpush1.bf16.xpose.msra.mxu0 0
  %1596 = vmatprep.mubr.bf16.mxu0 0
  %1597 = vmatmul.mubr.bf16.gmra.mrb[0].mxu0 %v1559
  %v1598 = vpop.f32.mrb[0].mxu0
  %v1599 = vadd.f32 0.0, %v1598
  %v1600 = vpop.f32.mrb[0].mxu0
  %v1601 = vpop.f32.mrb[0].mxu0
  %v1602 = vpop.f32.mrb[0].mxu0
  %1603 = vdwg.mxu0
  %v1605 = vsel %vm430, %v1551, 0
  %v1608 = vsel %vm430, %v271, 0
  %1610 = vmatprep.subr.bf16.mxu0 0
  %1611 = vmatpush1.bf16.xpose.msra.mxu0 %v1608
  %1612 = vmatprep.subr.bf16.mxu0 0
  %1613 = vmatpush1.bf16.xpose.msra.mxu0 0
  %1614 = vmatprep.subr.bf16.mxu0 0
  %1615 = vmatpush1.bf16.xpose.msra.mxu0 0
  %1616 = vmatprep.subr.bf16.mxu0 0
  %1617 = vmatpush1.bf16.xpose.msra.mxu0 0
  %1618 = vmatprep.subr.bf16.mxu0 0
  %1619 = vmatpush1.bf16.xpose.msra.mxu0 0
  %1620 = vmatprep.subr.bf16.mxu0 0
  %1621 = vmatpush1.bf16.xpose.msra.mxu0 0
  %1622 = vmatprep.subr.bf16.mxu0 0
  %1623 = vmatpush1.bf16.xpose.msra.mxu0 0
  %1624 = vmatprep.subr.bf16.mxu0 0
  %1625 = vmatpush1.bf16.xpose.msra.mxu0 0
  %1626 = vmatprep.subr.bf16.mxu0 0
  %1627 = vmatpush1.bf16.xpose.msra.mxu0 0
  %1628 = vmatprep.subr.bf16.mxu0 0
  %1629 = vmatpush1.bf16.xpose.msra.mxu0 0
  %1630 = vmatprep.subr.bf16.mxu0 0
  %1631 = vmatpush1.bf16.xpose.msra.mxu0 0
  %1632 = vmatprep.subr.bf16.mxu0 0
  %1633 = vmatpush1.bf16.xpose.msra.mxu0 0
  %1634 = vmatprep.subr.bf16.mxu0 0
  %1635 = vmatpush1.bf16.xpose.msra.mxu0 0
  %1636 = vmatprep.subr.bf16.mxu0 0
  %1637 = vmatpush1.bf16.xpose.msra.mxu0 0
  %1638 = vmatprep.subr.bf16.mxu0 0
  %1639 = vmatpush1.bf16.xpose.msra.mxu0 0
  %1640 = vmatprep.subr.bf16.mxu0 0
  %1641 = vmatpush1.bf16.xpose.msra.mxu0 0
  %1642 = vmatprep.mubr.bf16.mxu0 0
  %1643 = vmatmul.mubr.bf16.gmra.mrb[0].mxu0 %v1605
  %v1644 = vpop.f32.mrb[0].mxu0
  %v1645 = vadd.f32 0.0, %v1644
  %v1646 = vpop.f32.mrb[0].mxu0
  %v1647 = vpop.f32.mrb[0].mxu0
  %v1648 = vpop.f32.mrb[0].mxu0
  %1649 = vdwg.mxu0
  %v1651 = vsel %vm430, %v1552, 0
  %v1654 = vsel %vm430, %v272, 0
  %1656 = vmatprep.subr.bf16.mxu0 0
  %1657 = vmatpush1.bf16.xpose.msra.mxu0 %v1654
  %1658 = vmatprep.subr.bf16.mxu0 0
  %1659 = vmatpush1.bf16.xpose.msra.mxu0 0
  %1660 = vmatprep.subr.bf16.mxu0 0
  %1661 = vmatpush1.bf16.xpose.msra.mxu0 0
  %1662 = vmatprep.subr.bf16.mxu0 0
  %1663 = vmatpush1.bf16.xpose.msra.mxu0 0
  %1664 = vmatprep.subr.bf16.mxu0 0
  %1665 = vmatpush1.bf16.xpose.msra.mxu0 0
  %1666 = vmatprep.subr.bf16.mxu0 0
  %1667 = vmatpush1.bf16.xpose.msra.mxu0 0
  %1668 = vmatprep.subr.bf16.mxu0 0
  %1669 = vmatpush1.bf16.xpose.msra.mxu0 0
  %1670 = vmatprep.subr.bf16.mxu0 0
  %1671 = vmatpush1.bf16.xpose.msra.mxu0 0
  %1672 = vmatprep.subr.bf16.mxu0 0
  %1673 = vmatpush1.bf16.xpose.msra.mxu0 0
  %1674 = vmatprep.subr.bf16.mxu0 0
  %1675 = vmatpush1.bf16.xpose.msra.mxu0 0
  %1676 = vmatprep.subr.bf16.mxu0 0
  %1677 = vmatpush1.bf16.xpose.msra.mxu0 0
  %1678 = vmatprep.subr.bf16.mxu0 0
  %1679 = vmatpush1.bf16.xpose.msra.mxu0 0
  %1680 = vmatprep.subr.bf16.mxu0 0
  %1681 = vmatpush1.bf16.xpose.msra.mxu0 0
  %1682 = vmatprep.subr.bf16.mxu0 0
  %1683 = vmatpush1.bf16.xpose.msra.mxu0 0
  %1684 = vmatprep.subr.bf16.mxu0 0
  %1685 = vmatpush1.bf16.xpose.msra.mxu0 0
  %1686 = vmatprep.subr.bf16.mxu0 0
  %1687 = vmatpush1.bf16.xpose.msra.mxu0 0
  %1688 = vmatprep.mubr.bf16.mxu0 0
  %1689 = vmatmul.mubr.bf16.gmra.mrb[0].mxu0 %v1651
  %v1690 = vpop.f32.mrb[0].mxu0
  %v1691 = vadd.f32 0.0, %v1690
  %v1692 = vpop.f32.mrb[0].mxu0
  %v1693 = vpop.f32.mrb[0].mxu0
  %v1694 = vpop.f32.mrb[0].mxu0
  %1695 = vdwg.mxu0
  %v1697 = vsel %vm430, %v1553, 0
  %v1700 = vsel %vm430, %v273, 0
  %1702 = vmatprep.subr.bf16.mxu0 0
  %1703 = vmatpush1.bf16.xpose.msra.mxu0 %v1700
  %1704 = vmatprep.subr.bf16.mxu0 0
  %1705 = vmatpush1.bf16.xpose.msra.mxu0 0
  %1706 = vmatprep.subr.bf16.mxu0 0
  %1707 = vmatpush1.bf16.xpose.msra.mxu0 0
  %1708 = vmatprep.subr.bf16.mxu0 0
  %1709 = vmatpush1.bf16.xpose.msra.mxu0 0
  %1710 = vmatprep.subr.bf16.mxu0 0
  %1711 = vmatpush1.bf16.xpose.msra.mxu0 0
  %1712 = vmatprep.subr.bf16.mxu0 0
  %1713 = vmatpush1.bf16.xpose.msra.mxu0 0
  %1714 = vmatprep.subr.bf16.mxu0 0
  %1715 = vmatpush1.bf16.xpose.msra.mxu0 0
  %1716 = vmatprep.subr.bf16.mxu0 0
  %1717 = vmatpush1.bf16.xpose.msra.mxu0 0
  %1718 = vmatprep.subr.bf16.mxu0 0
  %1719 = vmatpush1.bf16.xpose.msra.mxu0 0
  %1720 = vmatprep.subr.bf16.mxu0 0
  %1721 = vmatpush1.bf16.xpose.msra.mxu0 0
  %1722 = vmatprep.subr.bf16.mxu0 0
  %1723 = vmatpush1.bf16.xpose.msra.mxu0 0
  %1724 = vmatprep.subr.bf16.mxu0 0
  %1725 = vmatpush1.bf16.xpose.msra.mxu0 0
  %1726 = vmatprep.subr.bf16.mxu0 0
  %1727 = vmatpush1.bf16.xpose.msra.mxu0 0
  %1728 = vmatprep.subr.bf16.mxu0 0
  %1729 = vmatpush1.bf16.xpose.msra.mxu0 0
  %1730 = vmatprep.subr.bf16.mxu0 0
  %1731 = vmatpush1.bf16.xpose.msra.mxu0 0
  %1732 = vmatprep.subr.bf16.mxu0 0
  %1733 = vmatpush1.bf16.xpose.msra.mxu0 0
  %1734 = vmatprep.mubr.bf16.mxu0 0
  %1735 = vmatmul.mubr.bf16.gmra.mrb[0].mxu0 %v1697
  %v1736 = vpop.f32.mrb[0].mxu0
  %v1737 = vadd.f32 0.0, %v1736
  %v1738 = vpop.f32.mrb[0].mxu0
  %v1739 = vpop.f32.mrb[0].mxu0
  %v1740 = vpop.f32.mrb[0].mxu0
  %1741 = vdwg.mxu0
  %v1743 = vsel %vm430, %v1554, 0
  %v1746 = vsel %vm430, %v274, 0
  %1748 = vmatprep.subr.bf16.mxu0 0
  %1749 = vmatpush1.bf16.xpose.msra.mxu0 %v1746
  %1750 = vmatprep.subr.bf16.mxu0 0
  %1751 = vmatpush1.bf16.xpose.msra.mxu0 0
  %1752 = vmatprep.subr.bf16.mxu0 0
  %1753 = vmatpush1.bf16.xpose.msra.mxu0 0
  %1754 = vmatprep.subr.bf16.mxu0 0
  %1755 = vmatpush1.bf16.xpose.msra.mxu0 0
  %1756 = vmatprep.subr.bf16.mxu0 0
  %1757 = vmatpush1.bf16.xpose.msra.mxu0 0
  %1758 = vmatprep.subr.bf16.mxu0 0
  %1759 = vmatpush1.bf16.xpose.msra.mxu0 0
  %1760 = vmatprep.subr.bf16.mxu0 0
  %1761 = vmatpush1.bf16.xpose.msra.mxu0 0
  %1762 = vmatprep.subr.bf16.mxu0 0
  %1763 = vmatpush1.bf16.xpose.msra.mxu0 0
  %1764 = vmatprep.subr.bf16.mxu0 0
  %1765 = vmatpush1.bf16.xpose.msra.mxu0 0
  %1766 = vmatprep.subr.bf16.mxu0 0
  %1767 = vmatpush1.bf16.xpose.msra.mxu0 0
  %1768 = vmatprep.subr.bf16.mxu0 0
  %1769 = vmatpush1.bf16.xpose.msra.mxu0 0
  %1770 = vmatprep.subr.bf16.mxu0 0
  %1771 = vmatpush1.bf16.xpose.msra.mxu0 0
  %1772 = vmatprep.subr.bf16.mxu0 0
  %1773 = vmatpush1.bf16.xpose.msra.mxu0 0
  %1774 = vmatprep.subr.bf16.mxu0 0
  %1775 = vmatpush1.bf16.xpose.msra.mxu0 0
  %1776 = vmatprep.subr.bf16.mxu0 0
  %1777 = vmatpush1.bf16.xpose.msra.mxu0 0
  %1778 = vmatprep.subr.bf16.mxu0 0
  %1779 = vmatpush1.bf16.xpose.msra.mxu0 0
  %1780 = vmatprep.mubr.bf16.mxu0 0
  %1781 = vmatmul.mubr.bf16.gmra.mrb[0].mxu0 %v1743
  %v1782 = vpop.f32.mrb[0].mxu0
  %v1783 = vadd.f32 0.0, %v1782
  %v1784 = vpop.f32.mrb[0].mxu0
  %v1785 = vpop.f32.mrb[0].mxu0
  %v1786 = vpop.f32.mrb[0].mxu0
  %1787 = vdwg.mxu0
  %v1789 = vsel %vm430, %v1555, 0
  %v1792 = vsel %vm430, %v275, 0
  %1794 = vmatprep.subr.bf16.mxu0 0
  %1795 = vmatpush1.bf16.xpose.msra.mxu0 %v1792
  %1796 = vmatprep.subr.bf16.mxu0 0
  %1797 = vmatpush1.bf16.xpose.msra.mxu0 0
  %1798 = vmatprep.subr.bf16.mxu0 0
  %1799 = vmatpush1.bf16.xpose.msra.mxu0 0
  %1800 = vmatprep.subr.bf16.mxu0 0
  %1801 = vmatpush1.bf16.xpose.msra.mxu0 0
  %1802 = vmatprep.subr.bf16.mxu0 0
  %1803 = vmatpush1.bf16.xpose.msra.mxu0 0
  %1804 = vmatprep.subr.bf16.mxu0 0
  %1805 = vmatpush1.bf16.xpose.msra.mxu0 0
  %1806 = vmatprep.subr.bf16.mxu0 0
  %1807 = vmatpush1.bf16.xpose.msra.mxu0 0
  %1808 = vmatprep.subr.bf16.mxu0 0
  %1809 = vmatpush1.bf16.xpose.msra.mxu0 0
  %1810 = vmatprep.subr.bf16.mxu0 0
  %1811 = vmatpush1.bf16.xpose.msra.mxu0 0
  %1812 = vmatprep.subr.bf16.mxu0 0
  %1813 = vmatpush1.bf16.xpose.msra.mxu0 0
  %1814 = vmatprep.subr.bf16.mxu0 0
  %1815 = vmatpush1.bf16.xpose.msra.mxu0 0
  %1816 = vmatprep.subr.bf16.mxu0 0
  %1817 = vmatpush1.bf16.xpose.msra.mxu0 0
  %1818 = vmatprep.subr.bf16.mxu0 0
  %1819 = vmatpush1.bf16.xpose.msra.mxu0 0
  %1820 = vmatprep.subr.bf16.mxu0 0
  %1821 = vmatpush1.bf16.xpose.msra.mxu0 0
  %1822 = vmatprep.subr.bf16.mxu0 0
  %1823 = vmatpush1.bf16.xpose.msra.mxu0 0
  %1824 = vmatprep.subr.bf16.mxu0 0
  %1825 = vmatpush1.bf16.xpose.msra.mxu0 0
  %1826 = vmatprep.mubr.bf16.mxu0 0
  %1827 = vmatmul.mubr.bf16.gmra.mrb[0].mxu0 %v1789
  %v1828 = vpop.f32.mrb[0].mxu0
  %v1829 = vadd.f32 0.0, %v1828
  %v1830 = vpop.f32.mrb[0].mxu0
  %v1831 = vpop.f32.mrb[0].mxu0
  %v1832 = vpop.f32.mrb[0].mxu0
  %1833 = vdwg.mxu0
  %v1835 = vsel %vm430, %v1556, 0
  %v1838 = vsel %vm430, %v276, 0
  %1840 = vmatprep.subr.bf16.mxu0 0
  %1841 = vmatpush1.bf16.xpose.msra.mxu0 %v1838
  %1842 = vmatprep.subr.bf16.mxu0 0
  %1843 = vmatpush1.bf16.xpose.msra.mxu0 0
  %1844 = vmatprep.subr.bf16.mxu0 0
  %1845 = vmatpush1.bf16.xpose.msra.mxu0 0
  %1846 = vmatprep.subr.bf16.mxu0 0
  %1847 = vmatpush1.bf16.xpose.msra.mxu0 0
  %1848 = vmatprep.subr.bf16.mxu0 0
  %1849 = vmatpush1.bf16.xpose.msra.mxu0 0
  %1850 = vmatprep.subr.bf16.mxu0 0
  %1851 = vmatpush1.bf16.xpose.msra.mxu0 0
  %1852 = vmatprep.subr.bf16.mxu0 0
  %1853 = vmatpush1.bf16.xpose.msra.mxu0 0
  %1854 = vmatprep.subr.bf16.mxu0 0
  %1855 = vmatpush1.bf16.xpose.msra.mxu0 0
  %1856 = vmatprep.subr.bf16.mxu0 0
  %1857 = vmatpush1.bf16.xpose.msra.mxu0 0
  %1858 = vmatprep.subr.bf16.mxu0 0
  %1859 = vmatpush1.bf16.xpose.msra.mxu0 0
  %1860 = vmatprep.subr.bf16.mxu0 0
  %1861 = vmatpush1.bf16.xpose.msra.mxu0 0
  %1862 = vmatprep.subr.bf16.mxu0 0
  %1863 = vmatpush1.bf16.xpose.msra.mxu0 0
  %1864 = vmatprep.subr.bf16.mxu0 0
  %1865 = vmatpush1.bf16.xpose.msra.mxu0 0
  %1866 = vmatprep.subr.bf16.mxu0 0
  %1867 = vmatpush1.bf16.xpose.msra.mxu0 0
  %1868 = vmatprep.subr.bf16.mxu0 0
  %1869 = vmatpush1.bf16.xpose.msra.mxu0 0
  %1870 = vmatprep.subr.bf16.mxu0 0
  %1871 = vmatpush1.bf16.xpose.msra.mxu0 0
  %1872 = vmatprep.mubr.bf16.mxu0 0
  %1873 = vmatmul.mubr.bf16.gmra.mrb[0].mxu0 %v1835
  %v1874 = vpop.f32.mrb[0].mxu0
  %v1875 = vadd.f32 0.0, %v1874
  %v1876 = vpop.f32.mrb[0].mxu0
  %v1877 = vpop.f32.mrb[0].mxu0
  %v1878 = vpop.f32.mrb[0].mxu0
  %1879 = vdwg.mxu0
  %v1881 = vsel %vm430, %v1557, 0
  %v1884 = vsel %vm430, %v277, 0
  %1886 = vmatprep.subr.bf16.mxu0 0
  %1887 = vmatpush1.bf16.xpose.msra.mxu0 %v1884
  %1888 = vmatprep.subr.bf16.mxu0 0
  %1889 = vmatpush1.bf16.xpose.msra.mxu0 0
  %1890 = vmatprep.subr.bf16.mxu0 0
  %1891 = vmatpush1.bf16.xpose.msra.mxu0 0
  %1892 = vmatprep.subr.bf16.mxu0 0
  %1893 = vmatpush1.bf16.xpose.msra.mxu0 0
  %1894 = vmatprep.subr.bf16.mxu0 0
  %1895 = vmatpush1.bf16.xpose.msra.mxu0 0
  %1896 = vmatprep.subr.bf16.mxu0 0
  %1897 = vmatpush1.bf16.xpose.msra.mxu0 0
  %1898 = vmatprep.subr.bf16.mxu0 0
  %1899 = vmatpush1.bf16.xpose.msra.mxu0 0
  %1900 = vmatprep.subr.bf16.mxu0 0
  %1901 = vmatpush1.bf16.xpose.msra.mxu0 0
  %1902 = vmatprep.subr.bf16.mxu0 0
  %1903 = vmatpush1.bf16.xpose.msra.mxu0 0
  %1904 = vmatprep.subr.bf16.mxu0 0
  %1905 = vmatpush1.bf16.xpose.msra.mxu0 0
  %1906 = vmatprep.subr.bf16.mxu0 0
  %1907 = vmatpush1.bf16.xpose.msra.mxu0 0
  %1908 = vmatprep.subr.bf16.mxu0 0
  %1909 = vmatpush1.bf16.xpose.msra.mxu0 0
  %1910 = vmatprep.subr.bf16.mxu0 0
  %1911 = vmatpush1.bf16.xpose.msra.mxu0 0
  %1912 = vmatprep.subr.bf16.mxu0 0
  %1913 = vmatpush1.bf16.xpose.msra.mxu0 0
  %1914 = vmatprep.subr.bf16.mxu0 0
  %1915 = vmatpush1.bf16.xpose.msra.mxu0 0
  %1916 = vmatprep.subr.bf16.mxu0 0
  %1917 = vmatpush1.bf16.xpose.msra.mxu0 0
  %1918 = vmatprep.mubr.bf16.mxu0 0
  %1919 = vmatmul.mubr.bf16.gmra.mrb[0].mxu0 %v1881
  %v1920 = vpop.f32.mrb[0].mxu0
  %v1921 = vadd.f32 0.0, %v1920
  %v1922 = vpop.f32.mrb[0].mxu0
  %v1923 = vpop.f32.mrb[0].mxu0
  %v1924 = vpop.f32.mrb[0].mxu0
  %1925 = vdwg.mxu0
  %vm1926 = vcmp.gt.f32.partialorder %v83, 0.5
  %vm1927 = vcmp.gt.f32.partialorder %v84, 0.5
  %vm1928 = vcmp.gt.f32.partialorder %v85, 0.5
  %vm1929 = vcmp.gt.f32.partialorder %v86, 0.5
  %vm1930 = vcmp.gt.f32.partialorder %v87, 0.5
  %vm1931 = vcmp.gt.f32.partialorder %v88, 0.5
  %vm1932 = vcmp.gt.f32.partialorder %v89, 0.5
  %vm1933 = vcmp.gt.f32.partialorder %v90, 0.5
  %v1934 = vsel %vm1926, 1, 0
  %v1935 = vsel %vm1927, 1, 0
  %v1936 = vsel %vm1928, 1, 0
  %v1937 = vsel %vm1929, 1, 0
  %v1938 = vsel %vm1930, 1, 0
  %v1939 = vsel %vm1931, 1, 0
  %v1940 = vsel %vm1932, 1, 0
  %v1941 = vsel %vm1933, 1, 0
  %v1942 = vlaneseq
  %v1943 = vshrl.u32 %v1942, 7
  %v1944 = vsub.s32 0, %v1943
  %v1945 = vrot.slane %v1934, %v1944
  %v1946 = vlaneseq
  %v1947 = vshrl.u32 %v1946, 7
  %v1948 = vsub.s32 0, %v1947
  %v1949 = vrot.slane %v1935, %v1948
  %v1950 = vlaneseq
  %v1951 = vshrl.u32 %v1950, 7
  %v1952 = vsub.s32 0, %v1951
  %v1953 = vrot.slane %v1936, %v1952
  %v1954 = vlaneseq
  %v1955 = vshrl.u32 %v1954, 7
  %v1956 = vsub.s32 0, %v1955
  %v1957 = vrot.slane %v1937, %v1956
  %v1958 = vlaneseq
  %v1959 = vshrl.u32 %v1958, 7
  %v1960 = vsub.s32 0, %v1959
  %v1961 = vrot.slane %v1938, %v1960
  %v1962 = vlaneseq
  %v1963 = vshrl.u32 %v1962, 7
  %v1964 = vsub.s32 0, %v1963
  %v1965 = vrot.slane %v1939, %v1964
  %v1966 = vlaneseq
  %v1967 = vshrl.u32 %v1966, 7
  %v1968 = vsub.s32 0, %v1967
  %v1969 = vrot.slane %v1940, %v1968
  %v1970 = vlaneseq
  %v1971 = vshrl.u32 %v1970, 7
  %v1972 = vsub.s32 0, %v1971
  %v1973 = vrot.slane %v1941, %v1972
  %vm1974 = vcmp.eq.s32.totalorder %v1945, 1
  %vm1975 = vcmp.eq.s32.totalorder %v1949, 1
  %vm1976 = vcmp.eq.s32.totalorder %v1953, 1
  %vm1977 = vcmp.eq.s32.totalorder %v1957, 1
  %vm1978 = vcmp.eq.s32.totalorder %v1961, 1
  %vm1979 = vcmp.eq.s32.totalorder %v1965, 1
  %vm1980 = vcmp.eq.s32.totalorder %v1969, 1
  %vm1981 = vcmp.eq.s32.totalorder %v1973, 1
  %v1982 = vsel %vm1974, -1e+18, %v1599
  %v1983 = vsel %vm1975, -1e+18, %v1645
  %v1984 = vsel %vm1976, -1e+18, %v1691
  %v1985 = vsel %vm1977, -1e+18, %v1737
  %v1986 = vsel %vm1978, -1e+18, %v1783
  %v1987 = vsel %vm1979, -1e+18, %v1829
  %v1988 = vsel %vm1980, -1e+18, %v1875
  %v1989 = vsel %vm1981, -1e+18, %v1921
  %vm1990 = vcmask 80896
  %v1991 = vsel %vm1990, %v1982, -inf
  %1992 = vmax.xlane.f32.xlu0 %v1991
  %v1993 = vpop.xlane.xlu0 %1992
  %v1994 = vsel %vm1990, %v1983, -inf
  %1995 = vmax.xlane.f32.xlu0 %v1994
  %v1996 = vpop.xlane.xlu0 %1995
  %v1997 = vsel %vm1990, %v1984, -inf
  %1998 = vmax.xlane.f32.xlu0 %v1997
  %v1999 = vpop.xlane.xlu0 %1998
  %v2000 = vsel %vm1990, %v1985, -inf
  %2001 = vmax.xlane.f32.xlu0 %v2000
  %v2002 = vpop.xlane.xlu0 %2001
  %v2003 = vsel %vm1990, %v1986, -inf
  %2004 = vmax.xlane.f32.xlu0 %v2003
  %v2005 = vpop.xlane.xlu0 %2004
  %v2006 = vsel %vm1990, %v1987, -inf
  %2007 = vmax.xlane.f32.xlu0 %v2006
  %v2008 = vpop.xlane.xlu0 %2007
  %v2009 = vsel %vm1990, %v1988, -inf
  %2010 = vmax.xlane.f32.xlu0 %v2009
  %v2011 = vpop.xlane.xlu0 %2010
  %v2012 = vsel %vm1990, %v1989, -inf
  %2013 = vmax.xlane.f32.xlu0 %v2012
  %v2014 = vpop.xlane.xlu0 %2013
  %v2015 = vsub.f32 %v1982, %v1993
  %v2016 = vsub.f32 %v1983, %v1996
  %v2017 = vsub.f32 %v1984, %v1999
  %v2018 = vsub.f32 %v1985, %v2002
  %v2019 = vsub.f32 %v1986, %v2005
  %v2020 = vsub.f32 %v1987, %v2008
  %v2021 = vsub.f32 %v1988, %v2011
  %v2022 = vsub.f32 %v1989, %v2014
  %v2023 = vmul.f32 %v2015, 1.442695
  %v2024 = vpow.pop %v2023
  %v2025 = vmul.f32 %v2016, 1.442695
  %v2026 = vpow.pop %v2025
  %v2027 = vmul.f32 %v2017, 1.442695
  %v2028 = vpow.pop %v2027
  %v2029 = vmul.f32 %v2018, 1.442695
  %v2030 = vpow.pop %v2029
  %v2031 = vmul.f32 %v2019, 1.442695
  %v2032 = vpow.pop %v2031
  %v2033 = vmul.f32 %v2020, 1.442695
  %v2034 = vpow.pop %v2033
  %v2035 = vmul.f32 %v2021, 1.442695
  %v2036 = vpow.pop %v2035
  %v2037 = vmul.f32 %v2022, 1.442695
  %v2038 = vpow.pop %v2037
  %v2039 = vsel %vm1990, %v2024, 0.0
  %2040 = vadd.xlane.f32.xlu0 %v2039
  %v2041 = vpop.xlane.xlu0 %2040
  %v2042 = vsel %vm1990, %v2026, 0.0
  %2043 = vadd.xlane.f32.xlu0 %v2042
  %v2044 = vpop.xlane.xlu0 %2043
  %v2045 = vsel %vm1990, %v2028, 0.0
  %2046 = vadd.xlane.f32.xlu0 %v2045
  %v2047 = vpop.xlane.xlu0 %2046
  %v2048 = vsel %vm1990, %v2030, 0.0
  %2049 = vadd.xlane.f32.xlu0 %v2048
  %v2050 = vpop.xlane.xlu0 %2049
  %v2051 = vsel %vm1990, %v2032, 0.0
  %2052 = vadd.xlane.f32.xlu0 %v2051
  %v2053 = vpop.xlane.xlu0 %2052
  %v2054 = vsel %vm1990, %v2034, 0.0
  %2055 = vadd.xlane.f32.xlu0 %v2054
  %v2056 = vpop.xlane.xlu0 %2055
  %v2057 = vsel %vm1990, %v2036, 0.0
  %2058 = vadd.xlane.f32.xlu0 %v2057
  %v2059 = vpop.xlane.xlu0 %2058
  %v2060 = vsel %vm1990, %v2038, 0.0
  %2061 = vadd.xlane.f32.xlu0 %v2060
  %v2062 = vpop.xlane.xlu0 %2061
  %v2063 = vrcp.pop %v2041
  %v2064 = vrcp.pop %v2044
  %v2065 = vrcp.pop %v2047
  %v2066 = vrcp.pop %v2050
  %v2067 = vrcp.pop %v2053
  %v2068 = vrcp.pop %v2056
  %v2069 = vrcp.pop %v2059
  %v2070 = vrcp.pop %v2062
  %v2071 = vmul.f32 %v2024, %v2063
  %v2072 = vmul.f32 %v2026, %v2064
  %v2073 = vmul.f32 %v2028, %v2065
  %v2074 = vmul.f32 %v2030, %v2066
  %v2075 = vmul.f32 %v2032, %v2067
  %v2076 = vmul.f32 %v2034, %v2068
  %v2077 = vmul.f32 %v2036, %v2069
  %v2078 = vmul.f32 %v2038, %v2070
  %v2079 = vpack.c.bf16 %v2071, %v2071
  %v2080 = vpack.c.bf16 %v2072, %v2072
  %v2081 = vpack.c.bf16 %v2073, %v2073
  %v2082 = vpack.c.bf16 %v2074, %v2074
  %v2083 = vpack.c.bf16 %v2075, %v2075
  %v2084 = vpack.c.bf16 %v2076, %v2076
  %v2085 = vpack.c.bf16 %v2077, %v2077
  %v2086 = vpack.c.bf16 %v2078, %v2078
  %2088 = vrot.lane.b32.xlu0 %v270, 96
  %v2089 = vpop.permute.xlu0 %2088
  %v2091 = vsel %vm1990, %v2079, 0
  %vm2093 = vcmask 1044480
  %v2095 = vsel %vm2093, %v2089, 0
  %2097 = vmatprep.subr.bf16.mxu0 0
  %2098 = vmatpush1.bf16.msra.mxu0 %v2095
  %2099 = vmatprep.subr.bf16.mxu0 0
  %2100 = vmatpush1.bf16.msra.mxu0 0
  %2101 = vmatprep.subr.bf16.mxu0 0
  %2102 = vmatpush1.bf16.msra.mxu0 0
  %2103 = vmatprep.subr.bf16.mxu0 0
  %2104 = vmatpush1.bf16.msra.mxu0 0
  %2105 = vmatprep.subr.bf16.mxu0 0
  %2106 = vmatpush1.bf16.msra.mxu0 0
  %2107 = vmatprep.subr.bf16.mxu0 0
  %2108 = vmatpush1.bf16.msra.mxu0 0
  %2109 = vmatprep.subr.bf16.mxu0 0
  %2110 = vmatpush1.bf16.msra.mxu0 0
  %2111 = vmatprep.subr.bf16.mxu0 0
  %2112 = vmatpush1.bf16.msra.mxu0 0
  %2113 = vmatprep.subr.bf16.mxu0 0
  %2114 = vmatpush1.bf16.msra.mxu0 0
  %2115 = vmatprep.subr.bf16.mxu0 0
  %2116 = vmatpush1.bf16.msra.mxu0 0
  %2117 = vmatprep.subr.bf16.mxu0 0
  %2118 = vmatpush1.bf16.msra.mxu0 0
  %2119 = vmatprep.subr.bf16.mxu0 0
  %2120 = vmatpush1.bf16.msra.mxu0 0
  %2121 = vmatprep.subr.bf16.mxu0 0
  %2122 = vmatpush1.bf16.msra.mxu0 0
  %2123 = vmatprep.subr.bf16.mxu0 0
  %2124 = vmatpush1.bf16.msra.mxu0 0
  %2125 = vmatprep.subr.bf16.mxu0 0
  %2126 = vmatpush1.bf16.msra.mxu0 0
  %2127 = vmatprep.subr.bf16.mxu0 0
  %2128 = vmatpush1.bf16.msra.mxu0 0
  %2129 = vmatprep.mubr.bf16.mxu0 0
  %2130 = vmatmul.mubr.bf16.gmra.mrb[0].mxu0 %v2091
  %v2131 = vpop.f32.mrb[0].mxu0
  %v2132 = vadd.f32 0.0, %v2131
  %v2133 = vpop.f32.mrb[0].mxu0
  %v2134 = vpop.f32.mrb[0].mxu0
  %v2135 = vpop.f32.mrb[0].mxu0
  %2136 = vdwg.mxu0
  %2138 = vrot.lane.b32.xlu0 %v271, 96
  %v2139 = vpop.permute.xlu0 %2138
  %v2141 = vsel %vm1990, %v2080, 0
  %v2144 = vsel %vm2093, %v2139, 0
  %2146 = vmatprep.subr.bf16.mxu0 0
  %2147 = vmatpush1.bf16.msra.mxu0 %v2144
  %2148 = vmatprep.subr.bf16.mxu0 0
  %2149 = vmatpush1.bf16.msra.mxu0 0
  %2150 = vmatprep.subr.bf16.mxu0 0
  %2151 = vmatpush1.bf16.msra.mxu0 0
  %2152 = vmatprep.subr.bf16.mxu0 0
  %2153 = vmatpush1.bf16.msra.mxu0 0
  %2154 = vmatprep.subr.bf16.mxu0 0
  %2155 = vmatpush1.bf16.msra.mxu0 0
  %2156 = vmatprep.subr.bf16.mxu0 0
  %2157 = vmatpush1.bf16.msra.mxu0 0
  %2158 = vmatprep.subr.bf16.mxu0 0
  %2159 = vmatpush1.bf16.msra.mxu0 0
  %2160 = vmatprep.subr.bf16.mxu0 0
  %2161 = vmatpush1.bf16.msra.mxu0 0
  %2162 = vmatprep.subr.bf16.mxu0 0
  %2163 = vmatpush1.bf16.msra.mxu0 0
  %2164 = vmatprep.subr.bf16.mxu0 0
  %2165 = vmatpush1.bf16.msra.mxu0 0
  %2166 = vmatprep.subr.bf16.mxu0 0
  %2167 = vmatpush1.bf16.msra.mxu0 0
  %2168 = vmatprep.subr.bf16.mxu0 0
  %2169 = vmatpush1.bf16.msra.mxu0 0
  %2170 = vmatprep.subr.bf16.mxu0 0
  %2171 = vmatpush1.bf16.msra.mxu0 0
  %2172 = vmatprep.subr.bf16.mxu0 0
  %2173 = vmatpush1.bf16.msra.mxu0 0
  %2174 = vmatprep.subr.bf16.mxu0 0
  %2175 = vmatpush1.bf16.msra.mxu0 0
  %2176 = vmatprep.subr.bf16.mxu0 0
  %2177 = vmatpush1.bf16.msra.mxu0 0
  %2178 = vmatprep.mubr.bf16.mxu0 0
  %2179 = vmatmul.mubr.bf16.gmra.mrb[0].mxu0 %v2141
  %v2180 = vpop.f32.mrb[0].mxu0
  %v2181 = vadd.f32 0.0, %v2180
  %v2182 = vpop.f32.mrb[0].mxu0
  %v2183 = vpop.f32.mrb[0].mxu0
  %v2184 = vpop.f32.mrb[0].mxu0
  %2185 = vdwg.mxu0
  %2187 = vrot.lane.b32.xlu0 %v272, 96
  %v2188 = vpop.permute.xlu0 %2187
  %v2190 = vsel %vm1990, %v2081, 0
  %v2193 = vsel %vm2093, %v2188, 0
  %2195 = vmatprep.subr.bf16.mxu0 0
  %2196 = vmatpush1.bf16.msra.mxu0 %v2193
  %2197 = vmatprep.subr.bf16.mxu0 0
  %2198 = vmatpush1.bf16.msra.mxu0 0
  %2199 = vmatprep.subr.bf16.mxu0 0
  %2200 = vmatpush1.bf16.msra.mxu0 0
  %2201 = vmatprep.subr.bf16.mxu0 0
  %2202 = vmatpush1.bf16.msra.mxu0 0
  %2203 = vmatprep.subr.bf16.mxu0 0
  %2204 = vmatpush1.bf16.msra.mxu0 0
  %2205 = vmatprep.subr.bf16.mxu0 0
  %2206 = vmatpush1.bf16.msra.mxu0 0
  %2207 = vmatprep.subr.bf16.mxu0 0
  %2208 = vmatpush1.bf16.msra.mxu0 0
  %2209 = vmatprep.subr.bf16.mxu0 0
  %2210 = vmatpush1.bf16.msra.mxu0 0
  %2211 = vmatprep.subr.bf16.mxu0 0
  %2212 = vmatpush1.bf16.msra.mxu0 0
  %2213 = vmatprep.subr.bf16.mxu0 0
  %2214 = vmatpush1.bf16.msra.mxu0 0
  %2215 = vmatprep.subr.bf16.mxu0 0
  %2216 = vmatpush1.bf16.msra.mxu0 0
  %2217 = vmatprep.subr.bf16.mxu0 0
  %2218 = vmatpush1.bf16.msra.mxu0 0
  %2219 = vmatprep.subr.bf16.mxu0 0
  %2220 = vmatpush1.bf16.msra.mxu0 0
  %2221 = vmatprep.subr.bf16.mxu0 0
  %2222 = vmatpush1.bf16.msra.mxu0 0
  %2223 = vmatprep.subr.bf16.mxu0 0
  %2224 = vmatpush1.bf16.msra.mxu0 0
  %2225 = vmatprep.subr.bf16.mxu0 0
  %2226 = vmatpush1.bf16.msra.mxu0 0
  %2227 = vmatprep.mubr.bf16.mxu0 0
  %2228 = vmatmul.mubr.bf16.gmra.mrb[0].mxu0 %v2190
  %v2229 = vpop.f32.mrb[0].mxu0
  %v2230 = vadd.f32 0.0, %v2229
  %v2231 = vpop.f32.mrb[0].mxu0
  %v2232 = vpop.f32.mrb[0].mxu0
  %v2233 = vpop.f32.mrb[0].mxu0
  %2234 = vdwg.mxu0
  %2236 = vrot.lane.b32.xlu0 %v273, 96
  %v2237 = vpop.permute.xlu0 %2236
  %v2239 = vsel %vm1990, %v2082, 0
  %v2242 = vsel %vm2093, %v2237, 0
  %2244 = vmatprep.subr.bf16.mxu0 0
  %2245 = vmatpush1.bf16.msra.mxu0 %v2242
  %2246 = vmatprep.subr.bf16.mxu0 0
  %2247 = vmatpush1.bf16.msra.mxu0 0
  %2248 = vmatprep.subr.bf16.mxu0 0
  %2249 = vmatpush1.bf16.msra.mxu0 0
  %2250 = vmatprep.subr.bf16.mxu0 0
  %2251 = vmatpush1.bf16.msra.mxu0 0
  %2252 = vmatprep.subr.bf16.mxu0 0
  %2253 = vmatpush1.bf16.msra.mxu0 0
  %2254 = vmatprep.subr.bf16.mxu0 0
  %2255 = vmatpush1.bf16.msra.mxu0 0
  %2256 = vmatprep.subr.bf16.mxu0 0
  %2257 = vmatpush1.bf16.msra.mxu0 0
  %2258 = vmatprep.subr.bf16.mxu0 0
  %2259 = vmatpush1.bf16.msra.mxu0 0
  %2260 = vmatprep.subr.bf16.mxu0 0
  %2261 = vmatpush1.bf16.msra.mxu0 0
  %2262 = vmatprep.subr.bf16.mxu0 0
  %2263 = vmatpush1.bf16.msra.mxu0 0
  %2264 = vmatprep.subr.bf16.mxu0 0
  %2265 = vmatpush1.bf16.msra.mxu0 0
  %2266 = vmatprep.subr.bf16.mxu0 0
  %2267 = vmatpush1.bf16.msra.mxu0 0
  %2268 = vmatprep.subr.bf16.mxu0 0
  %2269 = vmatpush1.bf16.msra.mxu0 0
  %2270 = vmatprep.subr.bf16.mxu0 0
  %2271 = vmatpush1.bf16.msra.mxu0 0
  %2272 = vmatprep.subr.bf16.mxu0 0
  %2273 = vmatpush1.bf16.msra.mxu0 0
  %2274 = vmatprep.subr.bf16.mxu0 0
  %2275 = vmatpush1.bf16.msra.mxu0 0
  %2276 = vmatprep.mubr.bf16.mxu0 0
  %2277 = vmatmul.mubr.bf16.gmra.mrb[0].mxu0 %v2239
  %v2278 = vpop.f32.mrb[0].mxu0
  %v2279 = vadd.f32 0.0, %v2278
  %v2280 = vpop.f32.mrb[0].mxu0
  %v2281 = vpop.f32.mrb[0].mxu0
  %v2282 = vpop.f32.mrb[0].mxu0
  %2283 = vdwg.mxu0
  %2285 = vrot.lane.b32.xlu0 %v274, 96
  %v2286 = vpop.permute.xlu0 %2285
  %v2288 = vsel %vm1990, %v2083, 0
  %v2291 = vsel %vm2093, %v2286, 0
  %2293 = vmatprep.subr.bf16.mxu0 0
  %2294 = vmatpush1.bf16.msra.mxu0 %v2291
  %2295 = vmatprep.subr.bf16.mxu0 0
  %2296 = vmatpush1.bf16.msra.mxu0 0
  %2297 = vmatprep.subr.bf16.mxu0 0
  %2298 = vmatpush1.bf16.msra.mxu0 0
  %2299 = vmatprep.subr.bf16.mxu0 0
  %2300 = vmatpush1.bf16.msra.mxu0 0
  %2301 = vmatprep.subr.bf16.mxu0 0
  %2302 = vmatpush1.bf16.msra.mxu0 0
  %2303 = vmatprep.subr.bf16.mxu0 0
  %2304 = vmatpush1.bf16.msra.mxu0 0
  %2305 = vmatprep.subr.bf16.mxu0 0
  %2306 = vmatpush1.bf16.msra.mxu0 0
  %2307 = vmatprep.subr.bf16.mxu0 0
  %2308 = vmatpush1.bf16.msra.mxu0 0
  %2309 = vmatprep.subr.bf16.mxu0 0
  %2310 = vmatpush1.bf16.msra.mxu0 0
  %2311 = vmatprep.subr.bf16.mxu0 0
  %2312 = vmatpush1.bf16.msra.mxu0 0
  %2313 = vmatprep.subr.bf16.mxu0 0
  %2314 = vmatpush1.bf16.msra.mxu0 0
  %2315 = vmatprep.subr.bf16.mxu0 0
  %2316 = vmatpush1.bf16.msra.mxu0 0
  %2317 = vmatprep.subr.bf16.mxu0 0
  %2318 = vmatpush1.bf16.msra.mxu0 0
  %2319 = vmatprep.subr.bf16.mxu0 0
  %2320 = vmatpush1.bf16.msra.mxu0 0
  %2321 = vmatprep.subr.bf16.mxu0 0
  %2322 = vmatpush1.bf16.msra.mxu0 0
  %2323 = vmatprep.subr.bf16.mxu0 0
  %2324 = vmatpush1.bf16.msra.mxu0 0
  %2325 = vmatprep.mubr.bf16.mxu0 0
  %2326 = vmatmul.mubr.bf16.gmra.mrb[0].mxu0 %v2288
  %v2327 = vpop.f32.mrb[0].mxu0
  %v2328 = vadd.f32 0.0, %v2327
  %v2329 = vpop.f32.mrb[0].mxu0
  %v2330 = vpop.f32.mrb[0].mxu0
  %v2331 = vpop.f32.mrb[0].mxu0
  %2332 = vdwg.mxu0
  %2334 = vrot.lane.b32.xlu0 %v275, 96
  %v2335 = vpop.permute.xlu0 %2334
  %v2337 = vsel %vm1990, %v2084, 0
  %v2340 = vsel %vm2093, %v2335, 0
  %2342 = vmatprep.subr.bf16.mxu0 0
  %2343 = vmatpush1.bf16.msra.mxu0 %v2340
  %2344 = vmatprep.subr.bf16.mxu0 0
  %2345 = vmatpush1.bf16.msra.mxu0 0
  %2346 = vmatprep.subr.bf16.mxu0 0
  %2347 = vmatpush1.bf16.msra.mxu0 0
  %2348 = vmatprep.subr.bf16.mxu0 0
  %2349 = vmatpush1.bf16.msra.mxu0 0
  %2350 = vmatprep.subr.bf16.mxu0 0
  %2351 = vmatpush1.bf16.msra.mxu0 0
  %2352 = vmatprep.subr.bf16.mxu0 0
  %2353 = vmatpush1.bf16.msra.mxu0 0
  %2354 = vmatprep.subr.bf16.mxu0 0
  %2355 = vmatpush1.bf16.msra.mxu0 0
  %2356 = vmatprep.subr.bf16.mxu0 0
  %2357 = vmatpush1.bf16.msra.mxu0 0
  %2358 = vmatprep.subr.bf16.mxu0 0
  %2359 = vmatpush1.bf16.msra.mxu0 0
  %2360 = vmatprep.subr.bf16.mxu0 0
  %2361 = vmatpush1.bf16.msra.mxu0 0
  %2362 = vmatprep.subr.bf16.mxu0 0
  %2363 = vmatpush1.bf16.msra.mxu0 0
  %2364 = vmatprep.subr.bf16.mxu0 0
  %2365 = vmatpush1.bf16.msra.mxu0 0
  %2366 = vmatprep.subr.bf16.mxu0 0
  %2367 = vmatpush1.bf16.msra.mxu0 0
  %2368 = vmatprep.subr.bf16.mxu0 0
  %2369 = vmatpush1.bf16.msra.mxu0 0
  %2370 = vmatprep.subr.bf16.mxu0 0
  %2371 = vmatpush1.bf16.msra.mxu0 0
  %2372 = vmatprep.subr.bf16.mxu0 0
  %2373 = vmatpush1.bf16.msra.mxu0 0
  %2374 = vmatprep.mubr.bf16.mxu0 0
  %2375 = vmatmul.mubr.bf16.gmra.mrb[0].mxu0 %v2337
  %v2376 = vpop.f32.mrb[0].mxu0
  %v2377 = vadd.f32 0.0, %v2376
  %v2378 = vpop.f32.mrb[0].mxu0
  %v2379 = vpop.f32.mrb[0].mxu0
  %v2380 = vpop.f32.mrb[0].mxu0
  %2381 = vdwg.mxu0
  %2383 = vrot.lane.b32.xlu0 %v276, 96
  %v2384 = vpop.permute.xlu0 %2383
  %v2386 = vsel %vm1990, %v2085, 0
  %v2389 = vsel %vm2093, %v2384, 0
  %2391 = vmatprep.subr.bf16.mxu0 0
  %2392 = vmatpush1.bf16.msra.mxu0 %v2389
  %2393 = vmatprep.subr.bf16.mxu0 0
  %2394 = vmatpush1.bf16.msra.mxu0 0
  %2395 = vmatprep.subr.bf16.mxu0 0
  %2396 = vmatpush1.bf16.msra.mxu0 0
  %2397 = vmatprep.subr.bf16.mxu0 0
  %2398 = vmatpush1.bf16.msra.mxu0 0
  %2399 = vmatprep.subr.bf16.mxu0 0
  %2400 = vmatpush1.bf16.msra.mxu0 0
  %2401 = vmatprep.subr.bf16.mxu0 0
  %2402 = vmatpush1.bf16.msra.mxu0 0
  %2403 = vmatprep.subr.bf16.mxu0 0
  %2404 = vmatpush1.bf16.msra.mxu0 0
  %2405 = vmatprep.subr.bf16.mxu0 0
  %2406 = vmatpush1.bf16.msra.mxu0 0
  %2407 = vmatprep.subr.bf16.mxu0 0
  %2408 = vmatpush1.bf16.msra.mxu0 0
  %2409 = vmatprep.subr.bf16.mxu0 0
  %2410 = vmatpush1.bf16.msra.mxu0 0
  %2411 = vmatprep.subr.bf16.mxu0 0
  %2412 = vmatpush1.bf16.msra.mxu0 0
  %2413 = vmatprep.subr.bf16.mxu0 0
  %2414 = vmatpush1.bf16.msra.mxu0 0
  %2415 = vmatprep.subr.bf16.mxu0 0
  %2416 = vmatpush1.bf16.msra.mxu0 0
  %2417 = vmatprep.subr.bf16.mxu0 0
  %2418 = vmatpush1.bf16.msra.mxu0 0
  %2419 = vmatprep.subr.bf16.mxu0 0
  %2420 = vmatpush1.bf16.msra.mxu0 0
  %2421 = vmatprep.subr.bf16.mxu0 0
  %2422 = vmatpush1.bf16.msra.mxu0 0
  %2423 = vmatprep.mubr.bf16.mxu0 0
  %2424 = vmatmul.mubr.bf16.gmra.mrb[0].mxu0 %v2386
  %v2425 = vpop.f32.mrb[0].mxu0
  %v2426 = vadd.f32 0.0, %v2425
  %v2427 = vpop.f32.mrb[0].mxu0
  %v2428 = vpop.f32.mrb[0].mxu0
  %v2429 = vpop.f32.mrb[0].mxu0
  %2430 = vdwg.mxu0
  %2432 = vrot.lane.b32.xlu0 %v277, 96
  %v2433 = vpop.permute.xlu0 %2432
  %v2435 = vsel %vm1990, %v2086, 0
  %v2438 = vsel %vm2093, %v2433, 0
  %2440 = vmatprep.subr.bf16.mxu0 0
  %2441 = vmatpush1.bf16.msra.mxu0 %v2438
  %2442 = vmatprep.subr.bf16.mxu0 0
  %2443 = vmatpush1.bf16.msra.mxu0 0
  %2444 = vmatprep.subr.bf16.mxu0 0
  %2445 = vmatpush1.bf16.msra.mxu0 0
  %2446 = vmatprep.subr.bf16.mxu0 0
  %2447 = vmatpush1.bf16.msra.mxu0 0
  %2448 = vmatprep.subr.bf16.mxu0 0
  %2449 = vmatpush1.bf16.msra.mxu0 0
  %2450 = vmatprep.subr.bf16.mxu0 0
  %2451 = vmatpush1.bf16.msra.mxu0 0
  %2452 = vmatprep.subr.bf16.mxu0 0
  %2453 = vmatpush1.bf16.msra.mxu0 0
  %2454 = vmatprep.subr.bf16.mxu0 0
  %2455 = vmatpush1.bf16.msra.mxu0 0
  %2456 = vmatprep.subr.bf16.mxu0 0
  %2457 = vmatpush1.bf16.msra.mxu0 0
  %2458 = vmatprep.subr.bf16.mxu0 0
  %2459 = vmatpush1.bf16.msra.mxu0 0
  %2460 = vmatprep.subr.bf16.mxu0 0
  %2461 = vmatpush1.bf16.msra.mxu0 0
  %2462 = vmatprep.subr.bf16.mxu0 0
  %2463 = vmatpush1.bf16.msra.mxu0 0
  %2464 = vmatprep.subr.bf16.mxu0 0
  %2465 = vmatpush1.bf16.msra.mxu0 0
  %2466 = vmatprep.subr.bf16.mxu0 0
  %2467 = vmatpush1.bf16.msra.mxu0 0
  %2468 = vmatprep.subr.bf16.mxu0 0
  %2469 = vmatpush1.bf16.msra.mxu0 0
  %2470 = vmatprep.subr.bf16.mxu0 0
  %2471 = vmatpush1.bf16.msra.mxu0 0
  %2472 = vmatprep.mubr.bf16.mxu0 0
  %2473 = vmatmul.mubr.bf16.gmra.mrb[0].mxu0 %v2435
  %v2474 = vpop.f32.mrb[0].mxu0
  %v2475 = vadd.f32 0.0, %v2474
  %v2476 = vpop.f32.mrb[0].mxu0
  %v2477 = vpop.f32.mrb[0].mxu0
  %v2478 = vpop.f32.mrb[0].mxu0
  %2479 = vdwg.mxu0
  %2481 = vrot.lane.b32.xlu0 %v2181, 8
  %v2482 = vpop.permute.xlu0 %2481
  %2485 = vrot.lane.b32.xlu0 %v2230, 16
  %v2486 = vpop.permute.xlu0 %2485
  %2489 = vrot.lane.b32.xlu0 %v2279, 24
  %v2490 = vpop.permute.xlu0 %2489
  %v2492 = vsel %vm430, %v2132, %v2482
  %v2493 = vsel %vm104, %v2492, %v2486
  %v2494 = vsel %vm1331, %v2493, %v2490
  %2496 = vrot.lane.b32.xlu0 %v2377, 8
  %v2497 = vpop.permute.xlu0 %2496
  %2500 = vrot.lane.b32.xlu0 %v2426, 16
  %v2501 = vpop.permute.xlu0 %2500
  %2504 = vrot.lane.b32.xlu0 %v2475, 24
  %v2505 = vpop.permute.xlu0 %2504
  %v2507 = vsel %vm430, %v2328, %v2497
  %v2508 = vsel %vm104, %v2507, %v2501
  %v2509 = vsel %vm1331, %v2508, %v2505
  %v2510 = vld [vmem:[%s14] sm:$0xf]
  %v2511 = vld [vmem:[%s14 + $0x4] sm:$0xf]
  %v2512 = vld [vmem:[%s14 + $0x8] sm:$0xf]
  %v2513 = vld [vmem:[%s14 + $0xc] sm:$0xf]
  %v2514 = vpack.c.bf16 %v2509, %v2494
  %v2519 = vunpack.c.l.b16 %v2510
  %v2520 = vunpack.c.l.b16 %v2511
  %v2521 = vunpack.c.l.b16 %v2512
  %v2522 = vunpack.c.l.b16 %v2513
  %v2523 = vpack.c.b16 %v2520, %v2519
  %v2524 = vpack.c.b16 %v2522, %v2521
  %v2528 = vsel %vm170, %v2514, 0
  %2530 = vmatprep.subr.bf16.mxu0 0
  %2531 = vmatpush1.bf16.msra.mxu0 %v2523
  %2532 = vmatprep.subr.bf16.mxu0 0
  %2533 = vmatpush1.bf16.msra.mxu0 %v2524
  %2534 = vmatprep.subr.bf16.mxu0 0
  %2535 = vmatpush1.bf16.msra.mxu0 0
  %2536 = vmatprep.subr.bf16.mxu0 0
  %2537 = vmatpush1.bf16.msra.mxu0 0
  %2538 = vmatprep.subr.bf16.mxu0 0
  %2539 = vmatpush1.bf16.msra.mxu0 0
  %2540 = vmatprep.subr.bf16.mxu0 0
  %2541 = vmatpush1.bf16.msra.mxu0 0
  %2542 = vmatprep.subr.bf16.mxu0 0
  %2543 = vmatpush1.bf16.msra.mxu0 0
  %2544 = vmatprep.subr.bf16.mxu0 0
  %2545 = vmatpush1.bf16.msra.mxu0 0
  %2546 = vmatprep.subr.bf16.mxu0 0
  %2547 = vmatpush1.bf16.msra.mxu0 0
  %2548 = vmatprep.subr.bf16.mxu0 0
  %2549 = vmatpush1.bf16.msra.mxu0 0
  %2550 = vmatprep.subr.bf16.mxu0 0
  %2551 = vmatpush1.bf16.msra.mxu0 0
  %2552 = vmatprep.subr.bf16.mxu0 0
  %2553 = vmatpush1.bf16.msra.mxu0 0
  %2554 = vmatprep.subr.bf16.mxu0 0
  %2555 = vmatpush1.bf16.msra.mxu0 0
  %2556 = vmatprep.subr.bf16.mxu0 0
  %2557 = vmatpush1.bf16.msra.mxu0 0
  %2558 = vmatprep.subr.bf16.mxu0 0
  %2559 = vmatpush1.bf16.msra.mxu0 0
  %2560 = vmatprep.subr.bf16.mxu0 0
  %2561 = vmatpush1.bf16.msra.mxu0 0
  %2562 = vmatprep.mubr.bf16.mxu0 0
  %2563 = vmatmul.mubr.bf16.gmra.mrb[0].mxu0 %v2528
  %v2564 = vpop.f32.mrb[0].mxu0
  %v2565 = vadd.f32 0.0, %v2564
  %v2566 = vpop.f32.mrb[0].mxu0
  %v2567 = vpop.f32.mrb[0].mxu0
  %v2568 = vadd.f32 0.0, %v2567
  %v2569 = vpop.f32.mrb[0].mxu0
  %2570 = vdwg.mxu0
  %v2571 = vadd.f32 %v1409, %v2565
  %v2572 = vadd.f32 %v1410, %v2568
  %v2573 = vld [vmem:[%s15] sm:$0x1]
  %v2574 = vld [vmem:[%s16] sm:$0x1]
  %v2575 = vsel %vm170, %v2571, 0.0
  %2576 = vadd.xlane.f32.xlu0 %v2575
  %v2577 = vpop.xlane.xlu0 %2576
  %v2578 = vsel %vm170, %v2572, 0.0
  %2579 = vadd.xlane.f32.xlu0 %v2578
  %v2580 = vpop.xlane.xlu0 %2579
  %v2581 = vmul.f32 %v2577, %v286
  %v2582 = vmul.f32 %v2580, %v286
  %v2583 = vsub.f32 %v2571, %v2581
  %v2584 = vsub.f32 %v2572, %v2582
  %v2585 = vmul.f32 %v2583, %v2583
  %v2586 = vmul.f32 %v2584, %v2584
  %v2587 = vsel %vm170, %v2585, 0.0
  %2588 = vadd.xlane.f32.xlu0 %v2587
  %v2589 = vpop.xlane.xlu0 %2588
  %v2590 = vsel %vm170, %v2586, 0.0
  %2591 = vadd.xlane.f32.xlu0 %v2590
  %v2592 = vpop.xlane.xlu0 %2591
  %v2593 = vmul.f32 %v2589, %v299
  %v2594 = vmul.f32 %v2592, %v299
  %v2595 = vrsqrt.pop %v2593
  %v2596 = vmul.f32 %v2593, %v2595
  %vm2597 = vcmp.eq.f32.partialorder %v2593, inf
  %v2598 = vsel %vm2597, %v2593, %v2596
  %vm2599 = vcmp.eq.f32.partialorder %v2593, 0.0
  %v2600 = vand.u32 %v2593, 2147483648
  %v2601 = vsel %vm2599, %v2600, %v2598
  %v2602 = vrsqrt.pop %v2594
  %v2603 = vmul.f32 %v2594, %v2602
  %vm2604 = vcmp.eq.f32.partialorder %v2594, inf
  %v2605 = vsel %vm2604, %v2594, %v2603
  %vm2606 = vcmp.eq.f32.partialorder %v2594, 0.0
  %v2607 = vand.u32 %v2594, 2147483648
  %v2608 = vsel %vm2606, %v2607, %v2605
  %v2609 = vadd.f32 %v2601, 1e-06
  %v2610 = vadd.f32 %v2608, 1e-06
  %v2611 = vrcp.pop %v2609
  %v2612 = vmul.f32 %v2583, %v2611
  %v2613 = vrcp.pop %v2610
  %v2614 = vmul.f32 %v2584, %v2613
  %v2616 = vlaneseq
  %v2617 = vshrl.u32 %v2616, 7
  %v2618 = vsub.s32 0, %v2617
  %v2619 = vrot.slane %v2573, %v2618
  %v2621 = vmul.f32 %v2619, %v2612
  %v2622 = vmul.f32 %v2619, %v2614
  %v2624 = vlaneseq
  %v2625 = vshrl.u32 %v2624, 7
  %v2626 = vsub.s32 0, %v2625
  %v2627 = vrot.slane %v2574, %v2626
  %v2629 = vadd.f32 %v2621, %v2627
  %v2630 = vadd.f32 %v2622, %v2627
  %v2631 = vld [vmem:[%s17] sm:$0xf]
  %v2632 = vld [vmem:[%s17 + $0x4] sm:$0xf]
  %v2633 = vld [vmem:[%s17 + $0x8] sm:$0xf]
  %v2634 = vld [vmem:[%s17 + $0xc] sm:$0xf]
  %v2635 = vpack.c.bf16 %v2630, %v2629
  %v2636 = vld [vmem:[%s18] sm:$0x1]
  %v2638 = vlaneseq
  %v2639 = vshrl.u32 %v2638, 7
  %v2640 = vsub.s32 0, %v2639
  %v2641 = vrot.slane %v2636, %v2640
  %v2647 = vunpack.c.l.b16 %v2631
  %v2648 = vunpack.c.l.b16 %v2632
  %v2649 = vunpack.c.l.b16 %v2633
  %v2650 = vunpack.c.l.b16 %v2634
  %v2651 = vpack.c.b16 %v2648, %v2647
  %v2652 = vpack.c.b16 %v2650, %v2649
  %v2656 = vsel %vm170, %v2635, 0
  %2658 = vmatprep.subr.bf16.mxu0 0
  %2659 = vmatpush1.bf16.msra.mxu0 %v2651
  %2660 = vmatprep.subr.bf16.mxu0 0
  %2661 = vmatpush1.bf16.msra.mxu0 %v2652
  %2662 = vmatprep.subr.bf16.mxu0 0
  %2663 = vmatpush1.bf16.msra.mxu0 0
  %2664 = vmatprep.subr.bf16.mxu0 0
  %2665 = vmatpush1.bf16.msra.mxu0 0
  %2666 = vmatprep.subr.bf16.mxu0 0
  %2667 = vmatpush1.bf16.msra.mxu0 0
  %2668 = vmatprep.subr.bf16.mxu0 0
  %2669 = vmatpush1.bf16.msra.mxu0 0
  %2670 = vmatprep.subr.bf16.mxu0 0
  %2671 = vmatpush1.bf16.msra.mxu0 0
  %2672 = vmatprep.subr.bf16.mxu0 0
  %2673 = vmatpush1.bf16.msra.mxu0 0
  %2674 = vmatprep.subr.bf16.mxu0 0
  %2675 = vmatpush1.bf16.msra.mxu0 0
  %2676 = vmatprep.subr.bf16.mxu0 0
  %2677 = vmatpush1.bf16.msra.mxu0 0
  %2678 = vmatprep.subr.bf16.mxu0 0
  %2679 = vmatpush1.bf16.msra.mxu0 0
  %2680 = vmatprep.subr.bf16.mxu0 0
  %2681 = vmatpush1.bf16.msra.mxu0 0
  %2682 = vmatprep.subr.bf16.mxu0 0
  %2683 = vmatpush1.bf16.msra.mxu0 0
  %2684 = vmatprep.subr.bf16.mxu0 0
  %2685 = vmatpush1.bf16.msra.mxu0 0
  %2686 = vmatprep.subr.bf16.mxu0 0
  %2687 = vmatpush1.bf16.msra.mxu0 0
  %2688 = vmatprep.subr.bf16.mxu0 0
  %2689 = vmatpush1.bf16.msra.mxu0 0
  %2690 = vmatprep.mubr.bf16.mxu0 0
  %2691 = vmatmul.mubr.bf16.gmra.mrb[0].mxu0 %v2656
  %v2692 = vpop.f32.mrb[0].mxu0
  %v2693 = vadd.f32 %v2641, %v2692
  %v2694 = vpop.f32.mrb[0].mxu0
  %v2695 = vpop.f32.mrb[0].mxu0
  %v2696 = vadd.f32 %v2641, %v2695
  %v2697 = vpop.f32.mrb[0].mxu0
  %2698 = vdwg.mxu0
  %v2699 = vmax.f32 %v2693, 0.0
  %v2700 = vmax.f32 %v2696, 0.0
  %v2701 = vld [vmem:[%s19] sm:$0xf]
  %v2702 = vld [vmem:[%s19 + $0x4] sm:$0xf]
  %v2703 = vld [vmem:[%s19 + $0x8] sm:$0xf]
  %v2704 = vld [vmem:[%s19 + $0xc] sm:$0xf]
  %v2705 = vld [vmem:[%s19 + $0x10] sm:$0xf]
  %v2706 = vld [vmem:[%s19 + $0x14] sm:$0xf]
  %v2707 = vld [vmem:[%s19 + $0x18] sm:$0xf]
  %v2708 = vld [vmem:[%s19 + $0x1c] sm:$0xf]
  %v2709 = vpack.c.bf16 %v2700, %v2699
  %v2718 = vunpack.c.l.b16 %v2701
  %v2719 = vunpack.c.l.b16 %v2702
  %v2720 = vunpack.c.l.b16 %v2703
  %v2721 = vunpack.c.l.b16 %v2704
  %v2722 = vunpack.c.l.b16 %v2705
  %v2723 = vunpack.c.l.b16 %v2706
  %v2724 = vunpack.c.l.b16 %v2707
  %v2725 = vunpack.c.l.b16 %v2708
  %v2726 = vpack.c.b16 %v2719, %v2718
  %v2727 = vpack.c.b16 %v2721, %v2720
  %v2728 = vpack.c.b16 %v2723, %v2722
  %v2729 = vpack.c.b16 %v2725, %v2724
  %vm2734 = vcmask 523264
  %v2736 = vsel %vm2734, %v2709, 0
  %2738 = vmatprep.subr.bf16.mxu0 0
  %2739 = vmatpush1.bf16.msra.mxu0 %v2726
  %2740 = vmatprep.subr.bf16.mxu0 0
  %2741 = vmatpush1.bf16.msra.mxu0 %v2727
  %2742 = vmatprep.subr.bf16.mxu0 0
  %2743 = vmatpush1.bf16.msra.mxu0 %v2728
  %2744 = vmatprep.subr.bf16.mxu0 0
  %2745 = vmatpush1.bf16.msra.mxu0 %v2729
  %2746 = vmatprep.subr.bf16.mxu0 0
  %2747 = vmatpush1.bf16.msra.mxu0 0
  %2748 = vmatprep.subr.bf16.mxu0 0
  %2749 = vmatpush1.bf16.msra.mxu0 0
  %2750 = vmatprep.subr.bf16.mxu0 0
  %2751 = vmatpush1.bf16.msra.mxu0 0
  %2752 = vmatprep.subr.bf16.mxu0 0
  %2753 = vmatpush1.bf16.msra.mxu0 0
  %2754 = vmatprep.subr.bf16.mxu0 0
  %2755 = vmatpush1.bf16.msra.mxu0 0
  %2756 = vmatprep.subr.bf16.mxu0 0
  %2757 = vmatpush1.bf16.msra.mxu0 0
  %2758 = vmatprep.subr.bf16.mxu0 0
  %2759 = vmatpush1.bf16.msra.mxu0 0
  %2760 = vmatprep.subr.bf16.mxu0 0
  %2761 = vmatpush1.bf16.msra.mxu0 0
  %2762 = vmatprep.subr.bf16.mxu0 0
  %2763 = vmatpush1.bf16.msra.mxu0 0
  %2764 = vmatprep.subr.bf16.mxu0 0
  %2765 = vmatpush1.bf16.msra.mxu0 0
  %2766 = vmatprep.subr.bf16.mxu0 0
  %2767 = vmatpush1.bf16.msra.mxu0 0
  %2768 = vmatprep.subr.bf16.mxu0 0
  %2769 = vmatpush1.bf16.msra.mxu0 0
  %2770 = vmatprep.mubr.bf16.mxu0 0
  %2771 = vmatmul.mubr.bf16.gmra.mrb[0].mxu0 %v2736
  %v2772 = vpop.f32.mrb[0].mxu0
  %v2773 = vadd.f32 0.0, %v2772
  %v2774 = vpop.f32.mrb[0].mxu0
  %v2775 = vpop.f32.mrb[0].mxu0
  %v2776 = vadd.f32 0.0, %v2775
  %v2777 = vpop.f32.mrb[0].mxu0
  %2778 = vdwg.mxu0
  %v2779 = vadd.f32 %v2571, %v2773
  %v2780 = vadd.f32 %v2572, %v2776
  %v2781 = vld [vmem:[%s20] sm:$0x1]
  %v2783 = vlaneseq
  %v2784 = vshrl.u32 %v2783, 7
  %v2785 = vsub.s32 0, %v2784
  %v2786 = vrot.slane %v2781, %v2785
  %v2788 = vadd.f32 %v2779, %v2786
  %v2789 = vadd.f32 %v2780, %v2786
  %s2790 = scalar_lea.vmem %s7, 1
  %v2791 = vld [vmem:[%s2790] sm:$0x1]
  %s2792 = scalar_lea.vmem %s8, 1
  %v2793 = vld [vmem:[%s2792] sm:$0x1]
  %v2794 = vsel %vm170, %v2788, 0.0
  %2795 = vadd.xlane.f32.xlu0 %v2794
  %v2796 = vpop.xlane.xlu0 %2795
  %v2797 = vsel %vm170, %v2789, 0.0
  %2798 = vadd.xlane.f32.xlu0 %v2797
  %v2799 = vpop.xlane.xlu0 %2798
  %v2800 = vmul.f32 %v2796, %v286
  %v2801 = vmul.f32 %v2799, %v286
  %v2802 = vsub.f32 %v2788, %v2800
  %v2803 = vsub.f32 %v2789, %v2801
  %v2804 = vmul.f32 %v2802, %v2802
  %v2805 = vmul.f32 %v2803, %v2803
  %v2806 = vsel %vm170, %v2804, 0.0
  %2807 = vadd.xlane.f32.xlu0 %v2806
  %v2808 = vpop.xlane.xlu0 %2807
  %v2809 = vsel %vm170, %v2805, 0.0
  %2810 = vadd.xlane.f32.xlu0 %v2809
  %v2811 = vpop.xlane.xlu0 %2810
  %v2812 = vmul.f32 %v2808, %v299
  %v2813 = vmul.f32 %v2811, %v299
  %v2814 = vrsqrt.pop %v2812
  %v2815 = vmul.f32 %v2812, %v2814
  %vm2816 = vcmp.eq.f32.partialorder %v2812, inf
  %v2817 = vsel %vm2816, %v2812, %v2815
  %vm2818 = vcmp.eq.f32.partialorder %v2812, 0.0
  %v2819 = vand.u32 %v2812, 2147483648
  %v2820 = vsel %vm2818, %v2819, %v2817
  %v2821 = vrsqrt.pop %v2813
  %v2822 = vmul.f32 %v2813, %v2821
  %vm2823 = vcmp.eq.f32.partialorder %v2813, inf
  %v2824 = vsel %vm2823, %v2813, %v2822
  %vm2825 = vcmp.eq.f32.partialorder %v2813, 0.0
  %v2826 = vand.u32 %v2813, 2147483648
  %v2827 = vsel %vm2825, %v2826, %v2824
  %v2828 = vadd.f32 %v2820, 1e-06
  %v2829 = vadd.f32 %v2827, 1e-06
  %v2830 = vrcp.pop %v2828
  %v2831 = vmul.f32 %v2802, %v2830
  %v2832 = vrcp.pop %v2829
  %v2833 = vmul.f32 %v2803, %v2832
  %v2835 = vlaneseq
  %v2836 = vshrl.u32 %v2835, 7
  %v2837 = vsub.s32 0, %v2836
  %v2838 = vrot.slane %v2791, %v2837
  %v2840 = vmul.f32 %v2838, %v2831
  %v2841 = vmul.f32 %v2838, %v2833
  %v2843 = vlaneseq
  %v2844 = vshrl.u32 %v2843, 7
  %v2845 = vsub.s32 0, %v2844
  %v2846 = vrot.slane %v2793, %v2845
  %v2848 = vadd.f32 %v2840, %v2846
  %v2849 = vadd.f32 %v2841, %v2846
  %s2850 = scalar_lea.vmem %s9, 16
  %v2851 = vld [vmem:[%s2850] sm:$0xf]
  %v2852 = vld [vmem:[%s2850 + $0x4] sm:$0xf]
  %v2853 = vld [vmem:[%s2850 + $0x8] sm:$0xf]
  %v2854 = vld [vmem:[%s2850 + $0xc] sm:$0xf]
  %v2855 = vpack.c.bf16 %v2849, %v2848
  %v2860 = vunpack.c.l.b16 %v2851
  %v2861 = vunpack.c.l.b16 %v2852
  %v2862 = vunpack.c.l.b16 %v2853
  %v2863 = vunpack.c.l.b16 %v2854
  %v2864 = vpack.c.b16 %v2861, %v2860
  %v2865 = vpack.c.b16 %v2863, %v2862
  %v2869 = vsel %vm170, %v2855, 0
  %2871 = vmatprep.subr.bf16.mxu0 0
  %2872 = vmatpush1.bf16.msra.mxu0 %v2864
  %2873 = vmatprep.subr.bf16.mxu0 0
  %2874 = vmatpush1.bf16.msra.mxu0 %v2865
  %2875 = vmatprep.subr.bf16.mxu0 0
  %2876 = vmatpush1.bf16.msra.mxu0 0
  %2877 = vmatprep.subr.bf16.mxu0 0
  %2878 = vmatpush1.bf16.msra.mxu0 0
  %2879 = vmatprep.subr.bf16.mxu0 0
  %2880 = vmatpush1.bf16.msra.mxu0 0
  %2881 = vmatprep.subr.bf16.mxu0 0
  %2882 = vmatpush1.bf16.msra.mxu0 0
  %2883 = vmatprep.subr.bf16.mxu0 0
  %2884 = vmatpush1.bf16.msra.mxu0 0
  %2885 = vmatprep.subr.bf16.mxu0 0
  %2886 = vmatpush1.bf16.msra.mxu0 0
  %2887 = vmatprep.subr.bf16.mxu0 0
  %2888 = vmatpush1.bf16.msra.mxu0 0
  %2889 = vmatprep.subr.bf16.mxu0 0
  %2890 = vmatpush1.bf16.msra.mxu0 0
  %2891 = vmatprep.subr.bf16.mxu0 0
  %2892 = vmatpush1.bf16.msra.mxu0 0
  %2893 = vmatprep.subr.bf16.mxu0 0
  %2894 = vmatpush1.bf16.msra.mxu0 0
  %2895 = vmatprep.subr.bf16.mxu0 0
  %2896 = vmatpush1.bf16.msra.mxu0 0
  %2897 = vmatprep.subr.bf16.mxu0 0
  %2898 = vmatpush1.bf16.msra.mxu0 0
  %2899 = vmatprep.subr.bf16.mxu0 0
  %2900 = vmatpush1.bf16.msra.mxu0 0
  %2901 = vmatprep.subr.bf16.mxu0 0
  %2902 = vmatpush1.bf16.msra.mxu0 0
  %2903 = vmatprep.mubr.bf16.mxu0 0
  %2904 = vmatmul.mubr.bf16.gmra.mrb[0].mxu0 %v2869
  %v2905 = vpop.f32.mrb[0].mxu0
  %v2906 = vadd.f32 0.0, %v2905
  %v2907 = vpop.f32.mrb[0].mxu0
  %v2908 = vpop.f32.mrb[0].mxu0
  %v2909 = vadd.f32 0.0, %v2908
  %v2910 = vpop.f32.mrb[0].mxu0
  %2911 = vdwg.mxu0
  %2913 = vrot.lane.b32.xlu0 %v2906, 120
  %v2914 = vpop.permute.xlu0 %2913
  %2916 = vrot.lane.b32.xlu0 %v2906, 112
  %v2917 = vpop.permute.xlu0 %2916
  %2919 = vrot.lane.b32.xlu0 %v2906, 104
  %v2920 = vpop.permute.xlu0 %2919
  %2923 = vrot.lane.b32.xlu0 %v2909, 120
  %v2924 = vpop.permute.xlu0 %2923
  %2926 = vrot.lane.b32.xlu0 %v2909, 112
  %v2927 = vpop.permute.xlu0 %2926
  %2929 = vrot.lane.b32.xlu0 %v2909, 104
  %v2930 = vpop.permute.xlu0 %2929
  %v2932 = vpack.c.bf16 %v2906, %v2906
  %v2933 = vpack.c.bf16 %v2914, %v2914
  %v2934 = vpack.c.bf16 %v2917, %v2917
  %v2935 = vpack.c.bf16 %v2920, %v2920
  %v2936 = vpack.c.bf16 %v2909, %v2909
  %v2937 = vpack.c.bf16 %v2924, %v2924
  %v2938 = vpack.c.bf16 %v2927, %v2927
  %v2939 = vpack.c.bf16 %v2930, %v2930
  %2941 = vrot.lane.b32.xlu0 %v2932, 96
  %v2942 = vpop.permute.xlu0 %2941
  %v2944 = vsel %vm430, %v2932, 0
  %v2947 = vsel %vm430, %v2942, 0
  %2949 = vmatprep.subr.bf16.mxu0 0
  %2950 = vmatpush1.bf16.xpose.msra.mxu0 %v2947
  %2951 = vmatprep.subr.bf16.mxu0 0
  %2952 = vmatpush1.bf16.xpose.msra.mxu0 0
  %2953 = vmatprep.subr.bf16.mxu0 0
  %2954 = vmatpush1.bf16.xpose.msra.mxu0 0
  %2955 = vmatprep.subr.bf16.mxu0 0
  %2956 = vmatpush1.bf16.xpose.msra.mxu0 0
  %2957 = vmatprep.subr.bf16.mxu0 0
  %2958 = vmatpush1.bf16.xpose.msra.mxu0 0
  %2959 = vmatprep.subr.bf16.mxu0 0
  %2960 = vmatpush1.bf16.xpose.msra.mxu0 0
  %2961 = vmatprep.subr.bf16.mxu0 0
  %2962 = vmatpush1.bf16.xpose.msra.mxu0 0
  %2963 = vmatprep.subr.bf16.mxu0 0
  %2964 = vmatpush1.bf16.xpose.msra.mxu0 0
  %2965 = vmatprep.subr.bf16.mxu0 0
  %2966 = vmatpush1.bf16.xpose.msra.mxu0 0
  %2967 = vmatprep.subr.bf16.mxu0 0
  %2968 = vmatpush1.bf16.xpose.msra.mxu0 0
  %2969 = vmatprep.subr.bf16.mxu0 0
  %2970 = vmatpush1.bf16.xpose.msra.mxu0 0
  %2971 = vmatprep.subr.bf16.mxu0 0
  %2972 = vmatpush1.bf16.xpose.msra.mxu0 0
  %2973 = vmatprep.subr.bf16.mxu0 0
  %2974 = vmatpush1.bf16.xpose.msra.mxu0 0
  %2975 = vmatprep.subr.bf16.mxu0 0
  %2976 = vmatpush1.bf16.xpose.msra.mxu0 0
  %2977 = vmatprep.subr.bf16.mxu0 0
  %2978 = vmatpush1.bf16.xpose.msra.mxu0 0
  %2979 = vmatprep.subr.bf16.mxu0 0
  %2980 = vmatpush1.bf16.xpose.msra.mxu0 0
  %2981 = vmatprep.mubr.bf16.mxu0 0
  %2982 = vmatmul.mubr.bf16.gmra.mrb[0].mxu0 %v2944
  %v2983 = vpop.f32.mrb[0].mxu0
  %v2984 = vadd.f32 0.0, %v2983
  %v2985 = vpop.f32.mrb[0].mxu0
  %v2986 = vpop.f32.mrb[0].mxu0
  %v2987 = vpop.f32.mrb[0].mxu0
  %2988 = vdwg.mxu0
  %2990 = vrot.lane.b32.xlu0 %v2933, 96
  %v2991 = vpop.permute.xlu0 %2990
  %v2993 = vsel %vm430, %v2933, 0
  %v2996 = vsel %vm430, %v2991, 0
  %2998 = vmatprep.subr.bf16.mxu0 0
  %2999 = vmatpush1.bf16.xpose.msra.mxu0 %v2996
  %3000 = vmatprep.subr.bf16.mxu0 0
  %3001 = vmatpush1.bf16.xpose.msra.mxu0 0
  %3002 = vmatprep.subr.bf16.mxu0 0
  %3003 = vmatpush1.bf16.xpose.msra.mxu0 0
  %3004 = vmatprep.subr.bf16.mxu0 0
  %3005 = vmatpush1.bf16.xpose.msra.mxu0 0
  %3006 = vmatprep.subr.bf16.mxu0 0
  %3007 = vmatpush1.bf16.xpose.msra.mxu0 0
  %3008 = vmatprep.subr.bf16.mxu0 0
  %3009 = vmatpush1.bf16.xpose.msra.mxu0 0
  %3010 = vmatprep.subr.bf16.mxu0 0
  %3011 = vmatpush1.bf16.xpose.msra.mxu0 0
  %3012 = vmatprep.subr.bf16.mxu0 0
  %3013 = vmatpush1.bf16.xpose.msra.mxu0 0
  %3014 = vmatprep.subr.bf16.mxu0 0
  %3015 = vmatpush1.bf16.xpose.msra.mxu0 0
  %3016 = vmatprep.subr.bf16.mxu0 0
  %3017 = vmatpush1.bf16.xpose.msra.mxu0 0
  %3018 = vmatprep.subr.bf16.mxu0 0
  %3019 = vmatpush1.bf16.xpose.msra.mxu0 0
  %3020 = vmatprep.subr.bf16.mxu0 0
  %3021 = vmatpush1.bf16.xpose.msra.mxu0 0
  %3022 = vmatprep.subr.bf16.mxu0 0
  %3023 = vmatpush1.bf16.xpose.msra.mxu0 0
  %3024 = vmatprep.subr.bf16.mxu0 0
  %3025 = vmatpush1.bf16.xpose.msra.mxu0 0
  %3026 = vmatprep.subr.bf16.mxu0 0
  %3027 = vmatpush1.bf16.xpose.msra.mxu0 0
  %3028 = vmatprep.subr.bf16.mxu0 0
  %3029 = vmatpush1.bf16.xpose.msra.mxu0 0
  %3030 = vmatprep.mubr.bf16.mxu0 0
  %3031 = vmatmul.mubr.bf16.gmra.mrb[0].mxu0 %v2993
  %v3032 = vpop.f32.mrb[0].mxu0
  %v3033 = vadd.f32 0.0, %v3032
  %v3034 = vpop.f32.mrb[0].mxu0
  %v3035 = vpop.f32.mrb[0].mxu0
  %v3036 = vpop.f32.mrb[0].mxu0
  %3037 = vdwg.mxu0
  %3039 = vrot.lane.b32.xlu0 %v2934, 96
  %v3040 = vpop.permute.xlu0 %3039
  %v3042 = vsel %vm430, %v2934, 0
  %v3045 = vsel %vm430, %v3040, 0
  %3047 = vmatprep.subr.bf16.mxu0 0
  %3048 = vmatpush1.bf16.xpose.msra.mxu0 %v3045
  %3049 = vmatprep.subr.bf16.mxu0 0
  %3050 = vmatpush1.bf16.xpose.msra.mxu0 0
  %3051 = vmatprep.subr.bf16.mxu0 0
  %3052 = vmatpush1.bf16.xpose.msra.mxu0 0
  %3053 = vmatprep.subr.bf16.mxu0 0
  %3054 = vmatpush1.bf16.xpose.msra.mxu0 0
  %3055 = vmatprep.subr.bf16.mxu0 0
  %3056 = vmatpush1.bf16.xpose.msra.mxu0 0
  %3057 = vmatprep.subr.bf16.mxu0 0
  %3058 = vmatpush1.bf16.xpose.msra.mxu0 0
  %3059 = vmatprep.subr.bf16.mxu0 0
  %3060 = vmatpush1.bf16.xpose.msra.mxu0 0
  %3061 = vmatprep.subr.bf16.mxu0 0
  %3062 = vmatpush1.bf16.xpose.msra.mxu0 0
  %3063 = vmatprep.subr.bf16.mxu0 0
  %3064 = vmatpush1.bf16.xpose.msra.mxu0 0
  %3065 = vmatprep.subr.bf16.mxu0 0
  %3066 = vmatpush1.bf16.xpose.msra.mxu0 0
  %3067 = vmatprep.subr.bf16.mxu0 0
  %3068 = vmatpush1.bf16.xpose.msra.mxu0 0
  %3069 = vmatprep.subr.bf16.mxu0 0
  %3070 = vmatpush1.bf16.xpose.msra.mxu0 0
  %3071 = vmatprep.subr.bf16.mxu0 0
  %3072 = vmatpush1.bf16.xpose.msra.mxu0 0
  %3073 = vmatprep.subr.bf16.mxu0 0
  %3074 = vmatpush1.bf16.xpose.msra.mxu0 0
  %3075 = vmatprep.subr.bf16.mxu0 0
  %3076 = vmatpush1.bf16.xpose.msra.mxu0 0
  %3077 = vmatprep.subr.bf16.mxu0 0
  %3078 = vmatpush1.bf16.xpose.msra.mxu0 0
  %3079 = vmatprep.mubr.bf16.mxu0 0
  %3080 = vmatmul.mubr.bf16.gmra.mrb[0].mxu0 %v3042
  %v3081 = vpop.f32.mrb[0].mxu0
  %v3082 = vadd.f32 0.0, %v3081
  %v3083 = vpop.f32.mrb[0].mxu0
  %v3084 = vpop.f32.mrb[0].mxu0
  %v3085 = vpop.f32.mrb[0].mxu0
  %3086 = vdwg.mxu0
  %3088 = vrot.lane.b32.xlu0 %v2935, 96
  %v3089 = vpop.permute.xlu0 %3088
  %v3091 = vsel %vm430, %v2935, 0
  %v3094 = vsel %vm430, %v3089, 0
  %3096 = vmatprep.subr.bf16.mxu0 0
  %3097 = vmatpush1.bf16.xpose.msra.mxu0 %v3094
  %3098 = vmatprep.subr.bf16.mxu0 0
  %3099 = vmatpush1.bf16.xpose.msra.mxu0 0
  %3100 = vmatprep.subr.bf16.mxu0 0
  %3101 = vmatpush1.bf16.xpose.msra.mxu0 0
  %3102 = vmatprep.subr.bf16.mxu0 0
  %3103 = vmatpush1.bf16.xpose.msra.mxu0 0
  %3104 = vmatprep.subr.bf16.mxu0 0
  %3105 = vmatpush1.bf16.xpose.msra.mxu0 0
  %3106 = vmatprep.subr.bf16.mxu0 0
  %3107 = vmatpush1.bf16.xpose.msra.mxu0 0
  %3108 = vmatprep.subr.bf16.mxu0 0
  %3109 = vmatpush1.bf16.xpose.msra.mxu0 0
  %3110 = vmatprep.subr.bf16.mxu0 0
  %3111 = vmatpush1.bf16.xpose.msra.mxu0 0
  %3112 = vmatprep.subr.bf16.mxu0 0
  %3113 = vmatpush1.bf16.xpose.msra.mxu0 0
  %3114 = vmatprep.subr.bf16.mxu0 0
  %3115 = vmatpush1.bf16.xpose.msra.mxu0 0
  %3116 = vmatprep.subr.bf16.mxu0 0
  %3117 = vmatpush1.bf16.xpose.msra.mxu0 0
  %3118 = vmatprep.subr.bf16.mxu0 0
  %3119 = vmatpush1.bf16.xpose.msra.mxu0 0
  %3120 = vmatprep.subr.bf16.mxu0 0
  %3121 = vmatpush1.bf16.xpose.msra.mxu0 0
  %3122 = vmatprep.subr.bf16.mxu0 0
  %3123 = vmatpush1.bf16.xpose.msra.mxu0 0
  %3124 = vmatprep.subr.bf16.mxu0 0
  %3125 = vmatpush1.bf16.xpose.msra.mxu0 0
  %3126 = vmatprep.subr.bf16.mxu0 0
  %3127 = vmatpush1.bf16.xpose.msra.mxu0 0
  %3128 = vmatprep.mubr.bf16.mxu0 0
  %3129 = vmatmul.mubr.bf16.gmra.mrb[0].mxu0 %v3091
  %v3130 = vpop.f32.mrb[0].mxu0
  %v3131 = vadd.f32 0.0, %v3130
  %v3132 = vpop.f32.mrb[0].mxu0
  %v3133 = vpop.f32.mrb[0].mxu0
  %v3134 = vpop.f32.mrb[0].mxu0
  %3135 = vdwg.mxu0
  %3137 = vrot.lane.b32.xlu0 %v2936, 96
  %v3138 = vpop.permute.xlu0 %3137
  %v3140 = vsel %vm430, %v2936, 0
  %v3143 = vsel %vm430, %v3138, 0
  %3145 = vmatprep.subr.bf16.mxu0 0
  %3146 = vmatpush1.bf16.xpose.msra.mxu0 %v3143
  %3147 = vmatprep.subr.bf16.mxu0 0
  %3148 = vmatpush1.bf16.xpose.msra.mxu0 0
  %3149 = vmatprep.subr.bf16.mxu0 0
  %3150 = vmatpush1.bf16.xpose.msra.mxu0 0
  %3151 = vmatprep.subr.bf16.mxu0 0
  %3152 = vmatpush1.bf16.xpose.msra.mxu0 0
  %3153 = vmatprep.subr.bf16.mxu0 0
  %3154 = vmatpush1.bf16.xpose.msra.mxu0 0
  %3155 = vmatprep.subr.bf16.mxu0 0
  %3156 = vmatpush1.bf16.xpose.msra.mxu0 0
  %3157 = vmatprep.subr.bf16.mxu0 0
  %3158 = vmatpush1.bf16.xpose.msra.mxu0 0
  %3159 = vmatprep.subr.bf16.mxu0 0
  %3160 = vmatpush1.bf16.xpose.msra.mxu0 0
  %3161 = vmatprep.subr.bf16.mxu0 0
  %3162 = vmatpush1.bf16.xpose.msra.mxu0 0
  %3163 = vmatprep.subr.bf16.mxu0 0
  %3164 = vmatpush1.bf16.xpose.msra.mxu0 0
  %3165 = vmatprep.subr.bf16.mxu0 0
  %3166 = vmatpush1.bf16.xpose.msra.mxu0 0
  %3167 = vmatprep.subr.bf16.mxu0 0
  %3168 = vmatpush1.bf16.xpose.msra.mxu0 0
  %3169 = vmatprep.subr.bf16.mxu0 0
  %3170 = vmatpush1.bf16.xpose.msra.mxu0 0
  %3171 = vmatprep.subr.bf16.mxu0 0
  %3172 = vmatpush1.bf16.xpose.msra.mxu0 0
  %3173 = vmatprep.subr.bf16.mxu0 0
  %3174 = vmatpush1.bf16.xpose.msra.mxu0 0
  %3175 = vmatprep.subr.bf16.mxu0 0
  %3176 = vmatpush1.bf16.xpose.msra.mxu0 0
  %3177 = vmatprep.mubr.bf16.mxu0 0
  %3178 = vmatmul.mubr.bf16.gmra.mrb[0].mxu0 %v3140
  %v3179 = vpop.f32.mrb[0].mxu0
  %v3180 = vadd.f32 0.0, %v3179
  %v3181 = vpop.f32.mrb[0].mxu0
  %v3182 = vpop.f32.mrb[0].mxu0
  %v3183 = vpop.f32.mrb[0].mxu0
  %3184 = vdwg.mxu0
  %3186 = vrot.lane.b32.xlu0 %v2937, 96
  %v3187 = vpop.permute.xlu0 %3186
  %v3189 = vsel %vm430, %v2937, 0
  %v3192 = vsel %vm430, %v3187, 0
  %3194 = vmatprep.subr.bf16.mxu0 0
  %3195 = vmatpush1.bf16.xpose.msra.mxu0 %v3192
  %3196 = vmatprep.subr.bf16.mxu0 0
  %3197 = vmatpush1.bf16.xpose.msra.mxu0 0
  %3198 = vmatprep.subr.bf16.mxu0 0
  %3199 = vmatpush1.bf16.xpose.msra.mxu0 0
  %3200 = vmatprep.subr.bf16.mxu0 0
  %3201 = vmatpush1.bf16.xpose.msra.mxu0 0
  %3202 = vmatprep.subr.bf16.mxu0 0
  %3203 = vmatpush1.bf16.xpose.msra.mxu0 0
  %3204 = vmatprep.subr.bf16.mxu0 0
  %3205 = vmatpush1.bf16.xpose.msra.mxu0 0
  %3206 = vmatprep.subr.bf16.mxu0 0
  %3207 = vmatpush1.bf16.xpose.msra.mxu0 0
  %3208 = vmatprep.subr.bf16.mxu0 0
  %3209 = vmatpush1.bf16.xpose.msra.mxu0 0
  %3210 = vmatprep.subr.bf16.mxu0 0
  %3211 = vmatpush1.bf16.xpose.msra.mxu0 0
  %3212 = vmatprep.subr.bf16.mxu0 0
  %3213 = vmatpush1.bf16.xpose.msra.mxu0 0
  %3214 = vmatprep.subr.bf16.mxu0 0
  %3215 = vmatpush1.bf16.xpose.msra.mxu0 0
  %3216 = vmatprep.subr.bf16.mxu0 0
  %3217 = vmatpush1.bf16.xpose.msra.mxu0 0
  %3218 = vmatprep.subr.bf16.mxu0 0
  %3219 = vmatpush1.bf16.xpose.msra.mxu0 0
  %3220 = vmatprep.subr.bf16.mxu0 0
  %3221 = vmatpush1.bf16.xpose.msra.mxu0 0
  %3222 = vmatprep.subr.bf16.mxu0 0
  %3223 = vmatpush1.bf16.xpose.msra.mxu0 0
  %3224 = vmatprep.subr.bf16.mxu0 0
  %3225 = vmatpush1.bf16.xpose.msra.mxu0 0
  %3226 = vmatprep.mubr.bf16.mxu0 0
  %3227 = vmatmul.mubr.bf16.gmra.mrb[0].mxu0 %v3189
  %v3228 = vpop.f32.mrb[0].mxu0
  %v3229 = vadd.f32 0.0, %v3228
  %v3230 = vpop.f32.mrb[0].mxu0
  %v3231 = vpop.f32.mrb[0].mxu0
  %v3232 = vpop.f32.mrb[0].mxu0
  %3233 = vdwg.mxu0
  %3235 = vrot.lane.b32.xlu0 %v2938, 96
  %v3236 = vpop.permute.xlu0 %3235
  %v3238 = vsel %vm430, %v2938, 0
  %v3241 = vsel %vm430, %v3236, 0
  %3243 = vmatprep.subr.bf16.mxu0 0
  %3244 = vmatpush1.bf16.xpose.msra.mxu0 %v3241
  %3245 = vmatprep.subr.bf16.mxu0 0
  %3246 = vmatpush1.bf16.xpose.msra.mxu0 0
  %3247 = vmatprep.subr.bf16.mxu0 0
  %3248 = vmatpush1.bf16.xpose.msra.mxu0 0
  %3249 = vmatprep.subr.bf16.mxu0 0
  %3250 = vmatpush1.bf16.xpose.msra.mxu0 0
  %3251 = vmatprep.subr.bf16.mxu0 0
  %3252 = vmatpush1.bf16.xpose.msra.mxu0 0
  %3253 = vmatprep.subr.bf16.mxu0 0
  %3254 = vmatpush1.bf16.xpose.msra.mxu0 0
  %3255 = vmatprep.subr.bf16.mxu0 0
  %3256 = vmatpush1.bf16.xpose.msra.mxu0 0
  %3257 = vmatprep.subr.bf16.mxu0 0
  %3258 = vmatpush1.bf16.xpose.msra.mxu0 0
  %3259 = vmatprep.subr.bf16.mxu0 0
  %3260 = vmatpush1.bf16.xpose.msra.mxu0 0
  %3261 = vmatprep.subr.bf16.mxu0 0
  %3262 = vmatpush1.bf16.xpose.msra.mxu0 0
  %3263 = vmatprep.subr.bf16.mxu0 0
  %3264 = vmatpush1.bf16.xpose.msra.mxu0 0
  %3265 = vmatprep.subr.bf16.mxu0 0
  %3266 = vmatpush1.bf16.xpose.msra.mxu0 0
  %3267 = vmatprep.subr.bf16.mxu0 0
  %3268 = vmatpush1.bf16.xpose.msra.mxu0 0
  %3269 = vmatprep.subr.bf16.mxu0 0
  %3270 = vmatpush1.bf16.xpose.msra.mxu0 0
  %3271 = vmatprep.subr.bf16.mxu0 0
  %3272 = vmatpush1.bf16.xpose.msra.mxu0 0
  %3273 = vmatprep.subr.bf16.mxu0 0
  %3274 = vmatpush1.bf16.xpose.msra.mxu0 0
  %3275 = vmatprep.mubr.bf16.mxu0 0
  %3276 = vmatmul.mubr.bf16.gmra.mrb[0].mxu0 %v3238
  %v3277 = vpop.f32.mrb[0].mxu0
  %v3278 = vadd.f32 0.0, %v3277
  %v3279 = vpop.f32.mrb[0].mxu0
  %v3280 = vpop.f32.mrb[0].mxu0
  %v3281 = vpop.f32.mrb[0].mxu0
  %3282 = vdwg.mxu0
  %3284 = vrot.lane.b32.xlu0 %v2939, 96
  %v3285 = vpop.permute.xlu0 %3284
  %v3287 = vsel %vm430, %v2939, 0
  %v3290 = vsel %vm430, %v3285, 0
  %3292 = vmatprep.subr.bf16.mxu0 0
  %3293 = vmatpush1.bf16.xpose.msra.mxu0 %v3290
  %3294 = vmatprep.subr.bf16.mxu0 0
  %3295 = vmatpush1.bf16.xpose.msra.mxu0 0
  %3296 = vmatprep.subr.bf16.mxu0 0
  %3297 = vmatpush1.bf16.xpose.msra.mxu0 0
  %3298 = vmatprep.subr.bf16.mxu0 0
  %3299 = vmatpush1.bf16.xpose.msra.mxu0 0
  %3300 = vmatprep.subr.bf16.mxu0 0
  %3301 = vmatpush1.bf16.xpose.msra.mxu0 0
  %3302 = vmatprep.subr.bf16.mxu0 0
  %3303 = vmatpush1.bf16.xpose.msra.mxu0 0
  %3304 = vmatprep.subr.bf16.mxu0 0
  %3305 = vmatpush1.bf16.xpose.msra.mxu0 0
  %3306 = vmatprep.subr.bf16.mxu0 0
  %3307 = vmatpush1.bf16.xpose.msra.mxu0 0
  %3308 = vmatprep.subr.bf16.mxu0 0
  %3309 = vmatpush1.bf16.xpose.msra.mxu0 0
  %3310 = vmatprep.subr.bf16.mxu0 0
  %3311 = vmatpush1.bf16.xpose.msra.mxu0 0
  %3312 = vmatprep.subr.bf16.mxu0 0
  %3313 = vmatpush1.bf16.xpose.msra.mxu0 0
  %3314 = vmatprep.subr.bf16.mxu0 0
  %3315 = vmatpush1.bf16.xpose.msra.mxu0 0
  %3316 = vmatprep.subr.bf16.mxu0 0
  %3317 = vmatpush1.bf16.xpose.msra.mxu0 0
  %3318 = vmatprep.subr.bf16.mxu0 0
  %3319 = vmatpush1.bf16.xpose.msra.mxu0 0
  %3320 = vmatprep.subr.bf16.mxu0 0
  %3321 = vmatpush1.bf16.xpose.msra.mxu0 0
  %3322 = vmatprep.subr.bf16.mxu0 0
  %3323 = vmatpush1.bf16.xpose.msra.mxu0 0
  %3324 = vmatprep.mubr.bf16.mxu0 0
  %3325 = vmatmul.mubr.bf16.gmra.mrb[0].mxu0 %v3287
  %v3326 = vpop.f32.mrb[0].mxu0
  %v3327 = vadd.f32 0.0, %v3326
  %v3328 = vpop.f32.mrb[0].mxu0
  %v3329 = vpop.f32.mrb[0].mxu0
  %v3330 = vpop.f32.mrb[0].mxu0
  %3331 = vdwg.mxu0
  %v3332 = vsel %vm820, -1e+18, %v2984
  %v3333 = vsel %vm821, -1e+18, %v3033
  %v3334 = vsel %vm822, -1e+18, %v3082
  %v3335 = vsel %vm823, -1e+18, %v3131
  %v3336 = vsel %vm824, -1e+18, %v3180
  %v3337 = vsel %vm825, -1e+18, %v3229
  %v3338 = vsel %vm826, -1e+18, %v3278
  %v3339 = vsel %vm827, -1e+18, %v3327
  %v3340 = vsel %vm430, %v3332, -inf
  %3341 = vmax.xlane.f32.xlu0 %v3340
  %v3342 = vpop.xlane.xlu0 %3341
  %v3343 = vsel %vm430, %v3333, -inf
  %3344 = vmax.xlane.f32.xlu0 %v3343
  %v3345 = vpop.xlane.xlu0 %3344
  %v3346 = vsel %vm430, %v3334, -inf
  %3347 = vmax.xlane.f32.xlu0 %v3346
  %v3348 = vpop.xlane.xlu0 %3347
  %v3349 = vsel %vm430, %v3335, -inf
  %3350 = vmax.xlane.f32.xlu0 %v3349
  %v3351 = vpop.xlane.xlu0 %3350
  %v3352 = vsel %vm430, %v3336, -inf
  %3353 = vmax.xlane.f32.xlu0 %v3352
  %v3354 = vpop.xlane.xlu0 %3353
  %v3355 = vsel %vm430, %v3337, -inf
  %3356 = vmax.xlane.f32.xlu0 %v3355
  %v3357 = vpop.xlane.xlu0 %3356
  %v3358 = vsel %vm430, %v3338, -inf
  %3359 = vmax.xlane.f32.xlu0 %v3358
  %v3360 = vpop.xlane.xlu0 %3359
  %v3361 = vsel %vm430, %v3339, -inf
  %3362 = vmax.xlane.f32.xlu0 %v3361
  %v3363 = vpop.xlane.xlu0 %3362
  %v3364 = vsub.f32 %v3332, %v3342
  %v3365 = vsub.f32 %v3333, %v3345
  %v3366 = vsub.f32 %v3334, %v3348
  %v3367 = vsub.f32 %v3335, %v3351
  %v3368 = vsub.f32 %v3336, %v3354
  %v3369 = vsub.f32 %v3337, %v3357
  %v3370 = vsub.f32 %v3338, %v3360
  %v3371 = vsub.f32 %v3339, %v3363
  %v3372 = vmul.f32 %v3364, 1.442695
  %v3373 = vpow.pop %v3372
  %v3374 = vmul.f32 %v3365, 1.442695
  %v3375 = vpow.pop %v3374
  %v3376 = vmul.f32 %v3366, 1.442695
  %v3377 = vpow.pop %v3376
  %v3378 = vmul.f32 %v3367, 1.442695
  %v3379 = vpow.pop %v3378
  %v3380 = vmul.f32 %v3368, 1.442695
  %v3381 = vpow.pop %v3380
  %v3382 = vmul.f32 %v3369, 1.442695
  %v3383 = vpow.pop %v3382
  %v3384 = vmul.f32 %v3370, 1.442695
  %v3385 = vpow.pop %v3384
  %v3386 = vmul.f32 %v3371, 1.442695
  %v3387 = vpow.pop %v3386
  %v3388 = vsel %vm430, %v3373, 0.0
  %3389 = vadd.xlane.f32.xlu0 %v3388
  %v3390 = vpop.xlane.xlu0 %3389
  %v3391 = vsel %vm430, %v3375, 0.0
  %3392 = vadd.xlane.f32.xlu0 %v3391
  %v3393 = vpop.xlane.xlu0 %3392
  %v3394 = vsel %vm430, %v3377, 0.0
  %3395 = vadd.xlane.f32.xlu0 %v3394
  %v3396 = vpop.xlane.xlu0 %3395
  %v3397 = vsel %vm430, %v3379, 0.0
  %3398 = vadd.xlane.f32.xlu0 %v3397
  %v3399 = vpop.xlane.xlu0 %3398
  %v3400 = vsel %vm430, %v3381, 0.0
  %3401 = vadd.xlane.f32.xlu0 %v3400
  %v3402 = vpop.xlane.xlu0 %3401
  %v3403 = vsel %vm430, %v3383, 0.0
  %3404 = vadd.xlane.f32.xlu0 %v3403
  %v3405 = vpop.xlane.xlu0 %3404
  %v3406 = vsel %vm430, %v3385, 0.0
  %3407 = vadd.xlane.f32.xlu0 %v3406
  %v3408 = vpop.xlane.xlu0 %3407
  %v3409 = vsel %vm430, %v3387, 0.0
  %3410 = vadd.xlane.f32.xlu0 %v3409
  %v3411 = vpop.xlane.xlu0 %3410
  %v3412 = vrcp.pop %v3390
  %v3413 = vrcp.pop %v3393
  %v3414 = vrcp.pop %v3396
  %v3415 = vrcp.pop %v3399
  %v3416 = vrcp.pop %v3402
  %v3417 = vrcp.pop %v3405
  %v3418 = vrcp.pop %v3408
  %v3419 = vrcp.pop %v3411
  %v3420 = vmul.f32 %v3373, %v3412
  %v3421 = vmul.f32 %v3375, %v3413
  %v3422 = vmul.f32 %v3377, %v3414
  %v3423 = vmul.f32 %v3379, %v3415
  %v3424 = vmul.f32 %v3381, %v3416
  %v3425 = vmul.f32 %v3383, %v3417
  %v3426 = vmul.f32 %v3385, %v3418
  %v3427 = vmul.f32 %v3387, %v3419
  %v3428 = vpack.c.bf16 %v3420, %v3420
  %v3429 = vpack.c.bf16 %v3421, %v3421
  %v3430 = vpack.c.bf16 %v3422, %v3422
  %v3431 = vpack.c.bf16 %v3423, %v3423
  %v3432 = vpack.c.bf16 %v3424, %v3424
  %v3433 = vpack.c.bf16 %v3425, %v3425
  %v3434 = vpack.c.bf16 %v3426, %v3426
  %v3435 = vpack.c.bf16 %v3427, %v3427
  %3436 = vrot.lane.b32.xlu0 %v2932, 64
  %v3437 = vpop.permute.xlu0 %3436
  %v3439 = vsel %vm430, %v3428, 0
  %v3442 = vsel %vm937, %v3437, 0
  %3444 = vmatprep.subr.bf16.mxu0 0
  %3445 = vmatpush1.bf16.msra.mxu0 %v3442
  %3446 = vmatprep.subr.bf16.mxu0 0
  %3447 = vmatpush1.bf16.msra.mxu0 0
  %3448 = vmatprep.subr.bf16.mxu0 0
  %3449 = vmatpush1.bf16.msra.mxu0 0
  %3450 = vmatprep.subr.bf16.mxu0 0
  %3451 = vmatpush1.bf16.msra.mxu0 0
  %3452 = vmatprep.subr.bf16.mxu0 0
  %3453 = vmatpush1.bf16.msra.mxu0 0
  %3454 = vmatprep.subr.bf16.mxu0 0
  %3455 = vmatpush1.bf16.msra.mxu0 0
  %3456 = vmatprep.subr.bf16.mxu0 0
  %3457 = vmatpush1.bf16.msra.mxu0 0
  %3458 = vmatprep.subr.bf16.mxu0 0
  %3459 = vmatpush1.bf16.msra.mxu0 0
  %3460 = vmatprep.subr.bf16.mxu0 0
  %3461 = vmatpush1.bf16.msra.mxu0 0
  %3462 = vmatprep.subr.bf16.mxu0 0
  %3463 = vmatpush1.bf16.msra.mxu0 0
  %3464 = vmatprep.subr.bf16.mxu0 0
  %3465 = vmatpush1.bf16.msra.mxu0 0
  %3466 = vmatprep.subr.bf16.mxu0 0
  %3467 = vmatpush1.bf16.msra.mxu0 0
  %3468 = vmatprep.subr.bf16.mxu0 0
  %3469 = vmatpush1.bf16.msra.mxu0 0
  %3470 = vmatprep.subr.bf16.mxu0 0
  %3471 = vmatpush1.bf16.msra.mxu0 0
  %3472 = vmatprep.subr.bf16.mxu0 0
  %3473 = vmatpush1.bf16.msra.mxu0 0
  %3474 = vmatprep.subr.bf16.mxu0 0
  %3475 = vmatpush1.bf16.msra.mxu0 0
  %3476 = vmatprep.mubr.bf16.mxu0 0
  %3477 = vmatmul.mubr.bf16.gmra.mrb[0].mxu0 %v3439
  %v3478 = vpop.f32.mrb[0].mxu0
  %v3479 = vadd.f32 0.0, %v3478
  %v3480 = vpop.f32.mrb[0].mxu0
  %v3481 = vpop.f32.mrb[0].mxu0
  %v3482 = vpop.f32.mrb[0].mxu0
  %3483 = vdwg.mxu0
  %3484 = vrot.lane.b32.xlu0 %v2933, 64
  %v3485 = vpop.permute.xlu0 %3484
  %v3487 = vsel %vm430, %v3429, 0
  %v3490 = vsel %vm937, %v3485, 0
  %3492 = vmatprep.subr.bf16.mxu0 0
  %3493 = vmatpush1.bf16.msra.mxu0 %v3490
  %3494 = vmatprep.subr.bf16.mxu0 0
  %3495 = vmatpush1.bf16.msra.mxu0 0
  %3496 = vmatprep.subr.bf16.mxu0 0
  %3497 = vmatpush1.bf16.msra.mxu0 0
  %3498 = vmatprep.subr.bf16.mxu0 0
  %3499 = vmatpush1.bf16.msra.mxu0 0
  %3500 = vmatprep.subr.bf16.mxu0 0
  %3501 = vmatpush1.bf16.msra.mxu0 0
  %3502 = vmatprep.subr.bf16.mxu0 0
  %3503 = vmatpush1.bf16.msra.mxu0 0
  %3504 = vmatprep.subr.bf16.mxu0 0
  %3505 = vmatpush1.bf16.msra.mxu0 0
  %3506 = vmatprep.subr.bf16.mxu0 0
  %3507 = vmatpush1.bf16.msra.mxu0 0
  %3508 = vmatprep.subr.bf16.mxu0 0
  %3509 = vmatpush1.bf16.msra.mxu0 0
  %3510 = vmatprep.subr.bf16.mxu0 0
  %3511 = vmatpush1.bf16.msra.mxu0 0
  %3512 = vmatprep.subr.bf16.mxu0 0
  %3513 = vmatpush1.bf16.msra.mxu0 0
  %3514 = vmatprep.subr.bf16.mxu0 0
  %3515 = vmatpush1.bf16.msra.mxu0 0
  %3516 = vmatprep.subr.bf16.mxu0 0
  %3517 = vmatpush1.bf16.msra.mxu0 0
  %3518 = vmatprep.subr.bf16.mxu0 0
  %3519 = vmatpush1.bf16.msra.mxu0 0
  %3520 = vmatprep.subr.bf16.mxu0 0
  %3521 = vmatpush1.bf16.msra.mxu0 0
  %3522 = vmatprep.subr.bf16.mxu0 0
  %3523 = vmatpush1.bf16.msra.mxu0 0
  %3524 = vmatprep.mubr.bf16.mxu0 0
  %3525 = vmatmul.mubr.bf16.gmra.mrb[0].mxu0 %v3487
  %v3526 = vpop.f32.mrb[0].mxu0
  %v3527 = vadd.f32 0.0, %v3526
  %v3528 = vpop.f32.mrb[0].mxu0
  %v3529 = vpop.f32.mrb[0].mxu0
  %v3530 = vpop.f32.mrb[0].mxu0
  %3531 = vdwg.mxu0
  %3532 = vrot.lane.b32.xlu0 %v2934, 64
  %v3533 = vpop.permute.xlu0 %3532
  %v3535 = vsel %vm430, %v3430, 0
  %v3538 = vsel %vm937, %v3533, 0
  %3540 = vmatprep.subr.bf16.mxu0 0
  %3541 = vmatpush1.bf16.msra.mxu0 %v3538
  %3542 = vmatprep.subr.bf16.mxu0 0
  %3543 = vmatpush1.bf16.msra.mxu0 0
  %3544 = vmatprep.subr.bf16.mxu0 0
  %3545 = vmatpush1.bf16.msra.mxu0 0
  %3546 = vmatprep.subr.bf16.mxu0 0
  %3547 = vmatpush1.bf16.msra.mxu0 0
  %3548 = vmatprep.subr.bf16.mxu0 0
  %3549 = vmatpush1.bf16.msra.mxu0 0
  %3550 = vmatprep.subr.bf16.mxu0 0
  %3551 = vmatpush1.bf16.msra.mxu0 0
  %3552 = vmatprep.subr.bf16.mxu0 0
  %3553 = vmatpush1.bf16.msra.mxu0 0
  %3554 = vmatprep.subr.bf16.mxu0 0
  %3555 = vmatpush1.bf16.msra.mxu0 0
  %3556 = vmatprep.subr.bf16.mxu0 0
  %3557 = vmatpush1.bf16.msra.mxu0 0
  %3558 = vmatprep.subr.bf16.mxu0 0
  %3559 = vmatpush1.bf16.msra.mxu0 0
  %3560 = vmatprep.subr.bf16.mxu0 0
  %3561 = vmatpush1.bf16.msra.mxu0 0
  %3562 = vmatprep.subr.bf16.mxu0 0
  %3563 = vmatpush1.bf16.msra.mxu0 0
  %3564 = vmatprep.subr.bf16.mxu0 0
  %3565 = vmatpush1.bf16.msra.mxu0 0
  %3566 = vmatprep.subr.bf16.mxu0 0
  %3567 = vmatpush1.bf16.msra.mxu0 0
  %3568 = vmatprep.subr.bf16.mxu0 0
  %3569 = vmatpush1.bf16.msra.mxu0 0
  %3570 = vmatprep.subr.bf16.mxu0 0
  %3571 = vmatpush1.bf16.msra.mxu0 0
  %3572 = vmatprep.mubr.bf16.mxu0 0
  %3573 = vmatmul.mubr.bf16.gmra.mrb[0].mxu0 %v3535
  %v3574 = vpop.f32.mrb[0].mxu0
  %v3575 = vadd.f32 0.0, %v3574
  %v3576 = vpop.f32.mrb[0].mxu0
  %v3577 = vpop.f32.mrb[0].mxu0
  %v3578 = vpop.f32.mrb[0].mxu0
  %3579 = vdwg.mxu0
  %3580 = vrot.lane.b32.xlu0 %v2935, 64
  %v3581 = vpop.permute.xlu0 %3580
  %v3583 = vsel %vm430, %v3431, 0
  %v3586 = vsel %vm937, %v3581, 0
  %3588 = vmatprep.subr.bf16.mxu0 0
  %3589 = vmatpush1.bf16.msra.mxu0 %v3586
  %3590 = vmatprep.subr.bf16.mxu0 0
  %3591 = vmatpush1.bf16.msra.mxu0 0
  %3592 = vmatprep.subr.bf16.mxu0 0
  %3593 = vmatpush1.bf16.msra.mxu0 0
  %3594 = vmatprep.subr.bf16.mxu0 0
  %3595 = vmatpush1.bf16.msra.mxu0 0
  %3596 = vmatprep.subr.bf16.mxu0 0
  %3597 = vmatpush1.bf16.msra.mxu0 0
  %3598 = vmatprep.subr.bf16.mxu0 0
  %3599 = vmatpush1.bf16.msra.mxu0 0
  %3600 = vmatprep.subr.bf16.mxu0 0
  %3601 = vmatpush1.bf16.msra.mxu0 0
  %3602 = vmatprep.subr.bf16.mxu0 0
  %3603 = vmatpush1.bf16.msra.mxu0 0
  %3604 = vmatprep.subr.bf16.mxu0 0
  %3605 = vmatpush1.bf16.msra.mxu0 0
  %3606 = vmatprep.subr.bf16.mxu0 0
  %3607 = vmatpush1.bf16.msra.mxu0 0
  %3608 = vmatprep.subr.bf16.mxu0 0
  %3609 = vmatpush1.bf16.msra.mxu0 0
  %3610 = vmatprep.subr.bf16.mxu0 0
  %3611 = vmatpush1.bf16.msra.mxu0 0
  %3612 = vmatprep.subr.bf16.mxu0 0
  %3613 = vmatpush1.bf16.msra.mxu0 0
  %3614 = vmatprep.subr.bf16.mxu0 0
  %3615 = vmatpush1.bf16.msra.mxu0 0
  %3616 = vmatprep.subr.bf16.mxu0 0
  %3617 = vmatpush1.bf16.msra.mxu0 0
  %3618 = vmatprep.subr.bf16.mxu0 0
  %3619 = vmatpush1.bf16.msra.mxu0 0
  %3620 = vmatprep.mubr.bf16.mxu0 0
  %3621 = vmatmul.mubr.bf16.gmra.mrb[0].mxu0 %v3583
  %v3622 = vpop.f32.mrb[0].mxu0
  %v3623 = vadd.f32 0.0, %v3622
  %v3624 = vpop.f32.mrb[0].mxu0
  %v3625 = vpop.f32.mrb[0].mxu0
  %v3626 = vpop.f32.mrb[0].mxu0
  %3627 = vdwg.mxu0
  %3628 = vrot.lane.b32.xlu0 %v2936, 64
  %v3629 = vpop.permute.xlu0 %3628
  %v3631 = vsel %vm430, %v3432, 0
  %v3634 = vsel %vm937, %v3629, 0
  %3636 = vmatprep.subr.bf16.mxu0 0
  %3637 = vmatpush1.bf16.msra.mxu0 %v3634
  %3638 = vmatprep.subr.bf16.mxu0 0
  %3639 = vmatpush1.bf16.msra.mxu0 0
  %3640 = vmatprep.subr.bf16.mxu0 0
  %3641 = vmatpush1.bf16.msra.mxu0 0
  %3642 = vmatprep.subr.bf16.mxu0 0
  %3643 = vmatpush1.bf16.msra.mxu0 0
  %3644 = vmatprep.subr.bf16.mxu0 0
  %3645 = vmatpush1.bf16.msra.mxu0 0
  %3646 = vmatprep.subr.bf16.mxu0 0
  %3647 = vmatpush1.bf16.msra.mxu0 0
  %3648 = vmatprep.subr.bf16.mxu0 0
  %3649 = vmatpush1.bf16.msra.mxu0 0
  %3650 = vmatprep.subr.bf16.mxu0 0
  %3651 = vmatpush1.bf16.msra.mxu0 0
  %3652 = vmatprep.subr.bf16.mxu0 0
  %3653 = vmatpush1.bf16.msra.mxu0 0
  %3654 = vmatprep.subr.bf16.mxu0 0
  %3655 = vmatpush1.bf16.msra.mxu0 0
  %3656 = vmatprep.subr.bf16.mxu0 0
  %3657 = vmatpush1.bf16.msra.mxu0 0
  %3658 = vmatprep.subr.bf16.mxu0 0
  %3659 = vmatpush1.bf16.msra.mxu0 0
  %3660 = vmatprep.subr.bf16.mxu0 0
  %3661 = vmatpush1.bf16.msra.mxu0 0
  %3662 = vmatprep.subr.bf16.mxu0 0
  %3663 = vmatpush1.bf16.msra.mxu0 0
  %3664 = vmatprep.subr.bf16.mxu0 0
  %3665 = vmatpush1.bf16.msra.mxu0 0
  %3666 = vmatprep.subr.bf16.mxu0 0
  %3667 = vmatpush1.bf16.msra.mxu0 0
  %3668 = vmatprep.mubr.bf16.mxu0 0
  %3669 = vmatmul.mubr.bf16.gmra.mrb[0].mxu0 %v3631
  %v3670 = vpop.f32.mrb[0].mxu0
  %v3671 = vadd.f32 0.0, %v3670
  %v3672 = vpop.f32.mrb[0].mxu0
  %v3673 = vpop.f32.mrb[0].mxu0
  %v3674 = vpop.f32.mrb[0].mxu0
  %3675 = vdwg.mxu0
  %3676 = vrot.lane.b32.xlu0 %v2937, 64
  %v3677 = vpop.permute.xlu0 %3676
  %v3679 = vsel %vm430, %v3433, 0
  %v3682 = vsel %vm937, %v3677, 0
  %3684 = vmatprep.subr.bf16.mxu0 0
  %3685 = vmatpush1.bf16.msra.mxu0 %v3682
  %3686 = vmatprep.subr.bf16.mxu0 0
  %3687 = vmatpush1.bf16.msra.mxu0 0
  %3688 = vmatprep.subr.bf16.mxu0 0
  %3689 = vmatpush1.bf16.msra.mxu0 0
  %3690 = vmatprep.subr.bf16.mxu0 0
  %3691 = vmatpush1.bf16.msra.mxu0 0
  %3692 = vmatprep.subr.bf16.mxu0 0
  %3693 = vmatpush1.bf16.msra.mxu0 0
  %3694 = vmatprep.subr.bf16.mxu0 0
  %3695 = vmatpush1.bf16.msra.mxu0 0
  %3696 = vmatprep.subr.bf16.mxu0 0
  %3697 = vmatpush1.bf16.msra.mxu0 0
  %3698 = vmatprep.subr.bf16.mxu0 0
  %3699 = vmatpush1.bf16.msra.mxu0 0
  %3700 = vmatprep.subr.bf16.mxu0 0
  %3701 = vmatpush1.bf16.msra.mxu0 0
  %3702 = vmatprep.subr.bf16.mxu0 0
  %3703 = vmatpush1.bf16.msra.mxu0 0
  %3704 = vmatprep.subr.bf16.mxu0 0
  %3705 = vmatpush1.bf16.msra.mxu0 0
  %3706 = vmatprep.subr.bf16.mxu0 0
  %3707 = vmatpush1.bf16.msra.mxu0 0
  %3708 = vmatprep.subr.bf16.mxu0 0
  %3709 = vmatpush1.bf16.msra.mxu0 0
  %3710 = vmatprep.subr.bf16.mxu0 0
  %3711 = vmatpush1.bf16.msra.mxu0 0
  %3712 = vmatprep.subr.bf16.mxu0 0
  %3713 = vmatpush1.bf16.msra.mxu0 0
  %3714 = vmatprep.subr.bf16.mxu0 0
  %3715 = vmatpush1.bf16.msra.mxu0 0
  %3716 = vmatprep.mubr.bf16.mxu0 0
  %3717 = vmatmul.mubr.bf16.gmra.mrb[0].mxu0 %v3679
  %v3718 = vpop.f32.mrb[0].mxu0
  %v3719 = vadd.f32 0.0, %v3718
  %v3720 = vpop.f32.mrb[0].mxu0
  %v3721 = vpop.f32.mrb[0].mxu0
  %v3722 = vpop.f32.mrb[0].mxu0
  %3723 = vdwg.mxu0
  %3724 = vrot.lane.b32.xlu0 %v2938, 64
  %v3725 = vpop.permute.xlu0 %3724
  %v3727 = vsel %vm430, %v3434, 0
  %v3730 = vsel %vm937, %v3725, 0
  %3732 = vmatprep.subr.bf16.mxu0 0
  %3733 = vmatpush1.bf16.msra.mxu0 %v3730
  %3734 = vmatprep.subr.bf16.mxu0 0
  %3735 = vmatpush1.bf16.msra.mxu0 0
  %3736 = vmatprep.subr.bf16.mxu0 0
  %3737 = vmatpush1.bf16.msra.mxu0 0
  %3738 = vmatprep.subr.bf16.mxu0 0
  %3739 = vmatpush1.bf16.msra.mxu0 0
  %3740 = vmatprep.subr.bf16.mxu0 0
  %3741 = vmatpush1.bf16.msra.mxu0 0
  %3742 = vmatprep.subr.bf16.mxu0 0
  %3743 = vmatpush1.bf16.msra.mxu0 0
  %3744 = vmatprep.subr.bf16.mxu0 0
  %3745 = vmatpush1.bf16.msra.mxu0 0
  %3746 = vmatprep.subr.bf16.mxu0 0
  %3747 = vmatpush1.bf16.msra.mxu0 0
  %3748 = vmatprep.subr.bf16.mxu0 0
  %3749 = vmatpush1.bf16.msra.mxu0 0
  %3750 = vmatprep.subr.bf16.mxu0 0
  %3751 = vmatpush1.bf16.msra.mxu0 0
  %3752 = vmatprep.subr.bf16.mxu0 0
  %3753 = vmatpush1.bf16.msra.mxu0 0
  %3754 = vmatprep.subr.bf16.mxu0 0
  %3755 = vmatpush1.bf16.msra.mxu0 0
  %3756 = vmatprep.subr.bf16.mxu0 0
  %3757 = vmatpush1.bf16.msra.mxu0 0
  %3758 = vmatprep.subr.bf16.mxu0 0
  %3759 = vmatpush1.bf16.msra.mxu0 0
  %3760 = vmatprep.subr.bf16.mxu0 0
  %3761 = vmatpush1.bf16.msra.mxu0 0
  %3762 = vmatprep.subr.bf16.mxu0 0
  %3763 = vmatpush1.bf16.msra.mxu0 0
  %3764 = vmatprep.mubr.bf16.mxu0 0
  %3765 = vmatmul.mubr.bf16.gmra.mrb[0].mxu0 %v3727
  %v3766 = vpop.f32.mrb[0].mxu0
  %v3767 = vadd.f32 0.0, %v3766
  %v3768 = vpop.f32.mrb[0].mxu0
  %v3769 = vpop.f32.mrb[0].mxu0
  %v3770 = vpop.f32.mrb[0].mxu0
  %3771 = vdwg.mxu0
  %3772 = vrot.lane.b32.xlu0 %v2939, 64
  %v3773 = vpop.permute.xlu0 %3772
  %v3775 = vsel %vm430, %v3435, 0
  %v3778 = vsel %vm937, %v3773, 0
  %3780 = vmatprep.subr.bf16.mxu0 0
  %3781 = vmatpush1.bf16.msra.mxu0 %v3778
  %3782 = vmatprep.subr.bf16.mxu0 0
  %3783 = vmatpush1.bf16.msra.mxu0 0
  %3784 = vmatprep.subr.bf16.mxu0 0
  %3785 = vmatpush1.bf16.msra.mxu0 0
  %3786 = vmatprep.subr.bf16.mxu0 0
  %3787 = vmatpush1.bf16.msra.mxu0 0
  %3788 = vmatprep.subr.bf16.mxu0 0
  %3789 = vmatpush1.bf16.msra.mxu0 0
  %3790 = vmatprep.subr.bf16.mxu0 0
  %3791 = vmatpush1.bf16.msra.mxu0 0
  %3792 = vmatprep.subr.bf16.mxu0 0
  %3793 = vmatpush1.bf16.msra.mxu0 0
  %3794 = vmatprep.subr.bf16.mxu0 0
  %3795 = vmatpush1.bf16.msra.mxu0 0
  %3796 = vmatprep.subr.bf16.mxu0 0
  %3797 = vmatpush1.bf16.msra.mxu0 0
  %3798 = vmatprep.subr.bf16.mxu0 0
  %3799 = vmatpush1.bf16.msra.mxu0 0
  %3800 = vmatprep.subr.bf16.mxu0 0
  %3801 = vmatpush1.bf16.msra.mxu0 0
  %3802 = vmatprep.subr.bf16.mxu0 0
  %3803 = vmatpush1.bf16.msra.mxu0 0
  %3804 = vmatprep.subr.bf16.mxu0 0
  %3805 = vmatpush1.bf16.msra.mxu0 0
  %3806 = vmatprep.subr.bf16.mxu0 0
  %3807 = vmatpush1.bf16.msra.mxu0 0
  %3808 = vmatprep.subr.bf16.mxu0 0
  %3809 = vmatpush1.bf16.msra.mxu0 0
  %3810 = vmatprep.subr.bf16.mxu0 0
  %3811 = vmatpush1.bf16.msra.mxu0 0
  %3812 = vmatprep.mubr.bf16.mxu0 0
  %3813 = vmatmul.mubr.bf16.gmra.mrb[0].mxu0 %v3775
  %v3814 = vpop.f32.mrb[0].mxu0
  %v3815 = vadd.f32 0.0, %v3814
  %v3816 = vpop.f32.mrb[0].mxu0
  %v3817 = vpop.f32.mrb[0].mxu0
  %v3818 = vpop.f32.mrb[0].mxu0
  %3819 = vdwg.mxu0
  %3821 = vrot.lane.b32.xlu0 %v3527, 8
  %v3822 = vpop.permute.xlu0 %3821
  %3825 = vrot.lane.b32.xlu0 %v3575, 16
  %v3826 = vpop.permute.xlu0 %3825
  %3829 = vrot.lane.b32.xlu0 %v3623, 24
  %v3830 = vpop.permute.xlu0 %3829
  %v3832 = vsel %vm430, %v3479, %v3822
  %v3833 = vsel %vm104, %v3832, %v3826
  %v3834 = vsel %vm1331, %v3833, %v3830
  %3836 = vrot.lane.b32.xlu0 %v3719, 8
  %v3837 = vpop.permute.xlu0 %3836
  %3840 = vrot.lane.b32.xlu0 %v3767, 16
  %v3841 = vpop.permute.xlu0 %3840
  %3844 = vrot.lane.b32.xlu0 %v3815, 24
  %v3845 = vpop.permute.xlu0 %3844
  %v3847 = vsel %vm430, %v3671, %v3837
  %v3848 = vsel %vm104, %v3847, %v3841
  %v3849 = vsel %vm1331, %v3848, %v3845
  %s3850 = scalar_lea.vmem %s10, 16
  %v3851 = vld [vmem:[%s3850] sm:$0xf]
  %v3852 = vld [vmem:[%s3850 + $0x4] sm:$0xf]
  %v3853 = vld [vmem:[%s3850 + $0x8] sm:$0xf]
  %v3854 = vld [vmem:[%s3850 + $0xc] sm:$0xf]
  %v3855 = vpack.c.bf16 %v3849, %v3834
  %v3860 = vunpack.c.l.b16 %v3851
  %v3861 = vunpack.c.l.b16 %v3852
  %v3862 = vunpack.c.l.b16 %v3853
  %v3863 = vunpack.c.l.b16 %v3854
  %v3864 = vpack.c.b16 %v3861, %v3860
  %v3865 = vpack.c.b16 %v3863, %v3862
  %v3869 = vsel %vm170, %v3855, 0
  %3871 = vmatprep.subr.bf16.mxu0 0
  %3872 = vmatpush1.bf16.msra.mxu0 %v3864
  %3873 = vmatprep.subr.bf16.mxu0 0
  %3874 = vmatpush1.bf16.msra.mxu0 %v3865
  %3875 = vmatprep.subr.bf16.mxu0 0
  %3876 = vmatpush1.bf16.msra.mxu0 0
  %3877 = vmatprep.subr.bf16.mxu0 0
  %3878 = vmatpush1.bf16.msra.mxu0 0
  %3879 = vmatprep.subr.bf16.mxu0 0
  %3880 = vmatpush1.bf16.msra.mxu0 0
  %3881 = vmatprep.subr.bf16.mxu0 0
  %3882 = vmatpush1.bf16.msra.mxu0 0
  %3883 = vmatprep.subr.bf16.mxu0 0
  %3884 = vmatpush1.bf16.msra.mxu0 0
  %3885 = vmatprep.subr.bf16.mxu0 0
  %3886 = vmatpush1.bf16.msra.mxu0 0
  %3887 = vmatprep.subr.bf16.mxu0 0
  %3888 = vmatpush1.bf16.msra.mxu0 0
  %3889 = vmatprep.subr.bf16.mxu0 0
  %3890 = vmatpush1.bf16.msra.mxu0 0
  %3891 = vmatprep.subr.bf16.mxu0 0
  %3892 = vmatpush1.bf16.msra.mxu0 0
  %3893 = vmatprep.subr.bf16.mxu0 0
  %3894 = vmatpush1.bf16.msra.mxu0 0
  %3895 = vmatprep.subr.bf16.mxu0 0
  %3896 = vmatpush1.bf16.msra.mxu0 0
  %3897 = vmatprep.subr.bf16.mxu0 0
  %3898 = vmatpush1.bf16.msra.mxu0 0
  %3899 = vmatprep.subr.bf16.mxu0 0
  %3900 = vmatpush1.bf16.msra.mxu0 0
  %3901 = vmatprep.subr.bf16.mxu0 0
  %3902 = vmatpush1.bf16.msra.mxu0 0
  %3903 = vmatprep.mubr.bf16.mxu0 0
  %3904 = vmatmul.mubr.bf16.gmra.mrb[0].mxu0 %v3869
  %v3905 = vpop.f32.mrb[0].mxu0
  %v3906 = vadd.f32 0.0, %v3905
  %v3907 = vpop.f32.mrb[0].mxu0
  %v3908 = vpop.f32.mrb[0].mxu0
  %v3909 = vadd.f32 0.0, %v3908
  %v3910 = vpop.f32.mrb[0].mxu0
  %3911 = vdwg.mxu0
  %v3912 = vadd.f32 %v2788, %v3906
  %v3913 = vadd.f32 %v2789, %v3909
  %s3914 = scalar_lea.vmem %s11, 1
  %v3915 = vld [vmem:[%s3914] sm:$0x1]
  %s3916 = scalar_lea.vmem %s12, 1
  %v3917 = vld [vmem:[%s3916] sm:$0x1]
  %v3918 = vsel %vm170, %v3912, 0.0
  %3919 = vadd.xlane.f32.xlu0 %v3918
  %v3920 = vpop.xlane.xlu0 %3919
  %v3921 = vsel %vm170, %v3913, 0.0
  %3922 = vadd.xlane.f32.xlu0 %v3921
  %v3923 = vpop.xlane.xlu0 %3922
  %v3924 = vmul.f32 %v3920, %v286
  %v3925 = vmul.f32 %v3923, %v286
  %v3926 = vsub.f32 %v3912, %v3924
  %v3927 = vsub.f32 %v3913, %v3925
  %v3928 = vmul.f32 %v3926, %v3926
  %v3929 = vmul.f32 %v3927, %v3927
  %v3930 = vsel %vm170, %v3928, 0.0
  %3931 = vadd.xlane.f32.xlu0 %v3930
  %v3932 = vpop.xlane.xlu0 %3931
  %v3933 = vsel %vm170, %v3929, 0.0
  %3934 = vadd.xlane.f32.xlu0 %v3933
  %v3935 = vpop.xlane.xlu0 %3934
  %v3936 = vmul.f32 %v3932, %v299
  %v3937 = vmul.f32 %v3935, %v299
  %v3938 = vrsqrt.pop %v3936
  %v3939 = vmul.f32 %v3936, %v3938
  %vm3940 = vcmp.eq.f32.partialorder %v3936, inf
  %v3941 = vsel %vm3940, %v3936, %v3939
  %vm3942 = vcmp.eq.f32.partialorder %v3936, 0.0
  %v3943 = vand.u32 %v3936, 2147483648
  %v3944 = vsel %vm3942, %v3943, %v3941
  %v3945 = vrsqrt.pop %v3937
  %v3946 = vmul.f32 %v3937, %v3945
  %vm3947 = vcmp.eq.f32.partialorder %v3937, inf
  %v3948 = vsel %vm3947, %v3937, %v3946
  %vm3949 = vcmp.eq.f32.partialorder %v3937, 0.0
  %v3950 = vand.u32 %v3937, 2147483648
  %v3951 = vsel %vm3949, %v3950, %v3948
  %v3952 = vadd.f32 %v3944, 1e-06
  %v3953 = vadd.f32 %v3951, 1e-06
  %v3954 = vrcp.pop %v3952
  %v3955 = vmul.f32 %v3926, %v3954
  %v3956 = vrcp.pop %v3953
  %v3957 = vmul.f32 %v3927, %v3956
  %v3959 = vlaneseq
  %v3960 = vshrl.u32 %v3959, 7
  %v3961 = vsub.s32 0, %v3960
  %v3962 = vrot.slane %v3915, %v3961
  %v3964 = vmul.f32 %v3962, %v3955
  %v3965 = vmul.f32 %v3962, %v3957
  %v3967 = vlaneseq
  %v3968 = vshrl.u32 %v3967, 7
  %v3969 = vsub.s32 0, %v3968
  %v3970 = vrot.slane %v3917, %v3969
  %v3972 = vadd.f32 %v3964, %v3970
  %v3973 = vadd.f32 %v3965, %v3970
  %s3974 = scalar_lea.vmem %s13, 16
  %v3975 = vld [vmem:[%s3974] sm:$0xf]
  %v3976 = vld [vmem:[%s3974 + $0x4] sm:$0xf]
  %v3977 = vld [vmem:[%s3974 + $0x8] sm:$0xf]
  %v3978 = vld [vmem:[%s3974 + $0xc] sm:$0xf]
  %v3979 = vpack.c.bf16 %v3973, %v3972
  %v3984 = vunpack.c.l.b16 %v3975
  %v3985 = vunpack.c.l.b16 %v3976
  %v3986 = vunpack.c.l.b16 %v3977
  %v3987 = vunpack.c.l.b16 %v3978
  %v3988 = vpack.c.b16 %v3985, %v3984
  %v3989 = vpack.c.b16 %v3987, %v3986
  %v3993 = vsel %vm170, %v3979, 0
  %3995 = vmatprep.subr.bf16.mxu0 0
  %3996 = vmatpush1.bf16.msra.mxu0 %v3988
  %3997 = vmatprep.subr.bf16.mxu0 0
  %3998 = vmatpush1.bf16.msra.mxu0 %v3989
  %3999 = vmatprep.subr.bf16.mxu0 0
  %4000 = vmatpush1.bf16.msra.mxu0 0
  %4001 = vmatprep.subr.bf16.mxu0 0
  %4002 = vmatpush1.bf16.msra.mxu0 0
  %4003 = vmatprep.subr.bf16.mxu0 0
  %4004 = vmatpush1.bf16.msra.mxu0 0
  %4005 = vmatprep.subr.bf16.mxu0 0
  %4006 = vmatpush1.bf16.msra.mxu0 0
  %4007 = vmatprep.subr.bf16.mxu0 0
  %4008 = vmatpush1.bf16.msra.mxu0 0
  %4009 = vmatprep.subr.bf16.mxu0 0
  %4010 = vmatpush1.bf16.msra.mxu0 0
  %4011 = vmatprep.subr.bf16.mxu0 0
  %4012 = vmatpush1.bf16.msra.mxu0 0
  %4013 = vmatprep.subr.bf16.mxu0 0
  %4014 = vmatpush1.bf16.msra.mxu0 0
  %4015 = vmatprep.subr.bf16.mxu0 0
  %4016 = vmatpush1.bf16.msra.mxu0 0
  %4017 = vmatprep.subr.bf16.mxu0 0
  %4018 = vmatpush1.bf16.msra.mxu0 0
  %4019 = vmatprep.subr.bf16.mxu0 0
  %4020 = vmatpush1.bf16.msra.mxu0 0
  %4021 = vmatprep.subr.bf16.mxu0 0
  %4022 = vmatpush1.bf16.msra.mxu0 0
  %4023 = vmatprep.subr.bf16.mxu0 0
  %4024 = vmatpush1.bf16.msra.mxu0 0
  %4025 = vmatprep.subr.bf16.mxu0 0
  %4026 = vmatpush1.bf16.msra.mxu0 0
  %4027 = vmatprep.mubr.bf16.mxu0 0
  %4028 = vmatmul.mubr.bf16.gmra.mrb[0].mxu0 %v3993
  %v4029 = vpop.f32.mrb[0].mxu0
  %v4030 = vadd.f32 0.0, %v4029
  %v4031 = vpop.f32.mrb[0].mxu0
  %v4032 = vpop.f32.mrb[0].mxu0
  %v4033 = vadd.f32 0.0, %v4032
  %v4034 = vpop.f32.mrb[0].mxu0
  %4035 = vdwg.mxu0
  %4037 = vrot.lane.b32.xlu0 %v4030, 120
  %v4038 = vpop.permute.xlu0 %4037
  %4040 = vrot.lane.b32.xlu0 %v4030, 112
  %v4041 = vpop.permute.xlu0 %4040
  %4043 = vrot.lane.b32.xlu0 %v4030, 104
  %v4044 = vpop.permute.xlu0 %4043
  %4047 = vrot.lane.b32.xlu0 %v4033, 120
  %v4048 = vpop.permute.xlu0 %4047
  %4050 = vrot.lane.b32.xlu0 %v4033, 112
  %v4051 = vpop.permute.xlu0 %4050
  %4053 = vrot.lane.b32.xlu0 %v4033, 104
  %v4054 = vpop.permute.xlu0 %4053
  %v4056 = vpack.c.bf16 %v4030, %v4030
  %v4057 = vpack.c.bf16 %v4038, %v4038
  %v4058 = vpack.c.bf16 %v4041, %v4041
  %v4059 = vpack.c.bf16 %v4044, %v4044
  %v4060 = vpack.c.bf16 %v4033, %v4033
  %v4061 = vpack.c.bf16 %v4048, %v4048
  %v4062 = vpack.c.bf16 %v4051, %v4051
  %v4063 = vpack.c.bf16 %v4054, %v4054
  %4064 = vrot.lane.b32.xlu0 %v270, 64
  %v4065 = vpop.permute.xlu0 %4064
  %v4067 = vsel %vm430, %v4056, 0
  %v4070 = vsel %vm430, %v4065, 0
  %4072 = vmatprep.subr.bf16.mxu0 0
  %4073 = vmatpush1.bf16.xpose.msra.mxu0 %v4070
  %4074 = vmatprep.subr.bf16.mxu0 0
  %4075 = vmatpush1.bf16.xpose.msra.mxu0 0
  %4076 = vmatprep.subr.bf16.mxu0 0
  %4077 = vmatpush1.bf16.xpose.msra.mxu0 0
  %4078 = vmatprep.subr.bf16.mxu0 0
  %4079 = vmatpush1.bf16.xpose.msra.mxu0 0
  %4080 = vmatprep.subr.bf16.mxu0 0
  %4081 = vmatpush1.bf16.xpose.msra.mxu0 0
  %4082 = vmatprep.subr.bf16.mxu0 0
  %4083 = vmatpush1.bf16.xpose.msra.mxu0 0
  %4084 = vmatprep.subr.bf16.mxu0 0
  %4085 = vmatpush1.bf16.xpose.msra.mxu0 0
  %4086 = vmatprep.subr.bf16.mxu0 0
  %4087 = vmatpush1.bf16.xpose.msra.mxu0 0
  %4088 = vmatprep.subr.bf16.mxu0 0
  %4089 = vmatpush1.bf16.xpose.msra.mxu0 0
  %4090 = vmatprep.subr.bf16.mxu0 0
  %4091 = vmatpush1.bf16.xpose.msra.mxu0 0
  %4092 = vmatprep.subr.bf16.mxu0 0
  %4093 = vmatpush1.bf16.xpose.msra.mxu0 0
  %4094 = vmatprep.subr.bf16.mxu0 0
  %4095 = vmatpush1.bf16.xpose.msra.mxu0 0
  %4096 = vmatprep.subr.bf16.mxu0 0
  %4097 = vmatpush1.bf16.xpose.msra.mxu0 0
  %4098 = vmatprep.subr.bf16.mxu0 0
  %4099 = vmatpush1.bf16.xpose.msra.mxu0 0
  %4100 = vmatprep.subr.bf16.mxu0 0
  %4101 = vmatpush1.bf16.xpose.msra.mxu0 0
  %4102 = vmatprep.subr.bf16.mxu0 0
  %4103 = vmatpush1.bf16.xpose.msra.mxu0 0
  %4104 = vmatprep.mubr.bf16.mxu0 0
  %4105 = vmatmul.mubr.bf16.gmra.mrb[0].mxu0 %v4067
  %v4106 = vpop.f32.mrb[0].mxu0
  %v4107 = vadd.f32 0.0, %v4106
  %v4108 = vpop.f32.mrb[0].mxu0
  %v4109 = vpop.f32.mrb[0].mxu0
  %v4110 = vpop.f32.mrb[0].mxu0
  %4111 = vdwg.mxu0
  %4112 = vrot.lane.b32.xlu0 %v271, 64
  %v4113 = vpop.permute.xlu0 %4112
  %v4115 = vsel %vm430, %v4057, 0
  %v4118 = vsel %vm430, %v4113, 0
  %4120 = vmatprep.subr.bf16.mxu0 0
  %4121 = vmatpush1.bf16.xpose.msra.mxu0 %v4118
  %4122 = vmatprep.subr.bf16.mxu0 0
  %4123 = vmatpush1.bf16.xpose.msra.mxu0 0
  %4124 = vmatprep.subr.bf16.mxu0 0
  %4125 = vmatpush1.bf16.xpose.msra.mxu0 0
  %4126 = vmatprep.subr.bf16.mxu0 0
  %4127 = vmatpush1.bf16.xpose.msra.mxu0 0
  %4128 = vmatprep.subr.bf16.mxu0 0
  %4129 = vmatpush1.bf16.xpose.msra.mxu0 0
  %4130 = vmatprep.subr.bf16.mxu0 0
  %4131 = vmatpush1.bf16.xpose.msra.mxu0 0
  %4132 = vmatprep.subr.bf16.mxu0 0
  %4133 = vmatpush1.bf16.xpose.msra.mxu0 0
  %4134 = vmatprep.subr.bf16.mxu0 0
  %4135 = vmatpush1.bf16.xpose.msra.mxu0 0
  %4136 = vmatprep.subr.bf16.mxu0 0
  %4137 = vmatpush1.bf16.xpose.msra.mxu0 0
  %4138 = vmatprep.subr.bf16.mxu0 0
  %4139 = vmatpush1.bf16.xpose.msra.mxu0 0
  %4140 = vmatprep.subr.bf16.mxu0 0
  %4141 = vmatpush1.bf16.xpose.msra.mxu0 0
  %4142 = vmatprep.subr.bf16.mxu0 0
  %4143 = vmatpush1.bf16.xpose.msra.mxu0 0
  %4144 = vmatprep.subr.bf16.mxu0 0
  %4145 = vmatpush1.bf16.xpose.msra.mxu0 0
  %4146 = vmatprep.subr.bf16.mxu0 0
  %4147 = vmatpush1.bf16.xpose.msra.mxu0 0
  %4148 = vmatprep.subr.bf16.mxu0 0
  %4149 = vmatpush1.bf16.xpose.msra.mxu0 0
  %4150 = vmatprep.subr.bf16.mxu0 0
  %4151 = vmatpush1.bf16.xpose.msra.mxu0 0
  %4152 = vmatprep.mubr.bf16.mxu0 0
  %4153 = vmatmul.mubr.bf16.gmra.mrb[0].mxu0 %v4115
  %v4154 = vpop.f32.mrb[0].mxu0
  %v4155 = vadd.f32 0.0, %v4154
  %v4156 = vpop.f32.mrb[0].mxu0
  %v4157 = vpop.f32.mrb[0].mxu0
  %v4158 = vpop.f32.mrb[0].mxu0
  %4159 = vdwg.mxu0
  %4160 = vrot.lane.b32.xlu0 %v272, 64
  %v4161 = vpop.permute.xlu0 %4160
  %v4163 = vsel %vm430, %v4058, 0
  %v4166 = vsel %vm430, %v4161, 0
  %4168 = vmatprep.subr.bf16.mxu0 0
  %4169 = vmatpush1.bf16.xpose.msra.mxu0 %v4166
  %4170 = vmatprep.subr.bf16.mxu0 0
  %4171 = vmatpush1.bf16.xpose.msra.mxu0 0
  %4172 = vmatprep.subr.bf16.mxu0 0
  %4173 = vmatpush1.bf16.xpose.msra.mxu0 0
  %4174 = vmatprep.subr.bf16.mxu0 0
  %4175 = vmatpush1.bf16.xpose.msra.mxu0 0
  %4176 = vmatprep.subr.bf16.mxu0 0
  %4177 = vmatpush1.bf16.xpose.msra.mxu0 0
  %4178 = vmatprep.subr.bf16.mxu0 0
  %4179 = vmatpush1.bf16.xpose.msra.mxu0 0
  %4180 = vmatprep.subr.bf16.mxu0 0
  %4181 = vmatpush1.bf16.xpose.msra.mxu0 0
  %4182 = vmatprep.subr.bf16.mxu0 0
  %4183 = vmatpush1.bf16.xpose.msra.mxu0 0
  %4184 = vmatprep.subr.bf16.mxu0 0
  %4185 = vmatpush1.bf16.xpose.msra.mxu0 0
  %4186 = vmatprep.subr.bf16.mxu0 0
  %4187 = vmatpush1.bf16.xpose.msra.mxu0 0
  %4188 = vmatprep.subr.bf16.mxu0 0
  %4189 = vmatpush1.bf16.xpose.msra.mxu0 0
  %4190 = vmatprep.subr.bf16.mxu0 0
  %4191 = vmatpush1.bf16.xpose.msra.mxu0 0
  %4192 = vmatprep.subr.bf16.mxu0 0
  %4193 = vmatpush1.bf16.xpose.msra.mxu0 0
  %4194 = vmatprep.subr.bf16.mxu0 0
  %4195 = vmatpush1.bf16.xpose.msra.mxu0 0
  %4196 = vmatprep.subr.bf16.mxu0 0
  %4197 = vmatpush1.bf16.xpose.msra.mxu0 0
  %4198 = vmatprep.subr.bf16.mxu0 0
  %4199 = vmatpush1.bf16.xpose.msra.mxu0 0
  %4200 = vmatprep.mubr.bf16.mxu0 0
  %4201 = vmatmul.mubr.bf16.gmra.mrb[0].mxu0 %v4163
  %v4202 = vpop.f32.mrb[0].mxu0
  %v4203 = vadd.f32 0.0, %v4202
  %v4204 = vpop.f32.mrb[0].mxu0
  %v4205 = vpop.f32.mrb[0].mxu0
  %v4206 = vpop.f32.mrb[0].mxu0
  %4207 = vdwg.mxu0
  %4208 = vrot.lane.b32.xlu0 %v273, 64
  %v4209 = vpop.permute.xlu0 %4208
  %v4211 = vsel %vm430, %v4059, 0
  %v4214 = vsel %vm430, %v4209, 0
  %4216 = vmatprep.subr.bf16.mxu0 0
  %4217 = vmatpush1.bf16.xpose.msra.mxu0 %v4214
  %4218 = vmatprep.subr.bf16.mxu0 0
  %4219 = vmatpush1.bf16.xpose.msra.mxu0 0
  %4220 = vmatprep.subr.bf16.mxu0 0
  %4221 = vmatpush1.bf16.xpose.msra.mxu0 0
  %4222 = vmatprep.subr.bf16.mxu0 0
  %4223 = vmatpush1.bf16.xpose.msra.mxu0 0
  %4224 = vmatprep.subr.bf16.mxu0 0
  %4225 = vmatpush1.bf16.xpose.msra.mxu0 0
  %4226 = vmatprep.subr.bf16.mxu0 0
  %4227 = vmatpush1.bf16.xpose.msra.mxu0 0
  %4228 = vmatprep.subr.bf16.mxu0 0
  %4229 = vmatpush1.bf16.xpose.msra.mxu0 0
  %4230 = vmatprep.subr.bf16.mxu0 0
  %4231 = vmatpush1.bf16.xpose.msra.mxu0 0
  %4232 = vmatprep.subr.bf16.mxu0 0
  %4233 = vmatpush1.bf16.xpose.msra.mxu0 0
  %4234 = vmatprep.subr.bf16.mxu0 0
  %4235 = vmatpush1.bf16.xpose.msra.mxu0 0
  %4236 = vmatprep.subr.bf16.mxu0 0
  %4237 = vmatpush1.bf16.xpose.msra.mxu0 0
  %4238 = vmatprep.subr.bf16.mxu0 0
  %4239 = vmatpush1.bf16.xpose.msra.mxu0 0
  %4240 = vmatprep.subr.bf16.mxu0 0
  %4241 = vmatpush1.bf16.xpose.msra.mxu0 0
  %4242 = vmatprep.subr.bf16.mxu0 0
  %4243 = vmatpush1.bf16.xpose.msra.mxu0 0
  %4244 = vmatprep.subr.bf16.mxu0 0
  %4245 = vmatpush1.bf16.xpose.msra.mxu0 0
  %4246 = vmatprep.subr.bf16.mxu0 0
  %4247 = vmatpush1.bf16.xpose.msra.mxu0 0
  %4248 = vmatprep.mubr.bf16.mxu0 0
  %4249 = vmatmul.mubr.bf16.gmra.mrb[0].mxu0 %v4211
  %v4250 = vpop.f32.mrb[0].mxu0
  %v4251 = vadd.f32 0.0, %v4250
  %v4252 = vpop.f32.mrb[0].mxu0
  %v4253 = vpop.f32.mrb[0].mxu0
  %v4254 = vpop.f32.mrb[0].mxu0
  %4255 = vdwg.mxu0
  %4256 = vrot.lane.b32.xlu0 %v274, 64
  %v4257 = vpop.permute.xlu0 %4256
  %v4259 = vsel %vm430, %v4060, 0
  %v4262 = vsel %vm430, %v4257, 0
  %4264 = vmatprep.subr.bf16.mxu0 0
  %4265 = vmatpush1.bf16.xpose.msra.mxu0 %v4262
  %4266 = vmatprep.subr.bf16.mxu0 0
  %4267 = vmatpush1.bf16.xpose.msra.mxu0 0
  %4268 = vmatprep.subr.bf16.mxu0 0
  %4269 = vmatpush1.bf16.xpose.msra.mxu0 0
  %4270 = vmatprep.subr.bf16.mxu0 0
  %4271 = vmatpush1.bf16.xpose.msra.mxu0 0
  %4272 = vmatprep.subr.bf16.mxu0 0
  %4273 = vmatpush1.bf16.xpose.msra.mxu0 0
  %4274 = vmatprep.subr.bf16.mxu0 0
  %4275 = vmatpush1.bf16.xpose.msra.mxu0 0
  %4276 = vmatprep.subr.bf16.mxu0 0
  %4277 = vmatpush1.bf16.xpose.msra.mxu0 0
  %4278 = vmatprep.subr.bf16.mxu0 0
  %4279 = vmatpush1.bf16.xpose.msra.mxu0 0
  %4280 = vmatprep.subr.bf16.mxu0 0
  %4281 = vmatpush1.bf16.xpose.msra.mxu0 0
  %4282 = vmatprep.subr.bf16.mxu0 0
  %4283 = vmatpush1.bf16.xpose.msra.mxu0 0
  %4284 = vmatprep.subr.bf16.mxu0 0
  %4285 = vmatpush1.bf16.xpose.msra.mxu0 0
  %4286 = vmatprep.subr.bf16.mxu0 0
  %4287 = vmatpush1.bf16.xpose.msra.mxu0 0
  %4288 = vmatprep.subr.bf16.mxu0 0
  %4289 = vmatpush1.bf16.xpose.msra.mxu0 0
  %4290 = vmatprep.subr.bf16.mxu0 0
  %4291 = vmatpush1.bf16.xpose.msra.mxu0 0
  %4292 = vmatprep.subr.bf16.mxu0 0
  %4293 = vmatpush1.bf16.xpose.msra.mxu0 0
  %4294 = vmatprep.subr.bf16.mxu0 0
  %4295 = vmatpush1.bf16.xpose.msra.mxu0 0
  %4296 = vmatprep.mubr.bf16.mxu0 0
  %4297 = vmatmul.mubr.bf16.gmra.mrb[0].mxu0 %v4259
  %v4298 = vpop.f32.mrb[0].mxu0
  %v4299 = vadd.f32 0.0, %v4298
  %v4300 = vpop.f32.mrb[0].mxu0
  %v4301 = vpop.f32.mrb[0].mxu0
  %v4302 = vpop.f32.mrb[0].mxu0
  %4303 = vdwg.mxu0
  %4304 = vrot.lane.b32.xlu0 %v275, 64
  %v4305 = vpop.permute.xlu0 %4304
  %v4307 = vsel %vm430, %v4061, 0
  %v4310 = vsel %vm430, %v4305, 0
  %4312 = vmatprep.subr.bf16.mxu0 0
  %4313 = vmatpush1.bf16.xpose.msra.mxu0 %v4310
  %4314 = vmatprep.subr.bf16.mxu0 0
  %4315 = vmatpush1.bf16.xpose.msra.mxu0 0
  %4316 = vmatprep.subr.bf16.mxu0 0
  %4317 = vmatpush1.bf16.xpose.msra.mxu0 0
  %4318 = vmatprep.subr.bf16.mxu0 0
  %4319 = vmatpush1.bf16.xpose.msra.mxu0 0
  %4320 = vmatprep.subr.bf16.mxu0 0
  %4321 = vmatpush1.bf16.xpose.msra.mxu0 0
  %4322 = vmatprep.subr.bf16.mxu0 0
  %4323 = vmatpush1.bf16.xpose.msra.mxu0 0
  %4324 = vmatprep.subr.bf16.mxu0 0
  %4325 = vmatpush1.bf16.xpose.msra.mxu0 0
  %4326 = vmatprep.subr.bf16.mxu0 0
  %4327 = vmatpush1.bf16.xpose.msra.mxu0 0
  %4328 = vmatprep.subr.bf16.mxu0 0
  %4329 = vmatpush1.bf16.xpose.msra.mxu0 0
  %4330 = vmatprep.subr.bf16.mxu0 0
  %4331 = vmatpush1.bf16.xpose.msra.mxu0 0
  %4332 = vmatprep.subr.bf16.mxu0 0
  %4333 = vmatpush1.bf16.xpose.msra.mxu0 0
  %4334 = vmatprep.subr.bf16.mxu0 0
  %4335 = vmatpush1.bf16.xpose.msra.mxu0 0
  %4336 = vmatprep.subr.bf16.mxu0 0
  %4337 = vmatpush1.bf16.xpose.msra.mxu0 0
  %4338 = vmatprep.subr.bf16.mxu0 0
  %4339 = vmatpush1.bf16.xpose.msra.mxu0 0
  %4340 = vmatprep.subr.bf16.mxu0 0
  %4341 = vmatpush1.bf16.xpose.msra.mxu0 0
  %4342 = vmatprep.subr.bf16.mxu0 0
  %4343 = vmatpush1.bf16.xpose.msra.mxu0 0
  %4344 = vmatprep.mubr.bf16.mxu0 0
  %4345 = vmatmul.mubr.bf16.gmra.mrb[0].mxu0 %v4307
  %v4346 = vpop.f32.mrb[0].mxu0
  %v4347 = vadd.f32 0.0, %v4346
  %v4348 = vpop.f32.mrb[0].mxu0
  %v4349 = vpop.f32.mrb[0].mxu0
  %v4350 = vpop.f32.mrb[0].mxu0
  %4351 = vdwg.mxu0
  %4352 = vrot.lane.b32.xlu0 %v276, 64
  %v4353 = vpop.permute.xlu0 %4352
  %v4355 = vsel %vm430, %v4062, 0
  %v4358 = vsel %vm430, %v4353, 0
  %4360 = vmatprep.subr.bf16.mxu0 0
  %4361 = vmatpush1.bf16.xpose.msra.mxu0 %v4358
  %4362 = vmatprep.subr.bf16.mxu0 0
  %4363 = vmatpush1.bf16.xpose.msra.mxu0 0
  %4364 = vmatprep.subr.bf16.mxu0 0
  %4365 = vmatpush1.bf16.xpose.msra.mxu0 0
  %4366 = vmatprep.subr.bf16.mxu0 0
  %4367 = vmatpush1.bf16.xpose.msra.mxu0 0
  %4368 = vmatprep.subr.bf16.mxu0 0
  %4369 = vmatpush1.bf16.xpose.msra.mxu0 0
  %4370 = vmatprep.subr.bf16.mxu0 0
  %4371 = vmatpush1.bf16.xpose.msra.mxu0 0
  %4372 = vmatprep.subr.bf16.mxu0 0
  %4373 = vmatpush1.bf16.xpose.msra.mxu0 0
  %4374 = vmatprep.subr.bf16.mxu0 0
  %4375 = vmatpush1.bf16.xpose.msra.mxu0 0
  %4376 = vmatprep.subr.bf16.mxu0 0
  %4377 = vmatpush1.bf16.xpose.msra.mxu0 0
  %4378 = vmatprep.subr.bf16.mxu0 0
  %4379 = vmatpush1.bf16.xpose.msra.mxu0 0
  %4380 = vmatprep.subr.bf16.mxu0 0
  %4381 = vmatpush1.bf16.xpose.msra.mxu0 0
  %4382 = vmatprep.subr.bf16.mxu0 0
  %4383 = vmatpush1.bf16.xpose.msra.mxu0 0
  %4384 = vmatprep.subr.bf16.mxu0 0
  %4385 = vmatpush1.bf16.xpose.msra.mxu0 0
  %4386 = vmatprep.subr.bf16.mxu0 0
  %4387 = vmatpush1.bf16.xpose.msra.mxu0 0
  %4388 = vmatprep.subr.bf16.mxu0 0
  %4389 = vmatpush1.bf16.xpose.msra.mxu0 0
  %4390 = vmatprep.subr.bf16.mxu0 0
  %4391 = vmatpush1.bf16.xpose.msra.mxu0 0
  %4392 = vmatprep.mubr.bf16.mxu0 0
  %4393 = vmatmul.mubr.bf16.gmra.mrb[0].mxu0 %v4355
  %v4394 = vpop.f32.mrb[0].mxu0
  %v4395 = vadd.f32 0.0, %v4394
  %v4396 = vpop.f32.mrb[0].mxu0
  %v4397 = vpop.f32.mrb[0].mxu0
  %v4398 = vpop.f32.mrb[0].mxu0
  %4399 = vdwg.mxu0
  %4400 = vrot.lane.b32.xlu0 %v277, 64
  %v4401 = vpop.permute.xlu0 %4400
  %v4403 = vsel %vm430, %v4063, 0
  %v4406 = vsel %vm430, %v4401, 0
  %4408 = vmatprep.subr.bf16.mxu0 0
  %4409 = vmatpush1.bf16.xpose.msra.mxu0 %v4406
  %4410 = vmatprep.subr.bf16.mxu0 0
  %4411 = vmatpush1.bf16.xpose.msra.mxu0 0
  %4412 = vmatprep.subr.bf16.mxu0 0
  %4413 = vmatpush1.bf16.xpose.msra.mxu0 0
  %4414 = vmatprep.subr.bf16.mxu0 0
  %4415 = vmatpush1.bf16.xpose.msra.mxu0 0
  %4416 = vmatprep.subr.bf16.mxu0 0
  %4417 = vmatpush1.bf16.xpose.msra.mxu0 0
  %4418 = vmatprep.subr.bf16.mxu0 0
  %4419 = vmatpush1.bf16.xpose.msra.mxu0 0
  %4420 = vmatprep.subr.bf16.mxu0 0
  %4421 = vmatpush1.bf16.xpose.msra.mxu0 0
  %4422 = vmatprep.subr.bf16.mxu0 0
  %4423 = vmatpush1.bf16.xpose.msra.mxu0 0
  %4424 = vmatprep.subr.bf16.mxu0 0
  %4425 = vmatpush1.bf16.xpose.msra.mxu0 0
  %4426 = vmatprep.subr.bf16.mxu0 0
  %4427 = vmatpush1.bf16.xpose.msra.mxu0 0
  %4428 = vmatprep.subr.bf16.mxu0 0
  %4429 = vmatpush1.bf16.xpose.msra.mxu0 0
  %4430 = vmatprep.subr.bf16.mxu0 0
  %4431 = vmatpush1.bf16.xpose.msra.mxu0 0
  %4432 = vmatprep.subr.bf16.mxu0 0
  %4433 = vmatpush1.bf16.xpose.msra.mxu0 0
  %4434 = vmatprep.subr.bf16.mxu0 0
  %4435 = vmatpush1.bf16.xpose.msra.mxu0 0
  %4436 = vmatprep.subr.bf16.mxu0 0
  %4437 = vmatpush1.bf16.xpose.msra.mxu0 0
  %4438 = vmatprep.subr.bf16.mxu0 0
  %4439 = vmatpush1.bf16.xpose.msra.mxu0 0
  %4440 = vmatprep.mubr.bf16.mxu0 0
  %4441 = vmatmul.mubr.bf16.gmra.mrb[0].mxu0 %v4403
  %v4442 = vpop.f32.mrb[0].mxu0
  %v4443 = vadd.f32 0.0, %v4442
  %v4444 = vpop.f32.mrb[0].mxu0
  %v4445 = vpop.f32.mrb[0].mxu0
  %v4446 = vpop.f32.mrb[0].mxu0
  %4447 = vdwg.mxu0
  %v4448 = vsel %vm1974, -1e+18, %v4107
  %v4449 = vsel %vm1975, -1e+18, %v4155
  %v4450 = vsel %vm1976, -1e+18, %v4203
  %v4451 = vsel %vm1977, -1e+18, %v4251
  %v4452 = vsel %vm1978, -1e+18, %v4299
  %v4453 = vsel %vm1979, -1e+18, %v4347
  %v4454 = vsel %vm1980, -1e+18, %v4395
  %v4455 = vsel %vm1981, -1e+18, %v4443
  %v4456 = vadd.f32 %v4448, %v4449
  %v4457 = vadd.f32 %v4456, %v4450
  %v4458 = vadd.f32 %v4457, %v4451
  %v4459 = vmul.f32 %v4458, 0.25
  %v4460 = vadd.f32 %v4452, %v4453
  %v4461 = vadd.f32 %v4460, %v4454
  %v4462 = vadd.f32 %v4461, %v4455
  %v4463 = vmul.f32 %v4462, 0.25
  %v4464 = vsel %vm1990, %v4448, -inf
  %4465 = vmax.xlane.f32.xlu0 %v4464
  %v4466 = vpop.xlane.xlu0 %4465
  %v4467 = vsel %vm1990, %v4449, -inf
  %4468 = vmax.xlane.f32.xlu0 %v4467
  %v4469 = vpop.xlane.xlu0 %4468
  %v4470 = vsel %vm1990, %v4450, -inf
  %4471 = vmax.xlane.f32.xlu0 %v4470
  %v4472 = vpop.xlane.xlu0 %4471
  %v4473 = vsel %vm1990, %v4451, -inf
  %4474 = vmax.xlane.f32.xlu0 %v4473
  %v4475 = vpop.xlane.xlu0 %4474
  %v4476 = vsel %vm1990, %v4452, -inf
  %4477 = vmax.xlane.f32.xlu0 %v4476
  %v4478 = vpop.xlane.xlu0 %4477
  %v4479 = vsel %vm1990, %v4453, -inf
  %4480 = vmax.xlane.f32.xlu0 %v4479
  %v4481 = vpop.xlane.xlu0 %4480
  %v4482 = vsel %vm1990, %v4454, -inf
  %4483 = vmax.xlane.f32.xlu0 %v4482
  %v4484 = vpop.xlane.xlu0 %4483
  %v4485 = vsel %vm1990, %v4455, -inf
  %4486 = vmax.xlane.f32.xlu0 %v4485
  %v4487 = vpop.xlane.xlu0 %4486
  %v4488 = vsub.f32 %v4448, %v4466
  %v4489 = vsub.f32 %v4449, %v4469
  %v4490 = vsub.f32 %v4450, %v4472
  %v4491 = vsub.f32 %v4451, %v4475
  %v4492 = vsub.f32 %v4452, %v4478
  %v4493 = vsub.f32 %v4453, %v4481
  %v4494 = vsub.f32 %v4454, %v4484
  %v4495 = vsub.f32 %v4455, %v4487
  %v4496 = vmul.f32 %v4488, 1.442695
  %v4497 = vpow.pop %v4496
  %v4498 = vmul.f32 %v4489, 1.442695
  %v4499 = vpow.pop %v4498
  %v4500 = vmul.f32 %v4490, 1.442695
  %v4501 = vpow.pop %v4500
  %v4502 = vmul.f32 %v4491, 1.442695
  %v4503 = vpow.pop %v4502
  %v4504 = vmul.f32 %v4492, 1.442695
  %v4505 = vpow.pop %v4504
  %v4506 = vmul.f32 %v4493, 1.442695
  %v4507 = vpow.pop %v4506
  %v4508 = vmul.f32 %v4494, 1.442695
  %v4509 = vpow.pop %v4508
  %v4510 = vmul.f32 %v4495, 1.442695
  %v4511 = vpow.pop %v4510
  %v4512 = vsel %vm1990, %v4497, 0.0
  %4513 = vadd.xlane.f32.xlu0 %v4512
  %v4514 = vpop.xlane.xlu0 %4513
  %v4515 = vsel %vm1990, %v4499, 0.0
  %4516 = vadd.xlane.f32.xlu0 %v4515
  %v4517 = vpop.xlane.xlu0 %4516
  %v4518 = vsel %vm1990, %v4501, 0.0
  %4519 = vadd.xlane.f32.xlu0 %v4518
  %v4520 = vpop.xlane.xlu0 %4519
  %v4521 = vsel %vm1990, %v4503, 0.0
  %4522 = vadd.xlane.f32.xlu0 %v4521
  %v4523 = vpop.xlane.xlu0 %4522
  %v4524 = vsel %vm1990, %v4505, 0.0
  %4525 = vadd.xlane.f32.xlu0 %v4524
  %v4526 = vpop.xlane.xlu0 %4525
  %v4527 = vsel %vm1990, %v4507, 0.0
  %4528 = vadd.xlane.f32.xlu0 %v4527
  %v4529 = vpop.xlane.xlu0 %4528
  %v4530 = vsel %vm1990, %v4509, 0.0
  %4531 = vadd.xlane.f32.xlu0 %v4530
  %v4532 = vpop.xlane.xlu0 %4531
  %v4533 = vsel %vm1990, %v4511, 0.0
  %4534 = vadd.xlane.f32.xlu0 %v4533
  %v4535 = vpop.xlane.xlu0 %4534
  %v4536 = vrcp.pop %v4514
  %v4537 = vrcp.pop %v4517
  %v4538 = vrcp.pop %v4520
  %v4539 = vrcp.pop %v4523
  %v4540 = vrcp.pop %v4526
  %v4541 = vrcp.pop %v4529
  %v4542 = vrcp.pop %v4532
  %v4543 = vrcp.pop %v4535
  %v4544 = vmul.f32 %v4497, %v4536
  %v4545 = vmul.f32 %v4499, %v4537
  %v4546 = vmul.f32 %v4501, %v4538
  %v4547 = vmul.f32 %v4503, %v4539
  %v4548 = vmul.f32 %v4505, %v4540
  %v4549 = vmul.f32 %v4507, %v4541
  %v4550 = vmul.f32 %v4509, %v4542
  %v4551 = vmul.f32 %v4511, %v4543
  %v4552 = vpack.c.bf16 %v4544, %v4544
  %v4553 = vpack.c.bf16 %v4545, %v4545
  %v4554 = vpack.c.bf16 %v4546, %v4546
  %v4555 = vpack.c.bf16 %v4547, %v4547
  %v4556 = vpack.c.bf16 %v4548, %v4548
  %v4557 = vpack.c.bf16 %v4549, %v4549
  %v4558 = vpack.c.bf16 %v4550, %v4550
  %v4559 = vpack.c.bf16 %v4551, %v4551
  %4560 = vrot.lane.b32.xlu0 %v270, 32
  %v4561 = vpop.permute.xlu0 %4560
  %v4563 = vsel %vm1990, %v4552, 0
  %v4566 = vsel %vm2093, %v4561, 0
  %4568 = vmatprep.subr.bf16.mxu0 0
  %4569 = vmatpush1.bf16.msra.mxu0 %v4566
  %4570 = vmatprep.subr.bf16.mxu0 0
  %4571 = vmatpush1.bf16.msra.mxu0 0
  %4572 = vmatprep.subr.bf16.mxu0 0
  %4573 = vmatpush1.bf16.msra.mxu0 0
  %4574 = vmatprep.subr.bf16.mxu0 0
  %4575 = vmatpush1.bf16.msra.mxu0 0
  %4576 = vmatprep.subr.bf16.mxu0 0
  %4577 = vmatpush1.bf16.msra.mxu0 0
  %4578 = vmatprep.subr.bf16.mxu0 0
  %4579 = vmatpush1.bf16.msra.mxu0 0
  %4580 = vmatprep.subr.bf16.mxu0 0
  %4581 = vmatpush1.bf16.msra.mxu0 0
  %4582 = vmatprep.subr.bf16.mxu0 0
  %4583 = vmatpush1.bf16.msra.mxu0 0
  %4584 = vmatprep.subr.bf16.mxu0 0
  %4585 = vmatpush1.bf16.msra.mxu0 0
  %4586 = vmatprep.subr.bf16.mxu0 0
  %4587 = vmatpush1.bf16.msra.mxu0 0
  %4588 = vmatprep.subr.bf16.mxu0 0
  %4589 = vmatpush1.bf16.msra.mxu0 0
  %4590 = vmatprep.subr.bf16.mxu0 0
  %4591 = vmatpush1.bf16.msra.mxu0 0
  %4592 = vmatprep.subr.bf16.mxu0 0
  %4593 = vmatpush1.bf16.msra.mxu0 0
  %4594 = vmatprep.subr.bf16.mxu0 0
  %4595 = vmatpush1.bf16.msra.mxu0 0
  %4596 = vmatprep.subr.bf16.mxu0 0
  %4597 = vmatpush1.bf16.msra.mxu0 0
  %4598 = vmatprep.subr.bf16.mxu0 0
  %4599 = vmatpush1.bf16.msra.mxu0 0
  %4600 = vmatprep.mubr.bf16.mxu0 0
  %4601 = vmatmul.mubr.bf16.gmra.mrb[0].mxu0 %v4563
  %v4602 = vpop.f32.mrb[0].mxu0
  %v4603 = vadd.f32 0.0, %v4602
  %v4604 = vpop.f32.mrb[0].mxu0
  %v4605 = vpop.f32.mrb[0].mxu0
  %v4606 = vpop.f32.mrb[0].mxu0
  %4607 = vdwg.mxu0
  %4608 = vrot.lane.b32.xlu0 %v271, 32
  %v4609 = vpop.permute.xlu0 %4608
  %v4611 = vsel %vm1990, %v4553, 0
  %v4614 = vsel %vm2093, %v4609, 0
  %4616 = vmatprep.subr.bf16.mxu0 0
  %4617 = vmatpush1.bf16.msra.mxu0 %v4614
  %4618 = vmatprep.subr.bf16.mxu0 0
  %4619 = vmatpush1.bf16.msra.mxu0 0
  %4620 = vmatprep.subr.bf16.mxu0 0
  %4621 = vmatpush1.bf16.msra.mxu0 0
  %4622 = vmatprep.subr.bf16.mxu0 0
  %4623 = vmatpush1.bf16.msra.mxu0 0
  %4624 = vmatprep.subr.bf16.mxu0 0
  %4625 = vmatpush1.bf16.msra.mxu0 0
  %4626 = vmatprep.subr.bf16.mxu0 0
  %4627 = vmatpush1.bf16.msra.mxu0 0
  %4628 = vmatprep.subr.bf16.mxu0 0
  %4629 = vmatpush1.bf16.msra.mxu0 0
  %4630 = vmatprep.subr.bf16.mxu0 0
  %4631 = vmatpush1.bf16.msra.mxu0 0
  %4632 = vmatprep.subr.bf16.mxu0 0
  %4633 = vmatpush1.bf16.msra.mxu0 0
  %4634 = vmatprep.subr.bf16.mxu0 0
  %4635 = vmatpush1.bf16.msra.mxu0 0
  %4636 = vmatprep.subr.bf16.mxu0 0
  %4637 = vmatpush1.bf16.msra.mxu0 0
  %4638 = vmatprep.subr.bf16.mxu0 0
  %4639 = vmatpush1.bf16.msra.mxu0 0
  %4640 = vmatprep.subr.bf16.mxu0 0
  %4641 = vmatpush1.bf16.msra.mxu0 0
  %4642 = vmatprep.subr.bf16.mxu0 0
  %4643 = vmatpush1.bf16.msra.mxu0 0
  %4644 = vmatprep.subr.bf16.mxu0 0
  %4645 = vmatpush1.bf16.msra.mxu0 0
  %4646 = vmatprep.subr.bf16.mxu0 0
  %4647 = vmatpush1.bf16.msra.mxu0 0
  %4648 = vmatprep.mubr.bf16.mxu0 0
  %4649 = vmatmul.mubr.bf16.gmra.mrb[0].mxu0 %v4611
  %v4650 = vpop.f32.mrb[0].mxu0
  %v4651 = vadd.f32 0.0, %v4650
  %v4652 = vpop.f32.mrb[0].mxu0
  %v4653 = vpop.f32.mrb[0].mxu0
  %v4654 = vpop.f32.mrb[0].mxu0
  %4655 = vdwg.mxu0
  %4656 = vrot.lane.b32.xlu0 %v272, 32
  %v4657 = vpop.permute.xlu0 %4656
  %v4659 = vsel %vm1990, %v4554, 0
  %v4662 = vsel %vm2093, %v4657, 0
  %4664 = vmatprep.subr.bf16.mxu0 0
  %4665 = vmatpush1.bf16.msra.mxu0 %v4662
  %4666 = vmatprep.subr.bf16.mxu0 0
  %4667 = vmatpush1.bf16.msra.mxu0 0
  %4668 = vmatprep.subr.bf16.mxu0 0
  %4669 = vmatpush1.bf16.msra.mxu0 0
  %4670 = vmatprep.subr.bf16.mxu0 0
  %4671 = vmatpush1.bf16.msra.mxu0 0
  %4672 = vmatprep.subr.bf16.mxu0 0
  %4673 = vmatpush1.bf16.msra.mxu0 0
  %4674 = vmatprep.subr.bf16.mxu0 0
  %4675 = vmatpush1.bf16.msra.mxu0 0
  %4676 = vmatprep.subr.bf16.mxu0 0
  %4677 = vmatpush1.bf16.msra.mxu0 0
  %4678 = vmatprep.subr.bf16.mxu0 0
  %4679 = vmatpush1.bf16.msra.mxu0 0
  %4680 = vmatprep.subr.bf16.mxu0 0
  %4681 = vmatpush1.bf16.msra.mxu0 0
  %4682 = vmatprep.subr.bf16.mxu0 0
  %4683 = vmatpush1.bf16.msra.mxu0 0
  %4684 = vmatprep.subr.bf16.mxu0 0
  %4685 = vmatpush1.bf16.msra.mxu0 0
  %4686 = vmatprep.subr.bf16.mxu0 0
  %4687 = vmatpush1.bf16.msra.mxu0 0
  %4688 = vmatprep.subr.bf16.mxu0 0
  %4689 = vmatpush1.bf16.msra.mxu0 0
  %4690 = vmatprep.subr.bf16.mxu0 0
  %4691 = vmatpush1.bf16.msra.mxu0 0
  %4692 = vmatprep.subr.bf16.mxu0 0
  %4693 = vmatpush1.bf16.msra.mxu0 0
  %4694 = vmatprep.subr.bf16.mxu0 0
  %4695 = vmatpush1.bf16.msra.mxu0 0
  %4696 = vmatprep.mubr.bf16.mxu0 0
  %4697 = vmatmul.mubr.bf16.gmra.mrb[0].mxu0 %v4659
  %v4698 = vpop.f32.mrb[0].mxu0
  %v4699 = vadd.f32 0.0, %v4698
  %v4700 = vpop.f32.mrb[0].mxu0
  %v4701 = vpop.f32.mrb[0].mxu0
  %v4702 = vpop.f32.mrb[0].mxu0
  %4703 = vdwg.mxu0
  %4704 = vrot.lane.b32.xlu0 %v273, 32
  %v4705 = vpop.permute.xlu0 %4704
  %v4707 = vsel %vm1990, %v4555, 0
  %v4710 = vsel %vm2093, %v4705, 0
  %4712 = vmatprep.subr.bf16.mxu0 0
  %4713 = vmatpush1.bf16.msra.mxu0 %v4710
  %4714 = vmatprep.subr.bf16.mxu0 0
  %4715 = vmatpush1.bf16.msra.mxu0 0
  %4716 = vmatprep.subr.bf16.mxu0 0
  %4717 = vmatpush1.bf16.msra.mxu0 0
  %4718 = vmatprep.subr.bf16.mxu0 0
  %4719 = vmatpush1.bf16.msra.mxu0 0
  %4720 = vmatprep.subr.bf16.mxu0 0
  %4721 = vmatpush1.bf16.msra.mxu0 0
  %4722 = vmatprep.subr.bf16.mxu0 0
  %4723 = vmatpush1.bf16.msra.mxu0 0
  %4724 = vmatprep.subr.bf16.mxu0 0
  %4725 = vmatpush1.bf16.msra.mxu0 0
  %4726 = vmatprep.subr.bf16.mxu0 0
  %4727 = vmatpush1.bf16.msra.mxu0 0
  %4728 = vmatprep.subr.bf16.mxu0 0
  %4729 = vmatpush1.bf16.msra.mxu0 0
  %4730 = vmatprep.subr.bf16.mxu0 0
  %4731 = vmatpush1.bf16.msra.mxu0 0
  %4732 = vmatprep.subr.bf16.mxu0 0
  %4733 = vmatpush1.bf16.msra.mxu0 0
  %4734 = vmatprep.subr.bf16.mxu0 0
  %4735 = vmatpush1.bf16.msra.mxu0 0
  %4736 = vmatprep.subr.bf16.mxu0 0
  %4737 = vmatpush1.bf16.msra.mxu0 0
  %4738 = vmatprep.subr.bf16.mxu0 0
  %4739 = vmatpush1.bf16.msra.mxu0 0
  %4740 = vmatprep.subr.bf16.mxu0 0
  %4741 = vmatpush1.bf16.msra.mxu0 0
  %4742 = vmatprep.subr.bf16.mxu0 0
  %4743 = vmatpush1.bf16.msra.mxu0 0
  %4744 = vmatprep.mubr.bf16.mxu0 0
  %4745 = vmatmul.mubr.bf16.gmra.mrb[0].mxu0 %v4707
  %v4746 = vpop.f32.mrb[0].mxu0
  %v4747 = vadd.f32 0.0, %v4746
  %v4748 = vpop.f32.mrb[0].mxu0
  %v4749 = vpop.f32.mrb[0].mxu0
  %v4750 = vpop.f32.mrb[0].mxu0
  %4751 = vdwg.mxu0
  %4752 = vrot.lane.b32.xlu0 %v274, 32
  %v4753 = vpop.permute.xlu0 %4752
  %v4755 = vsel %vm1990, %v4556, 0
  %v4758 = vsel %vm2093, %v4753, 0
  %4760 = vmatprep.subr.bf16.mxu0 0
  %4761 = vmatpush1.bf16.msra.mxu0 %v4758
  %4762 = vmatprep.subr.bf16.mxu0 0
  %4763 = vmatpush1.bf16.msra.mxu0 0
  %4764 = vmatprep.subr.bf16.mxu0 0
  %4765 = vmatpush1.bf16.msra.mxu0 0
  %4766 = vmatprep.subr.bf16.mxu0 0
  %4767 = vmatpush1.bf16.msra.mxu0 0
  %4768 = vmatprep.subr.bf16.mxu0 0
  %4769 = vmatpush1.bf16.msra.mxu0 0
  %4770 = vmatprep.subr.bf16.mxu0 0
  %4771 = vmatpush1.bf16.msra.mxu0 0
  %4772 = vmatprep.subr.bf16.mxu0 0
  %4773 = vmatpush1.bf16.msra.mxu0 0
  %4774 = vmatprep.subr.bf16.mxu0 0
  %4775 = vmatpush1.bf16.msra.mxu0 0
  %4776 = vmatprep.subr.bf16.mxu0 0
  %4777 = vmatpush1.bf16.msra.mxu0 0
  %4778 = vmatprep.subr.bf16.mxu0 0
  %4779 = vmatpush1.bf16.msra.mxu0 0
  %4780 = vmatprep.subr.bf16.mxu0 0
  %4781 = vmatpush1.bf16.msra.mxu0 0
  %4782 = vmatprep.subr.bf16.mxu0 0
  %4783 = vmatpush1.bf16.msra.mxu0 0
  %4784 = vmatprep.subr.bf16.mxu0 0
  %4785 = vmatpush1.bf16.msra.mxu0 0
  %4786 = vmatprep.subr.bf16.mxu0 0
  %4787 = vmatpush1.bf16.msra.mxu0 0
  %4788 = vmatprep.subr.bf16.mxu0 0
  %4789 = vmatpush1.bf16.msra.mxu0 0
  %4790 = vmatprep.subr.bf16.mxu0 0
  %4791 = vmatpush1.bf16.msra.mxu0 0
  %4792 = vmatprep.mubr.bf16.mxu0 0
  %4793 = vmatmul.mubr.bf16.gmra.mrb[0].mxu0 %v4755
  %v4794 = vpop.f32.mrb[0].mxu0
  %v4795 = vadd.f32 0.0, %v4794
  %v4796 = vpop.f32.mrb[0].mxu0
  %v4797 = vpop.f32.mrb[0].mxu0
  %v4798 = vpop.f32.mrb[0].mxu0
  %4799 = vdwg.mxu0
  %4800 = vrot.lane.b32.xlu0 %v275, 32
  %v4801 = vpop.permute.xlu0 %4800
  %v4803 = vsel %vm1990, %v4557, 0
  %v4806 = vsel %vm2093, %v4801, 0
  %4808 = vmatprep.subr.bf16.mxu0 0
  %4809 = vmatpush1.bf16.msra.mxu0 %v4806
  %4810 = vmatprep.subr.bf16.mxu0 0
  %4811 = vmatpush1.bf16.msra.mxu0 0
  %4812 = vmatprep.subr.bf16.mxu0 0
  %4813 = vmatpush1.bf16.msra.mxu0 0
  %4814 = vmatprep.subr.bf16.mxu0 0
  %4815 = vmatpush1.bf16.msra.mxu0 0
  %4816 = vmatprep.subr.bf16.mxu0 0
  %4817 = vmatpush1.bf16.msra.mxu0 0
  %4818 = vmatprep.subr.bf16.mxu0 0
  %4819 = vmatpush1.bf16.msra.mxu0 0
  %4820 = vmatprep.subr.bf16.mxu0 0
  %4821 = vmatpush1.bf16.msra.mxu0 0
  %4822 = vmatprep.subr.bf16.mxu0 0
  %4823 = vmatpush1.bf16.msra.mxu0 0
  %4824 = vmatprep.subr.bf16.mxu0 0
  %4825 = vmatpush1.bf16.msra.mxu0 0
  %4826 = vmatprep.subr.bf16.mxu0 0
  %4827 = vmatpush1.bf16.msra.mxu0 0
  %4828 = vmatprep.subr.bf16.mxu0 0
  %4829 = vmatpush1.bf16.msra.mxu0 0
  %4830 = vmatprep.subr.bf16.mxu0 0
  %4831 = vmatpush1.bf16.msra.mxu0 0
  %4832 = vmatprep.subr.bf16.mxu0 0
  %4833 = vmatpush1.bf16.msra.mxu0 0
  %4834 = vmatprep.subr.bf16.mxu0 0
  %4835 = vmatpush1.bf16.msra.mxu0 0
  %4836 = vmatprep.subr.bf16.mxu0 0
  %4837 = vmatpush1.bf16.msra.mxu0 0
  %4838 = vmatprep.subr.bf16.mxu0 0
  %4839 = vmatpush1.bf16.msra.mxu0 0
  %4840 = vmatprep.mubr.bf16.mxu0 0
  %4841 = vmatmul.mubr.bf16.gmra.mrb[0].mxu0 %v4803
  %v4842 = vpop.f32.mrb[0].mxu0
  %v4843 = vadd.f32 0.0, %v4842
  %v4844 = vpop.f32.mrb[0].mxu0
  %v4845 = vpop.f32.mrb[0].mxu0
  %v4846 = vpop.f32.mrb[0].mxu0
  %4847 = vdwg.mxu0
  %4848 = vrot.lane.b32.xlu0 %v276, 32
  %v4849 = vpop.permute.xlu0 %4848
  %v4851 = vsel %vm1990, %v4558, 0
  %v4854 = vsel %vm2093, %v4849, 0
  %4856 = vmatprep.subr.bf16.mxu0 0
  %4857 = vmatpush1.bf16.msra.mxu0 %v4854
  %4858 = vmatprep.subr.bf16.mxu0 0
  %4859 = vmatpush1.bf16.msra.mxu0 0
  %4860 = vmatprep.subr.bf16.mxu0 0
  %4861 = vmatpush1.bf16.msra.mxu0 0
  %4862 = vmatprep.subr.bf16.mxu0 0
  %4863 = vmatpush1.bf16.msra.mxu0 0
  %4864 = vmatprep.subr.bf16.mxu0 0
  %4865 = vmatpush1.bf16.msra.mxu0 0
  %4866 = vmatprep.subr.bf16.mxu0 0
  %4867 = vmatpush1.bf16.msra.mxu0 0
  %4868 = vmatprep.subr.bf16.mxu0 0
  %4869 = vmatpush1.bf16.msra.mxu0 0
  %4870 = vmatprep.subr.bf16.mxu0 0
  %4871 = vmatpush1.bf16.msra.mxu0 0
  %4872 = vmatprep.subr.bf16.mxu0 0
  %4873 = vmatpush1.bf16.msra.mxu0 0
  %4874 = vmatprep.subr.bf16.mxu0 0
  %4875 = vmatpush1.bf16.msra.mxu0 0
  %4876 = vmatprep.subr.bf16.mxu0 0
  %4877 = vmatpush1.bf16.msra.mxu0 0
  %4878 = vmatprep.subr.bf16.mxu0 0
  %4879 = vmatpush1.bf16.msra.mxu0 0
  %4880 = vmatprep.subr.bf16.mxu0 0
  %4881 = vmatpush1.bf16.msra.mxu0 0
  %4882 = vmatprep.subr.bf16.mxu0 0
  %4883 = vmatpush1.bf16.msra.mxu0 0
  %4884 = vmatprep.subr.bf16.mxu0 0
  %4885 = vmatpush1.bf16.msra.mxu0 0
  %4886 = vmatprep.subr.bf16.mxu0 0
  %4887 = vmatpush1.bf16.msra.mxu0 0
  %4888 = vmatprep.mubr.bf16.mxu0 0
  %4889 = vmatmul.mubr.bf16.gmra.mrb[0].mxu0 %v4851
  %v4890 = vpop.f32.mrb[0].mxu0
  %v4891 = vadd.f32 0.0, %v4890
  %v4892 = vpop.f32.mrb[0].mxu0
  %v4893 = vpop.f32.mrb[0].mxu0
  %v4894 = vpop.f32.mrb[0].mxu0
  %4895 = vdwg.mxu0
  %4896 = vrot.lane.b32.xlu0 %v277, 32
  %v4897 = vpop.permute.xlu0 %4896
  %v4899 = vsel %vm1990, %v4559, 0
  %v4902 = vsel %vm2093, %v4897, 0
  %4904 = vmatprep.subr.bf16.mxu0 0
  %4905 = vmatpush1.bf16.msra.mxu0 %v4902
  %4906 = vmatprep.subr.bf16.mxu0 0
  %4907 = vmatpush1.bf16.msra.mxu0 0
  %4908 = vmatprep.subr.bf16.mxu0 0
  %4909 = vmatpush1.bf16.msra.mxu0 0
  %4910 = vmatprep.subr.bf16.mxu0 0
  %4911 = vmatpush1.bf16.msra.mxu0 0
  %4912 = vmatprep.subr.bf16.mxu0 0
  %4913 = vmatpush1.bf16.msra.mxu0 0
  %4914 = vmatprep.subr.bf16.mxu0 0
  %4915 = vmatpush1.bf16.msra.mxu0 0
  %4916 = vmatprep.subr.bf16.mxu0 0
  %4917 = vmatpush1.bf16.msra.mxu0 0
  %4918 = vmatprep.subr.bf16.mxu0 0
  %4919 = vmatpush1.bf16.msra.mxu0 0
  %4920 = vmatprep.subr.bf16.mxu0 0
  %4921 = vmatpush1.bf16.msra.mxu0 0
  %4922 = vmatprep.subr.bf16.mxu0 0
  %4923 = vmatpush1.bf16.msra.mxu0 0
  %4924 = vmatprep.subr.bf16.mxu0 0
  %4925 = vmatpush1.bf16.msra.mxu0 0
  %4926 = vmatprep.subr.bf16.mxu0 0
  %4927 = vmatpush1.bf16.msra.mxu0 0
  %4928 = vmatprep.subr.bf16.mxu0 0
  %4929 = vmatpush1.bf16.msra.mxu0 0
  %4930 = vmatprep.subr.bf16.mxu0 0
  %4931 = vmatpush1.bf16.msra.mxu0 0
  %4932 = vmatprep.subr.bf16.mxu0 0
  %4933 = vmatpush1.bf16.msra.mxu0 0
  %4934 = vmatprep.subr.bf16.mxu0 0
  %4935 = vmatpush1.bf16.msra.mxu0 0
  %4936 = vmatprep.mubr.bf16.mxu0 0
  %4937 = vmatmul.mubr.bf16.gmra.mrb[0].mxu0 %v4899
  %v4938 = vpop.f32.mrb[0].mxu0
  %v4939 = vadd.f32 0.0, %v4938
  %v4940 = vpop.f32.mrb[0].mxu0
  %v4941 = vpop.f32.mrb[0].mxu0
  %v4942 = vpop.f32.mrb[0].mxu0
  %4943 = vdwg.mxu0
  %4945 = vrot.lane.b32.xlu0 %v4651, 8
  %v4946 = vpop.permute.xlu0 %4945
  %4949 = vrot.lane.b32.xlu0 %v4699, 16
  %v4950 = vpop.permute.xlu0 %4949
  %4953 = vrot.lane.b32.xlu0 %v4747, 24
  %v4954 = vpop.permute.xlu0 %4953
  %v4956 = vsel %vm430, %v4603, %v4946
  %v4957 = vsel %vm104, %v4956, %v4950
  %v4958 = vsel %vm1331, %v4957, %v4954
  %4960 = vrot.lane.b32.xlu0 %v4843, 8
  %v4961 = vpop.permute.xlu0 %4960
  %4964 = vrot.lane.b32.xlu0 %v4891, 16
  %v4965 = vpop.permute.xlu0 %4964
  %4968 = vrot.lane.b32.xlu0 %v4939, 24
  %v4969 = vpop.permute.xlu0 %4968
  %v4971 = vsel %vm430, %v4795, %v4961
  %v4972 = vsel %vm104, %v4971, %v4965
  %v4973 = vsel %vm1331, %v4972, %v4969
  %s4974 = scalar_lea.vmem %s14, 16
  %v4975 = vld [vmem:[%s4974] sm:$0xf]
  %v4976 = vld [vmem:[%s4974 + $0x4] sm:$0xf]
  %v4977 = vld [vmem:[%s4974 + $0x8] sm:$0xf]
  %v4978 = vld [vmem:[%s4974 + $0xc] sm:$0xf]
  %v4979 = vpack.c.bf16 %v4973, %v4958
  %v4984 = vunpack.c.l.b16 %v4975
  %v4985 = vunpack.c.l.b16 %v4976
  %v4986 = vunpack.c.l.b16 %v4977
  %v4987 = vunpack.c.l.b16 %v4978
  %v4988 = vpack.c.b16 %v4985, %v4984
  %v4989 = vpack.c.b16 %v4987, %v4986
  %v4993 = vsel %vm170, %v4979, 0
  %4995 = vmatprep.subr.bf16.mxu0 0
  %4996 = vmatpush1.bf16.msra.mxu0 %v4988
  %4997 = vmatprep.subr.bf16.mxu0 0
  %4998 = vmatpush1.bf16.msra.mxu0 %v4989
  %4999 = vmatprep.subr.bf16.mxu0 0
  %5000 = vmatpush1.bf16.msra.mxu0 0
  %5001 = vmatprep.subr.bf16.mxu0 0
  %5002 = vmatpush1.bf16.msra.mxu0 0
  %5003 = vmatprep.subr.bf16.mxu0 0
  %5004 = vmatpush1.bf16.msra.mxu0 0
  %5005 = vmatprep.subr.bf16.mxu0 0
  %5006 = vmatpush1.bf16.msra.mxu0 0
  %5007 = vmatprep.subr.bf16.mxu0 0
  %5008 = vmatpush1.bf16.msra.mxu0 0
  %5009 = vmatprep.subr.bf16.mxu0 0
  %5010 = vmatpush1.bf16.msra.mxu0 0
  %5011 = vmatprep.subr.bf16.mxu0 0
  %5012 = vmatpush1.bf16.msra.mxu0 0
  %5013 = vmatprep.subr.bf16.mxu0 0
  %5014 = vmatpush1.bf16.msra.mxu0 0
  %5015 = vmatprep.subr.bf16.mxu0 0
  %5016 = vmatpush1.bf16.msra.mxu0 0
  %5017 = vmatprep.subr.bf16.mxu0 0
  %5018 = vmatpush1.bf16.msra.mxu0 0
  %5019 = vmatprep.subr.bf16.mxu0 0
  %5020 = vmatpush1.bf16.msra.mxu0 0
  %5021 = vmatprep.subr.bf16.mxu0 0
  %5022 = vmatpush1.bf16.msra.mxu0 0
  %5023 = vmatprep.subr.bf16.mxu0 0
  %5024 = vmatpush1.bf16.msra.mxu0 0
  %5025 = vmatprep.subr.bf16.mxu0 0
  %5026 = vmatpush1.bf16.msra.mxu0 0
  %5027 = vmatprep.mubr.bf16.mxu0 0
  %5028 = vmatmul.mubr.bf16.gmra.mrb[0].mxu0 %v4993
  %v5029 = vpop.f32.mrb[0].mxu0
  %v5030 = vadd.f32 0.0, %v5029
  %v5031 = vpop.f32.mrb[0].mxu0
  %v5032 = vpop.f32.mrb[0].mxu0
  %v5033 = vadd.f32 0.0, %v5032
  %v5034 = vpop.f32.mrb[0].mxu0
  %5035 = vdwg.mxu0
  %v5036 = vadd.f32 %v3912, %v5030
  %v5037 = vadd.f32 %v3913, %v5033
  %s5038 = scalar_lea.vmem %s15, 1
  %v5039 = vld [vmem:[%s5038] sm:$0x1]
  %s5040 = scalar_lea.vmem %s16, 1
  %v5041 = vld [vmem:[%s5040] sm:$0x1]
  %v5042 = vsel %vm170, %v5036, 0.0
  %5043 = vadd.xlane.f32.xlu0 %v5042
  %v5044 = vpop.xlane.xlu0 %5043
  %v5045 = vsel %vm170, %v5037, 0.0
  %5046 = vadd.xlane.f32.xlu0 %v5045
  %v5047 = vpop.xlane.xlu0 %5046
  %v5048 = vmul.f32 %v5044, %v286
  %v5049 = vmul.f32 %v5047, %v286
  %v5050 = vsub.f32 %v5036, %v5048
  %v5051 = vsub.f32 %v5037, %v5049
  %v5052 = vmul.f32 %v5050, %v5050
  %v5053 = vmul.f32 %v5051, %v5051
  %v5054 = vsel %vm170, %v5052, 0.0
  %5055 = vadd.xlane.f32.xlu0 %v5054
  %v5056 = vpop.xlane.xlu0 %5055
  %v5057 = vsel %vm170, %v5053, 0.0
  %5058 = vadd.xlane.f32.xlu0 %v5057
  %v5059 = vpop.xlane.xlu0 %5058
  %v5060 = vmul.f32 %v5056, %v299
  %v5061 = vmul.f32 %v5059, %v299
  %v5062 = vrsqrt.pop %v5060
  %v5063 = vmul.f32 %v5060, %v5062
  %vm5064 = vcmp.eq.f32.partialorder %v5060, inf
  %v5065 = vsel %vm5064, %v5060, %v5063
  %vm5066 = vcmp.eq.f32.partialorder %v5060, 0.0
  %v5067 = vand.u32 %v5060, 2147483648
  %v5068 = vsel %vm5066, %v5067, %v5065
  %v5069 = vrsqrt.pop %v5061
  %v5070 = vmul.f32 %v5061, %v5069
  %vm5071 = vcmp.eq.f32.partialorder %v5061, inf
  %v5072 = vsel %vm5071, %v5061, %v5070
  %vm5073 = vcmp.eq.f32.partialorder %v5061, 0.0
  %v5074 = vand.u32 %v5061, 2147483648
  %v5075 = vsel %vm5073, %v5074, %v5072
  %v5076 = vadd.f32 %v5068, 1e-06
  %v5077 = vadd.f32 %v5075, 1e-06
  %v5078 = vrcp.pop %v5076
  %v5079 = vmul.f32 %v5050, %v5078
  %v5080 = vrcp.pop %v5077
  %v5081 = vmul.f32 %v5051, %v5080
  %v5083 = vlaneseq
  %v5084 = vshrl.u32 %v5083, 7
  %v5085 = vsub.s32 0, %v5084
  %v5086 = vrot.slane %v5039, %v5085
  %v5088 = vmul.f32 %v5086, %v5079
  %v5089 = vmul.f32 %v5086, %v5081
  %v5091 = vlaneseq
  %v5092 = vshrl.u32 %v5091, 7
  %v5093 = vsub.s32 0, %v5092
  %v5094 = vrot.slane %v5041, %v5093
  %v5096 = vadd.f32 %v5088, %v5094
  %v5097 = vadd.f32 %v5089, %v5094
  %s5098 = scalar_lea.vmem %s17, 16
  %v5099 = vld [vmem:[%s5098] sm:$0xf]
  %v5100 = vld [vmem:[%s5098 + $0x4] sm:$0xf]
  %v5101 = vld [vmem:[%s5098 + $0x8] sm:$0xf]
  %v5102 = vld [vmem:[%s5098 + $0xc] sm:$0xf]
  %v5103 = vpack.c.bf16 %v5097, %v5096
  %s5104 = scalar_lea.vmem %s18, 1
  %v5105 = vld [vmem:[%s5104] sm:$0x1]
  %v5107 = vlaneseq
  %v5108 = vshrl.u32 %v5107, 7
  %v5109 = vsub.s32 0, %v5108
  %v5110 = vrot.slane %v5105, %v5109
  %v5116 = vunpack.c.l.b16 %v5099
  %v5117 = vunpack.c.l.b16 %v5100
  %v5118 = vunpack.c.l.b16 %v5101
  %v5119 = vunpack.c.l.b16 %v5102
  %v5120 = vpack.c.b16 %v5117, %v5116
  %v5121 = vpack.c.b16 %v5119, %v5118
  %v5125 = vsel %vm170, %v5103, 0
  %5127 = vmatprep.subr.bf16.mxu0 0
  %5128 = vmatpush1.bf16.msra.mxu0 %v5120
  %5129 = vmatprep.subr.bf16.mxu0 0
  %5130 = vmatpush1.bf16.msra.mxu0 %v5121
  %5131 = vmatprep.subr.bf16.mxu0 0
  %5132 = vmatpush1.bf16.msra.mxu0 0
  %5133 = vmatprep.subr.bf16.mxu0 0
  %5134 = vmatpush1.bf16.msra.mxu0 0
  %5135 = vmatprep.subr.bf16.mxu0 0
  %5136 = vmatpush1.bf16.msra.mxu0 0
  %5137 = vmatprep.subr.bf16.mxu0 0
  %5138 = vmatpush1.bf16.msra.mxu0 0
  %5139 = vmatprep.subr.bf16.mxu0 0
  %5140 = vmatpush1.bf16.msra.mxu0 0
  %5141 = vmatprep.subr.bf16.mxu0 0
  %5142 = vmatpush1.bf16.msra.mxu0 0
  %5143 = vmatprep.subr.bf16.mxu0 0
  %5144 = vmatpush1.bf16.msra.mxu0 0
  %5145 = vmatprep.subr.bf16.mxu0 0
  %5146 = vmatpush1.bf16.msra.mxu0 0
  %5147 = vmatprep.subr.bf16.mxu0 0
  %5148 = vmatpush1.bf16.msra.mxu0 0
  %5149 = vmatprep.subr.bf16.mxu0 0
  %5150 = vmatpush1.bf16.msra.mxu0 0
  %5151 = vmatprep.subr.bf16.mxu0 0
  %5152 = vmatpush1.bf16.msra.mxu0 0
  %5153 = vmatprep.subr.bf16.mxu0 0
  %5154 = vmatpush1.bf16.msra.mxu0 0
  %5155 = vmatprep.subr.bf16.mxu0 0
  %5156 = vmatpush1.bf16.msra.mxu0 0
  %5157 = vmatprep.subr.bf16.mxu0 0
  %5158 = vmatpush1.bf16.msra.mxu0 0
  %5159 = vmatprep.mubr.bf16.mxu0 0
  %5160 = vmatmul.mubr.bf16.gmra.mrb[0].mxu0 %v5125
  %v5161 = vpop.f32.mrb[0].mxu0
  %v5162 = vadd.f32 %v5110, %v5161
  %v5163 = vpop.f32.mrb[0].mxu0
  %v5164 = vpop.f32.mrb[0].mxu0
  %v5165 = vadd.f32 %v5110, %v5164
  %v5166 = vpop.f32.mrb[0].mxu0
  %5167 = vdwg.mxu0
  %v5168 = vmax.f32 %v5162, 0.0
  %v5169 = vmax.f32 %v5165, 0.0
  %s5170 = scalar_lea.vmem %s19, 32
  %v5171 = vld [vmem:[%s5170] sm:$0xf]
  %v5172 = vld [vmem:[%s5170 + $0x4] sm:$0xf]
  %v5173 = vld [vmem:[%s5170 + $0x8] sm:$0xf]
  %v5174 = vld [vmem:[%s5170 + $0xc] sm:$0xf]
  %v5175 = vld [vmem:[%s5170 + $0x10] sm:$0xf]
  %v5176 = vld [vmem:[%s5170 + $0x14] sm:$0xf]
  %v5177 = vld [vmem:[%s5170 + $0x18] sm:$0xf]
  %v5178 = vld [vmem:[%s5170 + $0x1c] sm:$0xf]
  %v5179 = vpack.c.bf16 %v5169, %v5168
  %v5188 = vunpack.c.l.b16 %v5171
  %v5189 = vunpack.c.l.b16 %v5172
  %v5190 = vunpack.c.l.b16 %v5173
  %v5191 = vunpack.c.l.b16 %v5174
  %v5192 = vunpack.c.l.b16 %v5175
  %v5193 = vunpack.c.l.b16 %v5176
  %v5194 = vunpack.c.l.b16 %v5177
  %v5195 = vunpack.c.l.b16 %v5178
  %v5196 = vpack.c.b16 %v5189, %v5188
  %v5197 = vpack.c.b16 %v5191, %v5190
  %v5198 = vpack.c.b16 %v5193, %v5192
  %v5199 = vpack.c.b16 %v5195, %v5194
  %v5205 = vsel %vm2734, %v5179, 0
  %5207 = vmatprep.subr.bf16.mxu0 0
  %5208 = vmatpush1.bf16.msra.mxu0 %v5196
  %5209 = vmatprep.subr.bf16.mxu0 0
  %5210 = vmatpush1.bf16.msra.mxu0 %v5197
  %5211 = vmatprep.subr.bf16.mxu0 0
  %5212 = vmatpush1.bf16.msra.mxu0 %v5198
  %5213 = vmatprep.subr.bf16.mxu0 0
  %5214 = vmatpush1.bf16.msra.mxu0 %v5199
  %5215 = vmatprep.subr.bf16.mxu0 0
  %5216 = vmatpush1.bf16.msra.mxu0 0
  %5217 = vmatprep.subr.bf16.mxu0 0
  %5218 = vmatpush1.bf16.msra.mxu0 0
  %5219 = vmatprep.subr.bf16.mxu0 0
  %5220 = vmatpush1.bf16.msra.mxu0 0
  %5221 = vmatprep.subr.bf16.mxu0 0
  %5222 = vmatpush1.bf16.msra.mxu0 0
  %5223 = vmatprep.subr.bf16.mxu0 0
  %5224 = vmatpush1.bf16.msra.mxu0 0
  %5225 = vmatprep.subr.bf16.mxu0 0
  %5226 = vmatpush1.bf16.msra.mxu0 0
  %5227 = vmatprep.subr.bf16.mxu0 0
  %5228 = vmatpush1.bf16.msra.mxu0 0
  %5229 = vmatprep.subr.bf16.mxu0 0
  %5230 = vmatpush1.bf16.msra.mxu0 0
  %5231 = vmatprep.subr.bf16.mxu0 0
  %5232 = vmatpush1.bf16.msra.mxu0 0
  %5233 = vmatprep.subr.bf16.mxu0 0
  %5234 = vmatpush1.bf16.msra.mxu0 0
  %5235 = vmatprep.subr.bf16.mxu0 0
  %5236 = vmatpush1.bf16.msra.mxu0 0
  %5237 = vmatprep.subr.bf16.mxu0 0
  %5238 = vmatpush1.bf16.msra.mxu0 0
  %5239 = vmatprep.mubr.bf16.mxu0 0
  %5240 = vmatmul.mubr.bf16.gmra.mrb[0].mxu0 %v5205
  %v5241 = vpop.f32.mrb[0].mxu0
  %v5242 = vadd.f32 0.0, %v5241
  %v5243 = vpop.f32.mrb[0].mxu0
  %v5244 = vpop.f32.mrb[0].mxu0
  %v5245 = vadd.f32 0.0, %v5244
  %v5246 = vpop.f32.mrb[0].mxu0
  %5247 = vdwg.mxu0
  %v5248 = vadd.f32 %v5036, %v5242
  %v5249 = vadd.f32 %v5037, %v5245
  %s5250 = scalar_lea.vmem %s20, 1
  %v5251 = vld [vmem:[%s5250] sm:$0x1]
  %v5253 = vlaneseq
  %v5254 = vshrl.u32 %v5253, 7
  %v5255 = vsub.s32 0, %v5254
  %v5256 = vrot.slane %v5251, %v5255
  %v5258 = vadd.f32 %v5248, %v5256
  %v5259 = vadd.f32 %v5249, %v5256
  %v5260 = vld [vmem:[%s21] sm:$0x1]
  %v5261 = vld [vmem:[%s22] sm:$0x1]
  %v5262 = vsel %vm170, %v5258, 0.0
  %5263 = vadd.xlane.f32.xlu0 %v5262
  %v5264 = vpop.xlane.xlu0 %5263
  %v5265 = vsel %vm170, %v5259, 0.0
  %5266 = vadd.xlane.f32.xlu0 %v5265
  %v5267 = vpop.xlane.xlu0 %5266
  %v5268 = vmul.f32 %v5264, %v286
  %v5269 = vmul.f32 %v5267, %v286
  %v5270 = vsub.f32 %v5258, %v5268
  %v5271 = vsub.f32 %v5259, %v5269
  %v5272 = vmul.f32 %v5270, %v5270
  %v5273 = vmul.f32 %v5271, %v5271
  %v5274 = vsel %vm170, %v5272, 0.0
  %5275 = vadd.xlane.f32.xlu0 %v5274
  %v5276 = vpop.xlane.xlu0 %5275
  %v5277 = vsel %vm170, %v5273, 0.0
  %5278 = vadd.xlane.f32.xlu0 %v5277
  %v5279 = vpop.xlane.xlu0 %5278
  %v5280 = vmul.f32 %v5276, %v299
  %v5281 = vmul.f32 %v5279, %v299
  %v5282 = vrsqrt.pop %v5280
  %v5283 = vmul.f32 %v5280, %v5282
  %vm5284 = vcmp.eq.f32.partialorder %v5280, inf
  %v5285 = vsel %vm5284, %v5280, %v5283
  %vm5286 = vcmp.eq.f32.partialorder %v5280, 0.0
  %v5287 = vand.u32 %v5280, 2147483648
  %v5288 = vsel %vm5286, %v5287, %v5285
  %v5289 = vrsqrt.pop %v5281
  %v5290 = vmul.f32 %v5281, %v5289
  %vm5291 = vcmp.eq.f32.partialorder %v5281, inf
  %v5292 = vsel %vm5291, %v5281, %v5290
  %vm5293 = vcmp.eq.f32.partialorder %v5281, 0.0
  %v5294 = vand.u32 %v5281, 2147483648
  %v5295 = vsel %vm5293, %v5294, %v5292
  %v5296 = vadd.f32 %v5288, 1e-06
  %v5297 = vadd.f32 %v5295, 1e-06
  %v5298 = vrcp.pop %v5296
  %v5299 = vmul.f32 %v5270, %v5298
  %v5300 = vrcp.pop %v5297
  %v5301 = vmul.f32 %v5271, %v5300
  %v5303 = vlaneseq
  %v5304 = vshrl.u32 %v5303, 7
  %v5305 = vsub.s32 0, %v5304
  %v5306 = vrot.slane %v5260, %v5305
  %v5308 = vmul.f32 %v5306, %v5299
  %v5309 = vmul.f32 %v5306, %v5301
  %v5311 = vlaneseq
  %v5312 = vshrl.u32 %v5311, 7
  %v5313 = vsub.s32 0, %v5312
  %v5314 = vrot.slane %v5261, %v5313
  %v5316 = vadd.f32 %v5308, %v5314
  %v5317 = vadd.f32 %v5309, %v5314
  %5320 = vrot.lane.b32.xlu0 %v4459, 32
  %v5321 = vpop.permute.xlu0 %5320
  %5322 = vrot.lane.b32.xlu0 %v4463, 32
  %v5323 = vpop.permute.xlu0 %5322
  %v5326 = vsel %vm170, %v5316, %v5321
  %v5327 = vsel %vm170, %v5317, %v5323
  %vm5328 = vcmask 343040
  %v5329 = vsel %vm5328, %v5326, 0.0
  %v5330 = vsel %vm5328, %v5327, 0.0
  %5331 = vst [vmem:[%s23] sm:$0xff] %v5329
  %5332 = vst [vmem:[%s23 + $0x8] sm:$0xff] %v5330
  // Predicated region
  $region94: #{decoder_forward.1} parent=0 // pred_check
    _
  $region95: #{decoder_forward.1} parent=0 // pred_check_branch
    %5334 = sbr.rel (0) target = $region97
  $region96: #{decoder_forward.1} parent=0 // pred_region
    _
  $region97: #{decoder_forward.1} parent=0 // pred_fallthru
    _
  // Predicated region
  $region98: #{decoder_forward.1} parent=0 // pred_check
    _
  $region99: #{decoder_forward.1} parent=0 // pred_check_branch
    %5336 = sbr.rel (0) target = $region101
  $region100: #{decoder_forward.1} parent=0 // pred_region
    _
  $region101: #{decoder_forward.1} parent=0 // pred_fallthru
    _

</llo_original>
